<compile_context>
chip_gen: v6e
topology: v6e:2x2x1
jax: 0.10.0
libtpu: 0.0.40
codegen_flags: <defaults>
</compile_context>

<pallas_src>
import jax
import jax.numpy as jnp
from jax import lax
from jax.experimental import pallas as pl
from jax.experimental.pallas import tpu as pltpu

LANE = 128


def _ceil_to(v, m):
    return ((v + m - 1) // m) * m


def _build_fused_kernel(*, K, K3, S, n_bn, shortcut, Wo, th, BH_main, HLx, HL1, T,
                        C1p, Cmp, Chp, C2p):
    """Fused stem-conv + C3 kernel for one (batch, row-tile) grid step."""
    pb = K3 // 2
    R_in = BH_main + 2 * HLx          # staged input rows (x space, incl. halo)
    R1 = th + 2 * HL1                 # rows of x1 carried through the C3 body
    L = R1 * Wo                       # flattened pixels carried through C3
    PADLEN = pb * Wo + pb             # flat zero-halo length for the K3xK3 im2col

    def _silu(v):
        return v * jax.nn.sigmoid(v)

    def _cbs(lhs_bf16, w_ref, s_ref, b_ref):
        # bf16 MXU matmul, f32 accumulate, f32 folded-BN + SiLU epilogue.
        acc = jnp.dot(lhs_bf16, w_ref[...], preferred_element_type=jnp.float32)
        return _silu(acc * s_ref[...] + b_ref[...])

    def kernel(*refs):
        (xm_ref, xt_ref, xb_ref, cidx_ref,
         w0_ref, s0_ref, b0_ref,
         w1_ref, s1_ref, b1_ref,
         w2_ref, s2_ref, b2_ref) = refs[:13]
        m_refs = refs[13:13 + 6 * n_bn]
        (w3a_ref, w3b_ref, s3_ref, b3_ref,
         out_ref, xs_ref, hp_ref) = refs[13 + 6 * n_bn:]

        t = pl.program_id(1)
        first_tile = t == 0
        last_tile = t == T - 1

        # ---- stage the row-halo'ed x tile into VMEM scratch. Halo blocks that lie
        # outside the image (first/last tile) are zeroed == the conv's 'same'
        # zero padding, so no HBM-side jnp.pad of activations is ever done.
        def _stage(src_ref, dst_off, nrows, zero_pred):
            v = src_ref[0]
            if zero_pred is not None:
                v = jnp.where(zero_pred, jnp.zeros_like(v), v)
            xs_ref[dst_off:dst_off + nrows, :, :] = v

        _stage(xt_ref, 0, HLx, first_tile)
        _stage(xm_ref, HLx, BH_main, None)
        _stage(xb_ref, HLx + BH_main, HLx, last_tile)

        # ---- stem KxK conv: im2col (K*K shifted windows concatenated on the lane
        # axis) + ONE MXU matmul against the (K*K*C1p, Cmp) pre-flattened weight.
        taps = []
        for dh in range(K):
            for dw in range(K):
                if S == 1:
                    taps.append(xs_ref[dh:dh + R1, dw:dw + Wo, :])
                else:
                    taps.append(xs_ref[pl.ds(dh, R1, S), pl.ds(dw, Wo, S), :])
        lhs0 = jnp.concatenate(taps, axis=-1).reshape(L, K * K * C1p)
        x1 = _cbs(lhs0, w0_ref, s0_ref, b0_ref).astype(jnp.bfloat16)    # (L, Cmp)

        # ---- C3.cv1 / C3.cv2 (1x1 convs == plain matmuls, x1 stays in VMEM) ----
        y1 = _cbs(x1, w1_ref, s1_ref, b1_ref).astype(jnp.bfloat16)      # (L, Chp)
        x1v = x1[HL1 * Wo:(HL1 + th) * Wo, :]                           # valid rows
        y2 = _cbs(x1v, w2_ref, s2_ref, b2_ref).astype(jnp.bfloat16)     # (th*Wo, Chp)

        col = cidx_ref[...]                                             # (L, 1) int32

        # zero the flat halo regions of the im2col scratch
        if PADLEN > 0:
            hp_ref[0:PADLEN, :] = jnp.zeros((PADLEN, Chp), jnp.bfloat16)
            hp_ref[PADLEN + L:PADLEN + L + PADLEN, :] = jnp.zeros(
                (PADLEN, Chp), jnp.bfloat16)

        # ---- n x Bottleneck (1x1 -> K3xK3 + residual), fully VMEM-resident ----
        for i in range(n_bn):
            wm1, sm1, bm1, wm2, sm2, bm2 = m_refs[6 * i:6 * (i + 1)]
            h = _cbs(y1, wm1, sm1, bm1).astype(jnp.bfloat16)            # (L, Chp)
            hp_ref[PADLEN:PADLEN + L, :] = h
            if HL1 > 0:
                # rows of h outside the image must be zero (conv 'same' padding)
                @pl.when(first_tile)
                def _():
                    hp_ref[PADLEN:PADLEN + HL1 * Wo, :] = jnp.zeros(
                        (HL1 * Wo, Chp), jnp.bfloat16)

                @pl.when(last_tile)
                def _():
                    hp_ref[PADLEN + L - HL1 * Wo:PADLEN + L, :] = jnp.zeros(
                        (HL1 * Wo, Chp), jnp.bfloat16)

            taps = []
            for dh in range(K3):
                for dw in range(K3):
                    tp = hp_ref[dh * Wo + dw:dh * Wo + dw + L, :]
                    if dw != pb:  # zero the columns that wrap across image rows
                        ok = (col >= (pb - dw)) & (col < (Wo + pb - dw))
                        tp = jnp.where(ok, tp, jnp.zeros_like(tp))
                    taps.append(tp)
            lhs = jnp.concatenate(taps, axis=-1)                        # (L, K3*K3*Chp)
            z = _cbs(lhs, wm2, sm2, bm2).astype(jnp.bfloat16)
            y1 = (y1 + z) if shortcut else z

        # ---- C3.cv3 on concat(y1, y2): split-weight matmuls (no concat, no HBM) --
        y1v = y1[HL1 * Wo:(HL1 + th) * Wo, :]
        acc = (jnp.dot(y1v, w3a_ref[...], preferred_element_type=jnp.float32)
               + jnp.dot(y2, w3b_ref[...], preferred_element_type=jnp.float32))
        out = _silu(acc * s3_ref[...] + b3_ref[...])
        out_ref[0] = out.reshape(th, Wo, C2p).astype(out_ref.dtype)

    return kernel


def conv_c3_block(params, x_nhwc, *, stride=1, shortcut=True):
    """Forward of ConvC3Block (== its default search variant ConvC3) as ONE
    fused Pallas call. x_nhwc: (N, H, W, C1)."""
    N, H, W, C1 = map(int, x_nhwc.shape)
    K = int(params["cv"]["w"].shape[0])
    Cm = int(params["cv"]["w"].shape[-1])
    Ch = int(params["cv1"]["w"].shape[-1])
    C2 = int(params["cv3"]["w"].shape[-1])
    n_bn = len(params["m"])
    K3 = int(params["m"][0][1]["w"].shape[0]) if n_bn else 3
    S = int(stride)
    assert K % 2 == 1 and K3 % 2 == 1, "only odd kernel sizes ('same' padding)"
    # TODO(synk): grouped conv (g > 1) not implemented; module default g=1 is used.

    p_stem, p_b = K // 2, K3 // 2
    Ho = (H + 2 * p_stem - K) // S + 1
    Wo = (W + 2 * p_stem - K) // S + 1

    # lane-dense channel layout: every channel dim padded to a multiple of 128
    C1p, Cmp, Chp, C2p = (_ceil_to(c, LANE) for c in (C1, Cm, Ch, C2))

    # ---- spatial row tiling (parallel grid axis; bounds VMEM & feeds both TCs) --
    HL1 = n_bn * p_b                  # x1-level halo rows the C3 body needs
    HLx = S * HL1 + p_stem            # x-level halo rows the fused kernel needs
    th, T = Ho, 1
    if S == 1:
        cap = max(HLx, min(64, max(Ho // 2, 1)))
        for d in range(1, Ho + 1):
            if Ho % d == 0 and d % HLx == 0 and d <= cap:
                th, T = d, Ho // d
    BH_main = th if S == 1 else H
    R_in = BH_main + 2 * HLx
    R1 = th + 2 * HL1
    L = R1 * Wo
    PADLEN = p_b * Wo + p_b
    Wxp = W + 2 * p_stem

    # ---- one-time wrapper-side input prep: bf16 cast + stem 'same' W-pad +
    # channel pad to the lane-dense layout (single pad for the whole fused call).
    x_p = jnp.pad(x_nhwc, ((0, 0), (0, 0), (p_stem, p_stem),
                           (0, C1p - C1))).astype(jnp.bfloat16)
    col_idx = (jnp.arange(L, dtype=jnp.int32) % Wo).reshape(L, 1)

    def _pack(w, sc, bi, cin_p, cout_p):
        kk, _, ci, co = (int(d) for d in w.shape)
        wp = jnp.pad(w, ((0, 0), (0, 0), (0, cin_p - ci), (0, cout_p - co)))
        wp = wp.reshape(kk * kk * cin_p, cout_p).astype(jnp.bfloat16)
        sp = jnp.pad(sc, (0, cout_p - co)).reshape(1, cout_p).astype(jnp.float32)
        bp = jnp.pad(bi, (0, cout_p - co)).reshape(1, cout_p).astype(jnp.float32)
        return wp, sp, bp

    w0, s0, b0 = _pack(params["cv"]["w"], params["cv"]["scale"],
                       params["cv"]["bias"], C1p, Cmp)
    w1, s1, b1 = _pack(params["cv1"]["w"], params["cv1"]["scale"],
                       params["cv1"]["bias"], Cmp, Chp)
    w2, s2, b2 = _pack(params["cv2"]["w"], params["cv2"]["scale"],
                       params["cv2"]["bias"], Cmp, Chp)
    m_args = []
    for (pm1, pm2) in params["m"]:
        m_args += list(_pack(pm1["w"], pm1["scale"], pm1["bias"], Chp, Chp))
        m_args += list(_pack(pm2["w"], pm2["scale"], pm2["bias"], Chp, Chp))
    w3 = params["cv3"]["w"]
    w3a, s3, b3 = _pack(w3[:, :, :Ch, :], params["cv3"]["scale"],
                        params["cv3"]["bias"], Chp, C2p)
    w3b, _, _ = _pack(w3[:, :, Ch:, :], params["cv3"]["scale"],
                      params["cv3"]["bias"], Chp, C2p)

    # ---- BlockSpecs: x is passed 3x (main / top-halo / bottom-halo row blocks) so
    # overlapping row windows work with plain blocked index maps; weights use
    # constant index maps (stay VMEM resident across the grid).
    NHB = pl.cdiv(H, HLx)
    rb = max(BH_main // HLx, 1)
    x_main_spec = pl.BlockSpec((1, BH_main, Wxp, C1p), lambda b, t: (b, t, 0, 0))
    x_top_spec = pl.BlockSpec(
        (1, HLx, Wxp, C1p), lambda b, t: (b, jnp.maximum(t * rb - 1, 0), 0, 0))
    x_bot_spec = pl.BlockSpec(
        (1, HLx, Wxp, C1p),
        lambda b, t: (b, jnp.minimum((t + 1) * rb, NHB - 1), 0, 0))

    def _full(a):
        return pl.BlockSpec(tuple(int(d) for d in a.shape), lambda b, t: (0,) * a.ndim)

    args = [x_p, x_p, x_p, col_idx]
    in_specs = [x_main_spec, x_top_spec, x_bot_spec, _full(col_idx)]
    for a in (w0, s0, b0, w1, s1, b1, w2, s2, b2, *m_args, w3a, w3b, s3, b3):
        args.append(a)
        in_specs.append(_full(a))
    out_spec = pl.BlockSpec((1, th, Wo, C2p), lambda b, t: (b, t, 0, 0))

    # advisory cost estimate so XLA schedules around the custom call sensibly
    flops = 2 * N * Ho * Wo * (K * K * C1p * Cmp + 2 * Cmp * Chp
                               + n_bn * (Chp * Chp + K3 * K3 * Chp * Chp)
                               + 2 * Chp * C2p)
    trans = N * Ho * Wo * (Cmp + 2 * Chp + 2 * n_bn * Chp + C2p)
    bytes_acc = (N * H * Wxp * C1p * 2 + N * Ho * Wo * C2p * 2
                 + sum(int(a.size) * a.dtype.itemsize for a in args[3:]))
    cost = pl.CostEstimate(flops=int(flops), transcendentals=int(trans),
                           bytes_accessed=int(bytes_acc))

    kernel = _build_fused_kernel(
        K=K, K3=K3, S=S, n_bn=n_bn, shortcut=bool(shortcut), Wo=Wo, th=th,
        BH_main=BH_main, HLx=HLx, HL1=HL1, T=T,
        C1p=C1p, Cmp=Cmp, Chp=Chp, C2p=C2p)

    out = pl.pallas_call(
        kernel,
        out_shape=jax.ShapeDtypeStruct((N, Ho, Wo, C2p), jnp.bfloat16),
        grid=(N, T),
        in_specs=in_specs,
        out_specs=out_spec,
        scratch_shapes=[
            pltpu.VMEM((R_in, Wxp, C1p), jnp.bfloat16),        # staged x tile (+halo)
            pltpu.VMEM((L + 2 * PADLEN, Chp), jnp.bfloat16),   # flat im2col buffer
        ],
        compiler_params=pltpu.CompilerParams(
            dimension_semantics=("parallel", "parallel"),
            vmem_limit_bytes=48 * 1024 * 1024),                # fits v7x's 64 MiB VMEM
        cost_estimate=cost,
    )(*args)

    # drop the channel padding; return f32 like the PyTorch module
    return out[..., :C2].astype(jnp.float32)


def init_params(key, c1, c2, n=1, e=0.5, e0=1.0, k=3, k_c3=3):
    """Deterministic synthetic params for search-variant 0 of ConvC3Block.
    BatchNorm is folded: scale = gamma / sqrt(var + eps), bias = beta - mean*scale."""
    c_mid = int(c2 * e0)            # ConvC3: c_ = int(c2 * e0)
    c_ = int(c2 * (e * e0))         # C3 hidden channels

    def conv_p(key, kk, ci, co):
        k1, k2, k3 = jax.random.split(key, 3)
        w = 0.1 * jax.random.normal(k1, (kk, kk, ci, co), jnp.float32)
        scale = 1.0 + 0.05 * jax.random.normal(k2, (co,), jnp.float32)
        bias = 0.05 * jax.random.normal(k3, (co,), jnp.float32)
        return dict(w=w, scale=scale, bias=bias)

    keys = jax.random.split(key, 4 + 2 * n)
    return {
        "cv":  conv_p(keys[0], k, c1, c_mid),        # ConvC3.cv (kxk)
        "cv1": conv_p(keys[1], 1, c_mid, c_),        # C3.cv1 (1x1)
        "cv2": conv_p(keys[2], 1, c_mid, c_),        # C3.cv2 (1x1)
        "cv3": conv_p(keys[3], 1, 2 * c_, c2),       # C3.cv3 (1x1)
        "m": [
            (conv_p(keys[4 + 2 * i], 1, c_, c_),     # Bottleneck.cv1 (1x1)
             conv_p(keys[5 + 2 * i], k_c3, c_, c_))  # Bottleneck.cv2 (k_c3 x k_c3)
            for i in range(n)
        ],
    }


# ---------------- pure-JAX f32 reference (correctness oracle) ----------------
def _conv_bn_silu_ref(x, w, scale, bias, stride=1):
    k = w.shape[0]
    y = lax.conv_general_dilated(
        x, w, window_strides=(stride, stride),
        padding=[(k // 2, k // 2), (k // 2, k // 2)],
        dimension_numbers=("NHWC", "HWIO", "NHWC"))
    y = y * scale + bias
    return y * jax.nn.sigmoid(y)


def conv_c3_block_ref(params, x, *, stride=1, shortcut=True):
    p = params
    x1 = _conv_bn_silu_ref(x, p["cv"]["w"], p["cv"]["scale"], p["cv"]["bias"], stride)
    y1 = _conv_bn_silu_ref(x1, p["cv1"]["w"], p["cv1"]["scale"], p["cv1"]["bias"])
    for (pa, pb) in p["m"]:
        h = _conv_bn_silu_ref(y1, pa["w"], pa["scale"], pa["bias"])
        z = _conv_bn_silu_ref(h, pb["w"], pb["scale"], pb["bias"])
        y1 = y1 + z if shortcut else z
    y2 = _conv_bn_silu_ref(x1, p["cv2"]["w"], p["cv2"]["scale"], p["cv2"]["bias"])
    cat = jnp.concatenate([y1, y2], axis=-1)
    return _conv_bn_silu_ref(cat, p["cv3"]["w"], p["cv3"]["scale"], p["cv3"]["bias"])


if __name__ == "__main__":
    key = jax.random.PRNGKey(0)
    kx, kp = jax.random.split(key)

    N, C1, H, W = 2, 4, 16, 16
    C2 = 8
    n_repeats = 1

    # PyTorch-convention input (NCHW), transposed to NHWC for the kernel.
    x_nchw = jax.random.normal(kx, (N, C1, H, W), jnp.float32)
    x_nhwc = jnp.transpose(x_nchw, (0, 2, 3, 1))

    params = init_params(kp, C1, C2, n=n_repeats)

    out = conv_c3_block(params, x_nhwc, stride=1, shortcut=True)
    out = jax.block_until_ready(out)

    assert out.shape == (N, H, W, C2), out.shape
    assert bool(jnp.all(jnp.isfinite(out)))

    # numerical check vs. the pure-JAX f32 reference (kernel computes in bf16)
    ref = conv_c3_block_ref(params, x_nhwc, stride=1, shortcut=True)
    max_err = float(jnp.max(jnp.abs(out - ref)))
    assert max_err < 5e-2, f"max abs error vs reference: {max_err}"

    print("KERNEL_OK")
</pallas_src>

<mosaic_0001>
module attributes {stable_mosaic.version = 11 : i64} {
  func.func @kernel(%arg0: i32, %arg1: i32, %arg2: memref<1x8x18x128xbf16, #tpu.memory_space<vmem>>, %arg3: memref<1x2x18x128xbf16, #tpu.memory_space<vmem>>, %arg4: memref<1x2x18x128xbf16, #tpu.memory_space<vmem>>, %arg5: memref<160x1xi32, #tpu.memory_space<vmem>>, %arg6: memref<1152x128xbf16, #tpu.memory_space<vmem>>, %arg7: memref<1x128xf32, #tpu.memory_space<vmem>>, %arg8: memref<1x128xf32, #tpu.memory_space<vmem>>, %arg9: memref<128x128xbf16, #tpu.memory_space<vmem>>, %arg10: memref<1x128xf32, #tpu.memory_space<vmem>>, %arg11: memref<1x128xf32, #tpu.memory_space<vmem>>, %arg12: memref<128x128xbf16, #tpu.memory_space<vmem>>, %arg13: memref<1x128xf32, #tpu.memory_space<vmem>>, %arg14: memref<1x128xf32, #tpu.memory_space<vmem>>, %arg15: memref<128x128xbf16, #tpu.memory_space<vmem>>, %arg16: memref<1x128xf32, #tpu.memory_space<vmem>>, %arg17: memref<1x128xf32, #tpu.memory_space<vmem>>, %arg18: memref<1152x128xbf16, #tpu.memory_space<vmem>>, %arg19: memref<1x128xf32, #tpu.memory_space<vmem>>, %arg20: memref<1x128xf32, #tpu.memory_space<vmem>>, %arg21: memref<128x128xbf16, #tpu.memory_space<vmem>>, %arg22: memref<128x128xbf16, #tpu.memory_space<vmem>>, %arg23: memref<1x128xf32, #tpu.memory_space<vmem>>, %arg24: memref<1x128xf32, #tpu.memory_space<vmem>>, %arg25: memref<1x8x16x128xbf16, #tpu.memory_space<vmem>>, %arg26: memref<12x18x128xbf16, #tpu.memory_space<vmem>>, %arg27: memref<194x128xbf16, #tpu.memory_space<vmem>>) attributes {dimension_semantics = [#tpu.dimension_semantics<parallel>, #tpu.dimension_semantics<parallel>], iteration_bounds = array<i64: 2, 2>, scalar_prefetch = 0 : i64, scratch_operands = 2 : i64, tpu.core_type = #tpu.core_type<tc>, window_params = [{transform_indices = @transform_0, window_bounds = array<i64: 1, 8, 18, 128>}, {transform_indices = @transform_1, window_bounds = array<i64: 1, 2, 18, 128>}, {transform_indices = @transform_2, window_bounds = array<i64: 1, 2, 18, 128>}, {pipeline_mode = #tpu.pipeline_mode<synchronous>, transform_indices = @transform_3, window_bounds = array<i64: 160, 1>}, {pipeline_mode = #tpu.pipeline_mode<synchronous>, transform_indices = @transform_4, window_bounds = array<i64: 1152, 128>}, {pipeline_mode = #tpu.pipeline_mode<synchronous>, transform_indices = @transform_5, window_bounds = array<i64: 1, 128>}, {pipeline_mode = #tpu.pipeline_mode<synchronous>, transform_indices = @transform_6, window_bounds = array<i64: 1, 128>}, {pipeline_mode = #tpu.pipeline_mode<synchronous>, transform_indices = @transform_7, window_bounds = array<i64: 128, 128>}, {pipeline_mode = #tpu.pipeline_mode<synchronous>, transform_indices = @transform_8, window_bounds = array<i64: 1, 128>}, {pipeline_mode = #tpu.pipeline_mode<synchronous>, transform_indices = @transform_9, window_bounds = array<i64: 1, 128>}, {pipeline_mode = #tpu.pipeline_mode<synchronous>, transform_indices = @transform_10, window_bounds = array<i64: 128, 128>}, {pipeline_mode = #tpu.pipeline_mode<synchronous>, transform_indices = @transform_11, window_bounds = array<i64: 1, 128>}, {pipeline_mode = #tpu.pipeline_mode<synchronous>, transform_indices = @transform_12, window_bounds = array<i64: 1, 128>}, {pipeline_mode = #tpu.pipeline_mode<synchronous>, transform_indices = @transform_13, window_bounds = array<i64: 128, 128>}, {pipeline_mode = #tpu.pipeline_mode<synchronous>, transform_indices = @transform_14, window_bounds = array<i64: 1, 128>}, {pipeline_mode = #tpu.pipeline_mode<synchronous>, transform_indices = @transform_15, window_bounds = array<i64: 1, 128>}, {pipeline_mode = #tpu.pipeline_mode<synchronous>, transform_indices = @transform_16, window_bounds = array<i64: 1152, 128>}, {pipeline_mode = #tpu.pipeline_mode<synchronous>, transform_indices = @transform_17, window_bounds = array<i64: 1, 128>}, {pipeline_mode = #tpu.pipeline_mode<synchronous>, transform_indices = @transform_18, window_bounds = array<i64: 1, 128>}, {pipeline_mode = #tpu.pipeline_mode<synchronous>, transform_indices = @transform_19, window_bounds = array<i64: 128, 128>}, {pipeline_mode = #tpu.pipeline_mode<synchronous>, transform_indices = @transform_20, window_bounds = array<i64: 128, 128>}, {pipeline_mode = #tpu.pipeline_mode<synchronous>, transform_indices = @transform_21, window_bounds = array<i64: 1, 128>}, {pipeline_mode = #tpu.pipeline_mode<synchronous>, transform_indices = @transform_22, window_bounds = array<i64: 1, 128>}, {transform_indices = @transform_23, window_bounds = array<i64: 1, 8, 16, 128>}]} {
    %c0_i32 = arith.constant 0 : i32
    %0 = arith.cmpi eq, %arg1, %c0_i32 : i32
    %c1_i32 = arith.constant 1 : i32
    %1 = arith.cmpi eq, %arg1, %c1_i32 : i32
    %c0 = arith.constant 0 : index
    %c0_0 = arith.constant 0 : index
    %c0_1 = arith.constant 0 : index
    %c0_2 = arith.constant 0 : index
    %2 = vector.load %arg3[%c0, %c0_0, %c0_1, %c0_2] : memref<1x2x18x128xbf16, #tpu.memory_space<vmem>>, vector<1x2x18x128xbf16>
    %3 = vector.shape_cast %2 : vector<1x2x18x128xbf16> to vector<2x18x128xbf16>
    %cst = arith.constant 0.000000e+00 : bf16
    %4 = vector.broadcast %cst : bf16 to vector<2x18x128xbf16>
    %5 = arith.select %0, %4, %3 : vector<2x18x128xbf16>
    %c0_3 = arith.constant 0 : index
    %c0_4 = arith.constant 0 : index
    %c0_5 = arith.constant 0 : index
    %6 = vector.load %arg26[%c0_3, %c0_4, %c0_5] : memref<12x18x128xbf16, #tpu.memory_space<vmem>>, vector<2x18x128xbf16>
    tpu.vector_store %arg26[%c0_3, %c0_4, %c0_5], %5 {strides = array<i32>} : memref<12x18x128xbf16, #tpu.memory_space<vmem>>, vector<2x18x128xbf16>,
    %c0_6 = arith.constant 0 : index
    %c0_7 = arith.constant 0 : index
    %c0_8 = arith.constant 0 : index
    %c0_9 = arith.constant 0 : index
    %7 = vector.load %arg2[%c0_6, %c0_7, %c0_8, %c0_9] : memref<1x8x18x128xbf16, #tpu.memory_space<vmem>>, vector<1x8x18x128xbf16>
    %8 = vector.shape_cast %7 : vector<1x8x18x128xbf16> to vector<8x18x128xbf16>
    %c2 = arith.constant 2 : index
    %c0_10 = arith.constant 0 : index
    %c0_11 = arith.constant 0 : index
    %9 = vector.load %arg26[%c2, %c0_10, %c0_11] : memref<12x18x128xbf16, #tpu.memory_space<vmem>>, vector<8x18x128xbf16>
    tpu.vector_store %arg26[%c2, %c0_10, %c0_11], %8 {strides = array<i32>} : memref<12x18x128xbf16, #tpu.memory_space<vmem>>, vector<8x18x128xbf16>,
    %c0_12 = arith.constant 0 : index
    %c0_13 = arith.constant 0 : index
    %c0_14 = arith.constant 0 : index
    %c0_15 = arith.constant 0 : index
    %10 = vector.load %arg4[%c0_12, %c0_13, %c0_14, %c0_15] : memref<1x2x18x128xbf16, #tpu.memory_space<vmem>>, vector<1x2x18x128xbf16>
    %11 = vector.shape_cast %10 : vector<1x2x18x128xbf16> to vector<2x18x128xbf16>
    %cst_16 = arith.constant 0.000000e+00 : bf16
    %12 = vector.broadcast %cst_16 : bf16 to vector<2x18x128xbf16>
    %13 = arith.select %1, %12, %11 : vector<2x18x128xbf16>
    %c10 = arith.constant 10 : index
    %c0_17 = arith.constant 0 : index
    %c0_18 = arith.constant 0 : index
    %14 = vector.load %arg26[%c10, %c0_17, %c0_18] : memref<12x18x128xbf16, #tpu.memory_space<vmem>>, vector<2x18x128xbf16>
    tpu.vector_store %arg26[%c10, %c0_17, %c0_18], %13 {strides = array<i32>} : memref<12x18x128xbf16, #tpu.memory_space<vmem>>, vector<2x18x128xbf16>,
    %c0_19 = arith.constant 0 : index
    %c0_20 = arith.constant 0 : index
    %c0_21 = arith.constant 0 : index
    %15 = vector.load %arg26[%c0_19, %c0_20, %c0_21] : memref<12x18x128xbf16, #tpu.memory_space<vmem>>, vector<10x16x128xbf16>
    %c0_22 = arith.constant 0 : index
    %c1 = arith.constant 1 : index
    %c0_23 = arith.constant 0 : index
    %16 = vector.load %arg26[%c0_22, %c1, %c0_23] : memref<12x18x128xbf16, #tpu.memory_space<vmem>>, vector<10x16x128xbf16>
    %c0_24 = arith.constant 0 : index
    %c2_25 = arith.constant 2 : index
    %c0_26 = arith.constant 0 : index
    %17 = vector.load %arg26[%c0_24, %c2_25, %c0_26] : memref<12x18x128xbf16, #tpu.memory_space<vmem>>, vector<10x16x128xbf16>
    %c1_27 = arith.constant 1 : index
    %c0_28 = arith.constant 0 : index
    %c0_29 = arith.constant 0 : index
    %18 = vector.load %arg26[%c1_27, %c0_28, %c0_29] : memref<12x18x128xbf16, #tpu.memory_space<vmem>>, vector<10x16x128xbf16>
    %c1_30 = arith.constant 1 : index
    %c1_31 = arith.constant 1 : index
    %c0_32 = arith.constant 0 : index
    %19 = vector.load %arg26[%c1_30, %c1_31, %c0_32] : memref<12x18x128xbf16, #tpu.memory_space<vmem>>, vector<10x16x128xbf16>
    %c1_33 = arith.constant 1 : index
    %c2_34 = arith.constant 2 : index
    %c0_35 = arith.constant 0 : index
    %20 = vector.load %arg26[%c1_33, %c2_34, %c0_35] : memref<12x18x128xbf16, #tpu.memory_space<vmem>>, vector<10x16x128xbf16>
    %c2_36 = arith.constant 2 : index
    %c0_37 = arith.constant 0 : index
    %c0_38 = arith.constant 0 : index
    %21 = vector.load %arg26[%c2_36, %c0_37, %c0_38] : memref<12x18x128xbf16, #tpu.memory_space<vmem>>, vector<10x16x128xbf16>
    %c2_39 = arith.constant 2 : index
    %c1_40 = arith.constant 1 : index
    %c0_41 = arith.constant 0 : index
    %22 = vector.load %arg26[%c2_39, %c1_40, %c0_41] : memref<12x18x128xbf16, #tpu.memory_space<vmem>>, vector<10x16x128xbf16>
    %c2_42 = arith.constant 2 : index
    %c2_43 = arith.constant 2 : index
    %c0_44 = arith.constant 0 : index
    %23 = vector.load %arg26[%c2_42, %c2_43, %c0_44] : memref<12x18x128xbf16, #tpu.memory_space<vmem>>, vector<10x16x128xbf16>
    %24 = tpu.concatenate %15, %16, %17, %18, %19, %20, %21, %22, %23 in 2 : vector<10x16x128xbf16>, vector<10x16x128xbf16>, vector<10x16x128xbf16>, vector<10x16x128xbf16>, vector<10x16x128xbf16>, vector<10x16x128xbf16>, vector<10x16x128xbf16>, vector<10x16x128xbf16>, vector<10x16x128xbf16> -> vector<10x16x1152xbf16>
    %25 = vector.shape_cast %24 : vector<10x16x1152xbf16> to vector<160x1152xbf16>
    %c0_45 = arith.constant 0 : index
    %c0_46 = arith.constant 0 : index
    %26 = vector.load %arg6[%c0_45, %c0_46] : memref<1152x128xbf16, #tpu.memory_space<vmem>>, vector<1152x128xbf16>
    %cst_47 = arith.constant dense<0.000000e+00> : vector<160x128xf32>
    %27 = tpu.matmul %25, %26, %cst_47 {dimension_numbers = #tpu.dot_dimension_numbers<[1], [0], [0], [1], [0, 0, 1, 1], [], []>} : vector<160x1152xbf16>, vector<1152x128xbf16>, vector<160x128xf32> -> vector<160x128xf32>
    %c0_48 = arith.constant 0 : index
    %c0_49 = arith.constant 0 : index
    %28 = vector.load %arg7[%c0_48, %c0_49] : memref<1x128xf32, #tpu.memory_space<vmem>>, vector<1x128xf32>
    %29 = vector.broadcast %28 : vector<1x128xf32> to vector<160x128xf32>
    %30 = arith.mulf %27, %29 : vector<160x128xf32>
    %c0_50 = arith.constant 0 : index
    %c0_51 = arith.constant 0 : index
    %31 = vector.load %arg8[%c0_50, %c0_51] : memref<1x128xf32, #tpu.memory_space<vmem>>, vector<1x128xf32>
    %32 = vector.broadcast %31 : vector<1x128xf32> to vector<160x128xf32>
    %33 = arith.addf %30, %32 : vector<160x128xf32>
    %34 = arith.negf %33 : vector<160x128xf32>
    %35 = math.exp %34 : vector<160x128xf32>
    %cst_52 = arith.constant 1.000000e+00 : f32
    %36 = vector.broadcast %cst_52 : f32 to vector<160x128xf32>
    %37 = arith.addf %36, %35 : vector<160x128xf32>
    %38 = arith.divf %36, %37 : vector<160x128xf32>
    %39 = arith.mulf %33, %38 : vector<160x128xf32>
    %40 = arith.truncf %39 : vector<160x128xf32> to vector<160x128xbf16>
    %c0_53 = arith.constant 0 : index
    %c0_54 = arith.constant 0 : index
    %41 = vector.load %arg9[%c0_53, %c0_54] : memref<128x128xbf16, #tpu.memory_space<vmem>>, vector<128x128xbf16>
    %cst_55 = arith.constant dense<0.000000e+00> : vector<160x128xf32>
    %42 = tpu.matmul %40, %41, %cst_55 {dimension_numbers = #tpu.dot_dimension_numbers<[1], [0], [0], [1], [0, 0, 1, 1], [], []>} : vector<160x128xbf16>, vector<128x128xbf16>, vector<160x128xf32> -> vector<160x128xf32>
    %c0_56 = arith.constant 0 : index
    %c0_57 = arith.constant 0 : index
    %43 = vector.load %arg10[%c0_56, %c0_57] : memref<1x128xf32, #tpu.memory_space<vmem>>, vector<1x128xf32>
    %44 = vector.broadcast %43 : vector<1x128xf32> to vector<160x128xf32>
    %45 = arith.mulf %42, %44 : vector<160x128xf32>
    %c0_58 = arith.constant 0 : index
    %c0_59 = arith.constant 0 : index
    %46 = vector.load %arg11[%c0_58, %c0_59] : memref<1x128xf32, #tpu.memory_space<vmem>>, vector<1x128xf32>
    %47 = vector.broadcast %46 : vector<1x128xf32> to vector<160x128xf32>
    %48 = arith.addf %45, %47 : vector<160x128xf32>
    %49 = arith.negf %48 : vector<160x128xf32>
    %50 = math.exp %49 : vector<160x128xf32>
    %cst_60 = arith.constant 1.000000e+00 : f32
    %51 = vector.broadcast %cst_60 : f32 to vector<160x128xf32>
    %52 = arith.addf %51, %50 : vector<160x128xf32>
    %53 = arith.divf %51, %52 : vector<160x128xf32>
    %54 = arith.mulf %48, %53 : vector<160x128xf32>
    %55 = arith.truncf %54 : vector<160x128xf32> to vector<160x128xbf16>
    %56 = vector.extract_strided_slice %40 {offsets = [16, 0], sizes = [128, 128], strides = [1, 1]} : vector<160x128xbf16> to vector<128x128xbf16>
    %c0_61 = arith.constant 0 : index
    %c0_62 = arith.constant 0 : index
    %57 = vector.load %arg12[%c0_61, %c0_62] : memref<128x128xbf16, #tpu.memory_space<vmem>>, vector<128x128xbf16>
    %cst_63 = arith.constant dense<0.000000e+00> : vector<128x128xf32>
    %58 = tpu.matmul %56, %57, %cst_63 {dimension_numbers = #tpu.dot_dimension_numbers<[1], [0], [0], [1], [0, 0, 1, 1], [], []>} : vector<128x128xbf16>, vector<128x128xbf16>, vector<128x128xf32> -> vector<128x128xf32>
    %c0_64 = arith.constant 0 : index
    %c0_65 = arith.constant 0 : index
    %59 = vector.load %arg13[%c0_64, %c0_65] : memref<1x128xf32, #tpu.memory_space<vmem>>, vector<1x128xf32>
    %60 = vector.broadcast %59 : vector<1x128xf32> to vector<128x128xf32>
    %61 = arith.mulf %58, %60 : vector<128x128xf32>
    %c0_66 = arith.constant 0 : index
    %c0_67 = arith.constant 0 : index
    %62 = vector.load %arg14[%c0_66, %c0_67] : memref<1x128xf32, #tpu.memory_space<vmem>>, vector<1x128xf32>
    %63 = vector.broadcast %62 : vector<1x128xf32> to vector<128x128xf32>
    %64 = arith.addf %61, %63 : vector<128x128xf32>
    %65 = arith.negf %64 : vector<128x128xf32>
    %66 = math.exp %65 : vector<128x128xf32>
    %cst_68 = arith.constant 1.000000e+00 : f32
    %67 = vector.broadcast %cst_68 : f32 to vector<128x128xf32>
    %68 = arith.addf %67, %66 : vector<128x128xf32>
    %69 = arith.divf %67, %68 : vector<128x128xf32>
    %70 = arith.mulf %64, %69 : vector<128x128xf32>
    %71 = arith.truncf %70 : vector<128x128xf32> to vector<128x128xbf16>
    %c0_69 = arith.constant 0 : index
    %c0_70 = arith.constant 0 : index
    %72 = vector.load %arg5[%c0_69, %c0_70] : memref<160x1xi32, #tpu.memory_space<vmem>>, vector<160x1xi32>
    %cst_71 = arith.constant 0.000000e+00 : bf16
    %73 = vector.broadcast %cst_71 : bf16 to vector<17x128xbf16>
    %c0_72 = arith.constant 0 : index
    %c0_73 = arith.constant 0 : index
    %74 = vector.load %arg27[%c0_72, %c0_73] : memref<194x128xbf16, #tpu.memory_space<vmem>>, vector<17x128xbf16>
    tpu.vector_store %arg27[%c0_72, %c0_73], %73 {strides = array<i32>} : memref<194x128xbf16, #tpu.memory_space<vmem>>, vector<17x128xbf16>,
    %cst_74 = arith.constant 0.000000e+00 : bf16
    %75 = vector.broadcast %cst_74 : bf16 to vector<17x128xbf16>
    %c177 = arith.constant 177 : index
    %c0_75 = arith.constant 0 : index
    %76 = vector.load %arg27[%c177, %c0_75] : memref<194x128xbf16, #tpu.memory_space<vmem>>, vector<17x128xbf16>
    tpu.vector_store %arg27[%c177, %c0_75], %75 {strides = array<i32>} : memref<194x128xbf16, #tpu.memory_space<vmem>>, vector<17x128xbf16>,
    %c0_76 = arith.constant 0 : index
    %c0_77 = arith.constant 0 : index
    %77 = vector.load %arg15[%c0_76, %c0_77] : memref<128x128xbf16, #tpu.memory_space<vmem>>, vector<128x128xbf16>
    %cst_78 = arith.constant dense<0.000000e+00> : vector<160x128xf32>
    %78 = tpu.matmul %55, %77, %cst_78 {dimension_numbers = #tpu.dot_dimension_numbers<[1], [0], [0], [1], [0, 0, 1, 1], [], []>} : vector<160x128xbf16>, vector<128x128xbf16>, vector<160x128xf32> -> vector<160x128xf32>
    %c0_79 = arith.constant 0 : index
    %c0_80 = arith.constant 0 : index
    %79 = vector.load %arg16[%c0_79, %c0_80] : memref<1x128xf32, #tpu.memory_space<vmem>>, vector<1x128xf32>
    %80 = vector.broadcast %79 : vector<1x128xf32> to vector<160x128xf32>
    %81 = arith.mulf %78, %80 : vector<160x128xf32>
    %c0_81 = arith.constant 0 : index
    %c0_82 = arith.constant 0 : index
    %82 = vector.load %arg17[%c0_81, %c0_82] : memref<1x128xf32, #tpu.memory_space<vmem>>, vector<1x128xf32>
    %83 = vector.broadcast %82 : vector<1x128xf32> to vector<160x128xf32>
    %84 = arith.addf %81, %83 : vector<160x128xf32>
    %85 = arith.negf %84 : vector<160x128xf32>
    %86 = math.exp %85 : vector<160x128xf32>
    %cst_83 = arith.constant 1.000000e+00 : f32
    %87 = vector.broadcast %cst_83 : f32 to vector<160x128xf32>
    %88 = arith.addf %87, %86 : vector<160x128xf32>
    %89 = arith.divf %87, %88 : vector<160x128xf32>
    %90 = arith.mulf %84, %89 : vector<160x128xf32>
    %91 = arith.truncf %90 : vector<160x128xf32> to vector<160x128xbf16>
    %c17 = arith.constant 17 : index
    %c0_84 = arith.constant 0 : index
    %92 = vector.load %arg27[%c17, %c0_84] : memref<194x128xbf16, #tpu.memory_space<vmem>>, vector<160x128xbf16>
    tpu.vector_store %arg27[%c17, %c0_84], %91 {strides = array<i32>} : memref<194x128xbf16, #tpu.memory_space<vmem>>, vector<160x128xbf16>,
    %93 = arith.extui %0 : i1 to i32
    %c0_i32_85 = arith.constant 0 : i32
    %94 = arith.cmpi ne, %93, %c0_i32_85 : i32
    scf.if %94 {
      %cst_138 = arith.constant 0.000000e+00 : bf16
      %200 = vector.broadcast %cst_138 : bf16 to vector<16x128xbf16>
      %c17_139 = arith.constant 17 : index
      %c0_140 = arith.constant 0 : index
      %201 = vector.load %arg27[%c17_139, %c0_140] : memref<194x128xbf16, #tpu.memory_space<vmem>>, vector<16x128xbf16>
      tpu.vector_store %arg27[%c17_139, %c0_140], %200 {strides = array<i32>} : memref<194x128xbf16, #tpu.memory_space<vmem>>, vector<16x128xbf16>,
    } else {
    }
    %95 = arith.extui %1 : i1 to i32
    %c0_i32_86 = arith.constant 0 : i32
    %96 = arith.cmpi ne, %95, %c0_i32_86 : i32
    scf.if %96 {
      %cst_138 = arith.constant 0.000000e+00 : bf16
      %200 = vector.broadcast %cst_138 : bf16 to vector<16x128xbf16>
      %c161 = arith.constant 161 : index
      %c0_139 = arith.constant 0 : index
      %201 = vector.load %arg27[%c161, %c0_139] : memref<194x128xbf16, #tpu.memory_space<vmem>>, vector<16x128xbf16>
      tpu.vector_store %arg27[%c161, %c0_139], %200 {strides = array<i32>} : memref<194x128xbf16, #tpu.memory_space<vmem>>, vector<16x128xbf16>,
    } else {
    }
    %c0_87 = arith.constant 0 : index
    %c0_88 = arith.constant 0 : index
    %97 = vector.load %arg27[%c0_87, %c0_88] : memref<194x128xbf16, #tpu.memory_space<vmem>>, vector<160x128xbf16>
    %c1_i32_89 = arith.constant 1 : i32
    %98 = vector.broadcast %c1_i32_89 : i32 to vector<160x1xi32>
    %99 = arith.cmpi sge, %72, %98 : vector<160x1xi32>
    %c17_i32 = arith.constant 17 : i32
    %100 = vector.broadcast %c17_i32 : i32 to vector<160x1xi32>
    %101 = arith.cmpi slt, %72, %100 : vector<160x1xi32>
    %102 = arith.andi %99, %101 : vector<160x1xi1>
    %cst_90 = arith.constant 0.000000e+00 : bf16
    %103 = vector.broadcast %cst_90 : bf16 to vector<160x128xbf16>
    %104 = vector.shape_cast %102 : vector<160x1xi1> to vector<160x1xi1>
    %105 = vector.broadcast %104 : vector<160x1xi1> to vector<160x128xi1>
    %106 = arith.select %105, %97, %103 : vector<160x128xi1>, vector<160x128xbf16>
    %c1_91 = arith.constant 1 : index
    %c0_92 = arith.constant 0 : index
    %107 = vector.load %arg27[%c1_91, %c0_92] : memref<194x128xbf16, #tpu.memory_space<vmem>>, vector<160x128xbf16>
    %c2_93 = arith.constant 2 : index
    %c0_94 = arith.constant 0 : index
    %108 = vector.load %arg27[%c2_93, %c0_94] : memref<194x128xbf16, #tpu.memory_space<vmem>>, vector<160x128xbf16>
    %c-1_i32 = arith.constant -1 : i32
    %109 = vector.broadcast %c-1_i32 : i32 to vector<160x1xi32>
    %110 = arith.cmpi sge, %72, %109 : vector<160x1xi32>
    %c15_i32 = arith.constant 15 : i32
    %111 = vector.broadcast %c15_i32 : i32 to vector<160x1xi32>
    %112 = arith.cmpi slt, %72, %111 : vector<160x1xi32>
    %113 = arith.andi %110, %112 : vector<160x1xi1>
    %cst_95 = arith.constant 0.000000e+00 : bf16
    %114 = vector.broadcast %cst_95 : bf16 to vector<160x128xbf16>
    %115 = vector.shape_cast %113 : vector<160x1xi1> to vector<160x1xi1>
    %116 = vector.broadcast %115 : vector<160x1xi1> to vector<160x128xi1>
    %117 = arith.select %116, %108, %114 : vector<160x128xi1>, vector<160x128xbf16>
    %c16 = arith.constant 16 : index
    %c0_96 = arith.constant 0 : index
    %118 = vector.load %arg27[%c16, %c0_96] : memref<194x128xbf16, #tpu.memory_space<vmem>>, vector<160x128xbf16>
    %c1_i32_97 = arith.constant 1 : i32
    %119 = vector.broadcast %c1_i32_97 : i32 to vector<160x1xi32>
    %120 = arith.cmpi sge, %72, %119 : vector<160x1xi32>
    %c17_i32_98 = arith.constant 17 : i32
    %121 = vector.broadcast %c17_i32_98 : i32 to vector<160x1xi32>
    %122 = arith.cmpi slt, %72, %121 : vector<160x1xi32>
    %123 = arith.andi %120, %122 : vector<160x1xi1>
    %cst_99 = arith.constant 0.000000e+00 : bf16
    %124 = vector.broadcast %cst_99 : bf16 to vector<160x128xbf16>
    %125 = vector.shape_cast %123 : vector<160x1xi1> to vector<160x1xi1>
    %126 = vector.broadcast %125 : vector<160x1xi1> to vector<160x128xi1>
    %127 = arith.select %126, %118, %124 : vector<160x128xi1>, vector<160x128xbf16>
    %c17_100 = arith.constant 17 : index
    %c0_101 = arith.constant 0 : index
    %128 = vector.load %arg27[%c17_100, %c0_101] : memref<194x128xbf16, #tpu.memory_space<vmem>>, vector<160x128xbf16>
    %c18 = arith.constant 18 : index
    %c0_102 = arith.constant 0 : index
    %129 = vector.load %arg27[%c18, %c0_102] : memref<194x128xbf16, #tpu.memory_space<vmem>>, vector<160x128xbf16>
    %c-1_i32_103 = arith.constant -1 : i32
    %130 = vector.broadcast %c-1_i32_103 : i32 to vector<160x1xi32>
    %131 = arith.cmpi sge, %72, %130 : vector<160x1xi32>
    %c15_i32_104 = arith.constant 15 : i32
    %132 = vector.broadcast %c15_i32_104 : i32 to vector<160x1xi32>
    %133 = arith.cmpi slt, %72, %132 : vector<160x1xi32>
    %134 = arith.andi %131, %133 : vector<160x1xi1>
    %cst_105 = arith.constant 0.000000e+00 : bf16
    %135 = vector.broadcast %cst_105 : bf16 to vector<160x128xbf16>
    %136 = vector.shape_cast %134 : vector<160x1xi1> to vector<160x1xi1>
    %137 = vector.broadcast %136 : vector<160x1xi1> to vector<160x128xi1>
    %138 = arith.select %137, %129, %135 : vector<160x128xi1>, vector<160x128xbf16>
    %c32 = arith.constant 32 : index
    %c0_106 = arith.constant 0 : index
    %139 = vector.load %arg27[%c32, %c0_106] : memref<194x128xbf16, #tpu.memory_space<vmem>>, vector<160x128xbf16>
    %c1_i32_107 = arith.constant 1 : i32
    %140 = vector.broadcast %c1_i32_107 : i32 to vector<160x1xi32>
    %141 = arith.cmpi sge, %72, %140 : vector<160x1xi32>
    %c17_i32_108 = arith.constant 17 : i32
    %142 = vector.broadcast %c17_i32_108 : i32 to vector<160x1xi32>
    %143 = arith.cmpi slt, %72, %142 : vector<160x1xi32>
    %144 = arith.andi %141, %143 : vector<160x1xi1>
    %cst_109 = arith.constant 0.000000e+00 : bf16
    %145 = vector.broadcast %cst_109 : bf16 to vector<160x128xbf16>
    %146 = vector.shape_cast %144 : vector<160x1xi1> to vector<160x1xi1>
    %147 = vector.broadcast %146 : vector<160x1xi1> to vector<160x128xi1>
    %148 = arith.select %147, %139, %145 : vector<160x128xi1>, vector<160x128xbf16>
    %c33 = arith.constant 33 : index
    %c0_110 = arith.constant 0 : index
    %149 = vector.load %arg27[%c33, %c0_110] : memref<194x128xbf16, #tpu.memory_space<vmem>>, vector<160x128xbf16>
    %c34 = arith.constant 34 : index
    %c0_111 = arith.constant 0 : index
    %150 = vector.load %arg27[%c34, %c0_111] : memref<194x128xbf16, #tpu.memory_space<vmem>>, vector<160x128xbf16>
    %c-1_i32_112 = arith.constant -1 : i32
    %151 = vector.broadcast %c-1_i32_112 : i32 to vector<160x1xi32>
    %152 = arith.cmpi sge, %72, %151 : vector<160x1xi32>
    %c15_i32_113 = arith.constant 15 : i32
    %153 = vector.broadcast %c15_i32_113 : i32 to vector<160x1xi32>
    %154 = arith.cmpi slt, %72, %153 : vector<160x1xi32>
    %155 = arith.andi %152, %154 : vector<160x1xi1>
    %cst_114 = arith.constant 0.000000e+00 : bf16
    %156 = vector.broadcast %cst_114 : bf16 to vector<160x128xbf16>
    %157 = vector.shape_cast %155 : vector<160x1xi1> to vector<160x1xi1>
    %158 = vector.broadcast %157 : vector<160x1xi1> to vector<160x128xi1>
    %159 = arith.select %158, %150, %156 : vector<160x128xi1>, vector<160x128xbf16>
    %160 = tpu.concatenate %106, %107, %117, %127, %128, %138, %148, %149, %159 in 1 : vector<160x128xbf16>, vector<160x128xbf16>, vector<160x128xbf16>, vector<160x128xbf16>, vector<160x128xbf16>, vector<160x128xbf16>, vector<160x128xbf16>, vector<160x128xbf16>, vector<160x128xbf16> -> vector<160x1152xbf16>
    %c0_115 = arith.constant 0 : index
    %c0_116 = arith.constant 0 : index
    %161 = vector.load %arg18[%c0_115, %c0_116] : memref<1152x128xbf16, #tpu.memory_space<vmem>>, vector<1152x128xbf16>
    %cst_117 = arith.constant dense<0.000000e+00> : vector<160x128xf32>
    %162 = tpu.matmul %160, %161, %cst_117 {dimension_numbers = #tpu.dot_dimension_numbers<[1], [0], [0], [1], [0, 0, 1, 1], [], []>} : vector<160x1152xbf16>, vector<1152x128xbf16>, vector<160x128xf32> -> vector<160x128xf32>
    %c0_118 = arith.constant 0 : index
    %c0_119 = arith.constant 0 : index
    %163 = vector.load %arg19[%c0_118, %c0_119] : memref<1x128xf32, #tpu.memory_space<vmem>>, vector<1x128xf32>
    %164 = vector.broadcast %163 : vector<1x128xf32> to vector<160x128xf32>
    %165 = arith.mulf %162, %164 : vector<160x128xf32>
    %c0_120 = arith.constant 0 : index
    %c0_121 = arith.constant 0 : index
    %166 = vector.load %arg20[%c0_120, %c0_121] : memref<1x128xf32, #tpu.memory_space<vmem>>, vector<1x128xf32>
    %167 = vector.broadcast %166 : vector<1x128xf32> to vector<160x128xf32>
    %168 = arith.addf %165, %167 : vector<160x128xf32>
    %169 = arith.negf %168 : vector<160x128xf32>
    %170 = math.exp %169 : vector<160x128xf32>
    %cst_122 = arith.constant 1.000000e+00 : f32
    %171 = vector.broadcast %cst_122 : f32 to vector<160x128xf32>
    %172 = arith.addf %171, %170 : vector<160x128xf32>
    %173 = arith.divf %171, %172 : vector<160x128xf32>
    %174 = arith.mulf %168, %173 : vector<160x128xf32>
    %175 = arith.truncf %174 : vector<160x128xf32> to vector<160x128xbf16>
    %176 = arith.addf %55, %175 : vector<160x128xbf16>
    %177 = vector.extract_strided_slice %176 {offsets = [16, 0], sizes = [128, 128], strides = [1, 1]} : vector<160x128xbf16> to vector<128x128xbf16>
    %c0_123 = arith.constant 0 : index
    %c0_124 = arith.constant 0 : index
    %178 = vector.load %arg21[%c0_123, %c0_124] : memref<128x128xbf16, #tpu.memory_space<vmem>>, vector<128x128xbf16>
    %cst_125 = arith.constant dense<0.000000e+00> : vector<128x128xf32>
    %179 = tpu.matmul %177, %178, %cst_125 {dimension_numbers = #tpu.dot_dimension_numbers<[1], [0], [0], [1], [0, 0, 1, 1], [], []>} : vector<128x128xbf16>, vector<128x128xbf16>, vector<128x128xf32> -> vector<128x128xf32>
    %c0_126 = arith.constant 0 : index
    %c0_127 = arith.constant 0 : index
    %180 = vector.load %arg22[%c0_126, %c0_127] : memref<128x128xbf16, #tpu.memory_space<vmem>>, vector<128x128xbf16>
    %cst_128 = arith.constant dense<0.000000e+00> : vector<128x128xf32>
    %181 = tpu.matmul %71, %180, %cst_128 {dimension_numbers = #tpu.dot_dimension_numbers<[1], [0], [0], [1], [0, 0, 1, 1], [], []>} : vector<128x128xbf16>, vector<128x128xbf16>, vector<128x128xf32> -> vector<128x128xf32>
    %182 = arith.addf %179, %181 : vector<128x128xf32>
    %c0_129 = arith.constant 0 : index
    %c0_130 = arith.constant 0 : index
    %183 = vector.load %arg23[%c0_129, %c0_130] : memref<1x128xf32, #tpu.memory_space<vmem>>, vector<1x128xf32>
    %184 = vector.broadcast %183 : vector<1x128xf32> to vector<128x128xf32>
    %185 = arith.mulf %182, %184 : vector<128x128xf32>
    %c0_131 = arith.constant 0 : index
    %c0_132 = arith.constant 0 : index
    %186 = vector.load %arg24[%c0_131, %c0_132] : memref<1x128xf32, #tpu.memory_space<vmem>>, vector<1x128xf32>
    %187 = vector.broadcast %186 : vector<1x128xf32> to vector<128x128xf32>
    %188 = arith.addf %185, %187 : vector<128x128xf32>
    %189 = arith.negf %188 : vector<128x128xf32>
    %190 = math.exp %189 : vector<128x128xf32>
    %cst_133 = arith.constant 1.000000e+00 : f32
    %191 = vector.broadcast %cst_133 : f32 to vector<128x128xf32>
    %192 = arith.addf %191, %190 : vector<128x128xf32>
    %193 = arith.divf %191, %192 : vector<128x128xf32>
    %194 = arith.mulf %188, %193 : vector<128x128xf32>
    %195 = vector.shape_cast %194 : vector<128x128xf32> to vector<8x16x128xf32>
    %196 = arith.truncf %195 : vector<8x16x128xf32> to vector<8x16x128xbf16>
    %c0_134 = arith.constant 0 : index
    %c0_135 = arith.constant 0 : index
    %c0_136 = arith.constant 0 : index
    %c0_137 = arith.constant 0 : index
    %197 = vector.load %arg25[%c0_134, %c0_135, %c0_136, %c0_137] : memref<1x8x16x128xbf16, #tpu.memory_space<vmem>>, vector<1x8x16x128xbf16>
    %198 = vector.shape_cast %197 : vector<1x8x16x128xbf16> to vector<8x16x128xbf16>
    %199 = vector.shape_cast %196 : vector<8x16x128xbf16> to vector<1x8x16x128xbf16>
    tpu.vector_store %arg25[%c0_134, %c0_135, %c0_136, %c0_137], %199 {strides = array<i32>} : memref<1x8x16x128xbf16, #tpu.memory_space<vmem>>, vector<1x8x16x128xbf16>,
    return
  }
  func.func @transform_0(%arg0: i32, %arg1: i32) -> (i32, i32, i32, i32) {
    %c0_i32 = arith.constant 0 : i32
    %c0_i32_0 = arith.constant 0 : i32
    %c0_i32_1 = arith.constant 0 : i32
    return %arg0, %arg1, %c0_i32, %c0_i32_0 : i32, i32, i32, i32
  }
  func.func @transform_1(%arg0: i32, %arg1: i32) -> (i32, i32, i32, i32) {
    %c4_i32 = arith.constant 4 : i32
    %0 = arith.muli %arg1, %c4_i32 : i32
    %c1_i32 = arith.constant 1 : i32
    %1 = arith.subi %0, %c1_i32 : i32
    %c0_i32 = arith.constant 0 : i32
    %2 = arith.maxsi %1, %c0_i32 : i32
    %c0_i32_0 = arith.constant 0 : i32
    %c0_i32_1 = arith.constant 0 : i32
    %c0_i32_2 = arith.constant 0 : i32
    return %arg0, %2, %c0_i32_0, %c0_i32_1 : i32, i32, i32, i32
  }
  func.func @transform_2(%arg0: i32, %arg1: i32) -> (i32, i32, i32, i32) {
    %c1_i32 = arith.constant 1 : i32
    %0 = arith.addi %arg1, %c1_i32 : i32
    %c4_i32 = arith.constant 4 : i32
    %1 = arith.muli %0, %c4_i32 : i32
    %c7_i32 = arith.constant 7 : i32
    %2 = arith.minsi %1, %c7_i32 : i32
    %c0_i32 = arith.constant 0 : i32
    %c0_i32_0 = arith.constant 0 : i32
    %c0_i32_1 = arith.constant 0 : i32
    return %arg0, %2, %c0_i32, %c0_i32_0 : i32, i32, i32, i32
  }
  func.func @transform_3(%arg0: i32, %arg1: i32) -> (i32, i32) {
    %c0_i32 = arith.constant 0 : i32
    %c0_i32_0 = arith.constant 0 : i32
    %c0_i32_1 = arith.constant 0 : i32
    return %c0_i32, %c0_i32_0 : i32, i32
  }
  func.func @transform_4(%arg0: i32, %arg1: i32) -> (i32, i32) {
    %c0_i32 = arith.constant 0 : i32
    %c0_i32_0 = arith.constant 0 : i32
    %c0_i32_1 = arith.constant 0 : i32
    return %c0_i32, %c0_i32_0 : i32, i32
  }
  func.func @transform_5(%arg0: i32, %arg1: i32) -> (i32, i32) {
    %c0_i32 = arith.constant 0 : i32
    %c0_i32_0 = arith.constant 0 : i32
    %c0_i32_1 = arith.constant 0 : i32
    return %c0_i32, %c0_i32_0 : i32, i32
  }
  func.func @transform_6(%arg0: i32, %arg1: i32) -> (i32, i32) {
    %c0_i32 = arith.constant 0 : i32
    %c0_i32_0 = arith.constant 0 : i32
    %c0_i32_1 = arith.constant 0 : i32
    return %c0_i32, %c0_i32_0 : i32, i32
  }
  func.func @transform_7(%arg0: i32, %arg1: i32) -> (i32, i32) {
    %c0_i32 = arith.constant 0 : i32
    %c0_i32_0 = arith.constant 0 : i32
    %c0_i32_1 = arith.constant 0 : i32
    return %c0_i32, %c0_i32_0 : i32, i32
  }
  func.func @transform_8(%arg0: i32, %arg1: i32) -> (i32, i32) {
    %c0_i32 = arith.constant 0 : i32
    %c0_i32_0 = arith.constant 0 : i32
    %c0_i32_1 = arith.constant 0 : i32
    return %c0_i32, %c0_i32_0 : i32, i32
  }
  func.func @transform_9(%arg0: i32, %arg1: i32) -> (i32, i32) {
    %c0_i32 = arith.constant 0 : i32
    %c0_i32_0 = arith.constant 0 : i32
    %c0_i32_1 = arith.constant 0 : i32
    return %c0_i32, %c0_i32_0 : i32, i32
  }
  func.func @transform_10(%arg0: i32, %arg1: i32) -> (i32, i32) {
    %c0_i32 = arith.constant 0 : i32
    %c0_i32_0 = arith.constant 0 : i32
    %c0_i32_1 = arith.constant 0 : i32
    return %c0_i32, %c0_i32_0 : i32, i32
  }
  func.func @transform_11(%arg0: i32, %arg1: i32) -> (i32, i32) {
    %c0_i32 = arith.constant 0 : i32
    %c0_i32_0 = arith.constant 0 : i32
    %c0_i32_1 = arith.constant 0 : i32
    return %c0_i32, %c0_i32_0 : i32, i32
  }
  func.func @transform_12(%arg0: i32, %arg1: i32) -> (i32, i32) {
    %c0_i32 = arith.constant 0 : i32
    %c0_i32_0 = arith.constant 0 : i32
    %c0_i32_1 = arith.constant 0 : i32
    return %c0_i32, %c0_i32_0 : i32, i32
  }
  func.func @transform_13(%arg0: i32, %arg1: i32) -> (i32, i32) {
    %c0_i32 = arith.constant 0 : i32
    %c0_i32_0 = arith.constant 0 : i32
    %c0_i32_1 = arith.constant 0 : i32
    return %c0_i32, %c0_i32_0 : i32, i32
  }
  func.func @transform_14(%arg0: i32, %arg1: i32) -> (i32, i32) {
    %c0_i32 = arith.constant 0 : i32
    %c0_i32_0 = arith.constant 0 : i32
    %c0_i32_1 = arith.constant 0 : i32
    return %c0_i32, %c0_i32_0 : i32, i32
  }
  func.func @transform_15(%arg0: i32, %arg1: i32) -> (i32, i32) {
    %c0_i32 = arith.constant 0 : i32
    %c0_i32_0 = arith.constant 0 : i32
    %c0_i32_1 = arith.constant 0 : i32
    return %c0_i32, %c0_i32_0 : i32, i32
  }
  func.func @transform_16(%arg0: i32, %arg1: i32) -> (i32, i32) {
    %c0_i32 = arith.constant 0 : i32
    %c0_i32_0 = arith.constant 0 : i32
    %c0_i32_1 = arith.constant 0 : i32
    return %c0_i32, %c0_i32_0 : i32, i32
  }
  func.func @transform_17(%arg0: i32, %arg1: i32) -> (i32, i32) {
    %c0_i32 = arith.constant 0 : i32
    %c0_i32_0 = arith.constant 0 : i32
    %c0_i32_1 = arith.constant 0 : i32
    return %c0_i32, %c0_i32_0 : i32, i32
  }
  func.func @transform_18(%arg0: i32, %arg1: i32) -> (i32, i32) {
    %c0_i32 = arith.constant 0 : i32
    %c0_i32_0 = arith.constant 0 : i32
    %c0_i32_1 = arith.constant 0 : i32
    return %c0_i32, %c0_i32_0 : i32, i32
  }
  func.func @transform_19(%arg0: i32, %arg1: i32) -> (i32, i32) {
    %c0_i32 = arith.constant 0 : i32
    %c0_i32_0 = arith.constant 0 : i32
    %c0_i32_1 = arith.constant 0 : i32
    return %c0_i32, %c0_i32_0 : i32, i32
  }
  func.func @transform_20(%arg0: i32, %arg1: i32) -> (i32, i32) {
    %c0_i32 = arith.constant 0 : i32
    %c0_i32_0 = arith.constant 0 : i32
    %c0_i32_1 = arith.constant 0 : i32
    return %c0_i32, %c0_i32_0 : i32, i32
  }
  func.func @transform_21(%arg0: i32, %arg1: i32) -> (i32, i32) {
    %c0_i32 = arith.constant 0 : i32
    %c0_i32_0 = arith.constant 0 : i32
    %c0_i32_1 = arith.constant 0 : i32
    return %c0_i32, %c0_i32_0 : i32, i32
  }
  func.func @transform_22(%arg0: i32, %arg1: i32) -> (i32, i32) {
    %c0_i32 = arith.constant 0 : i32
    %c0_i32_0 = arith.constant 0 : i32
    %c0_i32_1 = arith.constant 0 : i32
    return %c0_i32, %c0_i32_0 : i32, i32
  }
  func.func @transform_23(%arg0: i32, %arg1: i32) -> (i32, i32, i32, i32) {
    %c0_i32 = arith.constant 0 : i32
    %c0_i32_0 = arith.constant 0 : i32
    %c0_i32_1 = arith.constant 0 : i32
    return %arg0, %arg1, %c0_i32, %c0_i32_0 : i32, i32, i32, i32
  }
}

</mosaic_0001>

<llo_original>
// kernel: tpu_custom_call.1
$region0: #{tpu_custom_call.1}
  #allocation0 [shape = 'u32[]', space=smem, size = 0x4, offset = 0x4, fixed_abs, tag = 'smem constant byte address 0x4 - core index']
  #allocation1 [shape = 'u32[144,128]{1,0:T(1,128)}', space=vmem, size = 0x12000, scoped, tag = 'internal scratch']
  #allocation2 [shape = 'bf16[12,18,128]{2,1,0:T(8,128)(2,1)}', space=vmem, size = 0x12000, scoped, tag = 'scratch operand']
  #allocation3 [shape = 'bf16[194,128]{1,0:T(8,128)(2,1)}', space=vmem, size = 0xc800, scoped, tag = 'scratch operand']
  %s0 = inlined_call_operand.vmem [shape: bf16[2,16,18,128], index: 0, kind: input, shape index: {}]
  %s1 = inlined_call_operand.vmem [shape: bf16[2,16,18,128], index: 1, kind: input, shape index: {}]
  %s2 = inlined_call_operand.vmem [shape: bf16[2,16,18,128], index: 2, kind: input, shape index: {}]
  %s3 = inlined_call_operand.vmem [shape: s32[160,1], index: 3, kind: input, shape index: {}]
  %s4 = inlined_call_operand.vmem [shape: bf16[1152,128], index: 4, kind: input, shape index: {}]
  %s5 = inlined_call_operand.vmem [shape: f32[1,128], index: 5, kind: input, shape index: {}]
  %s6 = inlined_call_operand.vmem [shape: f32[1,128], index: 6, kind: input, shape index: {}]
  %s7 = inlined_call_operand.vmem [shape: bf16[128,128], index: 7, kind: input, shape index: {}]
  %s8 = inlined_call_operand.vmem [shape: f32[1,128], index: 8, kind: input, shape index: {}]
  %s9 = inlined_call_operand.vmem [shape: f32[1,128], index: 9, kind: input, shape index: {}]
  %s10 = inlined_call_operand.vmem [shape: bf16[128,128], index: 10, kind: input, shape index: {}]
  %s11 = inlined_call_operand.vmem [shape: f32[1,128], index: 11, kind: input, shape index: {}]
  %s12 = inlined_call_operand.vmem [shape: f32[1,128], index: 12, kind: input, shape index: {}]
  %s13 = inlined_call_operand.vmem [shape: bf16[128,128], index: 13, kind: input, shape index: {}]
  %s14 = inlined_call_operand.vmem [shape: f32[1,128], index: 14, kind: input, shape index: {}]
  %s15 = inlined_call_operand.vmem [shape: f32[1,128], index: 15, kind: input, shape index: {}]
  %s16 = inlined_call_operand.vmem [shape: bf16[1152,128], index: 16, kind: input, shape index: {}]
  %s17 = inlined_call_operand.vmem [shape: f32[1,128], index: 17, kind: input, shape index: {}]
  %s18 = inlined_call_operand.vmem [shape: f32[1,128], index: 18, kind: input, shape index: {}]
  %s19 = inlined_call_operand.vmem [shape: bf16[128,128], index: 19, kind: input, shape index: {}]
  %s20 = inlined_call_operand.vmem [shape: bf16[128,128], index: 20, kind: input, shape index: {}]
  %s21 = inlined_call_operand.vmem [shape: f32[1,128], index: 21, kind: input, shape index: {}]
  %s22 = inlined_call_operand.vmem [shape: f32[1,128], index: 22, kind: input, shape index: {}]
  %s23 = inlined_call_operand.hbm [shape: bf16[2,16,16,128], index: 23, kind: output, shape index: {}]
  %s24 = sld [smem:[#allocation0]]
  $region133: #{tpu_custom_call.1} parent=0
    _
  %s26 = ssub.s32 1, %s24
  %s27 = scalar_select 0, %s26, %s24
  $region1: #{tpu_custom_call.1} parent=0
    #allocation4 [shape = 'u8[65536]{0}', space=vmem, size = 0x10000, scoped, tag = 'output window, operand 0']
    #allocation5 [shape = 's32[2]{0}', space=sflag, size = 0x8, scoped, tag = 'scoped memory for tpu_custom_call.1']
    %28 = vsyncpa [#allocation5], 0
    %s29 = scalar_lea.sflag [#allocation5], 1
    %30 = vsyncpa %s29, 0
    loop: start=0, step=1, limit=6
    $region2: #{tpu_custom_call.1} parent=1 // loop_pre_header
      _
    $region3: #{tpu_custom_call.1} parent=1 // loop_header
      %s32 = sphi 0, %s36
      %p33 = scmp.ge.s32.totalorder %s32, 6
      %s39 = sphi 0, %s51
      %s40 = sphi 0, %s47
      %s41 = sphi 0, %s39
      %s42 = sphi 0, %s40
      %s43 = sphi 0, %s41
      %s44 = sphi 0, %s42
      %s56 = sphi 0, %s58
      %s59 = sphi 0, %s56
      %s60 = sphi 0, %s59
      %s76 = sphi 0, %s60
      %s92 = sphi 0, %s94
      %s95 = sphi 0, %s92
      %s96 = sphi 0, %s95
      %s112 = sphi 0, %s96
      %s128 = sphi 0, %s130
      %s131 = sphi 0, %s128
      %s132 = sphi 0, %s131
      %s148 = sphi 0, %s132
      %s152 = sphi 0, %s152
      %s154 = sphi 0, %s152
      %s155 = sphi 0, %s154
      %s169 = sphi 0, %s155
      %s173 = sphi 0, %s173
      %s175 = sphi 0, %s173
      %s176 = sphi 0, %s175
      %s190 = sphi 0, %s176
      %s194 = sphi 0, %s194
      %s196 = sphi 0, %s194
      %s197 = sphi 0, %s196
      %s211 = sphi 0, %s197
      %s215 = sphi 0, %s215
      %s217 = sphi 0, %s215
      %s218 = sphi 0, %s217
      %s232 = sphi 0, %s218
      %s236 = sphi 0, %s236
      %s238 = sphi 0, %s236
      %s239 = sphi 0, %s238
      %s253 = sphi 0, %s239
      %s257 = sphi 0, %s257
      %s259 = sphi 0, %s257
      %s260 = sphi 0, %s259
      %s274 = sphi 0, %s260
      %s278 = sphi 0, %s278
      %s280 = sphi 0, %s278
      %s281 = sphi 0, %s280
      %s295 = sphi 0, %s281
      %s299 = sphi 0, %s299
      %s301 = sphi 0, %s299
      %s302 = sphi 0, %s301
      %s316 = sphi 0, %s302
      %s320 = sphi 0, %s320
      %s322 = sphi 0, %s320
      %s323 = sphi 0, %s322
      %s337 = sphi 0, %s323
      %s341 = sphi 0, %s341
      %s343 = sphi 0, %s341
      %s344 = sphi 0, %s343
      %s358 = sphi 0, %s344
      %s362 = sphi 0, %s362
      %s364 = sphi 0, %s362
      %s365 = sphi 0, %s364
      %s379 = sphi 0, %s365
      %s383 = sphi 0, %s383
      %s385 = sphi 0, %s383
      %s386 = sphi 0, %s385
      %s400 = sphi 0, %s386
      %s404 = sphi 0, %s404
      %s406 = sphi 0, %s404
      %s407 = sphi 0, %s406
      %s421 = sphi 0, %s407
      %s425 = sphi 0, %s425
      %s427 = sphi 0, %s425
      %s428 = sphi 0, %s427
      %s442 = sphi 0, %s428
      %s446 = sphi 0, %s446
      %s448 = sphi 0, %s446
      %s449 = sphi 0, %s448
      %s463 = sphi 0, %s449
      %s467 = sphi 0, %s467
      %s469 = sphi 0, %s467
      %s470 = sphi 0, %s469
      %s484 = sphi 0, %s470
      %s488 = sphi 0, %s488
      %s490 = sphi 0, %s488
      %s491 = sphi 0, %s490
      %s505 = sphi 0, %s491
      %s509 = sphi 0, %s509
      %s511 = sphi 0, %s509
      %s512 = sphi 0, %s511
      %s526 = sphi 0, %s512
      %s530 = sphi 0, %s530
      %s532 = sphi 0, %s530
      %s533 = sphi 0, %s532
      %s547 = sphi 0, %s533
      %s551 = sphi 0, %s551
      %s553 = sphi 0, %s551
      %s554 = sphi 0, %s553
      %s568 = sphi 0, %s554
      %s576 = sphi 0, %s578
      %s579 = sphi 0, %s576
      %s580 = sphi 0, %s579
      %s596 = sphi 0, %s580
    $region4: #{tpu_custom_call.1} parent=1 // loop_header_branch
      %35 = sbr.rel (%p33) target = $region8
    $region5: #{tpu_custom_call.1} parent=1 // loop_body
      %s37 = ssub.s32 %s32, 1
      %s38 = ssub.s32 %s32, 2
      %s45 = sadd.s32 1, %s40
      %p46 = scmp.ge.s32.totalorder %s45, 2
      %s47 = scalar_select %p46, 0, %s45
      %s48 = sadd.s32 1, %s39
      %s49 = scalar_select %p46, %s48, %s39
      %p50 = scmp.ge.s32.totalorder %s49, 2
      %s51 = scalar_select %p50, 0, %s49
      %s52 = ssub.s32 %s39, %s51
      %s53 = ssub.s32 %s40, %s47
      %s54 = sor.u32 %s52, %s53
      %p55 = scmp.eq.s32.totalorder %s54, 0
      %s57 = sadd.s32 %s56, 1
      %s58 = scalar_select %p55, %s56, %s57
      %p61 = pneg %p55
      %p62 = scmp.eq.s32.totalorder %s32, 3
      %p63 = por %p61, %p62
      %p64 = scmp.ne.s32.totalorder %s56, %s59
      %p65 = scmp.eq.s32.totalorder %s32, 0
      %p66 = por %p64, %p65
      %p67 = scmp.ne.s32.totalorder %s56, %s59
      %p68 = scmp.eq.s32.totalorder %s37, 3
      %p69 = por %p67, %p68
      %p70 = scmp.ne.s32.totalorder %s59, %s60
      %p71 = scmp.eq.s32.totalorder %s37, 0
      %p72 = por %p70, %p71
      %p73 = scmp.ne.s32.totalorder %s59, %s60
      %p74 = scmp.eq.s32.totalorder %s38, 3
      %p75 = por %p73, %p74
      %p77 = scmp.ne.s32.totalorder %s60, %s76
      %p78 = scmp.eq.s32.totalorder %s38, 0
      %p79 = por %p77, %p78
      %s80 = smul.u32 %s40, 4
      %s81 = ssub.s32 %s80, 1
      %p82 = scmp.gt.s32.totalorder %s81, 0
      %s83 = scalar_select %p82, %s81, 0
      %s84 = smul.u32 %s47, 4
      %s85 = ssub.s32 %s84, 1
      %p86 = scmp.gt.s32.totalorder %s85, 0
      %s87 = scalar_select %p86, %s85, 0
      %s88 = ssub.s32 %s39, %s51
      %s89 = ssub.s32 %s83, %s87
      %s90 = sor.u32 %s88, %s89
      %p91 = scmp.eq.s32.totalorder %s90, 0
      %s93 = sadd.s32 %s92, 1
      %s94 = scalar_select %p91, %s92, %s93
      %p97 = pneg %p91
      %p98 = scmp.eq.s32.totalorder %s32, 3
      %p99 = por %p97, %p98
      %p100 = scmp.ne.s32.totalorder %s92, %s95
      %p101 = scmp.eq.s32.totalorder %s32, 0
      %p102 = por %p100, %p101
      %p103 = scmp.ne.s32.totalorder %s92, %s95
      %p104 = scmp.eq.s32.totalorder %s37, 3
      %p105 = por %p103, %p104
      %p106 = scmp.ne.s32.totalorder %s95, %s96
      %p107 = scmp.eq.s32.totalorder %s37, 0
      %p108 = por %p106, %p107
      %p109 = scmp.ne.s32.totalorder %s95, %s96
      %p110 = scmp.eq.s32.totalorder %s38, 3
      %p111 = por %p109, %p110
      %p113 = scmp.ne.s32.totalorder %s96, %s112
      %p114 = scmp.eq.s32.totalorder %s38, 0
      %p115 = por %p113, %p114
      %s116 = sadd.s32 %s40, 1
      %s117 = smul.u32 %s116, 4
      %p118 = scmp.lt.s32.totalorder %s117, 7
      %s119 = scalar_select %p118, %s117, 7
      %s120 = sadd.s32 %s47, 1
      %s121 = smul.u32 %s120, 4
      %p122 = scmp.lt.s32.totalorder %s121, 7
      %s123 = scalar_select %p122, %s121, 7
      %s124 = ssub.s32 %s39, %s51
      %s125 = ssub.s32 %s119, %s123
      %s126 = sor.u32 %s124, %s125
      %p127 = scmp.eq.s32.totalorder %s126, 0
      %s129 = sadd.s32 %s128, 1
      %s130 = scalar_select %p127, %s128, %s129
      %p133 = pneg %p127
      %p134 = scmp.eq.s32.totalorder %s32, 3
      %p135 = por %p133, %p134
      %p136 = scmp.ne.s32.totalorder %s128, %s131
      %p137 = scmp.eq.s32.totalorder %s32, 0
      %p138 = por %p136, %p137
      %p139 = scmp.ne.s32.totalorder %s128, %s131
      %p140 = scmp.eq.s32.totalorder %s37, 3
      %p141 = por %p139, %p140
      %p142 = scmp.ne.s32.totalorder %s131, %s132
      %p143 = scmp.eq.s32.totalorder %s37, 0
      %p144 = por %p142, %p143
      %p145 = scmp.ne.s32.totalorder %s131, %s132
      %p146 = scmp.eq.s32.totalorder %s38, 3
      %p147 = por %p145, %p146
      %p149 = scmp.ne.s32.totalorder %s132, %s148
      %p150 = scmp.eq.s32.totalorder %s38, 0
      %p151 = por %p149, %p150
      %s153 = sadd.s32 %s152, 1
      %p156 = scmp.eq.s32.totalorder %s32, 3
      %p157 = scmp.ne.s32.totalorder %s152, %s154
      %p158 = scmp.eq.s32.totalorder %s32, 0
      %p159 = por %p157, %p158
      %p160 = scmp.ne.s32.totalorder %s152, %s154
      %p161 = scmp.eq.s32.totalorder %s37, 3
      %p162 = por %p160, %p161
      %p163 = scmp.ne.s32.totalorder %s154, %s155
      %p164 = scmp.eq.s32.totalorder %s37, 0
      %p165 = por %p163, %p164
      %p166 = scmp.ne.s32.totalorder %s154, %s155
      %p167 = scmp.eq.s32.totalorder %s38, 3
      %p168 = por %p166, %p167
      %p170 = scmp.ne.s32.totalorder %s155, %s169
      %p171 = scmp.eq.s32.totalorder %s38, 0
      %p172 = por %p170, %p171
      %s174 = sadd.s32 %s173, 1
      %p177 = scmp.eq.s32.totalorder %s32, 3
      %p178 = scmp.ne.s32.totalorder %s173, %s175
      %p179 = scmp.eq.s32.totalorder %s32, 0
      %p180 = por %p178, %p179
      %p181 = scmp.ne.s32.totalorder %s173, %s175
      %p182 = scmp.eq.s32.totalorder %s37, 3
      %p183 = por %p181, %p182
      %p184 = scmp.ne.s32.totalorder %s175, %s176
      %p185 = scmp.eq.s32.totalorder %s37, 0
      %p186 = por %p184, %p185
      %p187 = scmp.ne.s32.totalorder %s175, %s176
      %p188 = scmp.eq.s32.totalorder %s38, 3
      %p189 = por %p187, %p188
      %p191 = scmp.ne.s32.totalorder %s176, %s190
      %p192 = scmp.eq.s32.totalorder %s38, 0
      %p193 = por %p191, %p192
      %s195 = sadd.s32 %s194, 1
      %p198 = scmp.eq.s32.totalorder %s32, 3
      %p199 = scmp.ne.s32.totalorder %s194, %s196
      %p200 = scmp.eq.s32.totalorder %s32, 0
      %p201 = por %p199, %p200
      %p202 = scmp.ne.s32.totalorder %s194, %s196
      %p203 = scmp.eq.s32.totalorder %s37, 3
      %p204 = por %p202, %p203
      %p205 = scmp.ne.s32.totalorder %s196, %s197
      %p206 = scmp.eq.s32.totalorder %s37, 0
      %p207 = por %p205, %p206
      %p208 = scmp.ne.s32.totalorder %s196, %s197
      %p209 = scmp.eq.s32.totalorder %s38, 3
      %p210 = por %p208, %p209
      %p212 = scmp.ne.s32.totalorder %s197, %s211
      %p213 = scmp.eq.s32.totalorder %s38, 0
      %p214 = por %p212, %p213
      %s216 = sadd.s32 %s215, 1
      %p219 = scmp.eq.s32.totalorder %s32, 3
      %p220 = scmp.ne.s32.totalorder %s215, %s217
      %p221 = scmp.eq.s32.totalorder %s32, 0
      %p222 = por %p220, %p221
      %p223 = scmp.ne.s32.totalorder %s215, %s217
      %p224 = scmp.eq.s32.totalorder %s37, 3
      %p225 = por %p223, %p224
      %p226 = scmp.ne.s32.totalorder %s217, %s218
      %p227 = scmp.eq.s32.totalorder %s37, 0
      %p228 = por %p226, %p227
      %p229 = scmp.ne.s32.totalorder %s217, %s218
      %p230 = scmp.eq.s32.totalorder %s38, 3
      %p231 = por %p229, %p230
      %p233 = scmp.ne.s32.totalorder %s218, %s232
      %p234 = scmp.eq.s32.totalorder %s38, 0
      %p235 = por %p233, %p234
      %s237 = sadd.s32 %s236, 1
      %p240 = scmp.eq.s32.totalorder %s32, 3
      %p241 = scmp.ne.s32.totalorder %s236, %s238
      %p242 = scmp.eq.s32.totalorder %s32, 0
      %p243 = por %p241, %p242
      %p244 = scmp.ne.s32.totalorder %s236, %s238
      %p245 = scmp.eq.s32.totalorder %s37, 3
      %p246 = por %p244, %p245
      %p247 = scmp.ne.s32.totalorder %s238, %s239
      %p248 = scmp.eq.s32.totalorder %s37, 0
      %p249 = por %p247, %p248
      %p250 = scmp.ne.s32.totalorder %s238, %s239
      %p251 = scmp.eq.s32.totalorder %s38, 3
      %p252 = por %p250, %p251
      %p254 = scmp.ne.s32.totalorder %s239, %s253
      %p255 = scmp.eq.s32.totalorder %s38, 0
      %p256 = por %p254, %p255
      %s258 = sadd.s32 %s257, 1
      %p261 = scmp.eq.s32.totalorder %s32, 3
      %p262 = scmp.ne.s32.totalorder %s257, %s259
      %p263 = scmp.eq.s32.totalorder %s32, 0
      %p264 = por %p262, %p263
      %p265 = scmp.ne.s32.totalorder %s257, %s259
      %p266 = scmp.eq.s32.totalorder %s37, 3
      %p267 = por %p265, %p266
      %p268 = scmp.ne.s32.totalorder %s259, %s260
      %p269 = scmp.eq.s32.totalorder %s37, 0
      %p270 = por %p268, %p269
      %p271 = scmp.ne.s32.totalorder %s259, %s260
      %p272 = scmp.eq.s32.totalorder %s38, 3
      %p273 = por %p271, %p272
      %p275 = scmp.ne.s32.totalorder %s260, %s274
      %p276 = scmp.eq.s32.totalorder %s38, 0
      %p277 = por %p275, %p276
      %s279 = sadd.s32 %s278, 1
      %p282 = scmp.eq.s32.totalorder %s32, 3
      %p283 = scmp.ne.s32.totalorder %s278, %s280
      %p284 = scmp.eq.s32.totalorder %s32, 0
      %p285 = por %p283, %p284
      %p286 = scmp.ne.s32.totalorder %s278, %s280
      %p287 = scmp.eq.s32.totalorder %s37, 3
      %p288 = por %p286, %p287
      %p289 = scmp.ne.s32.totalorder %s280, %s281
      %p290 = scmp.eq.s32.totalorder %s37, 0
      %p291 = por %p289, %p290
      %p292 = scmp.ne.s32.totalorder %s280, %s281
      %p293 = scmp.eq.s32.totalorder %s38, 3
      %p294 = por %p292, %p293
      %p296 = scmp.ne.s32.totalorder %s281, %s295
      %p297 = scmp.eq.s32.totalorder %s38, 0
      %p298 = por %p296, %p297
      %s300 = sadd.s32 %s299, 1
      %p303 = scmp.eq.s32.totalorder %s32, 3
      %p304 = scmp.ne.s32.totalorder %s299, %s301
      %p305 = scmp.eq.s32.totalorder %s32, 0
      %p306 = por %p304, %p305
      %p307 = scmp.ne.s32.totalorder %s299, %s301
      %p308 = scmp.eq.s32.totalorder %s37, 3
      %p309 = por %p307, %p308
      %p310 = scmp.ne.s32.totalorder %s301, %s302
      %p311 = scmp.eq.s32.totalorder %s37, 0
      %p312 = por %p310, %p311
      %p313 = scmp.ne.s32.totalorder %s301, %s302
      %p314 = scmp.eq.s32.totalorder %s38, 3
      %p315 = por %p313, %p314
      %p317 = scmp.ne.s32.totalorder %s302, %s316
      %p318 = scmp.eq.s32.totalorder %s38, 0
      %p319 = por %p317, %p318
      %s321 = sadd.s32 %s320, 1
      %p324 = scmp.eq.s32.totalorder %s32, 3
      %p325 = scmp.ne.s32.totalorder %s320, %s322
      %p326 = scmp.eq.s32.totalorder %s32, 0
      %p327 = por %p325, %p326
      %p328 = scmp.ne.s32.totalorder %s320, %s322
      %p329 = scmp.eq.s32.totalorder %s37, 3
      %p330 = por %p328, %p329
      %p331 = scmp.ne.s32.totalorder %s322, %s323
      %p332 = scmp.eq.s32.totalorder %s37, 0
      %p333 = por %p331, %p332
      %p334 = scmp.ne.s32.totalorder %s322, %s323
      %p335 = scmp.eq.s32.totalorder %s38, 3
      %p336 = por %p334, %p335
      %p338 = scmp.ne.s32.totalorder %s323, %s337
      %p339 = scmp.eq.s32.totalorder %s38, 0
      %p340 = por %p338, %p339
      %s342 = sadd.s32 %s341, 1
      %p345 = scmp.eq.s32.totalorder %s32, 3
      %p346 = scmp.ne.s32.totalorder %s341, %s343
      %p347 = scmp.eq.s32.totalorder %s32, 0
      %p348 = por %p346, %p347
      %p349 = scmp.ne.s32.totalorder %s341, %s343
      %p350 = scmp.eq.s32.totalorder %s37, 3
      %p351 = por %p349, %p350
      %p352 = scmp.ne.s32.totalorder %s343, %s344
      %p353 = scmp.eq.s32.totalorder %s37, 0
      %p354 = por %p352, %p353
      %p355 = scmp.ne.s32.totalorder %s343, %s344
      %p356 = scmp.eq.s32.totalorder %s38, 3
      %p357 = por %p355, %p356
      %p359 = scmp.ne.s32.totalorder %s344, %s358
      %p360 = scmp.eq.s32.totalorder %s38, 0
      %p361 = por %p359, %p360
      %s363 = sadd.s32 %s362, 1
      %p366 = scmp.eq.s32.totalorder %s32, 3
      %p367 = scmp.ne.s32.totalorder %s362, %s364
      %p368 = scmp.eq.s32.totalorder %s32, 0
      %p369 = por %p367, %p368
      %p370 = scmp.ne.s32.totalorder %s362, %s364
      %p371 = scmp.eq.s32.totalorder %s37, 3
      %p372 = por %p370, %p371
      %p373 = scmp.ne.s32.totalorder %s364, %s365
      %p374 = scmp.eq.s32.totalorder %s37, 0
      %p375 = por %p373, %p374
      %p376 = scmp.ne.s32.totalorder %s364, %s365
      %p377 = scmp.eq.s32.totalorder %s38, 3
      %p378 = por %p376, %p377
      %p380 = scmp.ne.s32.totalorder %s365, %s379
      %p381 = scmp.eq.s32.totalorder %s38, 0
      %p382 = por %p380, %p381
      %s384 = sadd.s32 %s383, 1
      %p387 = scmp.eq.s32.totalorder %s32, 3
      %p388 = scmp.ne.s32.totalorder %s383, %s385
      %p389 = scmp.eq.s32.totalorder %s32, 0
      %p390 = por %p388, %p389
      %p391 = scmp.ne.s32.totalorder %s383, %s385
      %p392 = scmp.eq.s32.totalorder %s37, 3
      %p393 = por %p391, %p392
      %p394 = scmp.ne.s32.totalorder %s385, %s386
      %p395 = scmp.eq.s32.totalorder %s37, 0
      %p396 = por %p394, %p395
      %p397 = scmp.ne.s32.totalorder %s385, %s386
      %p398 = scmp.eq.s32.totalorder %s38, 3
      %p399 = por %p397, %p398
      %p401 = scmp.ne.s32.totalorder %s386, %s400
      %p402 = scmp.eq.s32.totalorder %s38, 0
      %p403 = por %p401, %p402
      %s405 = sadd.s32 %s404, 1
      %p408 = scmp.eq.s32.totalorder %s32, 3
      %p409 = scmp.ne.s32.totalorder %s404, %s406
      %p410 = scmp.eq.s32.totalorder %s32, 0
      %p411 = por %p409, %p410
      %p412 = scmp.ne.s32.totalorder %s404, %s406
      %p413 = scmp.eq.s32.totalorder %s37, 3
      %p414 = por %p412, %p413
      %p415 = scmp.ne.s32.totalorder %s406, %s407
      %p416 = scmp.eq.s32.totalorder %s37, 0
      %p417 = por %p415, %p416
      %p418 = scmp.ne.s32.totalorder %s406, %s407
      %p419 = scmp.eq.s32.totalorder %s38, 3
      %p420 = por %p418, %p419
      %p422 = scmp.ne.s32.totalorder %s407, %s421
      %p423 = scmp.eq.s32.totalorder %s38, 0
      %p424 = por %p422, %p423
      %s426 = sadd.s32 %s425, 1
      %p429 = scmp.eq.s32.totalorder %s32, 3
      %p430 = scmp.ne.s32.totalorder %s425, %s427
      %p431 = scmp.eq.s32.totalorder %s32, 0
      %p432 = por %p430, %p431
      %p433 = scmp.ne.s32.totalorder %s425, %s427
      %p434 = scmp.eq.s32.totalorder %s37, 3
      %p435 = por %p433, %p434
      %p436 = scmp.ne.s32.totalorder %s427, %s428
      %p437 = scmp.eq.s32.totalorder %s37, 0
      %p438 = por %p436, %p437
      %p439 = scmp.ne.s32.totalorder %s427, %s428
      %p440 = scmp.eq.s32.totalorder %s38, 3
      %p441 = por %p439, %p440
      %p443 = scmp.ne.s32.totalorder %s428, %s442
      %p444 = scmp.eq.s32.totalorder %s38, 0
      %p445 = por %p443, %p444
      %s447 = sadd.s32 %s446, 1
      %p450 = scmp.eq.s32.totalorder %s32, 3
      %p451 = scmp.ne.s32.totalorder %s446, %s448
      %p452 = scmp.eq.s32.totalorder %s32, 0
      %p453 = por %p451, %p452
      %p454 = scmp.ne.s32.totalorder %s446, %s448
      %p455 = scmp.eq.s32.totalorder %s37, 3
      %p456 = por %p454, %p455
      %p457 = scmp.ne.s32.totalorder %s448, %s449
      %p458 = scmp.eq.s32.totalorder %s37, 0
      %p459 = por %p457, %p458
      %p460 = scmp.ne.s32.totalorder %s448, %s449
      %p461 = scmp.eq.s32.totalorder %s38, 3
      %p462 = por %p460, %p461
      %p464 = scmp.ne.s32.totalorder %s449, %s463
      %p465 = scmp.eq.s32.totalorder %s38, 0
      %p466 = por %p464, %p465
      %s468 = sadd.s32 %s467, 1
      %p471 = scmp.eq.s32.totalorder %s32, 3
      %p472 = scmp.ne.s32.totalorder %s467, %s469
      %p473 = scmp.eq.s32.totalorder %s32, 0
      %p474 = por %p472, %p473
      %p475 = scmp.ne.s32.totalorder %s467, %s469
      %p476 = scmp.eq.s32.totalorder %s37, 3
      %p477 = por %p475, %p476
      %p478 = scmp.ne.s32.totalorder %s469, %s470
      %p479 = scmp.eq.s32.totalorder %s37, 0
      %p480 = por %p478, %p479
      %p481 = scmp.ne.s32.totalorder %s469, %s470
      %p482 = scmp.eq.s32.totalorder %s38, 3
      %p483 = por %p481, %p482
      %p485 = scmp.ne.s32.totalorder %s470, %s484
      %p486 = scmp.eq.s32.totalorder %s38, 0
      %p487 = por %p485, %p486
      %s489 = sadd.s32 %s488, 1
      %p492 = scmp.eq.s32.totalorder %s32, 3
      %p493 = scmp.ne.s32.totalorder %s488, %s490
      %p494 = scmp.eq.s32.totalorder %s32, 0
      %p495 = por %p493, %p494
      %p496 = scmp.ne.s32.totalorder %s488, %s490
      %p497 = scmp.eq.s32.totalorder %s37, 3
      %p498 = por %p496, %p497
      %p499 = scmp.ne.s32.totalorder %s490, %s491
      %p500 = scmp.eq.s32.totalorder %s37, 0
      %p501 = por %p499, %p500
      %p502 = scmp.ne.s32.totalorder %s490, %s491
      %p503 = scmp.eq.s32.totalorder %s38, 3
      %p504 = por %p502, %p503
      %p506 = scmp.ne.s32.totalorder %s491, %s505
      %p507 = scmp.eq.s32.totalorder %s38, 0
      %p508 = por %p506, %p507
      %s510 = sadd.s32 %s509, 1
      %p513 = scmp.eq.s32.totalorder %s32, 3
      %p514 = scmp.ne.s32.totalorder %s509, %s511
      %p515 = scmp.eq.s32.totalorder %s32, 0
      %p516 = por %p514, %p515
      %p517 = scmp.ne.s32.totalorder %s509, %s511
      %p518 = scmp.eq.s32.totalorder %s37, 3
      %p519 = por %p517, %p518
      %p520 = scmp.ne.s32.totalorder %s511, %s512
      %p521 = scmp.eq.s32.totalorder %s37, 0
      %p522 = por %p520, %p521
      %p523 = scmp.ne.s32.totalorder %s511, %s512
      %p524 = scmp.eq.s32.totalorder %s38, 3
      %p525 = por %p523, %p524
      %p527 = scmp.ne.s32.totalorder %s512, %s526
      %p528 = scmp.eq.s32.totalorder %s38, 0
      %p529 = por %p527, %p528
      %s531 = sadd.s32 %s530, 1
      %p534 = scmp.eq.s32.totalorder %s32, 3
      %p535 = scmp.ne.s32.totalorder %s530, %s532
      %p536 = scmp.eq.s32.totalorder %s32, 0
      %p537 = por %p535, %p536
      %p538 = scmp.ne.s32.totalorder %s530, %s532
      %p539 = scmp.eq.s32.totalorder %s37, 3
      %p540 = por %p538, %p539
      %p541 = scmp.ne.s32.totalorder %s532, %s533
      %p542 = scmp.eq.s32.totalorder %s37, 0
      %p543 = por %p541, %p542
      %p544 = scmp.ne.s32.totalorder %s532, %s533
      %p545 = scmp.eq.s32.totalorder %s38, 3
      %p546 = por %p544, %p545
      %p548 = scmp.ne.s32.totalorder %s533, %s547
      %p549 = scmp.eq.s32.totalorder %s38, 0
      %p550 = por %p548, %p549
      %s552 = sadd.s32 %s551, 1
      %p555 = scmp.eq.s32.totalorder %s32, 3
      %p556 = scmp.ne.s32.totalorder %s551, %s553
      %p557 = scmp.eq.s32.totalorder %s32, 0
      %p558 = por %p556, %p557
      %p559 = scmp.ne.s32.totalorder %s551, %s553
      %p560 = scmp.eq.s32.totalorder %s37, 3
      %p561 = por %p559, %p560
      %p562 = scmp.ne.s32.totalorder %s553, %s554
      %p563 = scmp.eq.s32.totalorder %s37, 0
      %p564 = por %p562, %p563
      %p565 = scmp.ne.s32.totalorder %s553, %s554
      %p566 = scmp.eq.s32.totalorder %s38, 3
      %p567 = por %p565, %p566
      %p569 = scmp.ne.s32.totalorder %s554, %s568
      %p570 = scmp.eq.s32.totalorder %s38, 0
      %p571 = por %p569, %p570
      %s572 = ssub.s32 %s39, %s51
      %s573 = ssub.s32 %s40, %s47
      %s574 = sor.u32 %s572, %s573
      %p575 = scmp.eq.s32.totalorder %s574, 0
      %s577 = sadd.s32 %s576, 1
      %s578 = scalar_select %p575, %s576, %s577
      %p581 = pneg %p575
      %p582 = scmp.eq.s32.totalorder %s32, 3
      %p583 = por %p581, %p582
      %p584 = scmp.ne.s32.totalorder %s576, %s579
      %p585 = scmp.eq.s32.totalorder %s32, 0
      %p586 = por %p584, %p585
      %p587 = scmp.ne.s32.totalorder %s576, %s579
      %p588 = scmp.eq.s32.totalorder %s37, 3
      %p589 = por %p587, %p588
      %p590 = scmp.ne.s32.totalorder %s579, %s580
      %p591 = scmp.eq.s32.totalorder %s37, 0
      %p592 = por %p590, %p591
      %p593 = scmp.ne.s32.totalorder %s579, %s580
      %p594 = scmp.eq.s32.totalorder %s38, 3
      %p595 = por %p593, %p594
      %p597 = scmp.ne.s32.totalorder %s580, %s596
      %p598 = scmp.eq.s32.totalorder %s38, 0
      %p599 = por %p597, %p598
      %p600 = scmp.le.s32.totalorder 1, %s32
      %p601 = scmp.lt.s32.totalorder %s32, 5
      %p602 = pnand %p600, %p601
      %p603 = pneg %p602
      // Predicated region
      $region9: #{tpu_custom_call.1} parent=5 // pred_check
        _
      $region10: #{tpu_custom_call.1} parent=5 // pred_check_branch
        %605 = sbr.rel (%p602) target = $region12
      $region11: #{tpu_custom_call.1} parent=5 // pred_region
        %s606 = ssub.s32 %s32, 1
        // Predicated region
        $region13: #{tpu_custom_call.1} parent=11 // pred_check
          %p607 = pneg %p165
        $region14: #{tpu_custom_call.1} parent=11 // pred_check_branch
          %609 = sbr.rel (%p607) target = $region16
        $region15: #{tpu_custom_call.1} parent=11 // pred_region
          _
        $region16: #{tpu_custom_call.1} parent=11 // pred_fallthru
          _
        // Predicated region
        $region17: #{tpu_custom_call.1} parent=11 // pred_check
          %p610 = pneg %p186
        $region18: #{tpu_custom_call.1} parent=11 // pred_check_branch
          %612 = sbr.rel (%p610) target = $region20
        $region19: #{tpu_custom_call.1} parent=11 // pred_region
          _
        $region20: #{tpu_custom_call.1} parent=11 // pred_fallthru
          _
        // Predicated region
        $region21: #{tpu_custom_call.1} parent=11 // pred_check
          %p613 = pneg %p207
        $region22: #{tpu_custom_call.1} parent=11 // pred_check_branch
          %615 = sbr.rel (%p613) target = $region24
        $region23: #{tpu_custom_call.1} parent=11 // pred_region
          _
        $region24: #{tpu_custom_call.1} parent=11 // pred_fallthru
          _
        // Predicated region
        $region25: #{tpu_custom_call.1} parent=11 // pred_check
          %p616 = pneg %p228
        $region26: #{tpu_custom_call.1} parent=11 // pred_check_branch
          %618 = sbr.rel (%p616) target = $region28
        $region27: #{tpu_custom_call.1} parent=11 // pred_region
          _
        $region28: #{tpu_custom_call.1} parent=11 // pred_fallthru
          _
        // Predicated region
        $region29: #{tpu_custom_call.1} parent=11 // pred_check
          %p619 = pneg %p249
        $region30: #{tpu_custom_call.1} parent=11 // pred_check_branch
          %621 = sbr.rel (%p619) target = $region32
        $region31: #{tpu_custom_call.1} parent=11 // pred_region
          _
        $region32: #{tpu_custom_call.1} parent=11 // pred_fallthru
          _
        // Predicated region
        $region33: #{tpu_custom_call.1} parent=11 // pred_check
          %p622 = pneg %p270
        $region34: #{tpu_custom_call.1} parent=11 // pred_check_branch
          %624 = sbr.rel (%p622) target = $region36
        $region35: #{tpu_custom_call.1} parent=11 // pred_region
          _
        $region36: #{tpu_custom_call.1} parent=11 // pred_fallthru
          _
        // Predicated region
        $region37: #{tpu_custom_call.1} parent=11 // pred_check
          %p625 = pneg %p291
        $region38: #{tpu_custom_call.1} parent=11 // pred_check_branch
          %627 = sbr.rel (%p625) target = $region40
        $region39: #{tpu_custom_call.1} parent=11 // pred_region
          _
        $region40: #{tpu_custom_call.1} parent=11 // pred_fallthru
          _
        // Predicated region
        $region41: #{tpu_custom_call.1} parent=11 // pred_check
          %p628 = pneg %p312
        $region42: #{tpu_custom_call.1} parent=11 // pred_check_branch
          %630 = sbr.rel (%p628) target = $region44
        $region43: #{tpu_custom_call.1} parent=11 // pred_region
          _
        $region44: #{tpu_custom_call.1} parent=11 // pred_fallthru
          _
        // Predicated region
        $region45: #{tpu_custom_call.1} parent=11 // pred_check
          %p631 = pneg %p333
        $region46: #{tpu_custom_call.1} parent=11 // pred_check_branch
          %633 = sbr.rel (%p631) target = $region48
        $region47: #{tpu_custom_call.1} parent=11 // pred_region
          _
        $region48: #{tpu_custom_call.1} parent=11 // pred_fallthru
          _
        // Predicated region
        $region49: #{tpu_custom_call.1} parent=11 // pred_check
          %p634 = pneg %p354
        $region50: #{tpu_custom_call.1} parent=11 // pred_check_branch
          %636 = sbr.rel (%p634) target = $region52
        $region51: #{tpu_custom_call.1} parent=11 // pred_region
          _
        $region52: #{tpu_custom_call.1} parent=11 // pred_fallthru
          _
        // Predicated region
        $region53: #{tpu_custom_call.1} parent=11 // pred_check
          %p637 = pneg %p375
        $region54: #{tpu_custom_call.1} parent=11 // pred_check_branch
          %639 = sbr.rel (%p637) target = $region56
        $region55: #{tpu_custom_call.1} parent=11 // pred_region
          _
        $region56: #{tpu_custom_call.1} parent=11 // pred_fallthru
          _
        // Predicated region
        $region57: #{tpu_custom_call.1} parent=11 // pred_check
          %p640 = pneg %p396
        $region58: #{tpu_custom_call.1} parent=11 // pred_check_branch
          %642 = sbr.rel (%p640) target = $region60
        $region59: #{tpu_custom_call.1} parent=11 // pred_region
          _
        $region60: #{tpu_custom_call.1} parent=11 // pred_fallthru
          _
        // Predicated region
        $region61: #{tpu_custom_call.1} parent=11 // pred_check
          %p643 = pneg %p417
        $region62: #{tpu_custom_call.1} parent=11 // pred_check_branch
          %645 = sbr.rel (%p643) target = $region64
        $region63: #{tpu_custom_call.1} parent=11 // pred_region
          _
        $region64: #{tpu_custom_call.1} parent=11 // pred_fallthru
          _
        // Predicated region
        $region65: #{tpu_custom_call.1} parent=11 // pred_check
          %p646 = pneg %p438
        $region66: #{tpu_custom_call.1} parent=11 // pred_check_branch
          %648 = sbr.rel (%p646) target = $region68
        $region67: #{tpu_custom_call.1} parent=11 // pred_region
          _
        $region68: #{tpu_custom_call.1} parent=11 // pred_fallthru
          _
        // Predicated region
        $region69: #{tpu_custom_call.1} parent=11 // pred_check
          %p649 = pneg %p459
        $region70: #{tpu_custom_call.1} parent=11 // pred_check_branch
          %651 = sbr.rel (%p649) target = $region72
        $region71: #{tpu_custom_call.1} parent=11 // pred_region
          _
        $region72: #{tpu_custom_call.1} parent=11 // pred_fallthru
          _
        // Predicated region
        $region73: #{tpu_custom_call.1} parent=11 // pred_check
          %p652 = pneg %p480
        $region74: #{tpu_custom_call.1} parent=11 // pred_check_branch
          %654 = sbr.rel (%p652) target = $region76
        $region75: #{tpu_custom_call.1} parent=11 // pred_region
          _
        $region76: #{tpu_custom_call.1} parent=11 // pred_fallthru
          _
        // Predicated region
        $region77: #{tpu_custom_call.1} parent=11 // pred_check
          %p655 = pneg %p501
        $region78: #{tpu_custom_call.1} parent=11 // pred_check_branch
          %657 = sbr.rel (%p655) target = $region80
        $region79: #{tpu_custom_call.1} parent=11 // pred_region
          _
        $region80: #{tpu_custom_call.1} parent=11 // pred_fallthru
          _
        // Predicated region
        $region81: #{tpu_custom_call.1} parent=11 // pred_check
          %p658 = pneg %p522
        $region82: #{tpu_custom_call.1} parent=11 // pred_check_branch
          %660 = sbr.rel (%p658) target = $region84
        $region83: #{tpu_custom_call.1} parent=11 // pred_region
          _
        $region84: #{tpu_custom_call.1} parent=11 // pred_fallthru
          _
        // Predicated region
        $region85: #{tpu_custom_call.1} parent=11 // pred_check
          %p661 = pneg %p543
        $region86: #{tpu_custom_call.1} parent=11 // pred_check_branch
          %663 = sbr.rel (%p661) target = $region88
        $region87: #{tpu_custom_call.1} parent=11 // pred_region
          _
        $region88: #{tpu_custom_call.1} parent=11 // pred_fallthru
          _
        // Predicated region
        $region89: #{tpu_custom_call.1} parent=11 // pred_check
          %p664 = pneg %p564
        $region90: #{tpu_custom_call.1} parent=11 // pred_check_branch
          %666 = sbr.rel (%p664) target = $region92
        $region91: #{tpu_custom_call.1} parent=11 // pred_region
          _
        $region92: #{tpu_custom_call.1} parent=11 // pred_fallthru
          _
      $region12: #{tpu_custom_call.1} parent=5 // pred_fallthru
        _
      %p667 = scmp.lt.s32.totalorder %s32, 4
      // Predicated region
      $region93: #{tpu_custom_call.1} parent=5 // pred_check
        %p668 = pneg %p667
      $region94: #{tpu_custom_call.1} parent=5 // pred_check_branch
        %670 = sbr.rel (%p668) target = $region96
      $region95: #{tpu_custom_call.1} parent=5 // pred_region
        // Predicated region
        $region97: #{tpu_custom_call.1} parent=95 // pred_check
          %p671 = pneg %p66
        $region98: #{tpu_custom_call.1} parent=95 // pred_check_branch
          %673 = sbr.rel (%p671) target = $region100
        $region99: #{tpu_custom_call.1} parent=95 // pred_region
          %s674 = smul.u32 8, %s40
          %p675 = scmp.lt.s32.totalorder %s39, 1
          %s676 = scalar_select %p675, %s39, 1
          %p677 = scmp.lt.s32.totalorder %s674, 15
          %s678 = scalar_select %p677, %s674, 15
          %s679 = smul.addr %s678, 3
          %s680 = smul.addr %s676, 48
          %s681 = sadd.s32 %s679, %s680
          %s682 = smul.addr %s681, 4
          %s683 = scalar_lea.vmem %s0, %s682
          %s684 = smul.u32 8, %s40
        $region100: #{tpu_custom_call.1} parent=95 // pred_fallthru
          _
        // Predicated region
        $region101: #{tpu_custom_call.1} parent=95 // pred_check
          %p685 = pneg %p102
        $region102: #{tpu_custom_call.1} parent=95 // pred_check_branch
          %687 = sbr.rel (%p685) target = $region104
        $region103: #{tpu_custom_call.1} parent=95 // pred_region
          %s688 = smul.u32 %s40, 4
          %s689 = ssub.s32 %s688, 1
          %p690 = scmp.gt.s32.totalorder %s689, 0
          %s691 = scalar_select %p690, %s689, 0
          %s692 = smul.u32 2, %s691
          %p693 = scmp.lt.s32.totalorder %s39, 1
          %s694 = scalar_select %p693, %s39, 1
          %p695 = scmp.lt.s32.totalorder %s692, 15
          %s696 = scalar_select %p695, %s692, 15
          %s697 = smul.addr %s696, 3
          %s698 = smul.addr %s694, 48
          %s699 = sadd.s32 %s697, %s698
          %s700 = smul.addr %s699, 4
          %s701 = scalar_lea.vmem %s1, %s700
          %s702 = smul.u32 %s40, 4
          %s703 = ssub.s32 %s702, 1
          %p704 = scmp.gt.s32.totalorder %s703, 0
          %s705 = scalar_select %p704, %s703, 0
          %s706 = smul.u32 2, %s705
        $region104: #{tpu_custom_call.1} parent=95 // pred_fallthru
          _
        // Predicated region
        $region105: #{tpu_custom_call.1} parent=95 // pred_check
          %p707 = pneg %p138
        $region106: #{tpu_custom_call.1} parent=95 // pred_check_branch
          %709 = sbr.rel (%p707) target = $region108
        $region107: #{tpu_custom_call.1} parent=95 // pred_region
          %s710 = sadd.s32 %s40, 1
          %s711 = smul.u32 %s710, 4
          %p712 = scmp.lt.s32.totalorder %s711, 7
          %s713 = scalar_select %p712, %s711, 7
          %s714 = smul.u32 2, %s713
          %p715 = scmp.lt.s32.totalorder %s39, 1
          %s716 = scalar_select %p715, %s39, 1
          %p717 = scmp.lt.s32.totalorder %s714, 15
          %s718 = scalar_select %p717, %s714, 15
          %s719 = smul.addr %s718, 3
          %s720 = smul.addr %s716, 48
          %s721 = sadd.s32 %s719, %s720
          %s722 = smul.addr %s721, 4
          %s723 = scalar_lea.vmem %s2, %s722
          %s724 = sadd.s32 %s40, 1
          %s725 = smul.u32 %s724, 4
          %p726 = scmp.lt.s32.totalorder %s725, 7
          %s727 = scalar_select %p726, %s725, 7
          %s728 = smul.u32 2, %s727
        $region108: #{tpu_custom_call.1} parent=95 // pred_fallthru
          _
      $region96: #{tpu_custom_call.1} parent=5 // pred_fallthru
        _
      %p729 = scmp.le.s32.totalorder 1, %s32
      %p730 = scmp.lt.s32.totalorder %s32, 5
      %p731 = pnand %p729, %p730
      %p732 = pneg %p731
      // Predicated region
      $region109: #{tpu_custom_call.1} parent=5 // pred_check
        _
      $region110: #{tpu_custom_call.1} parent=5 // pred_check_branch
        %734 = sbr.rel (%p731) target = $region112
      $region111: #{tpu_custom_call.1} parent=5 // pred_region
        %s735 = ssub.s32 %s32, 1
        %s736 = smul.u32 8, %s42
        %p737 = scmp.lt.s32.totalorder %s41, 1
        %s738 = scalar_select %p737, %s41, 1
        %p739 = scmp.lt.s32.totalorder %s736, 15
        %s740 = scalar_select %p739, %s736, 15
        %s741 = smul.addr %s740, 3
        %s742 = smul.addr %s738, 48
        %s743 = sadd.s32 %s741, %s742
        %s744 = smul.addr %s743, 4
        %s745 = scalar_lea.vmem %s0, %s744
        %p746 = pneg %p72
        %p747 = pneg %p69
        %s748 = smul.u32 %s42, 4
        %s749 = ssub.s32 %s748, 1
        %p750 = scmp.gt.s32.totalorder %s749, 0
        %s751 = scalar_select %p750, %s749, 0
        %s752 = smul.u32 2, %s751
        %p753 = scmp.lt.s32.totalorder %s41, 1
        %s754 = scalar_select %p753, %s41, 1
        %p755 = scmp.lt.s32.totalorder %s752, 15
        %s756 = scalar_select %p755, %s752, 15
        %s757 = smul.addr %s756, 3
        %s758 = smul.addr %s754, 48
        %s759 = sadd.s32 %s757, %s758
        %s760 = smul.addr %s759, 4
        %s761 = scalar_lea.vmem %s1, %s760
        %p762 = pneg %p108
        %p763 = pneg %p105
        %s764 = sadd.s32 %s42, 1
        %s765 = smul.u32 %s764, 4
        %p766 = scmp.lt.s32.totalorder %s765, 7
        %s767 = scalar_select %p766, %s765, 7
        %s768 = smul.u32 2, %s767
        %p769 = scmp.lt.s32.totalorder %s41, 1
        %s770 = scalar_select %p769, %s41, 1
        %p771 = scmp.lt.s32.totalorder %s768, 15
        %s772 = scalar_select %p771, %s768, 15
        %s773 = smul.addr %s772, 3
        %s774 = smul.addr %s770, 48
        %s775 = sadd.s32 %s773, %s774
        %s776 = smul.addr %s775, 4
        %s777 = scalar_lea.vmem %s2, %s776
        %p778 = pneg %p144
        %p779 = pneg %p141
        %p780 = pneg %p165
        %p781 = pneg %p162
        %p782 = pneg %p186
        %p783 = pneg %p183
        %p784 = pneg %p207
        %p785 = pneg %p204
        %p786 = pneg %p228
        %p787 = pneg %p225
        %p788 = pneg %p249
        %p789 = pneg %p246
        %p790 = pneg %p270
        %p791 = pneg %p267
        %p792 = pneg %p291
        %p793 = pneg %p288
        %p794 = pneg %p312
        %p795 = pneg %p309
        %p796 = pneg %p333
        %p797 = pneg %p330
        %p798 = pneg %p354
        %p799 = pneg %p351
        %p800 = pneg %p375
        %p801 = pneg %p372
        %p802 = pneg %p396
        %p803 = pneg %p393
        %p804 = pneg %p417
        %p805 = pneg %p414
        %p806 = pneg %p438
        %p807 = pneg %p435
        %p808 = pneg %p459
        %p809 = pneg %p456
        %p810 = pneg %p480
        %p811 = pneg %p477
        %p812 = pneg %p501
        %p813 = pneg %p498
        %p814 = pneg %p522
        %p815 = pneg %p519
        %p816 = pneg %p543
        %p817 = pneg %p540
        %p818 = pneg %p564
        %p819 = pneg %p561
        %p820 = pneg %p592
        %p821 = pneg %p589
        %s822 = sand.u32 %s579, 1
        %s823 = scalar_lea.sflag [#allocation5], %s822
        %s824 = sand.u32 %s579, 1
        %s825 = smul.addr %s824, 64
        %s826 = scalar_lea.vmem [#allocation4], %s825
        %s827 = smul.u32 8, %s42
        %p828 = scmp.lt.s32.totalorder %s41, 1
        %s829 = scalar_select %p828, %s41, 1
        %p830 = scmp.lt.s32.totalorder %s827, 15
        %s831 = scalar_select %p830, %s827, 15
        %s832 = smul.addr %s831, 3
        %s833 = smul.addr %s829, 48
        %s834 = sadd.s32 %s832, %s833
        %s835 = smul.addr %s834, 4
        %s836 = scalar_lea.vmem %s0, %s835
        %s837 = smul.u32 8, %s42
        %s838 = smul.u32 %s42, 4
        %s839 = ssub.s32 %s838, 1
        %p840 = scmp.gt.s32.totalorder %s839, 0
        %s841 = scalar_select %p840, %s839, 0
        %s842 = smul.u32 2, %s841
        %p843 = scmp.lt.s32.totalorder %s41, 1
        %s844 = scalar_select %p843, %s41, 1
        %p845 = scmp.lt.s32.totalorder %s842, 15
        %s846 = scalar_select %p845, %s842, 15
        %s847 = smul.addr %s846, 3
        %s848 = smul.addr %s844, 48
        %s849 = sadd.s32 %s847, %s848
        %s850 = smul.addr %s849, 4
        %s851 = scalar_lea.vmem %s1, %s850
        %s852 = smul.u32 %s42, 4
        %s853 = ssub.s32 %s852, 1
        %p854 = scmp.gt.s32.totalorder %s853, 0
        %s855 = scalar_select %p854, %s853, 0
        %s856 = smul.u32 2, %s855
        %s857 = sadd.s32 %s42, 1
        %s858 = smul.u32 %s857, 4
        %p859 = scmp.lt.s32.totalorder %s858, 7
        %s860 = scalar_select %p859, %s858, 7
        %s861 = smul.u32 2, %s860
        %p862 = scmp.lt.s32.totalorder %s41, 1
        %s863 = scalar_select %p862, %s41, 1
        %p864 = scmp.lt.s32.totalorder %s861, 15
        %s865 = scalar_select %p864, %s861, 15
        %s866 = smul.addr %s865, 3
        %s867 = smul.addr %s863, 48
        %s868 = sadd.s32 %s866, %s867
        %s869 = smul.addr %s868, 4
        %s870 = scalar_lea.vmem %s2, %s869
        %s871 = sadd.s32 %s42, 1
        %s872 = smul.u32 %s871, 4
        %p873 = scmp.lt.s32.totalorder %s872, 7
        %s874 = scalar_select %p873, %s872, 7
        %s875 = smul.u32 2, %s874
        %s876 = smul.u32 8, %s42
        %p880 = scmp.eq.s32.totalorder %s42, 0
        %p881 = scmp.eq.s32.totalorder %s42, 1
        %v882 = vld [vmem:[%s851] sm:$0xf]
        %v883 = vld [vmem:[%s851 + $0x4] sm:$0xf]
        %v884 = vld [vmem:[%s851 + $0x8] sm:$0x1]
        %v885 = vld [vmem:[%s851 + $0xc] sm:$0xf]
        %v886 = vld [vmem:[%s851 + $0x10] sm:$0xf]
        %v887 = vld [vmem:[%s851 + $0x14] sm:$0x1]
        %s888 = scalar_select %p880, 1, 0
        %v889 = vstv %s888
        %vm890 = vcmp.eq.s32.totalorder %v889, 1
        %v891 = vsel %vm890, 0, %v882
        %v892 = vsel %vm890, 0, %v883
        %v893 = vsel %vm890, 0, %v884
        %v894 = vsel %vm890, 0, %v885
        %v895 = vsel %vm890, 0, %v886
        %v896 = vsel %vm890, 0, %v887
        %897 = vst [vmem:[#allocation2] sm:$0xf] %v891
        %898 = vst [vmem:[#allocation2 + $0x4] sm:$0xf] %v892
        %899 = vst [vmem:[#allocation2 + $0x8] sm:$0x1] %v893
        %900 = vst [vmem:[#allocation2 + $0xc] sm:$0xf] %v894
        %901 = vst [vmem:[#allocation2 + $0x10] sm:$0xf] %v895
        %902 = vst [vmem:[#allocation2 + $0x14] sm:$0x1] %v896
        %v903 = vld [vmem:[%s836] sm:$0xf]
        %v904 = vld [vmem:[%s836 + $0x4] sm:$0xf]
        %v905 = vld [vmem:[%s836 + $0x8] sm:$0x1]
        %v906 = vld [vmem:[%s836 + $0xc] sm:$0xf]
        %v907 = vld [vmem:[%s836 + $0x10] sm:$0xf]
        %v908 = vld [vmem:[%s836 + $0x14] sm:$0x1]
        %v909 = vld [vmem:[%s836 + $0x18] sm:$0xf]
        %v910 = vld [vmem:[%s836 + $0x1c] sm:$0xf]
        %v911 = vld [vmem:[%s836 + $0x20] sm:$0x1]
        %v912 = vld [vmem:[%s836 + $0x24] sm:$0xf]
        %v913 = vld [vmem:[%s836 + $0x28] sm:$0xf]
        %v914 = vld [vmem:[%s836 + $0x2c] sm:$0x1]
        %v915 = vld [vmem:[%s836 + $0x30] sm:$0xf]
        %v916 = vld [vmem:[%s836 + $0x34] sm:$0xf]
        %v917 = vld [vmem:[%s836 + $0x38] sm:$0x1]
        %v918 = vld [vmem:[%s836 + $0x3c] sm:$0xf]
        %v919 = vld [vmem:[%s836 + $0x40] sm:$0xf]
        %v920 = vld [vmem:[%s836 + $0x44] sm:$0x1]
        %v921 = vld [vmem:[%s836 + $0x48] sm:$0xf]
        %v922 = vld [vmem:[%s836 + $0x4c] sm:$0xf]
        %v923 = vld [vmem:[%s836 + $0x50] sm:$0x1]
        %v924 = vld [vmem:[%s836 + $0x54] sm:$0xf]
        %v925 = vld [vmem:[%s836 + $0x58] sm:$0xf]
        %v926 = vld [vmem:[%s836 + $0x5c] sm:$0x1]
        %s927 = scalar_lea.vmem [#allocation2], 24
        %928 = vst [vmem:[%s927] sm:$0xf] %v903
        %929 = vst [vmem:[%s927 + $0x4] sm:$0xf] %v904
        %930 = vst [vmem:[%s927 + $0x8] sm:$0x1] %v905
        %931 = vst [vmem:[%s927 + $0xc] sm:$0xf] %v906
        %932 = vst [vmem:[%s927 + $0x10] sm:$0xf] %v907
        %933 = vst [vmem:[%s927 + $0x14] sm:$0x1] %v908
        %934 = vst [vmem:[%s927 + $0x18] sm:$0xf] %v909
        %935 = vst [vmem:[%s927 + $0x1c] sm:$0xf] %v910
        %936 = vst [vmem:[%s927 + $0x20] sm:$0x1] %v911
        %937 = vst [vmem:[%s927 + $0x24] sm:$0xf] %v912
        %938 = vst [vmem:[%s927 + $0x28] sm:$0xf] %v913
        %939 = vst [vmem:[%s927 + $0x2c] sm:$0x1] %v914
        %940 = vst [vmem:[%s927 + $0x30] sm:$0xf] %v915
        %941 = vst [vmem:[%s927 + $0x34] sm:$0xf] %v916
        %942 = vst [vmem:[%s927 + $0x38] sm:$0x1] %v917
        %943 = vst [vmem:[%s927 + $0x3c] sm:$0xf] %v918
        %944 = vst [vmem:[%s927 + $0x40] sm:$0xf] %v919
        %945 = vst [vmem:[%s927 + $0x44] sm:$0x1] %v920
        %946 = vst [vmem:[%s927 + $0x48] sm:$0xf] %v921
        %947 = vst [vmem:[%s927 + $0x4c] sm:$0xf] %v922
        %948 = vst [vmem:[%s927 + $0x50] sm:$0x1] %v923
        %949 = vst [vmem:[%s927 + $0x54] sm:$0xf] %v924
        %950 = vst [vmem:[%s927 + $0x58] sm:$0xf] %v925
        %951 = vst [vmem:[%s927 + $0x5c] sm:$0x1] %v926
        %v952 = vld [vmem:[%s870] sm:$0xf]
        %v953 = vld [vmem:[%s870 + $0x4] sm:$0xf]
        %v954 = vld [vmem:[%s870 + $0x8] sm:$0x1]
        %v955 = vld [vmem:[%s870 + $0xc] sm:$0xf]
        %v956 = vld [vmem:[%s870 + $0x10] sm:$0xf]
        %v957 = vld [vmem:[%s870 + $0x14] sm:$0x1]
        %s958 = scalar_select %p881, 1, 0
        %v959 = vstv %s958
        %vm960 = vcmp.eq.s32.totalorder %v959, 1
        %v961 = vsel %vm960, 0, %v952
        %v962 = vsel %vm960, 0, %v953
        %v963 = vsel %vm960, 0, %v954
        %v964 = vsel %vm960, 0, %v955
        %v965 = vsel %vm960, 0, %v956
        %v966 = vsel %vm960, 0, %v957
        %s967 = scalar_lea.vmem [#allocation2], 120
        %968 = vst [vmem:[%s967] sm:$0xf] %v961
        %969 = vst [vmem:[%s967 + $0x4] sm:$0xf] %v962
        %970 = vst [vmem:[%s967 + $0x8] sm:$0x1] %v963
        %971 = vst [vmem:[%s967 + $0xc] sm:$0xf] %v964
        %972 = vst [vmem:[%s967 + $0x10] sm:$0xf] %v965
        %973 = vst [vmem:[%s967 + $0x14] sm:$0x1] %v966
        %v974 = vld [vmem:[#allocation2] sm:$0xf]
        %v975 = vld [vmem:[#allocation2 + $0x4] sm:$0xf]
        %v976 = vld [vmem:[#allocation2 + $0xc] sm:$0xf]
        %v977 = vld [vmem:[#allocation2 + $0x10] sm:$0xf]
        %v978 = vld [vmem:[#allocation2 + $0x18] sm:$0xf]
        %v979 = vld [vmem:[#allocation2 + $0x1c] sm:$0xf]
        %v980 = vld [vmem:[#allocation2 + $0x24] sm:$0xf]
        %v981 = vld [vmem:[#allocation2 + $0x28] sm:$0xf]
        %v982 = vld [vmem:[#allocation2 + $0x30] sm:$0xf]
        %v983 = vld [vmem:[#allocation2 + $0x34] sm:$0xf]
        %v984 = vld [vmem:[#allocation2 + $0x3c] sm:$0xf]
        %v985 = vld [vmem:[#allocation2 + $0x40] sm:$0xf]
        %v986 = vld [vmem:[#allocation2 + $0x48] sm:$0xf]
        %v987 = vld [vmem:[#allocation2 + $0x4c] sm:$0xf]
        %v988 = vld [vmem:[#allocation2 + $0x54] sm:$0xf]
        %v989 = vld [vmem:[#allocation2 + $0x58] sm:$0xf]
        %v990 = vld [vmem:[#allocation2 + $0x60] sm:$0xf]
        %v991 = vld [vmem:[#allocation2 + $0x64] sm:$0xf]
        %v992 = vld [vmem:[#allocation2 + $0x6c] sm:$0xf]
        %v993 = vld [vmem:[#allocation2 + $0x70] sm:$0xf]
        %v994 = vld [vmem:[#allocation2 + $0x8] sm:$0x1]
        %v995 = vld [vmem:[#allocation2 + $0x14] sm:$0x1]
        %v996 = vld [vmem:[#allocation2 + $0x20] sm:$0x1]
        %v997 = vld [vmem:[#allocation2 + $0x2c] sm:$0x1]
        %v998 = vld [vmem:[#allocation2 + $0x38] sm:$0x1]
        %v999 = vld [vmem:[#allocation2 + $0x44] sm:$0x1]
        %v1000 = vld [vmem:[#allocation2 + $0x50] sm:$0x1]
        %v1001 = vld [vmem:[#allocation2 + $0x5c] sm:$0x1]
        %v1002 = vld [vmem:[#allocation2 + $0x68] sm:$0x1]
        %v1003 = vld [vmem:[#allocation2 + $0x74] sm:$0x1]
        %v1004 = vld [vmem:[#allocation2] sm:$0xe]
        %v1005 = vld [vmem:[#allocation2 + $0xc] sm:$0xe]
        %v1006 = vld [vmem:[#allocation2 + $0x18] sm:$0xe]
        %v1007 = vld [vmem:[#allocation2 + $0x24] sm:$0xe]
        %v1008 = vld [vmem:[#allocation2 + $0x30] sm:$0xe]
        %v1009 = vld [vmem:[#allocation2 + $0x3c] sm:$0xe]
        %v1010 = vld [vmem:[#allocation2 + $0x48] sm:$0xe]
        %v1011 = vld [vmem:[#allocation2 + $0x54] sm:$0xe]
        %v1012 = vld [vmem:[#allocation2 + $0x60] sm:$0xe]
        %v1013 = vld [vmem:[#allocation2 + $0x6c] sm:$0xe]
        %s1014 = scalar_lea.vmem [#allocation2], 12
        %v1015 = vld [vmem:[%s1014] sm:$0xf]
        %v1016 = vld [vmem:[%s1014 + $0x4] sm:$0xf]
        %v1017 = vld [vmem:[%s1014 + $0xc] sm:$0xf]
        %v1018 = vld [vmem:[%s1014 + $0x10] sm:$0xf]
        %v1019 = vld [vmem:[%s1014 + $0x18] sm:$0xf]
        %v1020 = vld [vmem:[%s1014 + $0x1c] sm:$0xf]
        %v1021 = vld [vmem:[%s1014 + $0x24] sm:$0xf]
        %v1022 = vld [vmem:[%s1014 + $0x28] sm:$0xf]
        %v1023 = vld [vmem:[%s1014 + $0x30] sm:$0xf]
        %v1024 = vld [vmem:[%s1014 + $0x34] sm:$0xf]
        %v1025 = vld [vmem:[%s1014 + $0x3c] sm:$0xf]
        %v1026 = vld [vmem:[%s1014 + $0x40] sm:$0xf]
        %v1027 = vld [vmem:[%s1014 + $0x48] sm:$0xf]
        %v1028 = vld [vmem:[%s1014 + $0x4c] sm:$0xf]
        %v1029 = vld [vmem:[%s1014 + $0x54] sm:$0xf]
        %v1030 = vld [vmem:[%s1014 + $0x58] sm:$0xf]
        %v1031 = vld [vmem:[%s1014 + $0x60] sm:$0xf]
        %v1032 = vld [vmem:[%s1014 + $0x64] sm:$0xf]
        %v1033 = vld [vmem:[%s1014 + $0x6c] sm:$0xf]
        %v1034 = vld [vmem:[%s1014 + $0x70] sm:$0xf]
        %v1035 = vld [vmem:[%s1014 + $0x8] sm:$0x1]
        %v1036 = vld [vmem:[%s1014 + $0x14] sm:$0x1]
        %v1037 = vld [vmem:[%s1014 + $0x20] sm:$0x1]
        %v1038 = vld [vmem:[%s1014 + $0x2c] sm:$0x1]
        %v1039 = vld [vmem:[%s1014 + $0x38] sm:$0x1]
        %v1040 = vld [vmem:[%s1014 + $0x44] sm:$0x1]
        %v1041 = vld [vmem:[%s1014 + $0x50] sm:$0x1]
        %v1042 = vld [vmem:[%s1014 + $0x5c] sm:$0x1]
        %v1043 = vld [vmem:[%s1014 + $0x68] sm:$0x1]
        %v1044 = vld [vmem:[%s1014 + $0x74] sm:$0x1]
        %v1045 = vld [vmem:[%s1014] sm:$0xe]
        %v1046 = vld [vmem:[%s1014 + $0xc] sm:$0xe]
        %v1047 = vld [vmem:[%s1014 + $0x18] sm:$0xe]
        %v1048 = vld [vmem:[%s1014 + $0x24] sm:$0xe]
        %v1049 = vld [vmem:[%s1014 + $0x30] sm:$0xe]
        %v1050 = vld [vmem:[%s1014 + $0x3c] sm:$0xe]
        %v1051 = vld [vmem:[%s1014 + $0x48] sm:$0xe]
        %v1052 = vld [vmem:[%s1014 + $0x54] sm:$0xe]
        %v1053 = vld [vmem:[%s1014 + $0x60] sm:$0xe]
        %v1054 = vld [vmem:[%s1014 + $0x6c] sm:$0xe]
        %v1055 = vld [vmem:[%s927] sm:$0xf]
        %v1056 = vld [vmem:[%s927 + $0x4] sm:$0xf]
        %v1057 = vld [vmem:[%s927 + $0xc] sm:$0xf]
        %v1058 = vld [vmem:[%s927 + $0x10] sm:$0xf]
        %v1059 = vld [vmem:[%s927 + $0x18] sm:$0xf]
        %v1060 = vld [vmem:[%s927 + $0x1c] sm:$0xf]
        %v1061 = vld [vmem:[%s927 + $0x24] sm:$0xf]
        %v1062 = vld [vmem:[%s927 + $0x28] sm:$0xf]
        %v1063 = vld [vmem:[%s927 + $0x30] sm:$0xf]
        %v1064 = vld [vmem:[%s927 + $0x34] sm:$0xf]
        %v1065 = vld [vmem:[%s927 + $0x3c] sm:$0xf]
        %v1066 = vld [vmem:[%s927 + $0x40] sm:$0xf]
        %v1067 = vld [vmem:[%s927 + $0x48] sm:$0xf]
        %v1068 = vld [vmem:[%s927 + $0x4c] sm:$0xf]
        %v1069 = vld [vmem:[%s927 + $0x54] sm:$0xf]
        %v1070 = vld [vmem:[%s927 + $0x58] sm:$0xf]
        %v1071 = vld [vmem:[%s927 + $0x60] sm:$0xf]
        %v1072 = vld [vmem:[%s927 + $0x64] sm:$0xf]
        %v1073 = vld [vmem:[%s927 + $0x6c] sm:$0xf]
        %v1074 = vld [vmem:[%s927 + $0x70] sm:$0xf]
        %v1075 = vld [vmem:[%s927 + $0x8] sm:$0x1]
        %v1076 = vld [vmem:[%s927 + $0x14] sm:$0x1]
        %v1077 = vld [vmem:[%s927 + $0x20] sm:$0x1]
        %v1078 = vld [vmem:[%s927 + $0x2c] sm:$0x1]
        %v1079 = vld [vmem:[%s927 + $0x38] sm:$0x1]
        %v1080 = vld [vmem:[%s927 + $0x44] sm:$0x1]
        %v1081 = vld [vmem:[%s927 + $0x50] sm:$0x1]
        %v1082 = vld [vmem:[%s927 + $0x5c] sm:$0x1]
        %v1083 = vld [vmem:[%s927 + $0x68] sm:$0x1]
        %v1084 = vld [vmem:[%s927 + $0x74] sm:$0x1]
        %v1085 = vld [vmem:[%s927] sm:$0xe]
        %v1086 = vld [vmem:[%s927 + $0xc] sm:$0xe]
        %v1087 = vld [vmem:[%s927 + $0x18] sm:$0xe]
        %v1088 = vld [vmem:[%s927 + $0x24] sm:$0xe]
        %v1089 = vld [vmem:[%s927 + $0x30] sm:$0xe]
        %v1090 = vld [vmem:[%s927 + $0x3c] sm:$0xe]
        %v1091 = vld [vmem:[%s927 + $0x48] sm:$0xe]
        %v1092 = vld [vmem:[%s927 + $0x54] sm:$0xe]
        %v1093 = vld [vmem:[%s927 + $0x60] sm:$0xe]
        %v1094 = vld [vmem:[%s927 + $0x6c] sm:$0xe]
        %v1115 = vunpack.c.l.b16 %v974
        %v1116 = vunpack.c.l.b16 %v975
        %v1117 = vunpack.c.l.b16 %v976
        %v1118 = vunpack.c.l.b16 %v977
        %v1119 = vunpack.c.l.b16 %v978
        %v1120 = vunpack.c.l.b16 %v979
        %v1121 = vunpack.c.l.b16 %v980
        %v1122 = vunpack.c.l.b16 %v981
        %v1123 = vunpack.c.l.b16 %v982
        %v1124 = vunpack.c.l.b16 %v983
        %v1125 = vunpack.c.l.b16 %v984
        %v1126 = vunpack.c.l.b16 %v985
        %v1127 = vunpack.c.l.b16 %v986
        %v1128 = vunpack.c.l.b16 %v987
        %v1129 = vunpack.c.l.b16 %v988
        %v1130 = vunpack.c.l.b16 %v989
        %v1131 = vunpack.c.l.b16 %v990
        %v1132 = vunpack.c.l.b16 %v991
        %v1133 = vunpack.c.l.b16 %v992
        %v1134 = vunpack.c.l.b16 %v993
        %v1135 = vpack.c.b16 %v1116, %v1115
        %v1136 = vpack.c.b16 %v1118, %v1117
        %v1137 = vpack.c.b16 %v1120, %v1119
        %v1138 = vpack.c.b16 %v1122, %v1121
        %v1139 = vpack.c.b16 %v1124, %v1123
        %v1140 = vpack.c.b16 %v1126, %v1125
        %v1141 = vpack.c.b16 %v1128, %v1127
        %v1142 = vpack.c.b16 %v1130, %v1129
        %v1143 = vpack.c.b16 %v1132, %v1131
        %v1144 = vpack.c.b16 %v1134, %v1133
        %v1165 = vunpack.c.l.b16 %v994
        %v1166 = vunpack.c.l.b16 %v995
        %v1167 = vunpack.c.l.b16 %v996
        %v1168 = vunpack.c.l.b16 %v997
        %v1169 = vunpack.c.l.b16 %v998
        %v1170 = vunpack.c.l.b16 %v999
        %v1171 = vunpack.c.l.b16 %v1000
        %v1172 = vunpack.c.l.b16 %v1001
        %v1173 = vunpack.c.l.b16 %v1002
        %v1174 = vunpack.c.l.b16 %v1003
        %v1175 = vpack.c.b16 %v1165, %v1165
        %v1176 = vpack.c.b16 %v1166, %v1166
        %v1177 = vpack.c.b16 %v1167, %v1167
        %v1178 = vpack.c.b16 %v1168, %v1168
        %v1179 = vpack.c.b16 %v1169, %v1169
        %v1180 = vpack.c.b16 %v1170, %v1170
        %v1181 = vpack.c.b16 %v1171, %v1171
        %v1182 = vpack.c.b16 %v1172, %v1172
        %v1183 = vpack.c.b16 %v1173, %v1173
        %v1184 = vpack.c.b16 %v1174, %v1174
        %vm1185 = vsmask.f32 7424
        %v1187 = vshrl.u32 %v1135, 16
        %v1189 = vshll.u32 %v1135, 16
        %v1191 = vrot.slane %v1189, 1
        %v1192 = vor.u32 %v1187, %v1191
        %v1194 = vshll.u32 %v1175, 16
        %v1196 = vrot.slane %v1194, 1
        %v1197 = vsel %vm1185, %v1192, %v1196
        %v1199 = vshrl.u32 %v1136, 16
        %v1201 = vshll.u32 %v1136, 16
        %v1203 = vrot.slane %v1201, 1
        %v1204 = vor.u32 %v1199, %v1203
        %v1206 = vshll.u32 %v1176, 16
        %v1208 = vrot.slane %v1206, 1
        %v1209 = vsel %vm1185, %v1204, %v1208
        %v1211 = vshrl.u32 %v1137, 16
        %v1213 = vshll.u32 %v1137, 16
        %v1215 = vrot.slane %v1213, 1
        %v1216 = vor.u32 %v1211, %v1215
        %v1218 = vshll.u32 %v1177, 16
        %v1220 = vrot.slane %v1218, 1
        %v1221 = vsel %vm1185, %v1216, %v1220
        %v1223 = vshrl.u32 %v1138, 16
        %v1225 = vshll.u32 %v1138, 16
        %v1227 = vrot.slane %v1225, 1
        %v1228 = vor.u32 %v1223, %v1227
        %v1230 = vshll.u32 %v1178, 16
        %v1232 = vrot.slane %v1230, 1
        %v1233 = vsel %vm1185, %v1228, %v1232
        %v1235 = vshrl.u32 %v1139, 16
        %v1237 = vshll.u32 %v1139, 16
        %v1239 = vrot.slane %v1237, 1
        %v1240 = vor.u32 %v1235, %v1239
        %v1242 = vshll.u32 %v1179, 16
        %v1244 = vrot.slane %v1242, 1
        %v1245 = vsel %vm1185, %v1240, %v1244
        %v1247 = vshrl.u32 %v1140, 16
        %v1249 = vshll.u32 %v1140, 16
        %v1251 = vrot.slane %v1249, 1
        %v1252 = vor.u32 %v1247, %v1251
        %v1254 = vshll.u32 %v1180, 16
        %v1256 = vrot.slane %v1254, 1
        %v1257 = vsel %vm1185, %v1252, %v1256
        %v1259 = vshrl.u32 %v1141, 16
        %v1261 = vshll.u32 %v1141, 16
        %v1263 = vrot.slane %v1261, 1
        %v1264 = vor.u32 %v1259, %v1263
        %v1266 = vshll.u32 %v1181, 16
        %v1268 = vrot.slane %v1266, 1
        %v1269 = vsel %vm1185, %v1264, %v1268
        %v1271 = vshrl.u32 %v1142, 16
        %v1273 = vshll.u32 %v1142, 16
        %v1275 = vrot.slane %v1273, 1
        %v1276 = vor.u32 %v1271, %v1275
        %v1278 = vshll.u32 %v1182, 16
        %v1280 = vrot.slane %v1278, 1
        %v1281 = vsel %vm1185, %v1276, %v1280
        %v1283 = vshrl.u32 %v1143, 16
        %v1285 = vshll.u32 %v1143, 16
        %v1287 = vrot.slane %v1285, 1
        %v1288 = vor.u32 %v1283, %v1287
        %v1290 = vshll.u32 %v1183, 16
        %v1292 = vrot.slane %v1290, 1
        %v1293 = vsel %vm1185, %v1288, %v1292
        %v1295 = vshrl.u32 %v1144, 16
        %v1297 = vshll.u32 %v1144, 16
        %v1299 = vrot.slane %v1297, 1
        %v1300 = vor.u32 %v1295, %v1299
        %v1302 = vshll.u32 %v1184, 16
        %v1304 = vrot.slane %v1302, 1
        %v1305 = vsel %vm1185, %v1300, %v1304
        %v1326 = vunpack.c.l.b16 %v1004
        %v1327 = vunpack.c.l.b16 %v1005
        %v1328 = vunpack.c.l.b16 %v1006
        %v1329 = vunpack.c.l.b16 %v1007
        %v1330 = vunpack.c.l.b16 %v1008
        %v1331 = vunpack.c.l.b16 %v1009
        %v1332 = vunpack.c.l.b16 %v1010
        %v1333 = vunpack.c.l.b16 %v1011
        %v1334 = vunpack.c.l.b16 %v1012
        %v1335 = vunpack.c.l.b16 %v1013
        %v1336 = vpack.c.b16 %v1116, %v1326
        %v1337 = vpack.c.b16 %v1118, %v1327
        %v1338 = vpack.c.b16 %v1120, %v1328
        %v1339 = vpack.c.b16 %v1122, %v1329
        %v1340 = vpack.c.b16 %v1124, %v1330
        %v1341 = vpack.c.b16 %v1126, %v1331
        %v1342 = vpack.c.b16 %v1128, %v1332
        %v1343 = vpack.c.b16 %v1130, %v1333
        %v1344 = vpack.c.b16 %v1132, %v1334
        %v1345 = vpack.c.b16 %v1134, %v1335
        %vm1346 = vcmask 1046528
        %v1347 = vrot.slane %v1336, 1
        %v1348 = vrot.slane %v1175, 1
        %v1349 = vsel %vm1346, %v1347, %v1348
        %v1350 = vrot.slane %v1337, 1
        %v1351 = vrot.slane %v1176, 1
        %v1352 = vsel %vm1346, %v1350, %v1351
        %v1353 = vrot.slane %v1338, 1
        %v1354 = vrot.slane %v1177, 1
        %v1355 = vsel %vm1346, %v1353, %v1354
        %v1356 = vrot.slane %v1339, 1
        %v1357 = vrot.slane %v1178, 1
        %v1358 = vsel %vm1346, %v1356, %v1357
        %v1359 = vrot.slane %v1340, 1
        %v1360 = vrot.slane %v1179, 1
        %v1361 = vsel %vm1346, %v1359, %v1360
        %v1362 = vrot.slane %v1341, 1
        %v1363 = vrot.slane %v1180, 1
        %v1364 = vsel %vm1346, %v1362, %v1363
        %v1365 = vrot.slane %v1342, 1
        %v1366 = vrot.slane %v1181, 1
        %v1367 = vsel %vm1346, %v1365, %v1366
        %v1368 = vrot.slane %v1343, 1
        %v1369 = vrot.slane %v1182, 1
        %v1370 = vsel %vm1346, %v1368, %v1369
        %v1371 = vrot.slane %v1344, 1
        %v1372 = vrot.slane %v1183, 1
        %v1373 = vsel %vm1346, %v1371, %v1372
        %v1374 = vrot.slane %v1345, 1
        %v1375 = vrot.slane %v1184, 1
        %v1376 = vsel %vm1346, %v1374, %v1375
        %v1407 = vunpack.c.l.b16 %v1015
        %v1408 = vunpack.c.l.b16 %v1016
        %v1409 = vunpack.c.l.b16 %v1017
        %v1410 = vunpack.c.l.b16 %v1018
        %v1411 = vunpack.c.l.b16 %v1019
        %v1412 = vunpack.c.l.b16 %v1020
        %v1413 = vunpack.c.l.b16 %v1021
        %v1414 = vunpack.c.l.b16 %v1022
        %v1415 = vunpack.c.l.b16 %v1023
        %v1416 = vunpack.c.l.b16 %v1024
        %v1417 = vunpack.c.l.b16 %v1025
        %v1418 = vunpack.c.l.b16 %v1026
        %v1419 = vunpack.c.l.b16 %v1027
        %v1420 = vunpack.c.l.b16 %v1028
        %v1421 = vunpack.c.l.b16 %v1029
        %v1422 = vunpack.c.l.b16 %v1030
        %v1423 = vunpack.c.l.b16 %v1031
        %v1424 = vunpack.c.l.b16 %v1032
        %v1425 = vunpack.c.l.b16 %v1033
        %v1426 = vunpack.c.l.b16 %v1034
        %v1427 = vpack.c.b16 %v1408, %v1407
        %v1428 = vpack.c.b16 %v1410, %v1409
        %v1429 = vpack.c.b16 %v1412, %v1411
        %v1430 = vpack.c.b16 %v1414, %v1413
        %v1431 = vpack.c.b16 %v1416, %v1415
        %v1432 = vpack.c.b16 %v1418, %v1417
        %v1433 = vpack.c.b16 %v1420, %v1419
        %v1434 = vpack.c.b16 %v1422, %v1421
        %v1435 = vpack.c.b16 %v1424, %v1423
        %v1436 = vpack.c.b16 %v1426, %v1425
        %v1457 = vunpack.c.l.b16 %v1035
        %v1458 = vunpack.c.l.b16 %v1036
        %v1459 = vunpack.c.l.b16 %v1037
        %v1460 = vunpack.c.l.b16 %v1038
        %v1461 = vunpack.c.l.b16 %v1039
        %v1462 = vunpack.c.l.b16 %v1040
        %v1463 = vunpack.c.l.b16 %v1041
        %v1464 = vunpack.c.l.b16 %v1042
        %v1465 = vunpack.c.l.b16 %v1043
        %v1466 = vunpack.c.l.b16 %v1044
        %v1467 = vpack.c.b16 %v1457, %v1457
        %v1468 = vpack.c.b16 %v1458, %v1458
        %v1469 = vpack.c.b16 %v1459, %v1459
        %v1470 = vpack.c.b16 %v1460, %v1460
        %v1471 = vpack.c.b16 %v1461, %v1461
        %v1472 = vpack.c.b16 %v1462, %v1462
        %v1473 = vpack.c.b16 %v1463, %v1463
        %v1474 = vpack.c.b16 %v1464, %v1464
        %v1475 = vpack.c.b16 %v1465, %v1465
        %v1476 = vpack.c.b16 %v1466, %v1466
        %v1478 = vshrl.u32 %v1427, 16
        %v1480 = vshll.u32 %v1427, 16
        %v1482 = vrot.slane %v1480, 1
        %v1483 = vor.u32 %v1478, %v1482
        %v1485 = vshll.u32 %v1467, 16
        %v1487 = vrot.slane %v1485, 1
        %v1488 = vsel %vm1185, %v1483, %v1487
        %v1490 = vshrl.u32 %v1428, 16
        %v1492 = vshll.u32 %v1428, 16
        %v1494 = vrot.slane %v1492, 1
        %v1495 = vor.u32 %v1490, %v1494
        %v1497 = vshll.u32 %v1468, 16
        %v1499 = vrot.slane %v1497, 1
        %v1500 = vsel %vm1185, %v1495, %v1499
        %v1502 = vshrl.u32 %v1429, 16
        %v1504 = vshll.u32 %v1429, 16
        %v1506 = vrot.slane %v1504, 1
        %v1507 = vor.u32 %v1502, %v1506
        %v1509 = vshll.u32 %v1469, 16
        %v1511 = vrot.slane %v1509, 1
        %v1512 = vsel %vm1185, %v1507, %v1511
        %v1514 = vshrl.u32 %v1430, 16
        %v1516 = vshll.u32 %v1430, 16
        %v1518 = vrot.slane %v1516, 1
        %v1519 = vor.u32 %v1514, %v1518
        %v1521 = vshll.u32 %v1470, 16
        %v1523 = vrot.slane %v1521, 1
        %v1524 = vsel %vm1185, %v1519, %v1523
        %v1526 = vshrl.u32 %v1431, 16
        %v1528 = vshll.u32 %v1431, 16
        %v1530 = vrot.slane %v1528, 1
        %v1531 = vor.u32 %v1526, %v1530
        %v1533 = vshll.u32 %v1471, 16
        %v1535 = vrot.slane %v1533, 1
        %v1536 = vsel %vm1185, %v1531, %v1535
        %v1538 = vshrl.u32 %v1432, 16
        %v1540 = vshll.u32 %v1432, 16
        %v1542 = vrot.slane %v1540, 1
        %v1543 = vor.u32 %v1538, %v1542
        %v1545 = vshll.u32 %v1472, 16
        %v1547 = vrot.slane %v1545, 1
        %v1548 = vsel %vm1185, %v1543, %v1547
        %v1550 = vshrl.u32 %v1433, 16
        %v1552 = vshll.u32 %v1433, 16
        %v1554 = vrot.slane %v1552, 1
        %v1555 = vor.u32 %v1550, %v1554
        %v1557 = vshll.u32 %v1473, 16
        %v1559 = vrot.slane %v1557, 1
        %v1560 = vsel %vm1185, %v1555, %v1559
        %v1562 = vshrl.u32 %v1434, 16
        %v1564 = vshll.u32 %v1434, 16
        %v1566 = vrot.slane %v1564, 1
        %v1567 = vor.u32 %v1562, %v1566
        %v1569 = vshll.u32 %v1474, 16
        %v1571 = vrot.slane %v1569, 1
        %v1572 = vsel %vm1185, %v1567, %v1571
        %v1574 = vshrl.u32 %v1435, 16
        %v1576 = vshll.u32 %v1435, 16
        %v1578 = vrot.slane %v1576, 1
        %v1579 = vor.u32 %v1574, %v1578
        %v1581 = vshll.u32 %v1475, 16
        %v1583 = vrot.slane %v1581, 1
        %v1584 = vsel %vm1185, %v1579, %v1583
        %v1586 = vshrl.u32 %v1436, 16
        %v1588 = vshll.u32 %v1436, 16
        %v1590 = vrot.slane %v1588, 1
        %v1591 = vor.u32 %v1586, %v1590
        %v1593 = vshll.u32 %v1476, 16
        %v1595 = vrot.slane %v1593, 1
        %v1596 = vsel %vm1185, %v1591, %v1595
        %v1617 = vunpack.c.l.b16 %v1045
        %v1618 = vunpack.c.l.b16 %v1046
        %v1619 = vunpack.c.l.b16 %v1047
        %v1620 = vunpack.c.l.b16 %v1048
        %v1621 = vunpack.c.l.b16 %v1049
        %v1622 = vunpack.c.l.b16 %v1050
        %v1623 = vunpack.c.l.b16 %v1051
        %v1624 = vunpack.c.l.b16 %v1052
        %v1625 = vunpack.c.l.b16 %v1053
        %v1626 = vunpack.c.l.b16 %v1054
        %v1627 = vpack.c.b16 %v1408, %v1617
        %v1628 = vpack.c.b16 %v1410, %v1618
        %v1629 = vpack.c.b16 %v1412, %v1619
        %v1630 = vpack.c.b16 %v1414, %v1620
        %v1631 = vpack.c.b16 %v1416, %v1621
        %v1632 = vpack.c.b16 %v1418, %v1622
        %v1633 = vpack.c.b16 %v1420, %v1623
        %v1634 = vpack.c.b16 %v1422, %v1624
        %v1635 = vpack.c.b16 %v1424, %v1625
        %v1636 = vpack.c.b16 %v1426, %v1626
        %v1637 = vrot.slane %v1627, 1
        %v1638 = vrot.slane %v1467, 1
        %v1639 = vsel %vm1346, %v1637, %v1638
        %v1640 = vrot.slane %v1628, 1
        %v1641 = vrot.slane %v1468, 1
        %v1642 = vsel %vm1346, %v1640, %v1641
        %v1643 = vrot.slane %v1629, 1
        %v1644 = vrot.slane %v1469, 1
        %v1645 = vsel %vm1346, %v1643, %v1644
        %v1646 = vrot.slane %v1630, 1
        %v1647 = vrot.slane %v1470, 1
        %v1648 = vsel %vm1346, %v1646, %v1647
        %v1649 = vrot.slane %v1631, 1
        %v1650 = vrot.slane %v1471, 1
        %v1651 = vsel %vm1346, %v1649, %v1650
        %v1652 = vrot.slane %v1632, 1
        %v1653 = vrot.slane %v1472, 1
        %v1654 = vsel %vm1346, %v1652, %v1653
        %v1655 = vrot.slane %v1633, 1
        %v1656 = vrot.slane %v1473, 1
        %v1657 = vsel %vm1346, %v1655, %v1656
        %v1658 = vrot.slane %v1634, 1
        %v1659 = vrot.slane %v1474, 1
        %v1660 = vsel %vm1346, %v1658, %v1659
        %v1661 = vrot.slane %v1635, 1
        %v1662 = vrot.slane %v1475, 1
        %v1663 = vsel %vm1346, %v1661, %v1662
        %v1664 = vrot.slane %v1636, 1
        %v1665 = vrot.slane %v1476, 1
        %v1666 = vsel %vm1346, %v1664, %v1665
        %v1697 = vunpack.c.l.b16 %v1055
        %v1698 = vunpack.c.l.b16 %v1056
        %v1699 = vunpack.c.l.b16 %v1057
        %v1700 = vunpack.c.l.b16 %v1058
        %v1701 = vunpack.c.l.b16 %v1059
        %v1702 = vunpack.c.l.b16 %v1060
        %v1703 = vunpack.c.l.b16 %v1061
        %v1704 = vunpack.c.l.b16 %v1062
        %v1705 = vunpack.c.l.b16 %v1063
        %v1706 = vunpack.c.l.b16 %v1064
        %v1707 = vunpack.c.l.b16 %v1065
        %v1708 = vunpack.c.l.b16 %v1066
        %v1709 = vunpack.c.l.b16 %v1067
        %v1710 = vunpack.c.l.b16 %v1068
        %v1711 = vunpack.c.l.b16 %v1069
        %v1712 = vunpack.c.l.b16 %v1070
        %v1713 = vunpack.c.l.b16 %v1071
        %v1714 = vunpack.c.l.b16 %v1072
        %v1715 = vunpack.c.l.b16 %v1073
        %v1716 = vunpack.c.l.b16 %v1074
        %v1717 = vpack.c.b16 %v1698, %v1697
        %v1718 = vpack.c.b16 %v1700, %v1699
        %v1719 = vpack.c.b16 %v1702, %v1701
        %v1720 = vpack.c.b16 %v1704, %v1703
        %v1721 = vpack.c.b16 %v1706, %v1705
        %v1722 = vpack.c.b16 %v1708, %v1707
        %v1723 = vpack.c.b16 %v1710, %v1709
        %v1724 = vpack.c.b16 %v1712, %v1711
        %v1725 = vpack.c.b16 %v1714, %v1713
        %v1726 = vpack.c.b16 %v1716, %v1715
        %v1747 = vunpack.c.l.b16 %v1075
        %v1748 = vunpack.c.l.b16 %v1076
        %v1749 = vunpack.c.l.b16 %v1077
        %v1750 = vunpack.c.l.b16 %v1078
        %v1751 = vunpack.c.l.b16 %v1079
        %v1752 = vunpack.c.l.b16 %v1080
        %v1753 = vunpack.c.l.b16 %v1081
        %v1754 = vunpack.c.l.b16 %v1082
        %v1755 = vunpack.c.l.b16 %v1083
        %v1756 = vunpack.c.l.b16 %v1084
        %v1757 = vpack.c.b16 %v1747, %v1747
        %v1758 = vpack.c.b16 %v1748, %v1748
        %v1759 = vpack.c.b16 %v1749, %v1749
        %v1760 = vpack.c.b16 %v1750, %v1750
        %v1761 = vpack.c.b16 %v1751, %v1751
        %v1762 = vpack.c.b16 %v1752, %v1752
        %v1763 = vpack.c.b16 %v1753, %v1753
        %v1764 = vpack.c.b16 %v1754, %v1754
        %v1765 = vpack.c.b16 %v1755, %v1755
        %v1766 = vpack.c.b16 %v1756, %v1756
        %v1768 = vshrl.u32 %v1717, 16
        %v1770 = vshll.u32 %v1717, 16
        %v1772 = vrot.slane %v1770, 1
        %v1773 = vor.u32 %v1768, %v1772
        %v1775 = vshll.u32 %v1757, 16
        %v1777 = vrot.slane %v1775, 1
        %v1778 = vsel %vm1185, %v1773, %v1777
        %v1780 = vshrl.u32 %v1718, 16
        %v1782 = vshll.u32 %v1718, 16
        %v1784 = vrot.slane %v1782, 1
        %v1785 = vor.u32 %v1780, %v1784
        %v1787 = vshll.u32 %v1758, 16
        %v1789 = vrot.slane %v1787, 1
        %v1790 = vsel %vm1185, %v1785, %v1789
        %v1792 = vshrl.u32 %v1719, 16
        %v1794 = vshll.u32 %v1719, 16
        %v1796 = vrot.slane %v1794, 1
        %v1797 = vor.u32 %v1792, %v1796
        %v1799 = vshll.u32 %v1759, 16
        %v1801 = vrot.slane %v1799, 1
        %v1802 = vsel %vm1185, %v1797, %v1801
        %v1804 = vshrl.u32 %v1720, 16
        %v1806 = vshll.u32 %v1720, 16
        %v1808 = vrot.slane %v1806, 1
        %v1809 = vor.u32 %v1804, %v1808
        %v1811 = vshll.u32 %v1760, 16
        %v1813 = vrot.slane %v1811, 1
        %v1814 = vsel %vm1185, %v1809, %v1813
        %v1816 = vshrl.u32 %v1721, 16
        %v1818 = vshll.u32 %v1721, 16
        %v1820 = vrot.slane %v1818, 1
        %v1821 = vor.u32 %v1816, %v1820
        %v1823 = vshll.u32 %v1761, 16
        %v1825 = vrot.slane %v1823, 1
        %v1826 = vsel %vm1185, %v1821, %v1825
        %v1828 = vshrl.u32 %v1722, 16
        %v1830 = vshll.u32 %v1722, 16
        %v1832 = vrot.slane %v1830, 1
        %v1833 = vor.u32 %v1828, %v1832
        %v1835 = vshll.u32 %v1762, 16
        %v1837 = vrot.slane %v1835, 1
        %v1838 = vsel %vm1185, %v1833, %v1837
        %v1840 = vshrl.u32 %v1723, 16
        %v1842 = vshll.u32 %v1723, 16
        %v1844 = vrot.slane %v1842, 1
        %v1845 = vor.u32 %v1840, %v1844
        %v1847 = vshll.u32 %v1763, 16
        %v1849 = vrot.slane %v1847, 1
        %v1850 = vsel %vm1185, %v1845, %v1849
        %v1852 = vshrl.u32 %v1724, 16
        %v1854 = vshll.u32 %v1724, 16
        %v1856 = vrot.slane %v1854, 1
        %v1857 = vor.u32 %v1852, %v1856
        %v1859 = vshll.u32 %v1764, 16
        %v1861 = vrot.slane %v1859, 1
        %v1862 = vsel %vm1185, %v1857, %v1861
        %v1864 = vshrl.u32 %v1725, 16
        %v1866 = vshll.u32 %v1725, 16
        %v1868 = vrot.slane %v1866, 1
        %v1869 = vor.u32 %v1864, %v1868
        %v1871 = vshll.u32 %v1765, 16
        %v1873 = vrot.slane %v1871, 1
        %v1874 = vsel %vm1185, %v1869, %v1873
        %v1876 = vshrl.u32 %v1726, 16
        %v1878 = vshll.u32 %v1726, 16
        %v1880 = vrot.slane %v1878, 1
        %v1881 = vor.u32 %v1876, %v1880
        %v1883 = vshll.u32 %v1766, 16
        %v1885 = vrot.slane %v1883, 1
        %v1886 = vsel %vm1185, %v1881, %v1885
        %v1907 = vunpack.c.l.b16 %v1085
        %v1908 = vunpack.c.l.b16 %v1086
        %v1909 = vunpack.c.l.b16 %v1087
        %v1910 = vunpack.c.l.b16 %v1088
        %v1911 = vunpack.c.l.b16 %v1089
        %v1912 = vunpack.c.l.b16 %v1090
        %v1913 = vunpack.c.l.b16 %v1091
        %v1914 = vunpack.c.l.b16 %v1092
        %v1915 = vunpack.c.l.b16 %v1093
        %v1916 = vunpack.c.l.b16 %v1094
        %v1917 = vpack.c.b16 %v1698, %v1907
        %v1918 = vpack.c.b16 %v1700, %v1908
        %v1919 = vpack.c.b16 %v1702, %v1909
        %v1920 = vpack.c.b16 %v1704, %v1910
        %v1921 = vpack.c.b16 %v1706, %v1911
        %v1922 = vpack.c.b16 %v1708, %v1912
        %v1923 = vpack.c.b16 %v1710, %v1913
        %v1924 = vpack.c.b16 %v1712, %v1914
        %v1925 = vpack.c.b16 %v1714, %v1915
        %v1926 = vpack.c.b16 %v1716, %v1916
        %v1927 = vrot.slane %v1917, 1
        %v1928 = vrot.slane %v1757, 1
        %v1929 = vsel %vm1346, %v1927, %v1928
        %v1930 = vrot.slane %v1918, 1
        %v1931 = vrot.slane %v1758, 1
        %v1932 = vsel %vm1346, %v1930, %v1931
        %v1933 = vrot.slane %v1919, 1
        %v1934 = vrot.slane %v1759, 1
        %v1935 = vsel %vm1346, %v1933, %v1934
        %v1936 = vrot.slane %v1920, 1
        %v1937 = vrot.slane %v1760, 1
        %v1938 = vsel %vm1346, %v1936, %v1937
        %v1939 = vrot.slane %v1921, 1
        %v1940 = vrot.slane %v1761, 1
        %v1941 = vsel %vm1346, %v1939, %v1940
        %v1942 = vrot.slane %v1922, 1
        %v1943 = vrot.slane %v1762, 1
        %v1944 = vsel %vm1346, %v1942, %v1943
        %v1945 = vrot.slane %v1923, 1
        %v1946 = vrot.slane %v1763, 1
        %v1947 = vsel %vm1346, %v1945, %v1946
        %v1948 = vrot.slane %v1924, 1
        %v1949 = vrot.slane %v1764, 1
        %v1950 = vsel %vm1346, %v1948, %v1949
        %v1951 = vrot.slane %v1925, 1
        %v1952 = vrot.slane %v1765, 1
        %v1953 = vsel %vm1346, %v1951, %v1952
        %v1954 = vrot.slane %v1926, 1
        %v1955 = vrot.slane %v1766, 1
        %v1956 = vsel %vm1346, %v1954, %v1955
        %v1967 = vld [vmem:[%s4] sm:$0xf]
        %v1968 = vld [vmem:[%s4 + $0x4] sm:$0xf]
        %v1969 = vld [vmem:[%s4 + $0x8] sm:$0xf]
        %v1970 = vld [vmem:[%s4 + $0xc] sm:$0xf]
        %v1971 = vld [vmem:[%s4 + $0x10] sm:$0xf]
        %v1972 = vld [vmem:[%s4 + $0x14] sm:$0xf]
        %v1973 = vld [vmem:[%s4 + $0x18] sm:$0xf]
        %v1974 = vld [vmem:[%s4 + $0x1c] sm:$0xf]
        %v1975 = vld [vmem:[%s4 + $0x20] sm:$0xf]
        %v1976 = vld [vmem:[%s4 + $0x24] sm:$0xf]
        %v1977 = vld [vmem:[%s4 + $0x28] sm:$0xf]
        %v1978 = vld [vmem:[%s4 + $0x2c] sm:$0xf]
        %v1979 = vld [vmem:[%s4 + $0x30] sm:$0xf]
        %v1980 = vld [vmem:[%s4 + $0x34] sm:$0xf]
        %v1981 = vld [vmem:[%s4 + $0x38] sm:$0xf]
        %v1982 = vld [vmem:[%s4 + $0x3c] sm:$0xf]
        %v1983 = vld [vmem:[%s4 + $0x40] sm:$0xf]
        %v1984 = vld [vmem:[%s4 + $0x44] sm:$0xf]
        %v1985 = vld [vmem:[%s4 + $0x48] sm:$0xf]
        %v1986 = vld [vmem:[%s4 + $0x4c] sm:$0xf]
        %v1987 = vld [vmem:[%s4 + $0x50] sm:$0xf]
        %v1988 = vld [vmem:[%s4 + $0x54] sm:$0xf]
        %v1989 = vld [vmem:[%s4 + $0x58] sm:$0xf]
        %v1990 = vld [vmem:[%s4 + $0x5c] sm:$0xf]
        %v1991 = vld [vmem:[%s4 + $0x60] sm:$0xf]
        %v1992 = vld [vmem:[%s4 + $0x64] sm:$0xf]
        %v1993 = vld [vmem:[%s4 + $0x68] sm:$0xf]
        %v1994 = vld [vmem:[%s4 + $0x6c] sm:$0xf]
        %v1995 = vld [vmem:[%s4 + $0x70] sm:$0xf]
        %v1996 = vld [vmem:[%s4 + $0x74] sm:$0xf]
        %v1997 = vld [vmem:[%s4 + $0x78] sm:$0xf]
        %v1998 = vld [vmem:[%s4 + $0x7c] sm:$0xf]
        %v1999 = vld [vmem:[%s4 + $0x80] sm:$0xf]
        %v2000 = vld [vmem:[%s4 + $0x84] sm:$0xf]
        %v2001 = vld [vmem:[%s4 + $0x88] sm:$0xf]
        %v2002 = vld [vmem:[%s4 + $0x8c] sm:$0xf]
        %v2003 = vld [vmem:[%s4 + $0x90] sm:$0xf]
        %v2004 = vld [vmem:[%s4 + $0x94] sm:$0xf]
        %v2005 = vld [vmem:[%s4 + $0x98] sm:$0xf]
        %v2006 = vld [vmem:[%s4 + $0x9c] sm:$0xf]
        %v2007 = vld [vmem:[%s4 + $0xa0] sm:$0xf]
        %v2008 = vld [vmem:[%s4 + $0xa4] sm:$0xf]
        %v2009 = vld [vmem:[%s4 + $0xa8] sm:$0xf]
        %v2010 = vld [vmem:[%s4 + $0xac] sm:$0xf]
        %v2011 = vld [vmem:[%s4 + $0xb0] sm:$0xf]
        %v2012 = vld [vmem:[%s4 + $0xb4] sm:$0xf]
        %v2013 = vld [vmem:[%s4 + $0xb8] sm:$0xf]
        %v2014 = vld [vmem:[%s4 + $0xbc] sm:$0xf]
        %v2015 = vld [vmem:[%s4 + $0xc0] sm:$0xf]
        %v2016 = vld [vmem:[%s4 + $0xc4] sm:$0xf]
        %v2017 = vld [vmem:[%s4 + $0xc8] sm:$0xf]
        %v2018 = vld [vmem:[%s4 + $0xcc] sm:$0xf]
        %v2019 = vld [vmem:[%s4 + $0xd0] sm:$0xf]
        %v2020 = vld [vmem:[%s4 + $0xd4] sm:$0xf]
        %v2021 = vld [vmem:[%s4 + $0xd8] sm:$0xf]
        %v2022 = vld [vmem:[%s4 + $0xdc] sm:$0xf]
        %v2023 = vld [vmem:[%s4 + $0xe0] sm:$0xf]
        %v2024 = vld [vmem:[%s4 + $0xe4] sm:$0xf]
        %v2025 = vld [vmem:[%s4 + $0xe8] sm:$0xf]
        %v2026 = vld [vmem:[%s4 + $0xec] sm:$0xf]
        %v2027 = vld [vmem:[%s4 + $0xf0] sm:$0xf]
        %v2028 = vld [vmem:[%s4 + $0xf4] sm:$0xf]
        %v2029 = vld [vmem:[%s4 + $0xf8] sm:$0xf]
        %v2030 = vld [vmem:[%s4 + $0xfc] sm:$0xf]
        %v2031 = vld [vmem:[%s4 + $0x100] sm:$0xf]
        %v2032 = vld [vmem:[%s4 + $0x104] sm:$0xf]
        %v2033 = vld [vmem:[%s4 + $0x108] sm:$0xf]
        %v2034 = vld [vmem:[%s4 + $0x10c] sm:$0xf]
        %v2035 = vld [vmem:[%s4 + $0x110] sm:$0xf]
        %v2036 = vld [vmem:[%s4 + $0x114] sm:$0xf]
        %v2037 = vld [vmem:[%s4 + $0x118] sm:$0xf]
        %v2038 = vld [vmem:[%s4 + $0x11c] sm:$0xf]
        %v2039 = vld [vmem:[%s4 + $0x120] sm:$0xf]
        %v2040 = vld [vmem:[%s4 + $0x124] sm:$0xf]
        %v2041 = vld [vmem:[%s4 + $0x128] sm:$0xf]
        %v2042 = vld [vmem:[%s4 + $0x12c] sm:$0xf]
        %v2043 = vld [vmem:[%s4 + $0x130] sm:$0xf]
        %v2044 = vld [vmem:[%s4 + $0x134] sm:$0xf]
        %v2045 = vld [vmem:[%s4 + $0x138] sm:$0xf]
        %v2046 = vld [vmem:[%s4 + $0x13c] sm:$0xf]
        %v2047 = vld [vmem:[%s4 + $0x140] sm:$0xf]
        %v2048 = vld [vmem:[%s4 + $0x144] sm:$0xf]
        %v2049 = vld [vmem:[%s4 + $0x148] sm:$0xf]
        %v2050 = vld [vmem:[%s4 + $0x14c] sm:$0xf]
        %v2051 = vld [vmem:[%s4 + $0x150] sm:$0xf]
        %v2052 = vld [vmem:[%s4 + $0x154] sm:$0xf]
        %v2053 = vld [vmem:[%s4 + $0x158] sm:$0xf]
        %v2054 = vld [vmem:[%s4 + $0x15c] sm:$0xf]
        %v2055 = vld [vmem:[%s4 + $0x160] sm:$0xf]
        %v2056 = vld [vmem:[%s4 + $0x164] sm:$0xf]
        %v2057 = vld [vmem:[%s4 + $0x168] sm:$0xf]
        %v2058 = vld [vmem:[%s4 + $0x16c] sm:$0xf]
        %v2059 = vld [vmem:[%s4 + $0x170] sm:$0xf]
        %v2060 = vld [vmem:[%s4 + $0x174] sm:$0xf]
        %v2061 = vld [vmem:[%s4 + $0x178] sm:$0xf]
        %v2062 = vld [vmem:[%s4 + $0x17c] sm:$0xf]
        %v2063 = vld [vmem:[%s4 + $0x180] sm:$0xf]
        %v2064 = vld [vmem:[%s4 + $0x184] sm:$0xf]
        %v2065 = vld [vmem:[%s4 + $0x188] sm:$0xf]
        %v2066 = vld [vmem:[%s4 + $0x18c] sm:$0xf]
        %v2067 = vld [vmem:[%s4 + $0x190] sm:$0xf]
        %v2068 = vld [vmem:[%s4 + $0x194] sm:$0xf]
        %v2069 = vld [vmem:[%s4 + $0x198] sm:$0xf]
        %v2070 = vld [vmem:[%s4 + $0x19c] sm:$0xf]
        %v2071 = vld [vmem:[%s4 + $0x1a0] sm:$0xf]
        %v2072 = vld [vmem:[%s4 + $0x1a4] sm:$0xf]
        %v2073 = vld [vmem:[%s4 + $0x1a8] sm:$0xf]
        %v2074 = vld [vmem:[%s4 + $0x1ac] sm:$0xf]
        %v2075 = vld [vmem:[%s4 + $0x1b0] sm:$0xf]
        %v2076 = vld [vmem:[%s4 + $0x1b4] sm:$0xf]
        %v2077 = vld [vmem:[%s4 + $0x1b8] sm:$0xf]
        %v2078 = vld [vmem:[%s4 + $0x1bc] sm:$0xf]
        %v2079 = vld [vmem:[%s4 + $0x1c0] sm:$0xf]
        %v2080 = vld [vmem:[%s4 + $0x1c4] sm:$0xf]
        %v2081 = vld [vmem:[%s4 + $0x1c8] sm:$0xf]
        %v2082 = vld [vmem:[%s4 + $0x1cc] sm:$0xf]
        %v2083 = vld [vmem:[%s4 + $0x1d0] sm:$0xf]
        %v2084 = vld [vmem:[%s4 + $0x1d4] sm:$0xf]
        %v2085 = vld [vmem:[%s4 + $0x1d8] sm:$0xf]
        %v2086 = vld [vmem:[%s4 + $0x1dc] sm:$0xf]
        %v2087 = vld [vmem:[%s4 + $0x1e0] sm:$0xf]
        %v2088 = vld [vmem:[%s4 + $0x1e4] sm:$0xf]
        %v2089 = vld [vmem:[%s4 + $0x1e8] sm:$0xf]
        %v2090 = vld [vmem:[%s4 + $0x1ec] sm:$0xf]
        %v2091 = vld [vmem:[%s4 + $0x1f0] sm:$0xf]
        %v2092 = vld [vmem:[%s4 + $0x1f4] sm:$0xf]
        %v2093 = vld [vmem:[%s4 + $0x1f8] sm:$0xf]
        %v2094 = vld [vmem:[%s4 + $0x1fc] sm:$0xf]
        %v2095 = vld [vmem:[%s4 + $0x200] sm:$0xf]
        %v2096 = vld [vmem:[%s4 + $0x204] sm:$0xf]
        %v2097 = vld [vmem:[%s4 + $0x208] sm:$0xf]
        %v2098 = vld [vmem:[%s4 + $0x20c] sm:$0xf]
        %v2099 = vld [vmem:[%s4 + $0x210] sm:$0xf]
        %v2100 = vld [vmem:[%s4 + $0x214] sm:$0xf]
        %v2101 = vld [vmem:[%s4 + $0x218] sm:$0xf]
        %v2102 = vld [vmem:[%s4 + $0x21c] sm:$0xf]
        %v2103 = vld [vmem:[%s4 + $0x220] sm:$0xf]
        %v2104 = vld [vmem:[%s4 + $0x224] sm:$0xf]
        %v2105 = vld [vmem:[%s4 + $0x228] sm:$0xf]
        %v2106 = vld [vmem:[%s4 + $0x22c] sm:$0xf]
        %v2107 = vld [vmem:[%s4 + $0x230] sm:$0xf]
        %v2108 = vld [vmem:[%s4 + $0x234] sm:$0xf]
        %v2109 = vld [vmem:[%s4 + $0x238] sm:$0xf]
        %v2110 = vld [vmem:[%s4 + $0x23c] sm:$0xf]
        %v2255 = vunpack.c.l.b16 %v1967
        %v2256 = vunpack.c.l.b16 %v1968
        %v2257 = vunpack.c.l.b16 %v1969
        %v2258 = vunpack.c.l.b16 %v1970
        %v2259 = vunpack.c.l.b16 %v1971
        %v2260 = vunpack.c.l.b16 %v1972
        %v2261 = vunpack.c.l.b16 %v1973
        %v2262 = vunpack.c.l.b16 %v1974
        %v2263 = vunpack.c.l.b16 %v1975
        %v2264 = vunpack.c.l.b16 %v1976
        %v2265 = vunpack.c.l.b16 %v1977
        %v2266 = vunpack.c.l.b16 %v1978
        %v2267 = vunpack.c.l.b16 %v1979
        %v2268 = vunpack.c.l.b16 %v1980
        %v2269 = vunpack.c.l.b16 %v1981
        %v2270 = vunpack.c.l.b16 %v1982
        %v2271 = vunpack.c.l.b16 %v1983
        %v2272 = vunpack.c.l.b16 %v1984
        %v2273 = vunpack.c.l.b16 %v1985
        %v2274 = vunpack.c.l.b16 %v1986
        %v2275 = vunpack.c.l.b16 %v1987
        %v2276 = vunpack.c.l.b16 %v1988
        %v2277 = vunpack.c.l.b16 %v1989
        %v2278 = vunpack.c.l.b16 %v1990
        %v2279 = vunpack.c.l.b16 %v1991
        %v2280 = vunpack.c.l.b16 %v1992
        %v2281 = vunpack.c.l.b16 %v1993
        %v2282 = vunpack.c.l.b16 %v1994
        %v2283 = vunpack.c.l.b16 %v1995
        %v2284 = vunpack.c.l.b16 %v1996
        %v2285 = vunpack.c.l.b16 %v1997
        %v2286 = vunpack.c.l.b16 %v1998
        %v2287 = vunpack.c.l.b16 %v1999
        %v2288 = vunpack.c.l.b16 %v2000
        %v2289 = vunpack.c.l.b16 %v2001
        %v2290 = vunpack.c.l.b16 %v2002
        %v2291 = vunpack.c.l.b16 %v2003
        %v2292 = vunpack.c.l.b16 %v2004
        %v2293 = vunpack.c.l.b16 %v2005
        %v2294 = vunpack.c.l.b16 %v2006
        %v2295 = vunpack.c.l.b16 %v2007
        %v2296 = vunpack.c.l.b16 %v2008
        %v2297 = vunpack.c.l.b16 %v2009
        %v2298 = vunpack.c.l.b16 %v2010
        %v2299 = vunpack.c.l.b16 %v2011
        %v2300 = vunpack.c.l.b16 %v2012
        %v2301 = vunpack.c.l.b16 %v2013
        %v2302 = vunpack.c.l.b16 %v2014
        %v2303 = vunpack.c.l.b16 %v2015
        %v2304 = vunpack.c.l.b16 %v2016
        %v2305 = vunpack.c.l.b16 %v2017
        %v2306 = vunpack.c.l.b16 %v2018
        %v2307 = vunpack.c.l.b16 %v2019
        %v2308 = vunpack.c.l.b16 %v2020
        %v2309 = vunpack.c.l.b16 %v2021
        %v2310 = vunpack.c.l.b16 %v2022
        %v2311 = vunpack.c.l.b16 %v2023
        %v2312 = vunpack.c.l.b16 %v2024
        %v2313 = vunpack.c.l.b16 %v2025
        %v2314 = vunpack.c.l.b16 %v2026
        %v2315 = vunpack.c.l.b16 %v2027
        %v2316 = vunpack.c.l.b16 %v2028
        %v2317 = vunpack.c.l.b16 %v2029
        %v2318 = vunpack.c.l.b16 %v2030
        %v2319 = vunpack.c.l.b16 %v2031
        %v2320 = vunpack.c.l.b16 %v2032
        %v2321 = vunpack.c.l.b16 %v2033
        %v2322 = vunpack.c.l.b16 %v2034
        %v2323 = vunpack.c.l.b16 %v2035
        %v2324 = vunpack.c.l.b16 %v2036
        %v2325 = vunpack.c.l.b16 %v2037
        %v2326 = vunpack.c.l.b16 %v2038
        %v2327 = vunpack.c.l.b16 %v2039
        %v2328 = vunpack.c.l.b16 %v2040
        %v2329 = vunpack.c.l.b16 %v2041
        %v2330 = vunpack.c.l.b16 %v2042
        %v2331 = vunpack.c.l.b16 %v2043
        %v2332 = vunpack.c.l.b16 %v2044
        %v2333 = vunpack.c.l.b16 %v2045
        %v2334 = vunpack.c.l.b16 %v2046
        %v2335 = vunpack.c.l.b16 %v2047
        %v2336 = vunpack.c.l.b16 %v2048
        %v2337 = vunpack.c.l.b16 %v2049
        %v2338 = vunpack.c.l.b16 %v2050
        %v2339 = vunpack.c.l.b16 %v2051
        %v2340 = vunpack.c.l.b16 %v2052
        %v2341 = vunpack.c.l.b16 %v2053
        %v2342 = vunpack.c.l.b16 %v2054
        %v2343 = vunpack.c.l.b16 %v2055
        %v2344 = vunpack.c.l.b16 %v2056
        %v2345 = vunpack.c.l.b16 %v2057
        %v2346 = vunpack.c.l.b16 %v2058
        %v2347 = vunpack.c.l.b16 %v2059
        %v2348 = vunpack.c.l.b16 %v2060
        %v2349 = vunpack.c.l.b16 %v2061
        %v2350 = vunpack.c.l.b16 %v2062
        %v2351 = vunpack.c.l.b16 %v2063
        %v2352 = vunpack.c.l.b16 %v2064
        %v2353 = vunpack.c.l.b16 %v2065
        %v2354 = vunpack.c.l.b16 %v2066
        %v2355 = vunpack.c.l.b16 %v2067
        %v2356 = vunpack.c.l.b16 %v2068
        %v2357 = vunpack.c.l.b16 %v2069
        %v2358 = vunpack.c.l.b16 %v2070
        %v2359 = vunpack.c.l.b16 %v2071
        %v2360 = vunpack.c.l.b16 %v2072
        %v2361 = vunpack.c.l.b16 %v2073
        %v2362 = vunpack.c.l.b16 %v2074
        %v2363 = vunpack.c.l.b16 %v2075
        %v2364 = vunpack.c.l.b16 %v2076
        %v2365 = vunpack.c.l.b16 %v2077
        %v2366 = vunpack.c.l.b16 %v2078
        %v2367 = vunpack.c.l.b16 %v2079
        %v2368 = vunpack.c.l.b16 %v2080
        %v2369 = vunpack.c.l.b16 %v2081
        %v2370 = vunpack.c.l.b16 %v2082
        %v2371 = vunpack.c.l.b16 %v2083
        %v2372 = vunpack.c.l.b16 %v2084
        %v2373 = vunpack.c.l.b16 %v2085
        %v2374 = vunpack.c.l.b16 %v2086
        %v2375 = vunpack.c.l.b16 %v2087
        %v2376 = vunpack.c.l.b16 %v2088
        %v2377 = vunpack.c.l.b16 %v2089
        %v2378 = vunpack.c.l.b16 %v2090
        %v2379 = vunpack.c.l.b16 %v2091
        %v2380 = vunpack.c.l.b16 %v2092
        %v2381 = vunpack.c.l.b16 %v2093
        %v2382 = vunpack.c.l.b16 %v2094
        %v2383 = vunpack.c.l.b16 %v2095
        %v2384 = vunpack.c.l.b16 %v2096
        %v2385 = vunpack.c.l.b16 %v2097
        %v2386 = vunpack.c.l.b16 %v2098
        %v2387 = vunpack.c.l.b16 %v2099
        %v2388 = vunpack.c.l.b16 %v2100
        %v2389 = vunpack.c.l.b16 %v2101
        %v2390 = vunpack.c.l.b16 %v2102
        %v2391 = vunpack.c.l.b16 %v2103
        %v2392 = vunpack.c.l.b16 %v2104
        %v2393 = vunpack.c.l.b16 %v2105
        %v2394 = vunpack.c.l.b16 %v2106
        %v2395 = vunpack.c.l.b16 %v2107
        %v2396 = vunpack.c.l.b16 %v2108
        %v2397 = vunpack.c.l.b16 %v2109
        %v2398 = vunpack.c.l.b16 %v2110
        %v2399 = vpack.c.b16 %v2256, %v2255
        %v2400 = vpack.c.b16 %v2258, %v2257
        %v2401 = vpack.c.b16 %v2260, %v2259
        %v2402 = vpack.c.b16 %v2262, %v2261
        %v2403 = vpack.c.b16 %v2264, %v2263
        %v2404 = vpack.c.b16 %v2266, %v2265
        %v2405 = vpack.c.b16 %v2268, %v2267
        %v2406 = vpack.c.b16 %v2270, %v2269
        %v2407 = vpack.c.b16 %v2272, %v2271
        %v2408 = vpack.c.b16 %v2274, %v2273
        %v2409 = vpack.c.b16 %v2276, %v2275
        %v2410 = vpack.c.b16 %v2278, %v2277
        %v2411 = vpack.c.b16 %v2280, %v2279
        %v2412 = vpack.c.b16 %v2282, %v2281
        %v2413 = vpack.c.b16 %v2284, %v2283
        %v2414 = vpack.c.b16 %v2286, %v2285
        %v2415 = vpack.c.b16 %v2288, %v2287
        %v2416 = vpack.c.b16 %v2290, %v2289
        %v2417 = vpack.c.b16 %v2292, %v2291
        %v2418 = vpack.c.b16 %v2294, %v2293
        %v2419 = vpack.c.b16 %v2296, %v2295
        %v2420 = vpack.c.b16 %v2298, %v2297
        %v2421 = vpack.c.b16 %v2300, %v2299
        %v2422 = vpack.c.b16 %v2302, %v2301
        %v2423 = vpack.c.b16 %v2304, %v2303
        %v2424 = vpack.c.b16 %v2306, %v2305
        %v2425 = vpack.c.b16 %v2308, %v2307
        %v2426 = vpack.c.b16 %v2310, %v2309
        %v2427 = vpack.c.b16 %v2312, %v2311
        %v2428 = vpack.c.b16 %v2314, %v2313
        %v2429 = vpack.c.b16 %v2316, %v2315
        %v2430 = vpack.c.b16 %v2318, %v2317
        %v2431 = vpack.c.b16 %v2320, %v2319
        %v2432 = vpack.c.b16 %v2322, %v2321
        %v2433 = vpack.c.b16 %v2324, %v2323
        %v2434 = vpack.c.b16 %v2326, %v2325
        %v2435 = vpack.c.b16 %v2328, %v2327
        %v2436 = vpack.c.b16 %v2330, %v2329
        %v2437 = vpack.c.b16 %v2332, %v2331
        %v2438 = vpack.c.b16 %v2334, %v2333
        %v2439 = vpack.c.b16 %v2336, %v2335
        %v2440 = vpack.c.b16 %v2338, %v2337
        %v2441 = vpack.c.b16 %v2340, %v2339
        %v2442 = vpack.c.b16 %v2342, %v2341
        %v2443 = vpack.c.b16 %v2344, %v2343
        %v2444 = vpack.c.b16 %v2346, %v2345
        %v2445 = vpack.c.b16 %v2348, %v2347
        %v2446 = vpack.c.b16 %v2350, %v2349
        %v2447 = vpack.c.b16 %v2352, %v2351
        %v2448 = vpack.c.b16 %v2354, %v2353
        %v2449 = vpack.c.b16 %v2356, %v2355
        %v2450 = vpack.c.b16 %v2358, %v2357
        %v2451 = vpack.c.b16 %v2360, %v2359
        %v2452 = vpack.c.b16 %v2362, %v2361
        %v2453 = vpack.c.b16 %v2364, %v2363
        %v2454 = vpack.c.b16 %v2366, %v2365
        %v2455 = vpack.c.b16 %v2368, %v2367
        %v2456 = vpack.c.b16 %v2370, %v2369
        %v2457 = vpack.c.b16 %v2372, %v2371
        %v2458 = vpack.c.b16 %v2374, %v2373
        %v2459 = vpack.c.b16 %v2376, %v2375
        %v2460 = vpack.c.b16 %v2378, %v2377
        %v2461 = vpack.c.b16 %v2380, %v2379
        %v2462 = vpack.c.b16 %v2382, %v2381
        %v2463 = vpack.c.b16 %v2384, %v2383
        %v2464 = vpack.c.b16 %v2386, %v2385
        %v2465 = vpack.c.b16 %v2388, %v2387
        %v2466 = vpack.c.b16 %v2390, %v2389
        %v2467 = vpack.c.b16 %v2392, %v2391
        %v2468 = vpack.c.b16 %v2394, %v2393
        %v2469 = vpack.c.b16 %v2396, %v2395
        %v2470 = vpack.c.b16 %v2398, %v2397
        %2543 = vmatprep.subr.bf16.mxu0 0
        %2544 = vmatpush1.bf16.msra.mxu0 %v2406
        %2545 = vmatprep.subr.bf16.mxu0 0
        %2546 = vmatpush1.bf16.msra.mxu0 %v2405
        %2547 = vmatprep.subr.bf16.mxu0 0
        %2548 = vmatpush1.bf16.msra.mxu0 %v2404
        %2549 = vmatprep.subr.bf16.mxu0 0
        %2550 = vmatpush1.bf16.msra.mxu0 %v2403
        %2551 = vmatprep.subr.bf16.mxu0 0
        %2552 = vmatpush1.bf16.msra.mxu0 %v2402
        %2553 = vmatprep.subr.bf16.mxu0 0
        %2554 = vmatpush1.bf16.msra.mxu0 %v2401
        %2555 = vmatprep.subr.bf16.mxu0 0
        %2556 = vmatpush1.bf16.msra.mxu0 %v2400
        %2557 = vmatprep.subr.bf16.mxu0 0
        %2558 = vmatpush1.bf16.msra.mxu0 %v2399
        %2559 = vmatprep.subr.bf16.mxu0 0
        %2560 = vmatpush2.bf16.msra.mxu0 %v2414
        %2561 = vmatprep.subr.bf16.mxu0 0
        %2562 = vmatpush2.bf16.msra.mxu0 %v2413
        %2563 = vmatprep.subr.bf16.mxu0 0
        %2564 = vmatpush2.bf16.msra.mxu0 %v2412
        %2565 = vmatprep.subr.bf16.mxu0 0
        %2566 = vmatpush2.bf16.msra.mxu0 %v2411
        %2567 = vmatprep.subr.bf16.mxu0 0
        %2568 = vmatpush2.bf16.msra.mxu0 %v2410
        %2569 = vmatprep.subr.bf16.mxu0 0
        %2570 = vmatpush2.bf16.msra.mxu0 %v2409
        %2571 = vmatprep.subr.bf16.mxu0 0
        %2572 = vmatpush2.bf16.msra.mxu0 %v2408
        %2573 = vmatprep.subr.bf16.mxu0 0
        %2574 = vmatpush2.bf16.msra.mxu0 %v2407
        %2575 = vmatprep.mubr.bf16.mxu0 %v1197
        %2576 = vmatmul.mubr.bf16.gmra.mxu0 %v1135
        %v2577 = vpop.f32.mrf.mxu0
        %v2578 = vadd.f32 0.0, %v2577
        %v2579 = vpop.f32.mrf.mxu0
        %v2580 = vpop.f32.mrf.mxu0
        %v2581 = vadd.f32 0.0, %v2580
        %v2582 = vpop.f32.mrf.mxu0
        %2583 = vmatprep.mubr.bf16.mxu0 %v1209
        %2584 = vmatmul.mubr.bf16.gmra.mxu0 %v1136
        %v2585 = vpop.f32.mrf.mxu0
        %v2586 = vadd.f32 0.0, %v2585
        %v2587 = vpop.f32.mrf.mxu0
        %v2588 = vpop.f32.mrf.mxu0
        %v2589 = vadd.f32 0.0, %v2588
        %v2590 = vpop.f32.mrf.mxu0
        %2591 = vmatprep.mubr.bf16.mxu0 %v1221
        %2592 = vmatmul.mubr.bf16.gmra.mxu0 %v1137
        %v2593 = vpop.f32.mrf.mxu0
        %v2594 = vadd.f32 0.0, %v2593
        %v2595 = vpop.f32.mrf.mxu0
        %v2596 = vpop.f32.mrf.mxu0
        %v2597 = vadd.f32 0.0, %v2596
        %v2598 = vpop.f32.mrf.mxu0
        %2599 = vmatprep.mubr.bf16.mxu0 %v1233
        %2600 = vmatmul.mubr.bf16.gmra.mxu0 %v1138
        %v2601 = vpop.f32.mrf.mxu0
        %v2602 = vadd.f32 0.0, %v2601
        %v2603 = vpop.f32.mrf.mxu0
        %v2604 = vpop.f32.mrf.mxu0
        %v2605 = vadd.f32 0.0, %v2604
        %v2606 = vpop.f32.mrf.mxu0
        %2607 = vmatprep.mubr.bf16.mxu0 %v1245
        %2608 = vmatmul.mubr.bf16.gmra.mxu0 %v1139
        %v2609 = vpop.f32.mrf.mxu0
        %v2610 = vadd.f32 0.0, %v2609
        %v2611 = vpop.f32.mrf.mxu0
        %v2612 = vpop.f32.mrf.mxu0
        %v2613 = vadd.f32 0.0, %v2612
        %v2614 = vpop.f32.mrf.mxu0
        %2615 = vmatprep.mubr.bf16.mxu0 %v1257
        %2616 = vmatmul.mubr.bf16.gmra.mxu0 %v1140
        %v2617 = vpop.f32.mrf.mxu0
        %v2618 = vadd.f32 0.0, %v2617
        %v2619 = vpop.f32.mrf.mxu0
        %v2620 = vpop.f32.mrf.mxu0
        %v2621 = vadd.f32 0.0, %v2620
        %v2622 = vpop.f32.mrf.mxu0
        %2623 = vmatprep.mubr.bf16.mxu0 %v1269
        %2624 = vmatmul.mubr.bf16.gmra.mxu0 %v1141
        %v2625 = vpop.f32.mrf.mxu0
        %v2626 = vadd.f32 0.0, %v2625
        %v2627 = vpop.f32.mrf.mxu0
        %v2628 = vpop.f32.mrf.mxu0
        %v2629 = vadd.f32 0.0, %v2628
        %v2630 = vpop.f32.mrf.mxu0
        %2631 = vmatprep.mubr.bf16.mxu0 %v1281
        %2632 = vmatmul.mubr.bf16.gmra.mxu0 %v1142
        %v2633 = vpop.f32.mrf.mxu0
        %v2634 = vadd.f32 0.0, %v2633
        %v2635 = vpop.f32.mrf.mxu0
        %v2636 = vpop.f32.mrf.mxu0
        %v2637 = vadd.f32 0.0, %v2636
        %v2638 = vpop.f32.mrf.mxu0
        %2639 = vmatprep.mubr.bf16.mxu0 %v1293
        %2640 = vmatmul.mubr.bf16.gmra.mxu0 %v1143
        %v2641 = vpop.f32.mrf.mxu0
        %v2642 = vadd.f32 0.0, %v2641
        %v2643 = vpop.f32.mrf.mxu0
        %v2644 = vpop.f32.mrf.mxu0
        %v2645 = vadd.f32 0.0, %v2644
        %v2646 = vpop.f32.mrf.mxu0
        %2647 = vmatprep.mubr.bf16.mxu0 %v1305
        %2648 = vmatmul.mubr.bf16.gmra.mxu0 %v1144
        %v2649 = vpop.f32.mrf.mxu0
        %v2650 = vadd.f32 0.0, %v2649
        %v2651 = vpop.f32.mrf.mxu0
        %v2652 = vpop.f32.mrf.mxu0
        %v2653 = vadd.f32 0.0, %v2652
        %v2654 = vpop.f32.mrf.mxu0
        %2655 = vdwg.mxu0
        %2656 = vmatprep.subr.bf16.mxu0 0
        %2657 = vmatpush1.bf16.msra.mxu0 %v2422
        %2658 = vmatprep.subr.bf16.mxu0 0
        %2659 = vmatpush1.bf16.msra.mxu0 %v2421
        %2660 = vmatprep.subr.bf16.mxu0 0
        %2661 = vmatpush1.bf16.msra.mxu0 %v2420
        %2662 = vmatprep.subr.bf16.mxu0 0
        %2663 = vmatpush1.bf16.msra.mxu0 %v2419
        %2664 = vmatprep.subr.bf16.mxu0 0
        %2665 = vmatpush1.bf16.msra.mxu0 %v2418
        %2666 = vmatprep.subr.bf16.mxu0 0
        %2667 = vmatpush1.bf16.msra.mxu0 %v2417
        %2668 = vmatprep.subr.bf16.mxu0 0
        %2669 = vmatpush1.bf16.msra.mxu0 %v2416
        %2670 = vmatprep.subr.bf16.mxu0 0
        %2671 = vmatpush1.bf16.msra.mxu0 %v2415
        %2672 = vmatprep.subr.bf16.mxu0 0
        %2673 = vmatpush2.bf16.msra.mxu0 %v2430
        %2674 = vmatprep.subr.bf16.mxu0 0
        %2675 = vmatpush2.bf16.msra.mxu0 %v2429
        %2676 = vmatprep.subr.bf16.mxu0 0
        %2677 = vmatpush2.bf16.msra.mxu0 %v2428
        %2678 = vmatprep.subr.bf16.mxu0 0
        %2679 = vmatpush2.bf16.msra.mxu0 %v2427
        %2680 = vmatprep.subr.bf16.mxu0 0
        %2681 = vmatpush2.bf16.msra.mxu0 %v2426
        %2682 = vmatprep.subr.bf16.mxu0 0
        %2683 = vmatpush2.bf16.msra.mxu0 %v2425
        %2684 = vmatprep.subr.bf16.mxu0 0
        %2685 = vmatpush2.bf16.msra.mxu0 %v2424
        %2686 = vmatprep.subr.bf16.mxu0 0
        %2687 = vmatpush2.bf16.msra.mxu0 %v2423
        %2688 = vmatprep.mubr.bf16.mxu0 %v1427
        %2689 = vmatmul.mubr.bf16.gmra.mxu0 %v1349
        %v2690 = vpop.f32.mrf.mxu0
        %v2691 = vadd.f32 %v2578, %v2690
        %v2692 = vpop.f32.mrf.mxu0
        %v2693 = vpop.f32.mrf.mxu0
        %v2694 = vadd.f32 %v2581, %v2693
        %v2695 = vpop.f32.mrf.mxu0
        %2696 = vmatprep.mubr.bf16.mxu0 %v1428
        %2697 = vmatmul.mubr.bf16.gmra.mxu0 %v1352
        %v2698 = vpop.f32.mrf.mxu0
        %v2699 = vadd.f32 %v2586, %v2698
        %v2700 = vpop.f32.mrf.mxu0
        %v2701 = vpop.f32.mrf.mxu0
        %v2702 = vadd.f32 %v2589, %v2701
        %v2703 = vpop.f32.mrf.mxu0
        %2704 = vmatprep.mubr.bf16.mxu0 %v1429
        %2705 = vmatmul.mubr.bf16.gmra.mxu0 %v1355
        %v2706 = vpop.f32.mrf.mxu0
        %v2707 = vadd.f32 %v2594, %v2706
        %v2708 = vpop.f32.mrf.mxu0
        %v2709 = vpop.f32.mrf.mxu0
        %v2710 = vadd.f32 %v2597, %v2709
        %v2711 = vpop.f32.mrf.mxu0
        %2712 = vmatprep.mubr.bf16.mxu0 %v1430
        %2713 = vmatmul.mubr.bf16.gmra.mxu0 %v1358
        %v2714 = vpop.f32.mrf.mxu0
        %v2715 = vadd.f32 %v2602, %v2714
        %v2716 = vpop.f32.mrf.mxu0
        %v2717 = vpop.f32.mrf.mxu0
        %v2718 = vadd.f32 %v2605, %v2717
        %v2719 = vpop.f32.mrf.mxu0
        %2720 = vmatprep.mubr.bf16.mxu0 %v1431
        %2721 = vmatmul.mubr.bf16.gmra.mxu0 %v1361
        %v2722 = vpop.f32.mrf.mxu0
        %v2723 = vadd.f32 %v2610, %v2722
        %v2724 = vpop.f32.mrf.mxu0
        %v2725 = vpop.f32.mrf.mxu0
        %v2726 = vadd.f32 %v2613, %v2725
        %v2727 = vpop.f32.mrf.mxu0
        %2728 = vmatprep.mubr.bf16.mxu0 %v1432
        %2729 = vmatmul.mubr.bf16.gmra.mxu0 %v1364
        %v2730 = vpop.f32.mrf.mxu0
        %v2731 = vadd.f32 %v2618, %v2730
        %v2732 = vpop.f32.mrf.mxu0
        %v2733 = vpop.f32.mrf.mxu0
        %v2734 = vadd.f32 %v2621, %v2733
        %v2735 = vpop.f32.mrf.mxu0
        %2736 = vmatprep.mubr.bf16.mxu0 %v1433
        %2737 = vmatmul.mubr.bf16.gmra.mxu0 %v1367
        %v2738 = vpop.f32.mrf.mxu0
        %v2739 = vadd.f32 %v2626, %v2738
        %v2740 = vpop.f32.mrf.mxu0
        %v2741 = vpop.f32.mrf.mxu0
        %v2742 = vadd.f32 %v2629, %v2741
        %v2743 = vpop.f32.mrf.mxu0
        %2744 = vmatprep.mubr.bf16.mxu0 %v1434
        %2745 = vmatmul.mubr.bf16.gmra.mxu0 %v1370
        %v2746 = vpop.f32.mrf.mxu0
        %v2747 = vadd.f32 %v2634, %v2746
        %v2748 = vpop.f32.mrf.mxu0
        %v2749 = vpop.f32.mrf.mxu0
        %v2750 = vadd.f32 %v2637, %v2749
        %v2751 = vpop.f32.mrf.mxu0
        %2752 = vmatprep.mubr.bf16.mxu0 %v1435
        %2753 = vmatmul.mubr.bf16.gmra.mxu0 %v1373
        %v2754 = vpop.f32.mrf.mxu0
        %v2755 = vadd.f32 %v2642, %v2754
        %v2756 = vpop.f32.mrf.mxu0
        %v2757 = vpop.f32.mrf.mxu0
        %v2758 = vadd.f32 %v2645, %v2757
        %v2759 = vpop.f32.mrf.mxu0
        %2760 = vmatprep.mubr.bf16.mxu0 %v1436
        %2761 = vmatmul.mubr.bf16.gmra.mxu0 %v1376
        %v2762 = vpop.f32.mrf.mxu0
        %v2763 = vadd.f32 %v2650, %v2762
        %v2764 = vpop.f32.mrf.mxu0
        %v2765 = vpop.f32.mrf.mxu0
        %v2766 = vadd.f32 %v2653, %v2765
        %v2767 = vpop.f32.mrf.mxu0
        %2768 = vdwg.mxu0
        %2769 = vmatprep.subr.bf16.mxu0 0
        %2770 = vmatpush1.bf16.msra.mxu0 %v2438
        %2771 = vmatprep.subr.bf16.mxu0 0
        %2772 = vmatpush1.bf16.msra.mxu0 %v2437
        %2773 = vmatprep.subr.bf16.mxu0 0
        %2774 = vmatpush1.bf16.msra.mxu0 %v2436
        %2775 = vmatprep.subr.bf16.mxu0 0
        %2776 = vmatpush1.bf16.msra.mxu0 %v2435
        %2777 = vmatprep.subr.bf16.mxu0 0
        %2778 = vmatpush1.bf16.msra.mxu0 %v2434
        %2779 = vmatprep.subr.bf16.mxu0 0
        %2780 = vmatpush1.bf16.msra.mxu0 %v2433
        %2781 = vmatprep.subr.bf16.mxu0 0
        %2782 = vmatpush1.bf16.msra.mxu0 %v2432
        %2783 = vmatprep.subr.bf16.mxu0 0
        %2784 = vmatpush1.bf16.msra.mxu0 %v2431
        %2785 = vmatprep.subr.bf16.mxu0 0
        %2786 = vmatpush2.bf16.msra.mxu0 %v2446
        %2787 = vmatprep.subr.bf16.mxu0 0
        %2788 = vmatpush2.bf16.msra.mxu0 %v2445
        %2789 = vmatprep.subr.bf16.mxu0 0
        %2790 = vmatpush2.bf16.msra.mxu0 %v2444
        %2791 = vmatprep.subr.bf16.mxu0 0
        %2792 = vmatpush2.bf16.msra.mxu0 %v2443
        %2793 = vmatprep.subr.bf16.mxu0 0
        %2794 = vmatpush2.bf16.msra.mxu0 %v2442
        %2795 = vmatprep.subr.bf16.mxu0 0
        %2796 = vmatpush2.bf16.msra.mxu0 %v2441
        %2797 = vmatprep.subr.bf16.mxu0 0
        %2798 = vmatpush2.bf16.msra.mxu0 %v2440
        %2799 = vmatprep.subr.bf16.mxu0 0
        %2800 = vmatpush2.bf16.msra.mxu0 %v2439
        %2801 = vmatprep.mubr.bf16.mxu0 %v1639
        %2802 = vmatmul.mubr.bf16.gmra.mxu0 %v1488
        %v2803 = vpop.f32.mrf.mxu0
        %v2804 = vadd.f32 %v2691, %v2803
        %v2805 = vpop.f32.mrf.mxu0
        %v2806 = vpop.f32.mrf.mxu0
        %v2807 = vadd.f32 %v2694, %v2806
        %v2808 = vpop.f32.mrf.mxu0
        %2809 = vmatprep.mubr.bf16.mxu0 %v1642
        %2810 = vmatmul.mubr.bf16.gmra.mxu0 %v1500
        %v2811 = vpop.f32.mrf.mxu0
        %v2812 = vadd.f32 %v2699, %v2811
        %v2813 = vpop.f32.mrf.mxu0
        %v2814 = vpop.f32.mrf.mxu0
        %v2815 = vadd.f32 %v2702, %v2814
        %v2816 = vpop.f32.mrf.mxu0
        %2817 = vmatprep.mubr.bf16.mxu0 %v1645
        %2818 = vmatmul.mubr.bf16.gmra.mxu0 %v1512
        %v2819 = vpop.f32.mrf.mxu0
        %v2820 = vadd.f32 %v2707, %v2819
        %v2821 = vpop.f32.mrf.mxu0
        %v2822 = vpop.f32.mrf.mxu0
        %v2823 = vadd.f32 %v2710, %v2822
        %v2824 = vpop.f32.mrf.mxu0
        %2825 = vmatprep.mubr.bf16.mxu0 %v1648
        %2826 = vmatmul.mubr.bf16.gmra.mxu0 %v1524
        %v2827 = vpop.f32.mrf.mxu0
        %v2828 = vadd.f32 %v2715, %v2827
        %v2829 = vpop.f32.mrf.mxu0
        %v2830 = vpop.f32.mrf.mxu0
        %v2831 = vadd.f32 %v2718, %v2830
        %v2832 = vpop.f32.mrf.mxu0
        %2833 = vmatprep.mubr.bf16.mxu0 %v1651
        %2834 = vmatmul.mubr.bf16.gmra.mxu0 %v1536
        %v2835 = vpop.f32.mrf.mxu0
        %v2836 = vadd.f32 %v2723, %v2835
        %v2837 = vpop.f32.mrf.mxu0
        %v2838 = vpop.f32.mrf.mxu0
        %v2839 = vadd.f32 %v2726, %v2838
        %v2840 = vpop.f32.mrf.mxu0
        %2841 = vmatprep.mubr.bf16.mxu0 %v1654
        %2842 = vmatmul.mubr.bf16.gmra.mxu0 %v1548
        %v2843 = vpop.f32.mrf.mxu0
        %v2844 = vadd.f32 %v2731, %v2843
        %v2845 = vpop.f32.mrf.mxu0
        %v2846 = vpop.f32.mrf.mxu0
        %v2847 = vadd.f32 %v2734, %v2846
        %v2848 = vpop.f32.mrf.mxu0
        %2849 = vmatprep.mubr.bf16.mxu0 %v1657
        %2850 = vmatmul.mubr.bf16.gmra.mxu0 %v1560
        %v2851 = vpop.f32.mrf.mxu0
        %v2852 = vadd.f32 %v2739, %v2851
        %v2853 = vpop.f32.mrf.mxu0
        %v2854 = vpop.f32.mrf.mxu0
        %v2855 = vadd.f32 %v2742, %v2854
        %v2856 = vpop.f32.mrf.mxu0
        %2857 = vmatprep.mubr.bf16.mxu0 %v1660
        %2858 = vmatmul.mubr.bf16.gmra.mxu0 %v1572
        %v2859 = vpop.f32.mrf.mxu0
        %v2860 = vadd.f32 %v2747, %v2859
        %v2861 = vpop.f32.mrf.mxu0
        %v2862 = vpop.f32.mrf.mxu0
        %v2863 = vadd.f32 %v2750, %v2862
        %v2864 = vpop.f32.mrf.mxu0
        %2865 = vmatprep.mubr.bf16.mxu0 %v1663
        %2866 = vmatmul.mubr.bf16.gmra.mxu0 %v1584
        %v2867 = vpop.f32.mrf.mxu0
        %v2868 = vadd.f32 %v2755, %v2867
        %v2869 = vpop.f32.mrf.mxu0
        %v2870 = vpop.f32.mrf.mxu0
        %v2871 = vadd.f32 %v2758, %v2870
        %v2872 = vpop.f32.mrf.mxu0
        %2873 = vmatprep.mubr.bf16.mxu0 %v1666
        %2874 = vmatmul.mubr.bf16.gmra.mxu0 %v1596
        %v2875 = vpop.f32.mrf.mxu0
        %v2876 = vadd.f32 %v2763, %v2875
        %v2877 = vpop.f32.mrf.mxu0
        %v2878 = vpop.f32.mrf.mxu0
        %v2879 = vadd.f32 %v2766, %v2878
        %v2880 = vpop.f32.mrf.mxu0
        %2881 = vdwg.mxu0
        %2882 = vmatprep.subr.bf16.mxu0 0
        %2883 = vmatpush1.bf16.msra.mxu0 %v2454
        %2884 = vmatprep.subr.bf16.mxu0 0
        %2885 = vmatpush1.bf16.msra.mxu0 %v2453
        %2886 = vmatprep.subr.bf16.mxu0 0
        %2887 = vmatpush1.bf16.msra.mxu0 %v2452
        %2888 = vmatprep.subr.bf16.mxu0 0
        %2889 = vmatpush1.bf16.msra.mxu0 %v2451
        %2890 = vmatprep.subr.bf16.mxu0 0
        %2891 = vmatpush1.bf16.msra.mxu0 %v2450
        %2892 = vmatprep.subr.bf16.mxu0 0
        %2893 = vmatpush1.bf16.msra.mxu0 %v2449
        %2894 = vmatprep.subr.bf16.mxu0 0
        %2895 = vmatpush1.bf16.msra.mxu0 %v2448
        %2896 = vmatprep.subr.bf16.mxu0 0
        %2897 = vmatpush1.bf16.msra.mxu0 %v2447
        %2898 = vmatprep.subr.bf16.mxu0 0
        %2899 = vmatpush2.bf16.msra.mxu0 %v2462
        %2900 = vmatprep.subr.bf16.mxu0 0
        %2901 = vmatpush2.bf16.msra.mxu0 %v2461
        %2902 = vmatprep.subr.bf16.mxu0 0
        %2903 = vmatpush2.bf16.msra.mxu0 %v2460
        %2904 = vmatprep.subr.bf16.mxu0 0
        %2905 = vmatpush2.bf16.msra.mxu0 %v2459
        %2906 = vmatprep.subr.bf16.mxu0 0
        %2907 = vmatpush2.bf16.msra.mxu0 %v2458
        %2908 = vmatprep.subr.bf16.mxu0 0
        %2909 = vmatpush2.bf16.msra.mxu0 %v2457
        %2910 = vmatprep.subr.bf16.mxu0 0
        %2911 = vmatpush2.bf16.msra.mxu0 %v2456
        %2912 = vmatprep.subr.bf16.mxu0 0
        %2913 = vmatpush2.bf16.msra.mxu0 %v2455
        %2914 = vmatprep.mubr.bf16.mxu0 %v1778
        %2915 = vmatmul.mubr.bf16.gmra.mxu0 %v1717
        %v2916 = vpop.f32.mrf.mxu0
        %v2917 = vadd.f32 %v2804, %v2916
        %v2918 = vpop.f32.mrf.mxu0
        %v2919 = vpop.f32.mrf.mxu0
        %v2920 = vadd.f32 %v2807, %v2919
        %v2921 = vpop.f32.mrf.mxu0
        %2922 = vmatprep.mubr.bf16.mxu0 %v1790
        %2923 = vmatmul.mubr.bf16.gmra.mxu0 %v1718
        %v2924 = vpop.f32.mrf.mxu0
        %v2925 = vadd.f32 %v2812, %v2924
        %v2926 = vpop.f32.mrf.mxu0
        %v2927 = vpop.f32.mrf.mxu0
        %v2928 = vadd.f32 %v2815, %v2927
        %v2929 = vpop.f32.mrf.mxu0
        %2930 = vmatprep.mubr.bf16.mxu0 %v1802
        %2931 = vmatmul.mubr.bf16.gmra.mxu0 %v1719
        %v2932 = vpop.f32.mrf.mxu0
        %v2933 = vadd.f32 %v2820, %v2932
        %v2934 = vpop.f32.mrf.mxu0
        %v2935 = vpop.f32.mrf.mxu0
        %v2936 = vadd.f32 %v2823, %v2935
        %v2937 = vpop.f32.mrf.mxu0
        %2938 = vmatprep.mubr.bf16.mxu0 %v1814
        %2939 = vmatmul.mubr.bf16.gmra.mxu0 %v1720
        %v2940 = vpop.f32.mrf.mxu0
        %v2941 = vadd.f32 %v2828, %v2940
        %v2942 = vpop.f32.mrf.mxu0
        %v2943 = vpop.f32.mrf.mxu0
        %v2944 = vadd.f32 %v2831, %v2943
        %v2945 = vpop.f32.mrf.mxu0
        %2946 = vmatprep.mubr.bf16.mxu0 %v1826
        %2947 = vmatmul.mubr.bf16.gmra.mxu0 %v1721
        %v2948 = vpop.f32.mrf.mxu0
        %v2949 = vadd.f32 %v2836, %v2948
        %v2950 = vpop.f32.mrf.mxu0
        %v2951 = vpop.f32.mrf.mxu0
        %v2952 = vadd.f32 %v2839, %v2951
        %v2953 = vpop.f32.mrf.mxu0
        %2954 = vmatprep.mubr.bf16.mxu0 %v1838
        %2955 = vmatmul.mubr.bf16.gmra.mxu0 %v1722
        %v2956 = vpop.f32.mrf.mxu0
        %v2957 = vadd.f32 %v2844, %v2956
        %v2958 = vpop.f32.mrf.mxu0
        %v2959 = vpop.f32.mrf.mxu0
        %v2960 = vadd.f32 %v2847, %v2959
        %v2961 = vpop.f32.mrf.mxu0
        %2962 = vmatprep.mubr.bf16.mxu0 %v1850
        %2963 = vmatmul.mubr.bf16.gmra.mxu0 %v1723
        %v2964 = vpop.f32.mrf.mxu0
        %v2965 = vadd.f32 %v2852, %v2964
        %v2966 = vpop.f32.mrf.mxu0
        %v2967 = vpop.f32.mrf.mxu0
        %v2968 = vadd.f32 %v2855, %v2967
        %v2969 = vpop.f32.mrf.mxu0
        %2970 = vmatprep.mubr.bf16.mxu0 %v1862
        %2971 = vmatmul.mubr.bf16.gmra.mxu0 %v1724
        %v2972 = vpop.f32.mrf.mxu0
        %v2973 = vadd.f32 %v2860, %v2972
        %v2974 = vpop.f32.mrf.mxu0
        %v2975 = vpop.f32.mrf.mxu0
        %v2976 = vadd.f32 %v2863, %v2975
        %v2977 = vpop.f32.mrf.mxu0
        %2978 = vmatprep.mubr.bf16.mxu0 %v1874
        %2979 = vmatmul.mubr.bf16.gmra.mxu0 %v1725
        %v2980 = vpop.f32.mrf.mxu0
        %v2981 = vadd.f32 %v2868, %v2980
        %v2982 = vpop.f32.mrf.mxu0
        %v2983 = vpop.f32.mrf.mxu0
        %v2984 = vadd.f32 %v2871, %v2983
        %v2985 = vpop.f32.mrf.mxu0
        %2986 = vmatprep.mubr.bf16.mxu0 %v1886
        %2987 = vmatmul.mubr.bf16.gmra.mxu0 %v1726
        %v2988 = vpop.f32.mrf.mxu0
        %v2989 = vadd.f32 %v2876, %v2988
        %v2990 = vpop.f32.mrf.mxu0
        %v2991 = vpop.f32.mrf.mxu0
        %v2992 = vadd.f32 %v2879, %v2991
        %v2993 = vpop.f32.mrf.mxu0
        %2994 = vdwg.mxu0
        %2995 = vmatprep.subr.bf16.mxu0 0
        %2996 = vmatpush1.bf16.msra.mxu0 %v2470
        %2997 = vmatprep.subr.bf16.mxu0 0
        %2998 = vmatpush1.bf16.msra.mxu0 %v2469
        %2999 = vmatprep.subr.bf16.mxu0 0
        %3000 = vmatpush1.bf16.msra.mxu0 %v2468
        %3001 = vmatprep.subr.bf16.mxu0 0
        %3002 = vmatpush1.bf16.msra.mxu0 %v2467
        %3003 = vmatprep.subr.bf16.mxu0 0
        %3004 = vmatpush1.bf16.msra.mxu0 %v2466
        %3005 = vmatprep.subr.bf16.mxu0 0
        %3006 = vmatpush1.bf16.msra.mxu0 %v2465
        %3007 = vmatprep.subr.bf16.mxu0 0
        %3008 = vmatpush1.bf16.msra.mxu0 %v2464
        %3009 = vmatprep.subr.bf16.mxu0 0
        %3010 = vmatpush1.bf16.msra.mxu0 %v2463
        %3011 = vmatprep.subr.bf16.mxu0 0
        %3012 = vmatpush2.bf16.msra.mxu0 0
        %3013 = vmatprep.subr.bf16.mxu0 0
        %3014 = vmatpush2.bf16.msra.mxu0 0
        %3015 = vmatprep.subr.bf16.mxu0 0
        %3016 = vmatpush2.bf16.msra.mxu0 0
        %3017 = vmatprep.subr.bf16.mxu0 0
        %3018 = vmatpush2.bf16.msra.mxu0 0
        %3019 = vmatprep.subr.bf16.mxu0 0
        %3020 = vmatpush2.bf16.msra.mxu0 0
        %3021 = vmatprep.subr.bf16.mxu0 0
        %3022 = vmatpush2.bf16.msra.mxu0 0
        %3023 = vmatprep.subr.bf16.mxu0 0
        %3024 = vmatpush2.bf16.msra.mxu0 0
        %3025 = vmatprep.subr.bf16.mxu0 0
        %3026 = vmatpush2.bf16.msra.mxu0 0
        %3027 = vmatprep.mubr.bf16.mxu0 0
        %3028 = vmatmul.mubr.bf16.gmra.mxu0 %v1929
        %v3029 = vpop.f32.mrf.mxu0
        %v3030 = vadd.f32 %v2917, %v3029
        %v3031 = vpop.f32.mrf.mxu0
        %v3032 = vpop.f32.mrf.mxu0
        %v3033 = vadd.f32 %v2920, %v3032
        %v3034 = vpop.f32.mrf.mxu0
        %3035 = vmatprep.mubr.bf16.mxu0 0
        %3036 = vmatmul.mubr.bf16.gmra.mxu0 %v1932
        %v3037 = vpop.f32.mrf.mxu0
        %v3038 = vadd.f32 %v2925, %v3037
        %v3039 = vpop.f32.mrf.mxu0
        %v3040 = vpop.f32.mrf.mxu0
        %v3041 = vadd.f32 %v2928, %v3040
        %v3042 = vpop.f32.mrf.mxu0
        %3043 = vmatprep.mubr.bf16.mxu0 0
        %3044 = vmatmul.mubr.bf16.gmra.mxu0 %v1935
        %v3045 = vpop.f32.mrf.mxu0
        %v3046 = vadd.f32 %v2933, %v3045
        %v3047 = vpop.f32.mrf.mxu0
        %v3048 = vpop.f32.mrf.mxu0
        %v3049 = vadd.f32 %v2936, %v3048
        %v3050 = vpop.f32.mrf.mxu0
        %3051 = vmatprep.mubr.bf16.mxu0 0
        %3052 = vmatmul.mubr.bf16.gmra.mxu0 %v1938
        %v3053 = vpop.f32.mrf.mxu0
        %v3054 = vadd.f32 %v2941, %v3053
        %v3055 = vpop.f32.mrf.mxu0
        %v3056 = vpop.f32.mrf.mxu0
        %v3057 = vadd.f32 %v2944, %v3056
        %v3058 = vpop.f32.mrf.mxu0
        %3059 = vmatprep.mubr.bf16.mxu0 0
        %3060 = vmatmul.mubr.bf16.gmra.mxu0 %v1941
        %v3061 = vpop.f32.mrf.mxu0
        %v3062 = vadd.f32 %v2949, %v3061
        %v3063 = vpop.f32.mrf.mxu0
        %v3064 = vpop.f32.mrf.mxu0
        %v3065 = vadd.f32 %v2952, %v3064
        %v3066 = vpop.f32.mrf.mxu0
        %3067 = vmatprep.mubr.bf16.mxu0 0
        %3068 = vmatmul.mubr.bf16.gmra.mxu0 %v1944
        %v3069 = vpop.f32.mrf.mxu0
        %v3070 = vadd.f32 %v2957, %v3069
        %v3071 = vpop.f32.mrf.mxu0
        %v3072 = vpop.f32.mrf.mxu0
        %v3073 = vadd.f32 %v2960, %v3072
        %v3074 = vpop.f32.mrf.mxu0
        %3075 = vmatprep.mubr.bf16.mxu0 0
        %3076 = vmatmul.mubr.bf16.gmra.mxu0 %v1947
        %v3077 = vpop.f32.mrf.mxu0
        %v3078 = vadd.f32 %v2965, %v3077
        %v3079 = vpop.f32.mrf.mxu0
        %v3080 = vpop.f32.mrf.mxu0
        %v3081 = vadd.f32 %v2968, %v3080
        %v3082 = vpop.f32.mrf.mxu0
        %3083 = vmatprep.mubr.bf16.mxu0 0
        %3084 = vmatmul.mubr.bf16.gmra.mxu0 %v1950
        %v3085 = vpop.f32.mrf.mxu0
        %v3086 = vadd.f32 %v2973, %v3085
        %v3087 = vpop.f32.mrf.mxu0
        %v3088 = vpop.f32.mrf.mxu0
        %v3089 = vadd.f32 %v2976, %v3088
        %v3090 = vpop.f32.mrf.mxu0
        %3091 = vmatprep.mubr.bf16.mxu0 0
        %3092 = vmatmul.mubr.bf16.gmra.mxu0 %v1953
        %v3093 = vpop.f32.mrf.mxu0
        %v3094 = vadd.f32 %v2981, %v3093
        %v3095 = vpop.f32.mrf.mxu0
        %v3096 = vpop.f32.mrf.mxu0
        %v3097 = vadd.f32 %v2984, %v3096
        %v3098 = vpop.f32.mrf.mxu0
        %3099 = vmatprep.mubr.bf16.mxu0 0
        %3100 = vmatmul.mubr.bf16.gmra.mxu0 %v1956
        %v3101 = vpop.f32.mrf.mxu0
        %v3102 = vadd.f32 %v2989, %v3101
        %v3103 = vpop.f32.mrf.mxu0
        %v3104 = vpop.f32.mrf.mxu0
        %v3105 = vadd.f32 %v2992, %v3104
        %v3106 = vpop.f32.mrf.mxu0
        %3107 = vdwg.mxu0
        %v3108 = vld [vmem:[%s5] sm:$0x1]
        %v3110 = vlaneseq
        %v3111 = vshrl.u32 %v3110, 7
        %v3112 = vsub.s32 0, %v3111
        %v3113 = vrot.slane %v3108, %v3112
        %v3115 = vmul.f32 %v3030, %v3113
        %v3116 = vmul.f32 %v3033, %v3113
        %v3117 = vmul.f32 %v3038, %v3113
        %v3118 = vmul.f32 %v3041, %v3113
        %v3119 = vmul.f32 %v3046, %v3113
        %v3120 = vmul.f32 %v3049, %v3113
        %v3121 = vmul.f32 %v3054, %v3113
        %v3122 = vmul.f32 %v3057, %v3113
        %v3123 = vmul.f32 %v3062, %v3113
        %v3124 = vmul.f32 %v3065, %v3113
        %v3125 = vmul.f32 %v3070, %v3113
        %v3126 = vmul.f32 %v3073, %v3113
        %v3127 = vmul.f32 %v3078, %v3113
        %v3128 = vmul.f32 %v3081, %v3113
        %v3129 = vmul.f32 %v3086, %v3113
        %v3130 = vmul.f32 %v3089, %v3113
        %v3131 = vmul.f32 %v3094, %v3113
        %v3132 = vmul.f32 %v3097, %v3113
        %v3133 = vmul.f32 %v3102, %v3113
        %v3134 = vmul.f32 %v3105, %v3113
        %v3135 = vld [vmem:[%s6] sm:$0x1]
        %v3137 = vlaneseq
        %v3138 = vshrl.u32 %v3137, 7
        %v3139 = vsub.s32 0, %v3138
        %v3140 = vrot.slane %v3135, %v3139
        %v3142 = vadd.f32 %v3115, %v3140
        %v3143 = vadd.f32 %v3116, %v3140
        %v3144 = vadd.f32 %v3117, %v3140
        %v3145 = vadd.f32 %v3118, %v3140
        %v3146 = vadd.f32 %v3119, %v3140
        %v3147 = vadd.f32 %v3120, %v3140
        %v3148 = vadd.f32 %v3121, %v3140
        %v3149 = vadd.f32 %v3122, %v3140
        %v3150 = vadd.f32 %v3123, %v3140
        %v3151 = vadd.f32 %v3124, %v3140
        %v3152 = vadd.f32 %v3125, %v3140
        %v3153 = vadd.f32 %v3126, %v3140
        %v3154 = vadd.f32 %v3127, %v3140
        %v3155 = vadd.f32 %v3128, %v3140
        %v3156 = vadd.f32 %v3129, %v3140
        %v3157 = vadd.f32 %v3130, %v3140
        %v3158 = vadd.f32 %v3131, %v3140
        %v3159 = vadd.f32 %v3132, %v3140
        %v3160 = vadd.f32 %v3133, %v3140
        %v3161 = vadd.f32 %v3134, %v3140
        %v3162 = vxor.u32 %v3142, 2147483648
        %v3163 = vxor.u32 %v3143, 2147483648
        %v3164 = vxor.u32 %v3144, 2147483648
        %v3165 = vxor.u32 %v3145, 2147483648
        %v3166 = vxor.u32 %v3146, 2147483648
        %v3167 = vxor.u32 %v3147, 2147483648
        %v3168 = vxor.u32 %v3148, 2147483648
        %v3169 = vxor.u32 %v3149, 2147483648
        %v3170 = vxor.u32 %v3150, 2147483648
        %v3171 = vxor.u32 %v3151, 2147483648
        %v3172 = vxor.u32 %v3152, 2147483648
        %v3173 = vxor.u32 %v3153, 2147483648
        %v3174 = vxor.u32 %v3154, 2147483648
        %v3175 = vxor.u32 %v3155, 2147483648
        %v3176 = vxor.u32 %v3156, 2147483648
        %v3177 = vxor.u32 %v3157, 2147483648
        %v3178 = vxor.u32 %v3158, 2147483648
        %v3179 = vxor.u32 %v3159, 2147483648
        %v3180 = vxor.u32 %v3160, 2147483648
        %v3181 = vxor.u32 %v3161, 2147483648
        %v3182 = vmul.f32 %v3162, 1.442695
        %v3183 = vpow.pop %v3182
        %v3184 = vmul.f32 %v3163, 1.442695
        %v3185 = vpow.pop %v3184
        %v3186 = vmul.f32 %v3164, 1.442695
        %v3187 = vpow.pop %v3186
        %v3188 = vmul.f32 %v3165, 1.442695
        %v3189 = vpow.pop %v3188
        %v3190 = vmul.f32 %v3166, 1.442695
        %v3191 = vpow.pop %v3190
        %v3192 = vmul.f32 %v3167, 1.442695
        %v3193 = vpow.pop %v3192
        %v3194 = vmul.f32 %v3168, 1.442695
        %v3195 = vpow.pop %v3194
        %v3196 = vmul.f32 %v3169, 1.442695
        %v3197 = vpow.pop %v3196
        %v3198 = vmul.f32 %v3170, 1.442695
        %v3199 = vpow.pop %v3198
        %v3200 = vmul.f32 %v3171, 1.442695
        %v3201 = vpow.pop %v3200
        %v3202 = vmul.f32 %v3172, 1.442695
        %v3203 = vpow.pop %v3202
        %v3204 = vmul.f32 %v3173, 1.442695
        %v3205 = vpow.pop %v3204
        %v3206 = vmul.f32 %v3174, 1.442695
        %v3207 = vpow.pop %v3206
        %v3208 = vmul.f32 %v3175, 1.442695
        %v3209 = vpow.pop %v3208
        %v3210 = vmul.f32 %v3176, 1.442695
        %v3211 = vpow.pop %v3210
        %v3212 = vmul.f32 %v3177, 1.442695
        %v3213 = vpow.pop %v3212
        %v3214 = vmul.f32 %v3178, 1.442695
        %v3215 = vpow.pop %v3214
        %v3216 = vmul.f32 %v3179, 1.442695
        %v3217 = vpow.pop %v3216
        %v3218 = vmul.f32 %v3180, 1.442695
        %v3219 = vpow.pop %v3218
        %v3220 = vmul.f32 %v3181, 1.442695
        %v3221 = vpow.pop %v3220
        %v3222 = vadd.f32 %v3183, 1.0
        %v3223 = vadd.f32 %v3185, 1.0
        %v3224 = vadd.f32 %v3187, 1.0
        %v3225 = vadd.f32 %v3189, 1.0
        %v3226 = vadd.f32 %v3191, 1.0
        %v3227 = vadd.f32 %v3193, 1.0
        %v3228 = vadd.f32 %v3195, 1.0
        %v3229 = vadd.f32 %v3197, 1.0
        %v3230 = vadd.f32 %v3199, 1.0
        %v3231 = vadd.f32 %v3201, 1.0
        %v3232 = vadd.f32 %v3203, 1.0
        %v3233 = vadd.f32 %v3205, 1.0
        %v3234 = vadd.f32 %v3207, 1.0
        %v3235 = vadd.f32 %v3209, 1.0
        %v3236 = vadd.f32 %v3211, 1.0
        %v3237 = vadd.f32 %v3213, 1.0
        %v3238 = vadd.f32 %v3215, 1.0
        %v3239 = vadd.f32 %v3217, 1.0
        %v3240 = vadd.f32 %v3219, 1.0
        %v3241 = vadd.f32 %v3221, 1.0
        %v3242 = vrcp.pop %v3222
        %v3243 = vmul.f32 1.0, %v3242
        %v3244 = vrcp.pop %v3223
        %v3245 = vmul.f32 1.0, %v3244
        %v3246 = vrcp.pop %v3224
        %v3247 = vmul.f32 1.0, %v3246
        %v3248 = vrcp.pop %v3225
        %v3249 = vmul.f32 1.0, %v3248
        %v3250 = vrcp.pop %v3226
        %v3251 = vmul.f32 1.0, %v3250
        %v3252 = vrcp.pop %v3227
        %v3253 = vmul.f32 1.0, %v3252
        %v3254 = vrcp.pop %v3228
        %v3255 = vmul.f32 1.0, %v3254
        %v3256 = vrcp.pop %v3229
        %v3257 = vmul.f32 1.0, %v3256
        %v3258 = vrcp.pop %v3230
        %v3259 = vmul.f32 1.0, %v3258
        %v3260 = vrcp.pop %v3231
        %v3261 = vmul.f32 1.0, %v3260
        %v3262 = vrcp.pop %v3232
        %v3263 = vmul.f32 1.0, %v3262
        %v3264 = vrcp.pop %v3233
        %v3265 = vmul.f32 1.0, %v3264
        %v3266 = vrcp.pop %v3234
        %v3267 = vmul.f32 1.0, %v3266
        %v3268 = vrcp.pop %v3235
        %v3269 = vmul.f32 1.0, %v3268
        %v3270 = vrcp.pop %v3236
        %v3271 = vmul.f32 1.0, %v3270
        %v3272 = vrcp.pop %v3237
        %v3273 = vmul.f32 1.0, %v3272
        %v3274 = vrcp.pop %v3238
        %v3275 = vmul.f32 1.0, %v3274
        %v3276 = vrcp.pop %v3239
        %v3277 = vmul.f32 1.0, %v3276
        %v3278 = vrcp.pop %v3240
        %v3279 = vmul.f32 1.0, %v3278
        %v3280 = vrcp.pop %v3241
        %v3281 = vmul.f32 1.0, %v3280
        %v3282 = vmul.f32 %v3142, %v3243
        %v3283 = vmul.f32 %v3143, %v3245
        %v3284 = vmul.f32 %v3144, %v3247
        %v3285 = vmul.f32 %v3145, %v3249
        %v3286 = vmul.f32 %v3146, %v3251
        %v3287 = vmul.f32 %v3147, %v3253
        %v3288 = vmul.f32 %v3148, %v3255
        %v3289 = vmul.f32 %v3149, %v3257
        %v3290 = vmul.f32 %v3150, %v3259
        %v3291 = vmul.f32 %v3151, %v3261
        %v3292 = vmul.f32 %v3152, %v3263
        %v3293 = vmul.f32 %v3153, %v3265
        %v3294 = vmul.f32 %v3154, %v3267
        %v3295 = vmul.f32 %v3155, %v3269
        %v3296 = vmul.f32 %v3156, %v3271
        %v3297 = vmul.f32 %v3157, %v3273
        %v3298 = vmul.f32 %v3158, %v3275
        %v3299 = vmul.f32 %v3159, %v3277
        %v3300 = vmul.f32 %v3160, %v3279
        %v3301 = vmul.f32 %v3161, %v3281
        %v3302 = vpack.c.bf16 %v3283, %v3282
        %v3303 = vpack.c.bf16 %v3285, %v3284
        %v3304 = vpack.c.bf16 %v3287, %v3286
        %v3305 = vpack.c.bf16 %v3289, %v3288
        %v3306 = vpack.c.bf16 %v3291, %v3290
        %v3307 = vpack.c.bf16 %v3293, %v3292
        %v3308 = vpack.c.bf16 %v3295, %v3294
        %v3309 = vpack.c.bf16 %v3297, %v3296
        %v3310 = vpack.c.bf16 %v3299, %v3298
        %v3311 = vpack.c.bf16 %v3301, %v3300
        %v3312 = vld [vmem:[%s7] sm:$0xf]
        %v3313 = vld [vmem:[%s7 + $0x4] sm:$0xf]
        %v3314 = vld [vmem:[%s7 + $0x8] sm:$0xf]
        %v3315 = vld [vmem:[%s7 + $0xc] sm:$0xf]
        %v3316 = vld [vmem:[%s7 + $0x10] sm:$0xf]
        %v3317 = vld [vmem:[%s7 + $0x14] sm:$0xf]
        %v3318 = vld [vmem:[%s7 + $0x18] sm:$0xf]
        %v3319 = vld [vmem:[%s7 + $0x1c] sm:$0xf]
        %v3320 = vld [vmem:[%s7 + $0x20] sm:$0xf]
        %v3321 = vld [vmem:[%s7 + $0x24] sm:$0xf]
        %v3322 = vld [vmem:[%s7 + $0x28] sm:$0xf]
        %v3323 = vld [vmem:[%s7 + $0x2c] sm:$0xf]
        %v3324 = vld [vmem:[%s7 + $0x30] sm:$0xf]
        %v3325 = vld [vmem:[%s7 + $0x34] sm:$0xf]
        %v3326 = vld [vmem:[%s7 + $0x38] sm:$0xf]
        %v3327 = vld [vmem:[%s7 + $0x3c] sm:$0xf]
        %v3344 = vunpack.c.l.b16 %v3312
        %v3345 = vunpack.c.l.b16 %v3313
        %v3346 = vunpack.c.l.b16 %v3314
        %v3347 = vunpack.c.l.b16 %v3315
        %v3348 = vunpack.c.l.b16 %v3316
        %v3349 = vunpack.c.l.b16 %v3317
        %v3350 = vunpack.c.l.b16 %v3318
        %v3351 = vunpack.c.l.b16 %v3319
        %v3352 = vunpack.c.l.b16 %v3320
        %v3353 = vunpack.c.l.b16 %v3321
        %v3354 = vunpack.c.l.b16 %v3322
        %v3355 = vunpack.c.l.b16 %v3323
        %v3356 = vunpack.c.l.b16 %v3324
        %v3357 = vunpack.c.l.b16 %v3325
        %v3358 = vunpack.c.l.b16 %v3326
        %v3359 = vunpack.c.l.b16 %v3327
        %v3360 = vpack.c.b16 %v3345, %v3344
        %v3361 = vpack.c.b16 %v3347, %v3346
        %v3362 = vpack.c.b16 %v3349, %v3348
        %v3363 = vpack.c.b16 %v3351, %v3350
        %v3364 = vpack.c.b16 %v3353, %v3352
        %v3365 = vpack.c.b16 %v3355, %v3354
        %v3366 = vpack.c.b16 %v3357, %v3356
        %v3367 = vpack.c.b16 %v3359, %v3358
        %3376 = vmatprep.subr.bf16.mxu0 0
        %3377 = vmatpush1.bf16.msra.mxu0 %v3367
        %3378 = vmatprep.subr.bf16.mxu0 0
        %3379 = vmatpush1.bf16.msra.mxu0 %v3366
        %3380 = vmatprep.subr.bf16.mxu0 0
        %3381 = vmatpush1.bf16.msra.mxu0 %v3365
        %3382 = vmatprep.subr.bf16.mxu0 0
        %3383 = vmatpush1.bf16.msra.mxu0 %v3364
        %3384 = vmatprep.subr.bf16.mxu0 0
        %3385 = vmatpush1.bf16.msra.mxu0 %v3363
        %3386 = vmatprep.subr.bf16.mxu0 0
        %3387 = vmatpush1.bf16.msra.mxu0 %v3362
        %3388 = vmatprep.subr.bf16.mxu0 0
        %3389 = vmatpush1.bf16.msra.mxu0 %v3361
        %3390 = vmatprep.subr.bf16.mxu0 0
        %3391 = vmatpush1.bf16.msra.mxu0 %v3360
        %3392 = vmatprep.subr.bf16.mxu0 0
        %3393 = vmatpush2.bf16.msra.mxu0 0
        %3394 = vmatprep.subr.bf16.mxu0 0
        %3395 = vmatpush2.bf16.msra.mxu0 0
        %3396 = vmatprep.subr.bf16.mxu0 0
        %3397 = vmatpush2.bf16.msra.mxu0 0
        %3398 = vmatprep.subr.bf16.mxu0 0
        %3399 = vmatpush2.bf16.msra.mxu0 0
        %3400 = vmatprep.subr.bf16.mxu0 0
        %3401 = vmatpush2.bf16.msra.mxu0 0
        %3402 = vmatprep.subr.bf16.mxu0 0
        %3403 = vmatpush2.bf16.msra.mxu0 0
        %3404 = vmatprep.subr.bf16.mxu0 0
        %3405 = vmatpush2.bf16.msra.mxu0 0
        %3406 = vmatprep.subr.bf16.mxu0 0
        %3407 = vmatpush2.bf16.msra.mxu0 0
        %3408 = vmatprep.mubr.bf16.mxu0 0
        %3409 = vmatmul.mubr.bf16.gmra.mxu0 %v3302
        %v3410 = vpop.f32.mrf.mxu0
        %v3411 = vadd.f32 0.0, %v3410
        %v3412 = vpop.f32.mrf.mxu0
        %v3413 = vpop.f32.mrf.mxu0
        %v3414 = vadd.f32 0.0, %v3413
        %v3415 = vpop.f32.mrf.mxu0
        %3416 = vmatprep.mubr.bf16.mxu0 0
        %3417 = vmatmul.mubr.bf16.gmra.mxu0 %v3303
        %v3418 = vpop.f32.mrf.mxu0
        %v3419 = vadd.f32 0.0, %v3418
        %v3420 = vpop.f32.mrf.mxu0
        %v3421 = vpop.f32.mrf.mxu0
        %v3422 = vadd.f32 0.0, %v3421
        %v3423 = vpop.f32.mrf.mxu0
        %3424 = vmatprep.mubr.bf16.mxu0 0
        %3425 = vmatmul.mubr.bf16.gmra.mxu0 %v3304
        %v3426 = vpop.f32.mrf.mxu0
        %v3427 = vadd.f32 0.0, %v3426
        %v3428 = vpop.f32.mrf.mxu0
        %v3429 = vpop.f32.mrf.mxu0
        %v3430 = vadd.f32 0.0, %v3429
        %v3431 = vpop.f32.mrf.mxu0
        %3432 = vmatprep.mubr.bf16.mxu0 0
        %3433 = vmatmul.mubr.bf16.gmra.mxu0 %v3305
        %v3434 = vpop.f32.mrf.mxu0
        %v3435 = vadd.f32 0.0, %v3434
        %v3436 = vpop.f32.mrf.mxu0
        %v3437 = vpop.f32.mrf.mxu0
        %v3438 = vadd.f32 0.0, %v3437
        %v3439 = vpop.f32.mrf.mxu0
        %3440 = vmatprep.mubr.bf16.mxu0 0
        %3441 = vmatmul.mubr.bf16.gmra.mxu0 %v3306
        %v3442 = vpop.f32.mrf.mxu0
        %v3443 = vadd.f32 0.0, %v3442
        %v3444 = vpop.f32.mrf.mxu0
        %v3445 = vpop.f32.mrf.mxu0
        %v3446 = vadd.f32 0.0, %v3445
        %v3447 = vpop.f32.mrf.mxu0
        %3448 = vmatprep.mubr.bf16.mxu0 0
        %3449 = vmatmul.mubr.bf16.gmra.mxu0 %v3307
        %v3450 = vpop.f32.mrf.mxu0
        %v3451 = vadd.f32 0.0, %v3450
        %v3452 = vpop.f32.mrf.mxu0
        %v3453 = vpop.f32.mrf.mxu0
        %v3454 = vadd.f32 0.0, %v3453
        %v3455 = vpop.f32.mrf.mxu0
        %3456 = vmatprep.mubr.bf16.mxu0 0
        %3457 = vmatmul.mubr.bf16.gmra.mxu0 %v3308
        %v3458 = vpop.f32.mrf.mxu0
        %v3459 = vadd.f32 0.0, %v3458
        %v3460 = vpop.f32.mrf.mxu0
        %v3461 = vpop.f32.mrf.mxu0
        %v3462 = vadd.f32 0.0, %v3461
        %v3463 = vpop.f32.mrf.mxu0
        %3464 = vmatprep.mubr.bf16.mxu0 0
        %3465 = vmatmul.mubr.bf16.gmra.mxu0 %v3309
        %v3466 = vpop.f32.mrf.mxu0
        %v3467 = vadd.f32 0.0, %v3466
        %v3468 = vpop.f32.mrf.mxu0
        %v3469 = vpop.f32.mrf.mxu0
        %v3470 = vadd.f32 0.0, %v3469
        %v3471 = vpop.f32.mrf.mxu0
        %3472 = vmatprep.mubr.bf16.mxu0 0
        %3473 = vmatmul.mubr.bf16.gmra.mxu0 %v3310
        %v3474 = vpop.f32.mrf.mxu0
        %v3475 = vadd.f32 0.0, %v3474
        %v3476 = vpop.f32.mrf.mxu0
        %v3477 = vpop.f32.mrf.mxu0
        %v3478 = vadd.f32 0.0, %v3477
        %v3479 = vpop.f32.mrf.mxu0
        %3480 = vmatprep.mubr.bf16.mxu0 0
        %3481 = vmatmul.mubr.bf16.gmra.mxu0 %v3311
        %v3482 = vpop.f32.mrf.mxu0
        %v3483 = vadd.f32 0.0, %v3482
        %v3484 = vpop.f32.mrf.mxu0
        %v3485 = vpop.f32.mrf.mxu0
        %v3486 = vadd.f32 0.0, %v3485
        %v3487 = vpop.f32.mrf.mxu0
        %3488 = vdwg.mxu0
        %v3489 = vld [vmem:[%s8] sm:$0x1]
        %v3491 = vlaneseq
        %v3492 = vshrl.u32 %v3491, 7
        %v3493 = vsub.s32 0, %v3492
        %v3494 = vrot.slane %v3489, %v3493
        %v3496 = vmul.f32 %v3411, %v3494
        %v3497 = vmul.f32 %v3414, %v3494
        %v3498 = vmul.f32 %v3419, %v3494
        %v3499 = vmul.f32 %v3422, %v3494
        %v3500 = vmul.f32 %v3427, %v3494
        %v3501 = vmul.f32 %v3430, %v3494
        %v3502 = vmul.f32 %v3435, %v3494
        %v3503 = vmul.f32 %v3438, %v3494
        %v3504 = vmul.f32 %v3443, %v3494
        %v3505 = vmul.f32 %v3446, %v3494
        %v3506 = vmul.f32 %v3451, %v3494
        %v3507 = vmul.f32 %v3454, %v3494
        %v3508 = vmul.f32 %v3459, %v3494
        %v3509 = vmul.f32 %v3462, %v3494
        %v3510 = vmul.f32 %v3467, %v3494
        %v3511 = vmul.f32 %v3470, %v3494
        %v3512 = vmul.f32 %v3475, %v3494
        %v3513 = vmul.f32 %v3478, %v3494
        %v3514 = vmul.f32 %v3483, %v3494
        %v3515 = vmul.f32 %v3486, %v3494
        %v3516 = vld [vmem:[%s9] sm:$0x1]
        %v3518 = vlaneseq
        %v3519 = vshrl.u32 %v3518, 7
        %v3520 = vsub.s32 0, %v3519
        %v3521 = vrot.slane %v3516, %v3520
        %v3523 = vadd.f32 %v3496, %v3521
        %v3524 = vadd.f32 %v3497, %v3521
        %v3525 = vadd.f32 %v3498, %v3521
        %v3526 = vadd.f32 %v3499, %v3521
        %v3527 = vadd.f32 %v3500, %v3521
        %v3528 = vadd.f32 %v3501, %v3521
        %v3529 = vadd.f32 %v3502, %v3521
        %v3530 = vadd.f32 %v3503, %v3521
        %v3531 = vadd.f32 %v3504, %v3521
        %v3532 = vadd.f32 %v3505, %v3521
        %v3533 = vadd.f32 %v3506, %v3521
        %v3534 = vadd.f32 %v3507, %v3521
        %v3535 = vadd.f32 %v3508, %v3521
        %v3536 = vadd.f32 %v3509, %v3521
        %v3537 = vadd.f32 %v3510, %v3521
        %v3538 = vadd.f32 %v3511, %v3521
        %v3539 = vadd.f32 %v3512, %v3521
        %v3540 = vadd.f32 %v3513, %v3521
        %v3541 = vadd.f32 %v3514, %v3521
        %v3542 = vadd.f32 %v3515, %v3521
        %v3543 = vxor.u32 %v3523, 2147483648
        %v3544 = vxor.u32 %v3524, 2147483648
        %v3545 = vxor.u32 %v3525, 2147483648
        %v3546 = vxor.u32 %v3526, 2147483648
        %v3547 = vxor.u32 %v3527, 2147483648
        %v3548 = vxor.u32 %v3528, 2147483648
        %v3549 = vxor.u32 %v3529, 2147483648
        %v3550 = vxor.u32 %v3530, 2147483648
        %v3551 = vxor.u32 %v3531, 2147483648
        %v3552 = vxor.u32 %v3532, 2147483648
        %v3553 = vxor.u32 %v3533, 2147483648
        %v3554 = vxor.u32 %v3534, 2147483648
        %v3555 = vxor.u32 %v3535, 2147483648
        %v3556 = vxor.u32 %v3536, 2147483648
        %v3557 = vxor.u32 %v3537, 2147483648
        %v3558 = vxor.u32 %v3538, 2147483648
        %v3559 = vxor.u32 %v3539, 2147483648
        %v3560 = vxor.u32 %v3540, 2147483648
        %v3561 = vxor.u32 %v3541, 2147483648
        %v3562 = vxor.u32 %v3542, 2147483648
        %v3563 = vmul.f32 %v3543, 1.442695
        %v3564 = vpow.pop %v3563
        %v3565 = vmul.f32 %v3544, 1.442695
        %v3566 = vpow.pop %v3565
        %v3567 = vmul.f32 %v3545, 1.442695
        %v3568 = vpow.pop %v3567
        %v3569 = vmul.f32 %v3546, 1.442695
        %v3570 = vpow.pop %v3569
        %v3571 = vmul.f32 %v3547, 1.442695
        %v3572 = vpow.pop %v3571
        %v3573 = vmul.f32 %v3548, 1.442695
        %v3574 = vpow.pop %v3573
        %v3575 = vmul.f32 %v3549, 1.442695
        %v3576 = vpow.pop %v3575
        %v3577 = vmul.f32 %v3550, 1.442695
        %v3578 = vpow.pop %v3577
        %v3579 = vmul.f32 %v3551, 1.442695
        %v3580 = vpow.pop %v3579
        %v3581 = vmul.f32 %v3552, 1.442695
        %v3582 = vpow.pop %v3581
        %v3583 = vmul.f32 %v3553, 1.442695
        %v3584 = vpow.pop %v3583
        %v3585 = vmul.f32 %v3554, 1.442695
        %v3586 = vpow.pop %v3585
        %v3587 = vmul.f32 %v3555, 1.442695
        %v3588 = vpow.pop %v3587
        %v3589 = vmul.f32 %v3556, 1.442695
        %v3590 = vpow.pop %v3589
        %v3591 = vmul.f32 %v3557, 1.442695
        %v3592 = vpow.pop %v3591
        %v3593 = vmul.f32 %v3558, 1.442695
        %v3594 = vpow.pop %v3593
        %v3595 = vmul.f32 %v3559, 1.442695
        %v3596 = vpow.pop %v3595
        %v3597 = vmul.f32 %v3560, 1.442695
        %v3598 = vpow.pop %v3597
        %v3599 = vmul.f32 %v3561, 1.442695
        %v3600 = vpow.pop %v3599
        %v3601 = vmul.f32 %v3562, 1.442695
        %v3602 = vpow.pop %v3601
        %v3603 = vadd.f32 %v3564, 1.0
        %v3604 = vadd.f32 %v3566, 1.0
        %v3605 = vadd.f32 %v3568, 1.0
        %v3606 = vadd.f32 %v3570, 1.0
        %v3607 = vadd.f32 %v3572, 1.0
        %v3608 = vadd.f32 %v3574, 1.0
        %v3609 = vadd.f32 %v3576, 1.0
        %v3610 = vadd.f32 %v3578, 1.0
        %v3611 = vadd.f32 %v3580, 1.0
        %v3612 = vadd.f32 %v3582, 1.0
        %v3613 = vadd.f32 %v3584, 1.0
        %v3614 = vadd.f32 %v3586, 1.0
        %v3615 = vadd.f32 %v3588, 1.0
        %v3616 = vadd.f32 %v3590, 1.0
        %v3617 = vadd.f32 %v3592, 1.0
        %v3618 = vadd.f32 %v3594, 1.0
        %v3619 = vadd.f32 %v3596, 1.0
        %v3620 = vadd.f32 %v3598, 1.0
        %v3621 = vadd.f32 %v3600, 1.0
        %v3622 = vadd.f32 %v3602, 1.0
        %v3623 = vrcp.pop %v3603
        %v3624 = vmul.f32 1.0, %v3623
        %v3625 = vrcp.pop %v3604
        %v3626 = vmul.f32 1.0, %v3625
        %v3627 = vrcp.pop %v3605
        %v3628 = vmul.f32 1.0, %v3627
        %v3629 = vrcp.pop %v3606
        %v3630 = vmul.f32 1.0, %v3629
        %v3631 = vrcp.pop %v3607
        %v3632 = vmul.f32 1.0, %v3631
        %v3633 = vrcp.pop %v3608
        %v3634 = vmul.f32 1.0, %v3633
        %v3635 = vrcp.pop %v3609
        %v3636 = vmul.f32 1.0, %v3635
        %v3637 = vrcp.pop %v3610
        %v3638 = vmul.f32 1.0, %v3637
        %v3639 = vrcp.pop %v3611
        %v3640 = vmul.f32 1.0, %v3639
        %v3641 = vrcp.pop %v3612
        %v3642 = vmul.f32 1.0, %v3641
        %v3643 = vrcp.pop %v3613
        %v3644 = vmul.f32 1.0, %v3643
        %v3645 = vrcp.pop %v3614
        %v3646 = vmul.f32 1.0, %v3645
        %v3647 = vrcp.pop %v3615
        %v3648 = vmul.f32 1.0, %v3647
        %v3649 = vrcp.pop %v3616
        %v3650 = vmul.f32 1.0, %v3649
        %v3651 = vrcp.pop %v3617
        %v3652 = vmul.f32 1.0, %v3651
        %v3653 = vrcp.pop %v3618
        %v3654 = vmul.f32 1.0, %v3653
        %v3655 = vrcp.pop %v3619
        %v3656 = vmul.f32 1.0, %v3655
        %v3657 = vrcp.pop %v3620
        %v3658 = vmul.f32 1.0, %v3657
        %v3659 = vrcp.pop %v3621
        %v3660 = vmul.f32 1.0, %v3659
        %v3661 = vrcp.pop %v3622
        %v3662 = vmul.f32 1.0, %v3661
        %v3663 = vmul.f32 %v3523, %v3624
        %v3664 = vmul.f32 %v3524, %v3626
        %v3665 = vmul.f32 %v3525, %v3628
        %v3666 = vmul.f32 %v3526, %v3630
        %v3667 = vmul.f32 %v3527, %v3632
        %v3668 = vmul.f32 %v3528, %v3634
        %v3669 = vmul.f32 %v3529, %v3636
        %v3670 = vmul.f32 %v3530, %v3638
        %v3671 = vmul.f32 %v3531, %v3640
        %v3672 = vmul.f32 %v3532, %v3642
        %v3673 = vmul.f32 %v3533, %v3644
        %v3674 = vmul.f32 %v3534, %v3646
        %v3675 = vmul.f32 %v3535, %v3648
        %v3676 = vmul.f32 %v3536, %v3650
        %v3677 = vmul.f32 %v3537, %v3652
        %v3678 = vmul.f32 %v3538, %v3654
        %v3679 = vmul.f32 %v3539, %v3656
        %v3680 = vmul.f32 %v3540, %v3658
        %v3681 = vmul.f32 %v3541, %v3660
        %v3682 = vmul.f32 %v3542, %v3662
        %v3683 = vpack.c.bf16 %v3664, %v3663
        %v3684 = vpack.c.bf16 %v3666, %v3665
        %v3685 = vpack.c.bf16 %v3668, %v3667
        %v3686 = vpack.c.bf16 %v3670, %v3669
        %v3687 = vpack.c.bf16 %v3672, %v3671
        %v3688 = vpack.c.bf16 %v3674, %v3673
        %v3689 = vpack.c.bf16 %v3676, %v3675
        %v3690 = vpack.c.bf16 %v3678, %v3677
        %v3691 = vpack.c.bf16 %v3680, %v3679
        %v3692 = vpack.c.bf16 %v3682, %v3681
        %v3693 = vld [vmem:[%s10] sm:$0xf]
        %v3694 = vld [vmem:[%s10 + $0x4] sm:$0xf]
        %v3695 = vld [vmem:[%s10 + $0x8] sm:$0xf]
        %v3696 = vld [vmem:[%s10 + $0xc] sm:$0xf]
        %v3697 = vld [vmem:[%s10 + $0x10] sm:$0xf]
        %v3698 = vld [vmem:[%s10 + $0x14] sm:$0xf]
        %v3699 = vld [vmem:[%s10 + $0x18] sm:$0xf]
        %v3700 = vld [vmem:[%s10 + $0x1c] sm:$0xf]
        %v3701 = vld [vmem:[%s10 + $0x20] sm:$0xf]
        %v3702 = vld [vmem:[%s10 + $0x24] sm:$0xf]
        %v3703 = vld [vmem:[%s10 + $0x28] sm:$0xf]
        %v3704 = vld [vmem:[%s10 + $0x2c] sm:$0xf]
        %v3705 = vld [vmem:[%s10 + $0x30] sm:$0xf]
        %v3706 = vld [vmem:[%s10 + $0x34] sm:$0xf]
        %v3707 = vld [vmem:[%s10 + $0x38] sm:$0xf]
        %v3708 = vld [vmem:[%s10 + $0x3c] sm:$0xf]
        %v3725 = vunpack.c.l.b16 %v3693
        %v3726 = vunpack.c.l.b16 %v3694
        %v3727 = vunpack.c.l.b16 %v3695
        %v3728 = vunpack.c.l.b16 %v3696
        %v3729 = vunpack.c.l.b16 %v3697
        %v3730 = vunpack.c.l.b16 %v3698
        %v3731 = vunpack.c.l.b16 %v3699
        %v3732 = vunpack.c.l.b16 %v3700
        %v3733 = vunpack.c.l.b16 %v3701
        %v3734 = vunpack.c.l.b16 %v3702
        %v3735 = vunpack.c.l.b16 %v3703
        %v3736 = vunpack.c.l.b16 %v3704
        %v3737 = vunpack.c.l.b16 %v3705
        %v3738 = vunpack.c.l.b16 %v3706
        %v3739 = vunpack.c.l.b16 %v3707
        %v3740 = vunpack.c.l.b16 %v3708
        %v3741 = vpack.c.b16 %v3726, %v3725
        %v3742 = vpack.c.b16 %v3728, %v3727
        %v3743 = vpack.c.b16 %v3730, %v3729
        %v3744 = vpack.c.b16 %v3732, %v3731
        %v3745 = vpack.c.b16 %v3734, %v3733
        %v3746 = vpack.c.b16 %v3736, %v3735
        %v3747 = vpack.c.b16 %v3738, %v3737
        %v3748 = vpack.c.b16 %v3740, %v3739
        %3757 = vmatprep.subr.bf16.mxu0 0
        %3758 = vmatpush1.bf16.msra.mxu0 %v3748
        %3759 = vmatprep.subr.bf16.mxu0 0
        %3760 = vmatpush1.bf16.msra.mxu0 %v3747
        %3761 = vmatprep.subr.bf16.mxu0 0
        %3762 = vmatpush1.bf16.msra.mxu0 %v3746
        %3763 = vmatprep.subr.bf16.mxu0 0
        %3764 = vmatpush1.bf16.msra.mxu0 %v3745
        %3765 = vmatprep.subr.bf16.mxu0 0
        %3766 = vmatpush1.bf16.msra.mxu0 %v3744
        %3767 = vmatprep.subr.bf16.mxu0 0
        %3768 = vmatpush1.bf16.msra.mxu0 %v3743
        %3769 = vmatprep.subr.bf16.mxu0 0
        %3770 = vmatpush1.bf16.msra.mxu0 %v3742
        %3771 = vmatprep.subr.bf16.mxu0 0
        %3772 = vmatpush1.bf16.msra.mxu0 %v3741
        %3773 = vmatprep.subr.bf16.mxu0 0
        %3774 = vmatpush2.bf16.msra.mxu0 0
        %3775 = vmatprep.subr.bf16.mxu0 0
        %3776 = vmatpush2.bf16.msra.mxu0 0
        %3777 = vmatprep.subr.bf16.mxu0 0
        %3778 = vmatpush2.bf16.msra.mxu0 0
        %3779 = vmatprep.subr.bf16.mxu0 0
        %3780 = vmatpush2.bf16.msra.mxu0 0
        %3781 = vmatprep.subr.bf16.mxu0 0
        %3782 = vmatpush2.bf16.msra.mxu0 0
        %3783 = vmatprep.subr.bf16.mxu0 0
        %3784 = vmatpush2.bf16.msra.mxu0 0
        %3785 = vmatprep.subr.bf16.mxu0 0
        %3786 = vmatpush2.bf16.msra.mxu0 0
        %3787 = vmatprep.subr.bf16.mxu0 0
        %3788 = vmatpush2.bf16.msra.mxu0 0
        %3789 = vmatprep.mubr.bf16.mxu0 0
        %3790 = vmatmul.mubr.bf16.gmra.mxu0 %v3303
        %v3791 = vpop.f32.mrf.mxu0
        %v3792 = vadd.f32 0.0, %v3791
        %v3793 = vpop.f32.mrf.mxu0
        %v3794 = vpop.f32.mrf.mxu0
        %v3795 = vadd.f32 0.0, %v3794
        %v3796 = vpop.f32.mrf.mxu0
        %3797 = vmatprep.mubr.bf16.mxu0 0
        %3798 = vmatmul.mubr.bf16.gmra.mxu0 %v3304
        %v3799 = vpop.f32.mrf.mxu0
        %v3800 = vadd.f32 0.0, %v3799
        %v3801 = vpop.f32.mrf.mxu0
        %v3802 = vpop.f32.mrf.mxu0
        %v3803 = vadd.f32 0.0, %v3802
        %v3804 = vpop.f32.mrf.mxu0
        %3805 = vmatprep.mubr.bf16.mxu0 0
        %3806 = vmatmul.mubr.bf16.gmra.mxu0 %v3305
        %v3807 = vpop.f32.mrf.mxu0
        %v3808 = vadd.f32 0.0, %v3807
        %v3809 = vpop.f32.mrf.mxu0
        %v3810 = vpop.f32.mrf.mxu0
        %v3811 = vadd.f32 0.0, %v3810
        %v3812 = vpop.f32.mrf.mxu0
        %3813 = vmatprep.mubr.bf16.mxu0 0
        %3814 = vmatmul.mubr.bf16.gmra.mxu0 %v3306
        %v3815 = vpop.f32.mrf.mxu0
        %v3816 = vadd.f32 0.0, %v3815
        %v3817 = vpop.f32.mrf.mxu0
        %v3818 = vpop.f32.mrf.mxu0
        %v3819 = vadd.f32 0.0, %v3818
        %v3820 = vpop.f32.mrf.mxu0
        %3821 = vmatprep.mubr.bf16.mxu0 0
        %3822 = vmatmul.mubr.bf16.gmra.mxu0 %v3307
        %v3823 = vpop.f32.mrf.mxu0
        %v3824 = vadd.f32 0.0, %v3823
        %v3825 = vpop.f32.mrf.mxu0
        %v3826 = vpop.f32.mrf.mxu0
        %v3827 = vadd.f32 0.0, %v3826
        %v3828 = vpop.f32.mrf.mxu0
        %3829 = vmatprep.mubr.bf16.mxu0 0
        %3830 = vmatmul.mubr.bf16.gmra.mxu0 %v3308
        %v3831 = vpop.f32.mrf.mxu0
        %v3832 = vadd.f32 0.0, %v3831
        %v3833 = vpop.f32.mrf.mxu0
        %v3834 = vpop.f32.mrf.mxu0
        %v3835 = vadd.f32 0.0, %v3834
        %v3836 = vpop.f32.mrf.mxu0
        %3837 = vmatprep.mubr.bf16.mxu0 0
        %3838 = vmatmul.mubr.bf16.gmra.mxu0 %v3309
        %v3839 = vpop.f32.mrf.mxu0
        %v3840 = vadd.f32 0.0, %v3839
        %v3841 = vpop.f32.mrf.mxu0
        %v3842 = vpop.f32.mrf.mxu0
        %v3843 = vadd.f32 0.0, %v3842
        %v3844 = vpop.f32.mrf.mxu0
        %3845 = vmatprep.mubr.bf16.mxu0 0
        %3846 = vmatmul.mubr.bf16.gmra.mxu0 %v3310
        %v3847 = vpop.f32.mrf.mxu0
        %v3848 = vadd.f32 0.0, %v3847
        %v3849 = vpop.f32.mrf.mxu0
        %v3850 = vpop.f32.mrf.mxu0
        %v3851 = vadd.f32 0.0, %v3850
        %v3852 = vpop.f32.mrf.mxu0
        %3853 = vdwg.mxu0
        %v3854 = vld [vmem:[%s11] sm:$0x1]
        %v3856 = vlaneseq
        %v3857 = vshrl.u32 %v3856, 7
        %v3858 = vsub.s32 0, %v3857
        %v3859 = vrot.slane %v3854, %v3858
        %v3861 = vmul.f32 %v3792, %v3859
        %v3862 = vmul.f32 %v3795, %v3859
        %v3863 = vmul.f32 %v3800, %v3859
        %v3864 = vmul.f32 %v3803, %v3859
        %v3865 = vmul.f32 %v3808, %v3859
        %v3866 = vmul.f32 %v3811, %v3859
        %v3867 = vmul.f32 %v3816, %v3859
        %v3868 = vmul.f32 %v3819, %v3859
        %v3869 = vmul.f32 %v3824, %v3859
        %v3870 = vmul.f32 %v3827, %v3859
        %v3871 = vmul.f32 %v3832, %v3859
        %v3872 = vmul.f32 %v3835, %v3859
        %v3873 = vmul.f32 %v3840, %v3859
        %v3874 = vmul.f32 %v3843, %v3859
        %v3875 = vmul.f32 %v3848, %v3859
        %v3876 = vmul.f32 %v3851, %v3859
        %v3877 = vld [vmem:[%s12] sm:$0x1]
        %v3879 = vlaneseq
        %v3880 = vshrl.u32 %v3879, 7
        %v3881 = vsub.s32 0, %v3880
        %v3882 = vrot.slane %v3877, %v3881
        %v3884 = vadd.f32 %v3861, %v3882
        %v3885 = vadd.f32 %v3862, %v3882
        %v3886 = vadd.f32 %v3863, %v3882
        %v3887 = vadd.f32 %v3864, %v3882
        %v3888 = vadd.f32 %v3865, %v3882
        %v3889 = vadd.f32 %v3866, %v3882
        %v3890 = vadd.f32 %v3867, %v3882
        %v3891 = vadd.f32 %v3868, %v3882
        %v3892 = vadd.f32 %v3869, %v3882
        %v3893 = vadd.f32 %v3870, %v3882
        %v3894 = vadd.f32 %v3871, %v3882
        %v3895 = vadd.f32 %v3872, %v3882
        %v3896 = vadd.f32 %v3873, %v3882
        %v3897 = vadd.f32 %v3874, %v3882
        %v3898 = vadd.f32 %v3875, %v3882
        %v3899 = vadd.f32 %v3876, %v3882
        %v3900 = vxor.u32 %v3884, 2147483648
        %v3901 = vxor.u32 %v3885, 2147483648
        %v3902 = vxor.u32 %v3886, 2147483648
        %v3903 = vxor.u32 %v3887, 2147483648
        %v3904 = vxor.u32 %v3888, 2147483648
        %v3905 = vxor.u32 %v3889, 2147483648
        %v3906 = vxor.u32 %v3890, 2147483648
        %v3907 = vxor.u32 %v3891, 2147483648
        %v3908 = vxor.u32 %v3892, 2147483648
        %v3909 = vxor.u32 %v3893, 2147483648
        %v3910 = vxor.u32 %v3894, 2147483648
        %v3911 = vxor.u32 %v3895, 2147483648
        %v3912 = vxor.u32 %v3896, 2147483648
        %v3913 = vxor.u32 %v3897, 2147483648
        %v3914 = vxor.u32 %v3898, 2147483648
        %v3915 = vxor.u32 %v3899, 2147483648
        %v3916 = vmul.f32 %v3900, 1.442695
        %v3917 = vpow.pop %v3916
        %v3918 = vmul.f32 %v3901, 1.442695
        %v3919 = vpow.pop %v3918
        %v3920 = vmul.f32 %v3902, 1.442695
        %v3921 = vpow.pop %v3920
        %v3922 = vmul.f32 %v3903, 1.442695
        %v3923 = vpow.pop %v3922
        %v3924 = vmul.f32 %v3904, 1.442695
        %v3925 = vpow.pop %v3924
        %v3926 = vmul.f32 %v3905, 1.442695
        %v3927 = vpow.pop %v3926
        %v3928 = vmul.f32 %v3906, 1.442695
        %v3929 = vpow.pop %v3928
        %v3930 = vmul.f32 %v3907, 1.442695
        %v3931 = vpow.pop %v3930
        %v3932 = vmul.f32 %v3908, 1.442695
        %v3933 = vpow.pop %v3932
        %v3934 = vmul.f32 %v3909, 1.442695
        %v3935 = vpow.pop %v3934
        %v3936 = vmul.f32 %v3910, 1.442695
        %v3937 = vpow.pop %v3936
        %v3938 = vmul.f32 %v3911, 1.442695
        %v3939 = vpow.pop %v3938
        %v3940 = vmul.f32 %v3912, 1.442695
        %v3941 = vpow.pop %v3940
        %v3942 = vmul.f32 %v3913, 1.442695
        %v3943 = vpow.pop %v3942
        %v3944 = vmul.f32 %v3914, 1.442695
        %v3945 = vpow.pop %v3944
        %v3946 = vmul.f32 %v3915, 1.442695
        %v3947 = vpow.pop %v3946
        %v3948 = vadd.f32 %v3917, 1.0
        %v3949 = vadd.f32 %v3919, 1.0
        %v3950 = vadd.f32 %v3921, 1.0
        %v3951 = vadd.f32 %v3923, 1.0
        %v3952 = vadd.f32 %v3925, 1.0
        %v3953 = vadd.f32 %v3927, 1.0
        %v3954 = vadd.f32 %v3929, 1.0
        %v3955 = vadd.f32 %v3931, 1.0
        %v3956 = vadd.f32 %v3933, 1.0
        %v3957 = vadd.f32 %v3935, 1.0
        %v3958 = vadd.f32 %v3937, 1.0
        %v3959 = vadd.f32 %v3939, 1.0
        %v3960 = vadd.f32 %v3941, 1.0
        %v3961 = vadd.f32 %v3943, 1.0
        %v3962 = vadd.f32 %v3945, 1.0
        %v3963 = vadd.f32 %v3947, 1.0
        %v3964 = vrcp.pop %v3948
        %v3965 = vmul.f32 1.0, %v3964
        %v3966 = vrcp.pop %v3949
        %v3967 = vmul.f32 1.0, %v3966
        %v3968 = vrcp.pop %v3950
        %v3969 = vmul.f32 1.0, %v3968
        %v3970 = vrcp.pop %v3951
        %v3971 = vmul.f32 1.0, %v3970
        %v3972 = vrcp.pop %v3952
        %v3973 = vmul.f32 1.0, %v3972
        %v3974 = vrcp.pop %v3953
        %v3975 = vmul.f32 1.0, %v3974
        %v3976 = vrcp.pop %v3954
        %v3977 = vmul.f32 1.0, %v3976
        %v3978 = vrcp.pop %v3955
        %v3979 = vmul.f32 1.0, %v3978
        %v3980 = vrcp.pop %v3956
        %v3981 = vmul.f32 1.0, %v3980
        %v3982 = vrcp.pop %v3957
        %v3983 = vmul.f32 1.0, %v3982
        %v3984 = vrcp.pop %v3958
        %v3985 = vmul.f32 1.0, %v3984
        %v3986 = vrcp.pop %v3959
        %v3987 = vmul.f32 1.0, %v3986
        %v3988 = vrcp.pop %v3960
        %v3989 = vmul.f32 1.0, %v3988
        %v3990 = vrcp.pop %v3961
        %v3991 = vmul.f32 1.0, %v3990
        %v3992 = vrcp.pop %v3962
        %v3993 = vmul.f32 1.0, %v3992
        %v3994 = vrcp.pop %v3963
        %v3995 = vmul.f32 1.0, %v3994
        %v3996 = vmul.f32 %v3884, %v3965
        %v3997 = vmul.f32 %v3885, %v3967
        %v3998 = vmul.f32 %v3886, %v3969
        %v3999 = vmul.f32 %v3887, %v3971
        %v4000 = vmul.f32 %v3888, %v3973
        %v4001 = vmul.f32 %v3889, %v3975
        %v4002 = vmul.f32 %v3890, %v3977
        %v4003 = vmul.f32 %v3891, %v3979
        %v4004 = vmul.f32 %v3892, %v3981
        %v4005 = vmul.f32 %v3893, %v3983
        %v4006 = vmul.f32 %v3894, %v3985
        %v4007 = vmul.f32 %v3895, %v3987
        %v4008 = vmul.f32 %v3896, %v3989
        %v4009 = vmul.f32 %v3897, %v3991
        %v4010 = vmul.f32 %v3898, %v3993
        %v4011 = vmul.f32 %v3899, %v3995
        %v4012 = vpack.c.bf16 %v3997, %v3996
        %v4013 = vpack.c.bf16 %v3999, %v3998
        %v4014 = vpack.c.bf16 %v4001, %v4000
        %v4015 = vpack.c.bf16 %v4003, %v4002
        %v4016 = vpack.c.bf16 %v4005, %v4004
        %v4017 = vpack.c.bf16 %v4007, %v4006
        %v4018 = vpack.c.bf16 %v4009, %v4008
        %v4019 = vpack.c.bf16 %v4011, %v4010
        %v4020 = vld [vmem:[%s3] sm:$0xff]
        %v4021 = vld [vmem:[%s3 + $0x8] sm:$0xff]
        %v4022 = vld [vmem:[%s3 + $0x10] sm:$0xff]
        %v4023 = vld [vmem:[%s3 + $0x18] sm:$0xff]
        %v4024 = vld [vmem:[%s3 + $0x20] sm:$0xff]
        %v4025 = vld [vmem:[%s3 + $0x28] sm:$0xff]
        %v4026 = vld [vmem:[%s3 + $0x30] sm:$0xff]
        %v4027 = vld [vmem:[%s3 + $0x38] sm:$0xff]
        %v4028 = vld [vmem:[%s3 + $0x40] sm:$0xff]
        %v4029 = vld [vmem:[%s3 + $0x48] sm:$0xff]
        %v4030 = vld [vmem:[%s3 + $0x50] sm:$0xff]
        %v4031 = vld [vmem:[%s3 + $0x58] sm:$0xff]
        %v4032 = vld [vmem:[%s3 + $0x60] sm:$0xff]
        %v4033 = vld [vmem:[%s3 + $0x68] sm:$0xff]
        %v4034 = vld [vmem:[%s3 + $0x70] sm:$0xff]
        %v4035 = vld [vmem:[%s3 + $0x78] sm:$0xff]
        %v4036 = vld [vmem:[%s3 + $0x80] sm:$0xff]
        %v4037 = vld [vmem:[%s3 + $0x88] sm:$0xff]
        %v4038 = vld [vmem:[%s3 + $0x90] sm:$0xff]
        %v4039 = vld [vmem:[%s3 + $0x98] sm:$0xff]
        %4040 = vst [vmem:[#allocation3] sm:$0xf] 0
        %4041 = vst [vmem:[#allocation3 + $0x4] sm:$0xf] 0
        %vm4042 = vcmask 1040384
        %vm4043 = vsmask.f32 256
        %vm4044 = vmand %vm4042, %vm4043
        %v4045 = vld [vmem:[#allocation3 + $0x8] sm:$0x1]
        %v4046 = vsel %vm4044, 0, %v4045
        %4047 = vst [vmem:[#allocation3 + $0x8] sm:$0x1] %v4046
        %vm4048 = vcmask 1043456
        %vm4049 = vsmask.f32 7938
        %vm4050 = vmand %vm4048, %vm4049
        %v4051 = vld [vmem:[#allocation3 + $0x58] sm:$0xf]
        %v4052 = vsel %vm4050, 0, %v4051
        %4053 = vst [vmem:[#allocation3 + $0x58] sm:$0xf] %v4052
        %4054 = vst [vmem:[#allocation3 + $0x5c] sm:$0xf] 0
        %4055 = vst [vmem:[#allocation3 + $0x60] sm:$0x1] 0
        %v4056 = vld [vmem:[%s13] sm:$0xf]
        %v4057 = vld [vmem:[%s13 + $0x4] sm:$0xf]
        %v4058 = vld [vmem:[%s13 + $0x8] sm:$0xf]
        %v4059 = vld [vmem:[%s13 + $0xc] sm:$0xf]
        %v4060 = vld [vmem:[%s13 + $0x10] sm:$0xf]
        %v4061 = vld [vmem:[%s13 + $0x14] sm:$0xf]
        %v4062 = vld [vmem:[%s13 + $0x18] sm:$0xf]
        %v4063 = vld [vmem:[%s13 + $0x1c] sm:$0xf]
        %v4064 = vld [vmem:[%s13 + $0x20] sm:$0xf]
        %v4065 = vld [vmem:[%s13 + $0x24] sm:$0xf]
        %v4066 = vld [vmem:[%s13 + $0x28] sm:$0xf]
        %v4067 = vld [vmem:[%s13 + $0x2c] sm:$0xf]
        %v4068 = vld [vmem:[%s13 + $0x30] sm:$0xf]
        %v4069 = vld [vmem:[%s13 + $0x34] sm:$0xf]
        %v4070 = vld [vmem:[%s13 + $0x38] sm:$0xf]
        %v4071 = vld [vmem:[%s13 + $0x3c] sm:$0xf]
        %v4088 = vunpack.c.l.b16 %v4056
        %v4089 = vunpack.c.l.b16 %v4057
        %v4090 = vunpack.c.l.b16 %v4058
        %v4091 = vunpack.c.l.b16 %v4059
        %v4092 = vunpack.c.l.b16 %v4060
        %v4093 = vunpack.c.l.b16 %v4061
        %v4094 = vunpack.c.l.b16 %v4062
        %v4095 = vunpack.c.l.b16 %v4063
        %v4096 = vunpack.c.l.b16 %v4064
        %v4097 = vunpack.c.l.b16 %v4065
        %v4098 = vunpack.c.l.b16 %v4066
        %v4099 = vunpack.c.l.b16 %v4067
        %v4100 = vunpack.c.l.b16 %v4068
        %v4101 = vunpack.c.l.b16 %v4069
        %v4102 = vunpack.c.l.b16 %v4070
        %v4103 = vunpack.c.l.b16 %v4071
        %v4104 = vpack.c.b16 %v4089, %v4088
        %v4105 = vpack.c.b16 %v4091, %v4090
        %v4106 = vpack.c.b16 %v4093, %v4092
        %v4107 = vpack.c.b16 %v4095, %v4094
        %v4108 = vpack.c.b16 %v4097, %v4096
        %v4109 = vpack.c.b16 %v4099, %v4098
        %v4110 = vpack.c.b16 %v4101, %v4100
        %v4111 = vpack.c.b16 %v4103, %v4102
        %4120 = vmatprep.subr.bf16.mxu0 0
        %4121 = vmatpush1.bf16.msra.mxu0 %v4111
        %4122 = vmatprep.subr.bf16.mxu0 0
        %4123 = vmatpush1.bf16.msra.mxu0 %v4110
        %4124 = vmatprep.subr.bf16.mxu0 0
        %4125 = vmatpush1.bf16.msra.mxu0 %v4109
        %4126 = vmatprep.subr.bf16.mxu0 0
        %4127 = vmatpush1.bf16.msra.mxu0 %v4108
        %4128 = vmatprep.subr.bf16.mxu0 0
        %4129 = vmatpush1.bf16.msra.mxu0 %v4107
        %4130 = vmatprep.subr.bf16.mxu0 0
        %4131 = vmatpush1.bf16.msra.mxu0 %v4106
        %4132 = vmatprep.subr.bf16.mxu0 0
        %4133 = vmatpush1.bf16.msra.mxu0 %v4105
        %4134 = vmatprep.subr.bf16.mxu0 0
        %4135 = vmatpush1.bf16.msra.mxu0 %v4104
        %4136 = vmatprep.subr.bf16.mxu0 0
        %4137 = vmatpush2.bf16.msra.mxu0 0
        %4138 = vmatprep.subr.bf16.mxu0 0
        %4139 = vmatpush2.bf16.msra.mxu0 0
        %4140 = vmatprep.subr.bf16.mxu0 0
        %4141 = vmatpush2.bf16.msra.mxu0 0
        %4142 = vmatprep.subr.bf16.mxu0 0
        %4143 = vmatpush2.bf16.msra.mxu0 0
        %4144 = vmatprep.subr.bf16.mxu0 0
        %4145 = vmatpush2.bf16.msra.mxu0 0
        %4146 = vmatprep.subr.bf16.mxu0 0
        %4147 = vmatpush2.bf16.msra.mxu0 0
        %4148 = vmatprep.subr.bf16.mxu0 0
        %4149 = vmatpush2.bf16.msra.mxu0 0
        %4150 = vmatprep.subr.bf16.mxu0 0
        %4151 = vmatpush2.bf16.msra.mxu0 0
        %4152 = vmatprep.mubr.bf16.mxu0 0
        %4153 = vmatmul.mubr.bf16.gmra.mxu0 %v3683
        %v4154 = vpop.f32.mrf.mxu0
        %v4155 = vadd.f32 0.0, %v4154
        %v4156 = vpop.f32.mrf.mxu0
        %v4157 = vpop.f32.mrf.mxu0
        %v4158 = vadd.f32 0.0, %v4157
        %v4159 = vpop.f32.mrf.mxu0
        %4160 = vmatprep.mubr.bf16.mxu0 0
        %4161 = vmatmul.mubr.bf16.gmra.mxu0 %v3684
        %v4162 = vpop.f32.mrf.mxu0
        %v4163 = vadd.f32 0.0, %v4162
        %v4164 = vpop.f32.mrf.mxu0
        %v4165 = vpop.f32.mrf.mxu0
        %v4166 = vadd.f32 0.0, %v4165
        %v4167 = vpop.f32.mrf.mxu0
        %4168 = vmatprep.mubr.bf16.mxu0 0
        %4169 = vmatmul.mubr.bf16.gmra.mxu0 %v3685
        %v4170 = vpop.f32.mrf.mxu0
        %v4171 = vadd.f32 0.0, %v4170
        %v4172 = vpop.f32.mrf.mxu0
        %v4173 = vpop.f32.mrf.mxu0
        %v4174 = vadd.f32 0.0, %v4173
        %v4175 = vpop.f32.mrf.mxu0
        %4176 = vmatprep.mubr.bf16.mxu0 0
        %4177 = vmatmul.mubr.bf16.gmra.mxu0 %v3686
        %v4178 = vpop.f32.mrf.mxu0
        %v4179 = vadd.f32 0.0, %v4178
        %v4180 = vpop.f32.mrf.mxu0
        %v4181 = vpop.f32.mrf.mxu0
        %v4182 = vadd.f32 0.0, %v4181
        %v4183 = vpop.f32.mrf.mxu0
        %4184 = vmatprep.mubr.bf16.mxu0 0
        %4185 = vmatmul.mubr.bf16.gmra.mxu0 %v3687
        %v4186 = vpop.f32.mrf.mxu0
        %v4187 = vadd.f32 0.0, %v4186
        %v4188 = vpop.f32.mrf.mxu0
        %v4189 = vpop.f32.mrf.mxu0
        %v4190 = vadd.f32 0.0, %v4189
        %v4191 = vpop.f32.mrf.mxu0
        %4192 = vmatprep.mubr.bf16.mxu0 0
        %4193 = vmatmul.mubr.bf16.gmra.mxu0 %v3688
        %v4194 = vpop.f32.mrf.mxu0
        %v4195 = vadd.f32 0.0, %v4194
        %v4196 = vpop.f32.mrf.mxu0
        %v4197 = vpop.f32.mrf.mxu0
        %v4198 = vadd.f32 0.0, %v4197
        %v4199 = vpop.f32.mrf.mxu0
        %4200 = vmatprep.mubr.bf16.mxu0 0
        %4201 = vmatmul.mubr.bf16.gmra.mxu0 %v3689
        %v4202 = vpop.f32.mrf.mxu0
        %v4203 = vadd.f32 0.0, %v4202
        %v4204 = vpop.f32.mrf.mxu0
        %v4205 = vpop.f32.mrf.mxu0
        %v4206 = vadd.f32 0.0, %v4205
        %v4207 = vpop.f32.mrf.mxu0
        %4208 = vmatprep.mubr.bf16.mxu0 0
        %4209 = vmatmul.mubr.bf16.gmra.mxu0 %v3690
        %v4210 = vpop.f32.mrf.mxu0
        %v4211 = vadd.f32 0.0, %v4210
        %v4212 = vpop.f32.mrf.mxu0
        %v4213 = vpop.f32.mrf.mxu0
        %v4214 = vadd.f32 0.0, %v4213
        %v4215 = vpop.f32.mrf.mxu0
        %4216 = vmatprep.mubr.bf16.mxu0 0
        %4217 = vmatmul.mubr.bf16.gmra.mxu0 %v3691
        %v4218 = vpop.f32.mrf.mxu0
        %v4219 = vadd.f32 0.0, %v4218
        %v4220 = vpop.f32.mrf.mxu0
        %v4221 = vpop.f32.mrf.mxu0
        %v4222 = vadd.f32 0.0, %v4221
        %v4223 = vpop.f32.mrf.mxu0
        %4224 = vmatprep.mubr.bf16.mxu0 0
        %4225 = vmatmul.mubr.bf16.gmra.mxu0 %v3692
        %v4226 = vpop.f32.mrf.mxu0
        %v4227 = vadd.f32 0.0, %v4226
        %v4228 = vpop.f32.mrf.mxu0
        %v4229 = vpop.f32.mrf.mxu0
        %v4230 = vadd.f32 0.0, %v4229
        %v4231 = vpop.f32.mrf.mxu0
        %4232 = vdwg.mxu0
        %v4233 = vld [vmem:[%s14] sm:$0x1]
        %v4235 = vlaneseq
        %v4236 = vshrl.u32 %v4235, 7
        %v4237 = vsub.s32 0, %v4236
        %v4238 = vrot.slane %v4233, %v4237
        %v4240 = vmul.f32 %v4155, %v4238
        %v4241 = vmul.f32 %v4158, %v4238
        %v4242 = vmul.f32 %v4163, %v4238
        %v4243 = vmul.f32 %v4166, %v4238
        %v4244 = vmul.f32 %v4171, %v4238
        %v4245 = vmul.f32 %v4174, %v4238
        %v4246 = vmul.f32 %v4179, %v4238
        %v4247 = vmul.f32 %v4182, %v4238
        %v4248 = vmul.f32 %v4187, %v4238
        %v4249 = vmul.f32 %v4190, %v4238
        %v4250 = vmul.f32 %v4195, %v4238
        %v4251 = vmul.f32 %v4198, %v4238
        %v4252 = vmul.f32 %v4203, %v4238
        %v4253 = vmul.f32 %v4206, %v4238
        %v4254 = vmul.f32 %v4211, %v4238
        %v4255 = vmul.f32 %v4214, %v4238
        %v4256 = vmul.f32 %v4219, %v4238
        %v4257 = vmul.f32 %v4222, %v4238
        %v4258 = vmul.f32 %v4227, %v4238
        %v4259 = vmul.f32 %v4230, %v4238
        %v4260 = vld [vmem:[%s15] sm:$0x1]
        %v4262 = vlaneseq
        %v4263 = vshrl.u32 %v4262, 7
        %v4264 = vsub.s32 0, %v4263
        %v4265 = vrot.slane %v4260, %v4264
        %v4267 = vadd.f32 %v4240, %v4265
        %v4268 = vadd.f32 %v4241, %v4265
        %v4269 = vadd.f32 %v4242, %v4265
        %v4270 = vadd.f32 %v4243, %v4265
        %v4271 = vadd.f32 %v4244, %v4265
        %v4272 = vadd.f32 %v4245, %v4265
        %v4273 = vadd.f32 %v4246, %v4265
        %v4274 = vadd.f32 %v4247, %v4265
        %v4275 = vadd.f32 %v4248, %v4265
        %v4276 = vadd.f32 %v4249, %v4265
        %v4277 = vadd.f32 %v4250, %v4265
        %v4278 = vadd.f32 %v4251, %v4265
        %v4279 = vadd.f32 %v4252, %v4265
        %v4280 = vadd.f32 %v4253, %v4265
        %v4281 = vadd.f32 %v4254, %v4265
        %v4282 = vadd.f32 %v4255, %v4265
        %v4283 = vadd.f32 %v4256, %v4265
        %v4284 = vadd.f32 %v4257, %v4265
        %v4285 = vadd.f32 %v4258, %v4265
        %v4286 = vadd.f32 %v4259, %v4265
        %v4287 = vxor.u32 %v4267, 2147483648
        %v4288 = vxor.u32 %v4268, 2147483648
        %v4289 = vxor.u32 %v4269, 2147483648
        %v4290 = vxor.u32 %v4270, 2147483648
        %v4291 = vxor.u32 %v4271, 2147483648
        %v4292 = vxor.u32 %v4272, 2147483648
        %v4293 = vxor.u32 %v4273, 2147483648
        %v4294 = vxor.u32 %v4274, 2147483648
        %v4295 = vxor.u32 %v4275, 2147483648
        %v4296 = vxor.u32 %v4276, 2147483648
        %v4297 = vxor.u32 %v4277, 2147483648
        %v4298 = vxor.u32 %v4278, 2147483648
        %v4299 = vxor.u32 %v4279, 2147483648
        %v4300 = vxor.u32 %v4280, 2147483648
        %v4301 = vxor.u32 %v4281, 2147483648
        %v4302 = vxor.u32 %v4282, 2147483648
        %v4303 = vxor.u32 %v4283, 2147483648
        %v4304 = vxor.u32 %v4284, 2147483648
        %v4305 = vxor.u32 %v4285, 2147483648
        %v4306 = vxor.u32 %v4286, 2147483648
        %v4307 = vmul.f32 %v4287, 1.442695
        %v4308 = vpow.pop %v4307
        %v4309 = vmul.f32 %v4288, 1.442695
        %v4310 = vpow.pop %v4309
        %v4311 = vmul.f32 %v4289, 1.442695
        %v4312 = vpow.pop %v4311
        %v4313 = vmul.f32 %v4290, 1.442695
        %v4314 = vpow.pop %v4313
        %v4315 = vmul.f32 %v4291, 1.442695
        %v4316 = vpow.pop %v4315
        %v4317 = vmul.f32 %v4292, 1.442695
        %v4318 = vpow.pop %v4317
        %v4319 = vmul.f32 %v4293, 1.442695
        %v4320 = vpow.pop %v4319
        %v4321 = vmul.f32 %v4294, 1.442695
        %v4322 = vpow.pop %v4321
        %v4323 = vmul.f32 %v4295, 1.442695
        %v4324 = vpow.pop %v4323
        %v4325 = vmul.f32 %v4296, 1.442695
        %v4326 = vpow.pop %v4325
        %v4327 = vmul.f32 %v4297, 1.442695
        %v4328 = vpow.pop %v4327
        %v4329 = vmul.f32 %v4298, 1.442695
        %v4330 = vpow.pop %v4329
        %v4331 = vmul.f32 %v4299, 1.442695
        %v4332 = vpow.pop %v4331
        %v4333 = vmul.f32 %v4300, 1.442695
        %v4334 = vpow.pop %v4333
        %v4335 = vmul.f32 %v4301, 1.442695
        %v4336 = vpow.pop %v4335
        %v4337 = vmul.f32 %v4302, 1.442695
        %v4338 = vpow.pop %v4337
        %v4339 = vmul.f32 %v4303, 1.442695
        %v4340 = vpow.pop %v4339
        %v4341 = vmul.f32 %v4304, 1.442695
        %v4342 = vpow.pop %v4341
        %v4343 = vmul.f32 %v4305, 1.442695
        %v4344 = vpow.pop %v4343
        %v4345 = vmul.f32 %v4306, 1.442695
        %v4346 = vpow.pop %v4345
        %v4347 = vadd.f32 %v4308, 1.0
        %v4348 = vadd.f32 %v4310, 1.0
        %v4349 = vadd.f32 %v4312, 1.0
        %v4350 = vadd.f32 %v4314, 1.0
        %v4351 = vadd.f32 %v4316, 1.0
        %v4352 = vadd.f32 %v4318, 1.0
        %v4353 = vadd.f32 %v4320, 1.0
        %v4354 = vadd.f32 %v4322, 1.0
        %v4355 = vadd.f32 %v4324, 1.0
        %v4356 = vadd.f32 %v4326, 1.0
        %v4357 = vadd.f32 %v4328, 1.0
        %v4358 = vadd.f32 %v4330, 1.0
        %v4359 = vadd.f32 %v4332, 1.0
        %v4360 = vadd.f32 %v4334, 1.0
        %v4361 = vadd.f32 %v4336, 1.0
        %v4362 = vadd.f32 %v4338, 1.0
        %v4363 = vadd.f32 %v4340, 1.0
        %v4364 = vadd.f32 %v4342, 1.0
        %v4365 = vadd.f32 %v4344, 1.0
        %v4366 = vadd.f32 %v4346, 1.0
        %v4367 = vrcp.pop %v4347
        %v4368 = vmul.f32 1.0, %v4367
        %v4369 = vrcp.pop %v4348
        %v4370 = vmul.f32 1.0, %v4369
        %v4371 = vrcp.pop %v4349
        %v4372 = vmul.f32 1.0, %v4371
        %v4373 = vrcp.pop %v4350
        %v4374 = vmul.f32 1.0, %v4373
        %v4375 = vrcp.pop %v4351
        %v4376 = vmul.f32 1.0, %v4375
        %v4377 = vrcp.pop %v4352
        %v4378 = vmul.f32 1.0, %v4377
        %v4379 = vrcp.pop %v4353
        %v4380 = vmul.f32 1.0, %v4379
        %v4381 = vrcp.pop %v4354
        %v4382 = vmul.f32 1.0, %v4381
        %v4383 = vrcp.pop %v4355
        %v4384 = vmul.f32 1.0, %v4383
        %v4385 = vrcp.pop %v4356
        %v4386 = vmul.f32 1.0, %v4385
        %v4387 = vrcp.pop %v4357
        %v4388 = vmul.f32 1.0, %v4387
        %v4389 = vrcp.pop %v4358
        %v4390 = vmul.f32 1.0, %v4389
        %v4391 = vrcp.pop %v4359
        %v4392 = vmul.f32 1.0, %v4391
        %v4393 = vrcp.pop %v4360
        %v4394 = vmul.f32 1.0, %v4393
        %v4395 = vrcp.pop %v4361
        %v4396 = vmul.f32 1.0, %v4395
        %v4397 = vrcp.pop %v4362
        %v4398 = vmul.f32 1.0, %v4397
        %v4399 = vrcp.pop %v4363
        %v4400 = vmul.f32 1.0, %v4399
        %v4401 = vrcp.pop %v4364
        %v4402 = vmul.f32 1.0, %v4401
        %v4403 = vrcp.pop %v4365
        %v4404 = vmul.f32 1.0, %v4403
        %v4405 = vrcp.pop %v4366
        %v4406 = vmul.f32 1.0, %v4405
        %v4407 = vmul.f32 %v4267, %v4368
        %v4408 = vmul.f32 %v4268, %v4370
        %v4409 = vmul.f32 %v4269, %v4372
        %v4410 = vmul.f32 %v4270, %v4374
        %v4411 = vmul.f32 %v4271, %v4376
        %v4412 = vmul.f32 %v4272, %v4378
        %v4413 = vmul.f32 %v4273, %v4380
        %v4414 = vmul.f32 %v4274, %v4382
        %v4415 = vmul.f32 %v4275, %v4384
        %v4416 = vmul.f32 %v4276, %v4386
        %v4417 = vmul.f32 %v4277, %v4388
        %v4418 = vmul.f32 %v4278, %v4390
        %v4419 = vmul.f32 %v4279, %v4392
        %v4420 = vmul.f32 %v4280, %v4394
        %v4421 = vmul.f32 %v4281, %v4396
        %v4422 = vmul.f32 %v4282, %v4398
        %v4423 = vmul.f32 %v4283, %v4400
        %v4424 = vmul.f32 %v4284, %v4402
        %v4425 = vmul.f32 %v4285, %v4404
        %v4426 = vmul.f32 %v4286, %v4406
        %v4427 = vpack.c.bf16 %v4408, %v4407
        %v4428 = vpack.c.bf16 %v4410, %v4409
        %v4429 = vpack.c.bf16 %v4412, %v4411
        %v4430 = vpack.c.bf16 %v4414, %v4413
        %v4431 = vpack.c.bf16 %v4416, %v4415
        %v4432 = vpack.c.bf16 %v4418, %v4417
        %v4433 = vpack.c.bf16 %v4420, %v4419
        %v4434 = vpack.c.bf16 %v4422, %v4421
        %v4435 = vpack.c.bf16 %v4424, %v4423
        %v4436 = vpack.c.bf16 %v4426, %v4425
        %v4447 = vunpack.c.l.b16 %v4427
        %v4448 = vunpack.c.h.b16 %v4427
        %v4449 = vunpack.c.l.b16 %v4428
        %v4450 = vunpack.c.h.b16 %v4428
        %v4451 = vunpack.c.l.b16 %v4429
        %v4452 = vunpack.c.h.b16 %v4429
        %v4453 = vunpack.c.l.b16 %v4430
        %v4454 = vunpack.c.h.b16 %v4430
        %v4455 = vunpack.c.l.b16 %v4431
        %v4456 = vunpack.c.h.b16 %v4431
        %v4457 = vunpack.c.l.b16 %v4432
        %v4458 = vunpack.c.h.b16 %v4432
        %v4459 = vunpack.c.l.b16 %v4433
        %v4460 = vunpack.c.h.b16 %v4433
        %v4461 = vunpack.c.l.b16 %v4434
        %v4462 = vunpack.c.h.b16 %v4434
        %v4463 = vunpack.c.l.b16 %v4435
        %v4464 = vunpack.c.h.b16 %v4435
        %v4465 = vunpack.c.l.b16 %v4436
        %v4466 = vunpack.c.h.b16 %v4436
        %v4467 = vpack.c.b16 %v4447, %v4447
        %v4468 = vpack.c.b16 %v4448, %v4448
        %v4469 = vpack.c.b16 %v4449, %v4449
        %v4470 = vpack.c.b16 %v4450, %v4450
        %v4471 = vpack.c.b16 %v4451, %v4451
        %v4472 = vpack.c.b16 %v4452, %v4452
        %v4473 = vpack.c.b16 %v4453, %v4453
        %v4474 = vpack.c.b16 %v4454, %v4454
        %v4475 = vpack.c.b16 %v4455, %v4455
        %v4476 = vpack.c.b16 %v4456, %v4456
        %v4477 = vpack.c.b16 %v4457, %v4457
        %v4478 = vpack.c.b16 %v4458, %v4458
        %v4479 = vpack.c.b16 %v4459, %v4459
        %v4480 = vpack.c.b16 %v4460, %v4460
        %v4481 = vpack.c.b16 %v4461, %v4461
        %v4482 = vpack.c.b16 %v4462, %v4462
        %v4483 = vpack.c.b16 %v4463, %v4463
        %v4484 = vpack.c.b16 %v4464, %v4464
        %v4485 = vpack.c.b16 %v4465, %v4465
        %v4486 = vpack.c.b16 %v4466, %v4466
        %vm4487 = vsmask.f32 4368
        %vm4488 = vmor %vm4043, %vm4487
        %v4490 = vshrl.u32 %v4467, 16
        %v4492 = vrot.slane %v4490, 7
        %v4493 = vshll.u32 %v4467, 16
        %v4495 = vor.u32 %v4492, %v4493
        %v4496 = vrot.slane %v4492, 4
        %v4498 = vshrl.u32 %v4468, 16
        %v4500 = vrot.slane %v4498, 7
        %v4501 = vshll.u32 %v4468, 16
        %v4503 = vor.u32 %v4500, %v4501
        %v4504 = vsel %vm4488, %v4496, %v4503
        %v4505 = vrot.slane %v4500, 4
        %v4507 = vshrl.u32 %v4469, 16
        %v4509 = vrot.slane %v4507, 7
        %v4510 = vshll.u32 %v4469, 16
        %v4512 = vor.u32 %v4509, %v4510
        %v4513 = vsel %vm4488, %v4505, %v4512
        %v4514 = vrot.slane %v4509, 4
        %v4516 = vshrl.u32 %v4470, 16
        %v4518 = vrot.slane %v4516, 7
        %v4519 = vshll.u32 %v4470, 16
        %v4521 = vor.u32 %v4518, %v4519
        %v4522 = vsel %vm4488, %v4514, %v4521
        %v4523 = vrot.slane %v4518, 4
        %v4525 = vshrl.u32 %v4471, 16
        %v4527 = vrot.slane %v4525, 7
        %v4528 = vshll.u32 %v4471, 16
        %v4530 = vor.u32 %v4527, %v4528
        %v4531 = vsel %vm4488, %v4523, %v4530
        %v4532 = vrot.slane %v4527, 4
        %v4534 = vshrl.u32 %v4472, 16
        %v4536 = vrot.slane %v4534, 7
        %v4537 = vshll.u32 %v4472, 16
        %v4539 = vor.u32 %v4536, %v4537
        %v4540 = vsel %vm4488, %v4532, %v4539
        %v4541 = vrot.slane %v4536, 4
        %v4543 = vshrl.u32 %v4473, 16
        %v4545 = vrot.slane %v4543, 7
        %v4546 = vshll.u32 %v4473, 16
        %v4548 = vor.u32 %v4545, %v4546
        %v4549 = vsel %vm4488, %v4541, %v4548
        %v4550 = vrot.slane %v4545, 4
        %v4552 = vshrl.u32 %v4474, 16
        %v4554 = vrot.slane %v4552, 7
        %v4555 = vshll.u32 %v4474, 16
        %v4557 = vor.u32 %v4554, %v4555
        %v4558 = vsel %vm4488, %v4550, %v4557
        %v4559 = vrot.slane %v4554, 4
        %v4561 = vshrl.u32 %v4475, 16
        %v4563 = vrot.slane %v4561, 7
        %v4564 = vshll.u32 %v4475, 16
        %v4566 = vor.u32 %v4563, %v4564
        %v4567 = vsel %vm4488, %v4559, %v4566
        %v4568 = vrot.slane %v4563, 4
        %v4570 = vshrl.u32 %v4476, 16
        %v4572 = vrot.slane %v4570, 7
        %v4573 = vshll.u32 %v4476, 16
        %v4575 = vor.u32 %v4572, %v4573
        %v4576 = vsel %vm4488, %v4568, %v4575
        %v4577 = vrot.slane %v4572, 4
        %v4579 = vshrl.u32 %v4477, 16
        %v4581 = vrot.slane %v4579, 7
        %v4582 = vshll.u32 %v4477, 16
        %v4584 = vor.u32 %v4581, %v4582
        %v4585 = vsel %vm4488, %v4577, %v4584
        %v4586 = vrot.slane %v4581, 4
        %v4588 = vshrl.u32 %v4478, 16
        %v4590 = vrot.slane %v4588, 7
        %v4591 = vshll.u32 %v4478, 16
        %v4593 = vor.u32 %v4590, %v4591
        %v4594 = vsel %vm4488, %v4586, %v4593
        %v4595 = vrot.slane %v4590, 4
        %v4597 = vshrl.u32 %v4479, 16
        %v4599 = vrot.slane %v4597, 7
        %v4600 = vshll.u32 %v4479, 16
        %v4602 = vor.u32 %v4599, %v4600
        %v4603 = vsel %vm4488, %v4595, %v4602
        %v4604 = vrot.slane %v4599, 4
        %v4606 = vshrl.u32 %v4480, 16
        %v4608 = vrot.slane %v4606, 7
        %v4609 = vshll.u32 %v4480, 16
        %v4611 = vor.u32 %v4608, %v4609
        %v4612 = vsel %vm4488, %v4604, %v4611
        %v4613 = vrot.slane %v4608, 4
        %v4615 = vshrl.u32 %v4481, 16
        %v4617 = vrot.slane %v4615, 7
        %v4618 = vshll.u32 %v4481, 16
        %v4620 = vor.u32 %v4617, %v4618
        %v4621 = vsel %vm4488, %v4613, %v4620
        %v4622 = vrot.slane %v4617, 4
        %v4624 = vshrl.u32 %v4482, 16
        %v4626 = vrot.slane %v4624, 7
        %v4627 = vshll.u32 %v4482, 16
        %v4629 = vor.u32 %v4626, %v4627
        %v4630 = vsel %vm4488, %v4622, %v4629
        %v4631 = vrot.slane %v4626, 4
        %v4633 = vshrl.u32 %v4483, 16
        %v4635 = vrot.slane %v4633, 7
        %v4636 = vshll.u32 %v4483, 16
        %v4638 = vor.u32 %v4635, %v4636
        %v4639 = vsel %vm4488, %v4631, %v4638
        %v4640 = vrot.slane %v4635, 4
        %v4642 = vshrl.u32 %v4484, 16
        %v4644 = vrot.slane %v4642, 7
        %v4645 = vshll.u32 %v4484, 16
        %v4647 = vor.u32 %v4644, %v4645
        %v4648 = vsel %vm4488, %v4640, %v4647
        %v4649 = vrot.slane %v4644, 4
        %v4651 = vshrl.u32 %v4485, 16
        %v4653 = vrot.slane %v4651, 7
        %v4654 = vshll.u32 %v4485, 16
        %v4656 = vor.u32 %v4653, %v4654
        %v4657 = vsel %vm4488, %v4649, %v4656
        %v4658 = vrot.slane %v4653, 4
        %v4660 = vshrl.u32 %v4486, 16
        %v4662 = vrot.slane %v4660, 7
        %v4663 = vshll.u32 %v4486, 16
        %v4665 = vor.u32 %v4662, %v4663
        %v4666 = vsel %vm4488, %v4658, %v4665
        %v4667 = vrot.slane %v4662, 4
        %v4689 = vld [vmem:[#allocation3 + $0x8] sm:$0xf]
        %v4690 = vsel %vm4050, %v4495, %v4689
        %4691 = vst [vmem:[#allocation3 + $0x8] sm:$0xf] %v4690
        %4692 = vst [vmem:[#allocation3 + $0xc] sm:$0xf] %v4504
        %4693 = vst [vmem:[#allocation3 + $0x10] sm:$0xf] %v4513
        %4694 = vst [vmem:[#allocation3 + $0x14] sm:$0xf] %v4522
        %4695 = vst [vmem:[#allocation3 + $0x18] sm:$0xf] %v4531
        %4696 = vst [vmem:[#allocation3 + $0x1c] sm:$0xf] %v4540
        %4697 = vst [vmem:[#allocation3 + $0x20] sm:$0xf] %v4549
        %4698 = vst [vmem:[#allocation3 + $0x24] sm:$0xf] %v4558
        %4699 = vst [vmem:[#allocation3 + $0x28] sm:$0xf] %v4567
        %4700 = vst [vmem:[#allocation3 + $0x2c] sm:$0xf] %v4576
        %4701 = vst [vmem:[#allocation3 + $0x30] sm:$0xf] %v4585
        %4702 = vst [vmem:[#allocation3 + $0x34] sm:$0xf] %v4594
        %4703 = vst [vmem:[#allocation3 + $0x38] sm:$0xf] %v4603
        %4704 = vst [vmem:[#allocation3 + $0x3c] sm:$0xf] %v4612
        %4705 = vst [vmem:[#allocation3 + $0x40] sm:$0xf] %v4621
        %4706 = vst [vmem:[#allocation3 + $0x44] sm:$0xf] %v4630
        %4707 = vst [vmem:[#allocation3 + $0x48] sm:$0xf] %v4639
        %4708 = vst [vmem:[#allocation3 + $0x4c] sm:$0xf] %v4648
        %4709 = vst [vmem:[#allocation3 + $0x50] sm:$0xf] %v4657
        %4710 = vst [vmem:[#allocation3 + $0x54] sm:$0xf] %v4666
        %v4711 = vld [vmem:[#allocation3 + $0x58] sm:$0x1]
        %v4712 = vsel %vm4044, %v4667, %v4711
        %4713 = vst [vmem:[#allocation3 + $0x58] sm:$0x1] %v4712
        // Predicated region
        $region113: #{tpu_custom_call.1} parent=111 // pred_check
          %p4714 = pneg %p880
        $region114: #{tpu_custom_call.1} parent=111 // pred_check_branch
          %4716 = sbr.rel (%p4714) target = $region116
        $region115: #{tpu_custom_call.1} parent=111 // pred_region
          %v4717 = vld [vmem:[#allocation3 + $0x8] sm:$0xf]
          %v4718 = vsel %vm4050, 0, %v4717
          %4719 = vst [vmem:[#allocation3 + $0x8] sm:$0xf] %v4718
          %4720 = vst [vmem:[#allocation3 + $0xc] sm:$0xf] 0
          %v4721 = vld [vmem:[#allocation3 + $0x10] sm:$0x1]
          %v4722 = vsel %vm4044, 0, %v4721
          %4723 = vst [vmem:[#allocation3 + $0x10] sm:$0x1] %v4722
        $region116: #{tpu_custom_call.1} parent=111 // pred_fallthru
          _
        // Predicated region
        $region117: #{tpu_custom_call.1} parent=111 // pred_check
          %p4724 = pneg %p881
        $region118: #{tpu_custom_call.1} parent=111 // pred_check_branch
          %4726 = sbr.rel (%p4724) target = $region120
        $region119: #{tpu_custom_call.1} parent=111 // pred_region
          %v4727 = vld [vmem:[#allocation3 + $0x50] sm:$0xf]
          %v4728 = vsel %vm4050, 0, %v4727
          %4729 = vst [vmem:[#allocation3 + $0x50] sm:$0xf] %v4728
          %4730 = vst [vmem:[#allocation3 + $0x54] sm:$0xf] 0
          %v4731 = vld [vmem:[#allocation3 + $0x58] sm:$0x1]
          %v4732 = vsel %vm4044, 0, %v4731
          %4733 = vst [vmem:[#allocation3 + $0x58] sm:$0x1] %v4732
        $region120: #{tpu_custom_call.1} parent=111 // pred_fallthru
          _
        %v4734 = vld [vmem:[#allocation3] sm:$0xf]
        %v4735 = vld [vmem:[#allocation3 + $0x4] sm:$0xf]
        %v4736 = vld [vmem:[#allocation3 + $0x8] sm:$0xf]
        %v4737 = vld [vmem:[#allocation3 + $0xc] sm:$0xf]
        %v4738 = vld [vmem:[#allocation3 + $0x10] sm:$0xf]
        %v4739 = vld [vmem:[#allocation3 + $0x14] sm:$0xf]
        %v4740 = vld [vmem:[#allocation3 + $0x18] sm:$0xf]
        %v4741 = vld [vmem:[#allocation3 + $0x1c] sm:$0xf]
        %v4742 = vld [vmem:[#allocation3 + $0x20] sm:$0xf]
        %v4743 = vld [vmem:[#allocation3 + $0x24] sm:$0xf]
        %v4744 = vld [vmem:[#allocation3 + $0x28] sm:$0xf]
        %v4745 = vld [vmem:[#allocation3 + $0x2c] sm:$0xf]
        %v4746 = vld [vmem:[#allocation3 + $0x30] sm:$0xf]
        %v4747 = vld [vmem:[#allocation3 + $0x34] sm:$0xf]
        %v4748 = vld [vmem:[#allocation3 + $0x38] sm:$0xf]
        %v4749 = vld [vmem:[#allocation3 + $0x3c] sm:$0xf]
        %v4750 = vld [vmem:[#allocation3 + $0x40] sm:$0xf]
        %v4751 = vld [vmem:[#allocation3 + $0x44] sm:$0xf]
        %v4752 = vld [vmem:[#allocation3 + $0x48] sm:$0xf]
        %v4753 = vld [vmem:[#allocation3 + $0x4c] sm:$0xf]
        %vm4754 = vcmp.ge.s32.totalorder %v4020, 1
        %vm4755 = vcmp.ge.s32.totalorder %v4021, 1
        %vm4756 = vcmp.ge.s32.totalorder %v4022, 1
        %vm4757 = vcmp.ge.s32.totalorder %v4023, 1
        %vm4758 = vcmp.ge.s32.totalorder %v4024, 1
        %vm4759 = vcmp.ge.s32.totalorder %v4025, 1
        %vm4760 = vcmp.ge.s32.totalorder %v4026, 1
        %vm4761 = vcmp.ge.s32.totalorder %v4027, 1
        %vm4762 = vcmp.ge.s32.totalorder %v4028, 1
        %vm4763 = vcmp.ge.s32.totalorder %v4029, 1
        %vm4764 = vcmp.ge.s32.totalorder %v4030, 1
        %vm4765 = vcmp.ge.s32.totalorder %v4031, 1
        %vm4766 = vcmp.ge.s32.totalorder %v4032, 1
        %vm4767 = vcmp.ge.s32.totalorder %v4033, 1
        %vm4768 = vcmp.ge.s32.totalorder %v4034, 1
        %vm4769 = vcmp.ge.s32.totalorder %v4035, 1
        %vm4770 = vcmp.ge.s32.totalorder %v4036, 1
        %vm4771 = vcmp.ge.s32.totalorder %v4037, 1
        %vm4772 = vcmp.ge.s32.totalorder %v4038, 1
        %vm4773 = vcmp.ge.s32.totalorder %v4039, 1
        %vm4774 = vcmp.lt.s32.totalorder %v4020, 17
        %vm4775 = vcmp.lt.s32.totalorder %v4021, 17
        %vm4776 = vcmp.lt.s32.totalorder %v4022, 17
        %vm4777 = vcmp.lt.s32.totalorder %v4023, 17
        %vm4778 = vcmp.lt.s32.totalorder %v4024, 17
        %vm4779 = vcmp.lt.s32.totalorder %v4025, 17
        %vm4780 = vcmp.lt.s32.totalorder %v4026, 17
        %vm4781 = vcmp.lt.s32.totalorder %v4027, 17
        %vm4782 = vcmp.lt.s32.totalorder %v4028, 17
        %vm4783 = vcmp.lt.s32.totalorder %v4029, 17
        %vm4784 = vcmp.lt.s32.totalorder %v4030, 17
        %vm4785 = vcmp.lt.s32.totalorder %v4031, 17
        %vm4786 = vcmp.lt.s32.totalorder %v4032, 17
        %vm4787 = vcmp.lt.s32.totalorder %v4033, 17
        %vm4788 = vcmp.lt.s32.totalorder %v4034, 17
        %vm4789 = vcmp.lt.s32.totalorder %v4035, 17
        %vm4790 = vcmp.lt.s32.totalorder %v4036, 17
        %vm4791 = vcmp.lt.s32.totalorder %v4037, 17
        %vm4792 = vcmp.lt.s32.totalorder %v4038, 17
        %vm4793 = vcmp.lt.s32.totalorder %v4039, 17
        %vm4794 = vmand %vm4754, %vm4774
        %vm4795 = vmand %vm4755, %vm4775
        %vm4796 = vmand %vm4756, %vm4776
        %vm4797 = vmand %vm4757, %vm4777
        %vm4798 = vmand %vm4758, %vm4778
        %vm4799 = vmand %vm4759, %vm4779
        %vm4800 = vmand %vm4760, %vm4780
        %vm4801 = vmand %vm4761, %vm4781
        %vm4802 = vmand %vm4762, %vm4782
        %vm4803 = vmand %vm4763, %vm4783
        %vm4804 = vmand %vm4764, %vm4784
        %vm4805 = vmand %vm4765, %vm4785
        %vm4806 = vmand %vm4766, %vm4786
        %vm4807 = vmand %vm4767, %vm4787
        %vm4808 = vmand %vm4768, %vm4788
        %vm4809 = vmand %vm4769, %vm4789
        %vm4810 = vmand %vm4770, %vm4790
        %vm4811 = vmand %vm4771, %vm4791
        %vm4812 = vmand %vm4772, %vm4792
        %vm4813 = vmand %vm4773, %vm4793
        %v4814 = vsel %vm4794, 1, 0
        %v4815 = vsel %vm4795, 1, 0
        %v4816 = vsel %vm4796, 1, 0
        %v4817 = vsel %vm4797, 1, 0
        %v4818 = vsel %vm4798, 1, 0
        %v4819 = vsel %vm4799, 1, 0
        %v4820 = vsel %vm4800, 1, 0
        %v4821 = vsel %vm4801, 1, 0
        %v4822 = vsel %vm4802, 1, 0
        %v4823 = vsel %vm4803, 1, 0
        %v4824 = vsel %vm4804, 1, 0
        %v4825 = vsel %vm4805, 1, 0
        %v4826 = vsel %vm4806, 1, 0
        %v4827 = vsel %vm4807, 1, 0
        %v4828 = vsel %vm4808, 1, 0
        %v4829 = vsel %vm4809, 1, 0
        %v4830 = vsel %vm4810, 1, 0
        %v4831 = vsel %vm4811, 1, 0
        %v4832 = vsel %vm4812, 1, 0
        %v4833 = vsel %vm4813, 1, 0
        %4834 = vset.pattern.permute.xlu0 0
        %4835 = vperm.xlu0 %4834, %v4814
        %v4836 = vpop.permute.xlu0 %4835
        %4837 = vset.pattern.permute.xlu0 0
        %4838 = vperm.xlu0 %4837, %v4815
        %v4839 = vpop.permute.xlu0 %4838
        %4840 = vset.pattern.permute.xlu0 0
        %4841 = vperm.xlu0 %4840, %v4816
        %v4842 = vpop.permute.xlu0 %4841
        %4843 = vset.pattern.permute.xlu0 0
        %4844 = vperm.xlu0 %4843, %v4817
        %v4845 = vpop.permute.xlu0 %4844
        %4846 = vset.pattern.permute.xlu0 0
        %4847 = vperm.xlu0 %4846, %v4818
        %v4848 = vpop.permute.xlu0 %4847
        %4849 = vset.pattern.permute.xlu0 0
        %4850 = vperm.xlu0 %4849, %v4819
        %v4851 = vpop.permute.xlu0 %4850
        %4852 = vset.pattern.permute.xlu0 0
        %4853 = vperm.xlu0 %4852, %v4820
        %v4854 = vpop.permute.xlu0 %4853
        %4855 = vset.pattern.permute.xlu0 0
        %4856 = vperm.xlu0 %4855, %v4821
        %v4857 = vpop.permute.xlu0 %4856
        %4858 = vset.pattern.permute.xlu0 0
        %4859 = vperm.xlu0 %4858, %v4822
        %v4860 = vpop.permute.xlu0 %4859
        %4861 = vset.pattern.permute.xlu0 0
        %4862 = vperm.xlu0 %4861, %v4823
        %v4863 = vpop.permute.xlu0 %4862
        %4864 = vset.pattern.permute.xlu0 0
        %4865 = vperm.xlu0 %4864, %v4824
        %v4866 = vpop.permute.xlu0 %4865
        %4867 = vset.pattern.permute.xlu0 0
        %4868 = vperm.xlu0 %4867, %v4825
        %v4869 = vpop.permute.xlu0 %4868
        %4870 = vset.pattern.permute.xlu0 0
        %4871 = vperm.xlu0 %4870, %v4826
        %v4872 = vpop.permute.xlu0 %4871
        %4873 = vset.pattern.permute.xlu0 0
        %4874 = vperm.xlu0 %4873, %v4827
        %v4875 = vpop.permute.xlu0 %4874
        %4876 = vset.pattern.permute.xlu0 0
        %4877 = vperm.xlu0 %4876, %v4828
        %v4878 = vpop.permute.xlu0 %4877
        %4879 = vset.pattern.permute.xlu0 0
        %4880 = vperm.xlu0 %4879, %v4829
        %v4881 = vpop.permute.xlu0 %4880
        %4882 = vset.pattern.permute.xlu0 0
        %4883 = vperm.xlu0 %4882, %v4830
        %v4884 = vpop.permute.xlu0 %4883
        %4885 = vset.pattern.permute.xlu0 0
        %4886 = vperm.xlu0 %4885, %v4831
        %v4887 = vpop.permute.xlu0 %4886
        %4888 = vset.pattern.permute.xlu0 0
        %4889 = vperm.xlu0 %4888, %v4832
        %v4890 = vpop.permute.xlu0 %4889
        %4891 = vset.pattern.permute.xlu0 0
        %4892 = vperm.xlu0 %4891, %v4833
        %v4893 = vpop.permute.xlu0 %4892
        %vm4894 = vcmp.eq.s32.totalorder %v4836, 1
        %vm4895 = vcmp.eq.s32.totalorder %v4839, 1
        %vm4896 = vcmp.eq.s32.totalorder %v4842, 1
        %vm4897 = vcmp.eq.s32.totalorder %v4845, 1
        %vm4898 = vcmp.eq.s32.totalorder %v4848, 1
        %vm4899 = vcmp.eq.s32.totalorder %v4851, 1
        %vm4900 = vcmp.eq.s32.totalorder %v4854, 1
        %vm4901 = vcmp.eq.s32.totalorder %v4857, 1
        %vm4902 = vcmp.eq.s32.totalorder %v4860, 1
        %vm4903 = vcmp.eq.s32.totalorder %v4863, 1
        %vm4904 = vcmp.eq.s32.totalorder %v4866, 1
        %vm4905 = vcmp.eq.s32.totalorder %v4869, 1
        %vm4906 = vcmp.eq.s32.totalorder %v4872, 1
        %vm4907 = vcmp.eq.s32.totalorder %v4875, 1
        %vm4908 = vcmp.eq.s32.totalorder %v4878, 1
        %vm4909 = vcmp.eq.s32.totalorder %v4881, 1
        %vm4910 = vcmp.eq.s32.totalorder %v4884, 1
        %vm4911 = vcmp.eq.s32.totalorder %v4887, 1
        %vm4912 = vcmp.eq.s32.totalorder %v4890, 1
        %vm4913 = vcmp.eq.s32.totalorder %v4893, 1
        %vm4914 = vmpackc.low %vm4894, %vm4894
        %vm4915 = vmpackc.low %vm4895, %vm4895
        %vm4916 = vmpackc.low %vm4896, %vm4896
        %vm4917 = vmpackc.low %vm4897, %vm4897
        %vm4918 = vmpackc.low %vm4898, %vm4898
        %vm4919 = vmpackc.low %vm4899, %vm4899
        %vm4920 = vmpackc.low %vm4900, %vm4900
        %vm4921 = vmpackc.low %vm4901, %vm4901
        %vm4922 = vmpackc.low %vm4902, %vm4902
        %vm4923 = vmpackc.low %vm4903, %vm4903
        %vm4924 = vmpackc.low %vm4904, %vm4904
        %vm4925 = vmpackc.low %vm4905, %vm4905
        %vm4926 = vmpackc.low %vm4906, %vm4906
        %vm4927 = vmpackc.low %vm4907, %vm4907
        %vm4928 = vmpackc.low %vm4908, %vm4908
        %vm4929 = vmpackc.low %vm4909, %vm4909
        %vm4930 = vmpackc.low %vm4910, %vm4910
        %vm4931 = vmpackc.low %vm4911, %vm4911
        %vm4932 = vmpackc.low %vm4912, %vm4912
        %vm4933 = vmpackc.low %vm4913, %vm4913
        %v4934 = vsel %vm4914, %v4734, 0
        %v4935 = vsel %vm4915, %v4735, 0
        %v4936 = vsel %vm4916, %v4736, 0
        %v4937 = vsel %vm4917, %v4737, 0
        %v4938 = vsel %vm4918, %v4738, 0
        %v4939 = vsel %vm4919, %v4739, 0
        %v4940 = vsel %vm4920, %v4740, 0
        %v4941 = vsel %vm4921, %v4741, 0
        %v4942 = vsel %vm4922, %v4742, 0
        %v4943 = vsel %vm4923, %v4743, 0
        %v4944 = vsel %vm4924, %v4744, 0
        %v4945 = vsel %vm4925, %v4745, 0
        %v4946 = vsel %vm4926, %v4746, 0
        %v4947 = vsel %vm4927, %v4747, 0
        %v4948 = vsel %vm4928, %v4748, 0
        %v4949 = vsel %vm4929, %v4749, 0
        %v4950 = vsel %vm4930, %v4750, 0
        %v4951 = vsel %vm4931, %v4751, 0
        %v4952 = vsel %vm4932, %v4752, 0
        %v4953 = vsel %vm4933, %v4753, 0
        %v4954 = vld [vmem:[#allocation3] sm:$0xf]
        %v4955 = vld [vmem:[#allocation3 + $0x4] sm:$0xf]
        %v4956 = vld [vmem:[#allocation3 + $0x8] sm:$0xf]
        %v4957 = vld [vmem:[#allocation3 + $0xc] sm:$0xf]
        %v4958 = vld [vmem:[#allocation3 + $0x10] sm:$0xf]
        %v4959 = vld [vmem:[#allocation3 + $0x14] sm:$0xf]
        %v4960 = vld [vmem:[#allocation3 + $0x18] sm:$0xf]
        %v4961 = vld [vmem:[#allocation3 + $0x1c] sm:$0xf]
        %v4962 = vld [vmem:[#allocation3 + $0x20] sm:$0xf]
        %v4963 = vld [vmem:[#allocation3 + $0x24] sm:$0xf]
        %v4964 = vld [vmem:[#allocation3 + $0x28] sm:$0xf]
        %v4965 = vld [vmem:[#allocation3 + $0x2c] sm:$0xf]
        %v4966 = vld [vmem:[#allocation3 + $0x30] sm:$0xf]
        %v4967 = vld [vmem:[#allocation3 + $0x34] sm:$0xf]
        %v4968 = vld [vmem:[#allocation3 + $0x38] sm:$0xf]
        %v4969 = vld [vmem:[#allocation3 + $0x3c] sm:$0xf]
        %v4970 = vld [vmem:[#allocation3 + $0x40] sm:$0xf]
        %v4971 = vld [vmem:[#allocation3 + $0x44] sm:$0xf]
        %v4972 = vld [vmem:[#allocation3 + $0x48] sm:$0xf]
        %v4973 = vld [vmem:[#allocation3 + $0x4c] sm:$0xf]
        %v4974 = vld [vmem:[#allocation3 + $0x50] sm:$0x1]
        %v4975 = vld [vmem:[#allocation3] sm:$0xe]
        %vm4976 = vcmp.ge.s32.totalorder %v4020, 4294967295
        %vm4977 = vcmp.ge.s32.totalorder %v4021, 4294967295
        %vm4978 = vcmp.ge.s32.totalorder %v4022, 4294967295
        %vm4979 = vcmp.ge.s32.totalorder %v4023, 4294967295
        %vm4980 = vcmp.ge.s32.totalorder %v4024, 4294967295
        %vm4981 = vcmp.ge.s32.totalorder %v4025, 4294967295
        %vm4982 = vcmp.ge.s32.totalorder %v4026, 4294967295
        %vm4983 = vcmp.ge.s32.totalorder %v4027, 4294967295
        %vm4984 = vcmp.ge.s32.totalorder %v4028, 4294967295
        %vm4985 = vcmp.ge.s32.totalorder %v4029, 4294967295
        %vm4986 = vcmp.ge.s32.totalorder %v4030, 4294967295
        %vm4987 = vcmp.ge.s32.totalorder %v4031, 4294967295
        %vm4988 = vcmp.ge.s32.totalorder %v4032, 4294967295
        %vm4989 = vcmp.ge.s32.totalorder %v4033, 4294967295
        %vm4990 = vcmp.ge.s32.totalorder %v4034, 4294967295
        %vm4991 = vcmp.ge.s32.totalorder %v4035, 4294967295
        %vm4992 = vcmp.ge.s32.totalorder %v4036, 4294967295
        %vm4993 = vcmp.ge.s32.totalorder %v4037, 4294967295
        %vm4994 = vcmp.ge.s32.totalorder %v4038, 4294967295
        %vm4995 = vcmp.ge.s32.totalorder %v4039, 4294967295
        %vm4996 = vcmp.lt.s32.totalorder %v4020, 15
        %vm4997 = vcmp.lt.s32.totalorder %v4021, 15
        %vm4998 = vcmp.lt.s32.totalorder %v4022, 15
        %vm4999 = vcmp.lt.s32.totalorder %v4023, 15
        %vm5000 = vcmp.lt.s32.totalorder %v4024, 15
        %vm5001 = vcmp.lt.s32.totalorder %v4025, 15
        %vm5002 = vcmp.lt.s32.totalorder %v4026, 15
        %vm5003 = vcmp.lt.s32.totalorder %v4027, 15
        %vm5004 = vcmp.lt.s32.totalorder %v4028, 15
        %vm5005 = vcmp.lt.s32.totalorder %v4029, 15
        %vm5006 = vcmp.lt.s32.totalorder %v4030, 15
        %vm5007 = vcmp.lt.s32.totalorder %v4031, 15
        %vm5008 = vcmp.lt.s32.totalorder %v4032, 15
        %vm5009 = vcmp.lt.s32.totalorder %v4033, 15
        %vm5010 = vcmp.lt.s32.totalorder %v4034, 15
        %vm5011 = vcmp.lt.s32.totalorder %v4035, 15
        %vm5012 = vcmp.lt.s32.totalorder %v4036, 15
        %vm5013 = vcmp.lt.s32.totalorder %v4037, 15
        %vm5014 = vcmp.lt.s32.totalorder %v4038, 15
        %vm5015 = vcmp.lt.s32.totalorder %v4039, 15
        %vm5016 = vmand %vm4976, %vm4996
        %vm5017 = vmand %vm4977, %vm4997
        %vm5018 = vmand %vm4978, %vm4998
        %vm5019 = vmand %vm4979, %vm4999
        %vm5020 = vmand %vm4980, %vm5000
        %vm5021 = vmand %vm4981, %vm5001
        %vm5022 = vmand %vm4982, %vm5002
        %vm5023 = vmand %vm4983, %vm5003
        %vm5024 = vmand %vm4984, %vm5004
        %vm5025 = vmand %vm4985, %vm5005
        %vm5026 = vmand %vm4986, %vm5006
        %vm5027 = vmand %vm4987, %vm5007
        %vm5028 = vmand %vm4988, %vm5008
        %vm5029 = vmand %vm4989, %vm5009
        %vm5030 = vmand %vm4990, %vm5010
        %vm5031 = vmand %vm4991, %vm5011
        %vm5032 = vmand %vm4992, %vm5012
        %vm5033 = vmand %vm4993, %vm5013
        %vm5034 = vmand %vm4994, %vm5014
        %vm5035 = vmand %vm4995, %vm5015
        %v5036 = vsel %vm5016, 1, 0
        %v5037 = vsel %vm5017, 1, 0
        %v5038 = vsel %vm5018, 1, 0
        %v5039 = vsel %vm5019, 1, 0
        %v5040 = vsel %vm5020, 1, 0
        %v5041 = vsel %vm5021, 1, 0
        %v5042 = vsel %vm5022, 1, 0
        %v5043 = vsel %vm5023, 1, 0
        %v5044 = vsel %vm5024, 1, 0
        %v5045 = vsel %vm5025, 1, 0
        %v5046 = vsel %vm5026, 1, 0
        %v5047 = vsel %vm5027, 1, 0
        %v5048 = vsel %vm5028, 1, 0
        %v5049 = vsel %vm5029, 1, 0
        %v5050 = vsel %vm5030, 1, 0
        %v5051 = vsel %vm5031, 1, 0
        %v5052 = vsel %vm5032, 1, 0
        %v5053 = vsel %vm5033, 1, 0
        %v5054 = vsel %vm5034, 1, 0
        %v5055 = vsel %vm5035, 1, 0
        %5056 = vset.pattern.permute.xlu0 0
        %5057 = vperm.xlu0 %5056, %v5036
        %v5058 = vpop.permute.xlu0 %5057
        %5059 = vset.pattern.permute.xlu0 0
        %5060 = vperm.xlu0 %5059, %v5037
        %v5061 = vpop.permute.xlu0 %5060
        %5062 = vset.pattern.permute.xlu0 0
        %5063 = vperm.xlu0 %5062, %v5038
        %v5064 = vpop.permute.xlu0 %5063
        %5065 = vset.pattern.permute.xlu0 0
        %5066 = vperm.xlu0 %5065, %v5039
        %v5067 = vpop.permute.xlu0 %5066
        %5068 = vset.pattern.permute.xlu0 0
        %5069 = vperm.xlu0 %5068, %v5040
        %v5070 = vpop.permute.xlu0 %5069
        %5071 = vset.pattern.permute.xlu0 0
        %5072 = vperm.xlu0 %5071, %v5041
        %v5073 = vpop.permute.xlu0 %5072
        %5074 = vset.pattern.permute.xlu0 0
        %5075 = vperm.xlu0 %5074, %v5042
        %v5076 = vpop.permute.xlu0 %5075
        %5077 = vset.pattern.permute.xlu0 0
        %5078 = vperm.xlu0 %5077, %v5043
        %v5079 = vpop.permute.xlu0 %5078
        %5080 = vset.pattern.permute.xlu0 0
        %5081 = vperm.xlu0 %5080, %v5044
        %v5082 = vpop.permute.xlu0 %5081
        %5083 = vset.pattern.permute.xlu0 0
        %5084 = vperm.xlu0 %5083, %v5045
        %v5085 = vpop.permute.xlu0 %5084
        %5086 = vset.pattern.permute.xlu0 0
        %5087 = vperm.xlu0 %5086, %v5046
        %v5088 = vpop.permute.xlu0 %5087
        %5089 = vset.pattern.permute.xlu0 0
        %5090 = vperm.xlu0 %5089, %v5047
        %v5091 = vpop.permute.xlu0 %5090
        %5092 = vset.pattern.permute.xlu0 0
        %5093 = vperm.xlu0 %5092, %v5048
        %v5094 = vpop.permute.xlu0 %5093
        %5095 = vset.pattern.permute.xlu0 0
        %5096 = vperm.xlu0 %5095, %v5049
        %v5097 = vpop.permute.xlu0 %5096
        %5098 = vset.pattern.permute.xlu0 0
        %5099 = vperm.xlu0 %5098, %v5050
        %v5100 = vpop.permute.xlu0 %5099
        %5101 = vset.pattern.permute.xlu0 0
        %5102 = vperm.xlu0 %5101, %v5051
        %v5103 = vpop.permute.xlu0 %5102
        %5104 = vset.pattern.permute.xlu0 0
        %5105 = vperm.xlu0 %5104, %v5052
        %v5106 = vpop.permute.xlu0 %5105
        %5107 = vset.pattern.permute.xlu0 0
        %5108 = vperm.xlu0 %5107, %v5053
        %v5109 = vpop.permute.xlu0 %5108
        %5110 = vset.pattern.permute.xlu0 0
        %5111 = vperm.xlu0 %5110, %v5054
        %v5112 = vpop.permute.xlu0 %5111
        %5113 = vset.pattern.permute.xlu0 0
        %5114 = vperm.xlu0 %5113, %v5055
        %v5115 = vpop.permute.xlu0 %5114
        %vm5116 = vcmp.eq.s32.totalorder %v5058, 1
        %vm5117 = vcmp.eq.s32.totalorder %v5061, 1
        %vm5118 = vcmp.eq.s32.totalorder %v5064, 1
        %vm5119 = vcmp.eq.s32.totalorder %v5067, 1
        %vm5120 = vcmp.eq.s32.totalorder %v5070, 1
        %vm5121 = vcmp.eq.s32.totalorder %v5073, 1
        %vm5122 = vcmp.eq.s32.totalorder %v5076, 1
        %vm5123 = vcmp.eq.s32.totalorder %v5079, 1
        %vm5124 = vcmp.eq.s32.totalorder %v5082, 1
        %vm5125 = vcmp.eq.s32.totalorder %v5085, 1
        %vm5126 = vcmp.eq.s32.totalorder %v5088, 1
        %vm5127 = vcmp.eq.s32.totalorder %v5091, 1
        %vm5128 = vcmp.eq.s32.totalorder %v5094, 1
        %vm5129 = vcmp.eq.s32.totalorder %v5097, 1
        %vm5130 = vcmp.eq.s32.totalorder %v5100, 1
        %vm5131 = vcmp.eq.s32.totalorder %v5103, 1
        %vm5132 = vcmp.eq.s32.totalorder %v5106, 1
        %vm5133 = vcmp.eq.s32.totalorder %v5109, 1
        %vm5134 = vcmp.eq.s32.totalorder %v5112, 1
        %vm5135 = vcmp.eq.s32.totalorder %v5115, 1
        %vm5136 = vmpackc.low %vm5116, %vm5116
        %vm5137 = vmpackc.low %vm5117, %vm5117
        %vm5138 = vmpackc.low %vm5118, %vm5118
        %vm5139 = vmpackc.low %vm5119, %vm5119
        %vm5140 = vmpackc.low %vm5120, %vm5120
        %vm5141 = vmpackc.low %vm5121, %vm5121
        %vm5142 = vmpackc.low %vm5122, %vm5122
        %vm5143 = vmpackc.low %vm5123, %vm5123
        %vm5144 = vmpackc.low %vm5124, %vm5124
        %vm5145 = vmpackc.low %vm5125, %vm5125
        %vm5146 = vmpackc.low %vm5126, %vm5126
        %vm5147 = vmpackc.low %vm5127, %vm5127
        %vm5148 = vmpackc.low %vm5128, %vm5128
        %vm5149 = vmpackc.low %vm5129, %vm5129
        %vm5150 = vmpackc.low %vm5130, %vm5130
        %vm5151 = vmpackc.low %vm5131, %vm5131
        %vm5152 = vmpackc.low %vm5132, %vm5132
        %vm5153 = vmpackc.low %vm5133, %vm5133
        %vm5154 = vmpackc.low %vm5134, %vm5134
        %vm5155 = vmpackc.low %vm5135, %vm5135
        %v5156 = vsel %vm5136, 65537, 0
        %v5157 = vsel %vm5137, 65537, 0
        %v5158 = vsel %vm5138, 65537, 0
        %v5159 = vsel %vm5139, 65537, 0
        %v5160 = vsel %vm5140, 65537, 0
        %v5161 = vsel %vm5141, 65537, 0
        %v5162 = vsel %vm5142, 65537, 0
        %v5163 = vsel %vm5143, 65537, 0
        %v5164 = vsel %vm5144, 65537, 0
        %v5165 = vsel %vm5145, 65537, 0
        %v5166 = vsel %vm5146, 65537, 0
        %v5167 = vsel %vm5147, 65537, 0
        %v5168 = vsel %vm5148, 65537, 0
        %v5169 = vsel %vm5149, 65537, 0
        %v5170 = vsel %vm5150, 65537, 0
        %v5171 = vsel %vm5151, 65537, 0
        %v5172 = vsel %vm5152, 65537, 0
        %v5173 = vsel %vm5153, 65537, 0
        %v5174 = vsel %vm5154, 65537, 0
        %v5175 = vsel %vm5155, 65537, 0
        %vm5176 = vcmask 1044484
        %vm5177 = vmor %vm4042, %vm5176
        %v5178 = vrot.slane %v5156, 7
        %v5179 = vrot.slane %v5178, 4
        %v5180 = vrot.slane %v5157, 7
        %v5181 = vsel %vm5177, %v5179, %v5180
        %v5182 = vrot.slane %v5180, 4
        %v5183 = vrot.slane %v5158, 7
        %v5184 = vsel %vm5177, %v5182, %v5183
        %v5185 = vrot.slane %v5183, 4
        %v5186 = vrot.slane %v5159, 7
        %v5187 = vsel %vm5177, %v5185, %v5186
        %v5188 = vrot.slane %v5186, 4
        %v5189 = vrot.slane %v5160, 7
        %v5190 = vsel %vm5177, %v5188, %v5189
        %v5191 = vrot.slane %v5189, 4
        %v5192 = vrot.slane %v5161, 7
        %v5193 = vsel %vm5177, %v5191, %v5192
        %v5194 = vrot.slane %v5192, 4
        %v5195 = vrot.slane %v5162, 7
        %v5196 = vsel %vm5177, %v5194, %v5195
        %v5197 = vrot.slane %v5195, 4
        %v5198 = vrot.slane %v5163, 7
        %v5199 = vsel %vm5177, %v5197, %v5198
        %v5200 = vrot.slane %v5198, 4
        %v5201 = vrot.slane %v5164, 7
        %v5202 = vsel %vm5177, %v5200, %v5201
        %v5203 = vrot.slane %v5201, 4
        %v5204 = vrot.slane %v5165, 7
        %v5205 = vsel %vm5177, %v5203, %v5204
        %v5206 = vrot.slane %v5204, 4
        %v5207 = vrot.slane %v5166, 7
        %v5208 = vsel %vm5177, %v5206, %v5207
        %v5209 = vrot.slane %v5207, 4
        %v5210 = vrot.slane %v5167, 7
        %v5211 = vsel %vm5177, %v5209, %v5210
        %v5212 = vrot.slane %v5210, 4
        %v5213 = vrot.slane %v5168, 7
        %v5214 = vsel %vm5177, %v5212, %v5213
        %v5215 = vrot.slane %v5213, 4
        %v5216 = vrot.slane %v5169, 7
        %v5217 = vsel %vm5177, %v5215, %v5216
        %v5218 = vrot.slane %v5216, 4
        %v5219 = vrot.slane %v5170, 7
        %v5220 = vsel %vm5177, %v5218, %v5219
        %v5221 = vrot.slane %v5219, 4
        %v5222 = vrot.slane %v5171, 7
        %v5223 = vsel %vm5177, %v5221, %v5222
        %v5224 = vrot.slane %v5222, 4
        %v5225 = vrot.slane %v5172, 7
        %v5226 = vsel %vm5177, %v5224, %v5225
        %v5227 = vrot.slane %v5225, 4
        %v5228 = vrot.slane %v5173, 7
        %v5229 = vsel %vm5177, %v5227, %v5228
        %v5230 = vrot.slane %v5228, 4
        %v5231 = vrot.slane %v5174, 7
        %v5232 = vsel %vm5177, %v5230, %v5231
        %v5233 = vrot.slane %v5231, 4
        %v5234 = vrot.slane %v5175, 7
        %v5235 = vsel %vm5177, %v5233, %v5234
        %v5236 = vrot.slane %v5234, 4
        %vm5237 = vcmp.ne.s16.totalorder %v5178, 0
        %vm5238 = vcmp.ne.s16.totalorder %v5181, 0
        %vm5239 = vcmp.ne.s16.totalorder %v5184, 0
        %vm5240 = vcmp.ne.s16.totalorder %v5187, 0
        %vm5241 = vcmp.ne.s16.totalorder %v5190, 0
        %vm5242 = vcmp.ne.s16.totalorder %v5193, 0
        %vm5243 = vcmp.ne.s16.totalorder %v5196, 0
        %vm5244 = vcmp.ne.s16.totalorder %v5199, 0
        %vm5245 = vcmp.ne.s16.totalorder %v5202, 0
        %vm5246 = vcmp.ne.s16.totalorder %v5205, 0
        %vm5247 = vcmp.ne.s16.totalorder %v5208, 0
        %vm5248 = vcmp.ne.s16.totalorder %v5211, 0
        %vm5249 = vcmp.ne.s16.totalorder %v5214, 0
        %vm5250 = vcmp.ne.s16.totalorder %v5217, 0
        %vm5251 = vcmp.ne.s16.totalorder %v5220, 0
        %vm5252 = vcmp.ne.s16.totalorder %v5223, 0
        %vm5253 = vcmp.ne.s16.totalorder %v5226, 0
        %vm5254 = vcmp.ne.s16.totalorder %v5229, 0
        %vm5255 = vcmp.ne.s16.totalorder %v5232, 0
        %vm5256 = vcmp.ne.s16.totalorder %v5235, 0
        %vm5257 = vcmp.ne.s16.totalorder %v5236, 0
        %v5258 = vsel %vm5237, %v4975, 0
        %v5259 = vsel %vm5238, %v4955, 0
        %v5260 = vsel %vm5239, %v4956, 0
        %v5261 = vsel %vm5240, %v4957, 0
        %v5262 = vsel %vm5241, %v4958, 0
        %v5263 = vsel %vm5242, %v4959, 0
        %v5264 = vsel %vm5243, %v4960, 0
        %v5265 = vsel %vm5244, %v4961, 0
        %v5266 = vsel %vm5245, %v4962, 0
        %v5267 = vsel %vm5246, %v4963, 0
        %v5268 = vsel %vm5247, %v4964, 0
        %v5269 = vsel %vm5248, %v4965, 0
        %v5270 = vsel %vm5249, %v4966, 0
        %v5271 = vsel %vm5250, %v4967, 0
        %v5272 = vsel %vm5251, %v4968, 0
        %v5273 = vsel %vm5252, %v4969, 0
        %v5274 = vsel %vm5253, %v4970, 0
        %v5275 = vsel %vm5254, %v4971, 0
        %v5276 = vsel %vm5255, %v4972, 0
        %v5277 = vsel %vm5256, %v4973, 0
        %v5278 = vsel %vm5257, %v4974, 0
        %v5279 = vld [vmem:[#allocation3 + $0x8] sm:$0xf]
        %v5280 = vld [vmem:[#allocation3 + $0xc] sm:$0xf]
        %v5281 = vld [vmem:[#allocation3 + $0x10] sm:$0xf]
        %v5282 = vld [vmem:[#allocation3 + $0x14] sm:$0xf]
        %v5283 = vld [vmem:[#allocation3 + $0x18] sm:$0xf]
        %v5284 = vld [vmem:[#allocation3 + $0x1c] sm:$0xf]
        %v5285 = vld [vmem:[#allocation3 + $0x20] sm:$0xf]
        %v5286 = vld [vmem:[#allocation3 + $0x24] sm:$0xf]
        %v5287 = vld [vmem:[#allocation3 + $0x28] sm:$0xf]
        %v5288 = vld [vmem:[#allocation3 + $0x2c] sm:$0xf]
        %v5289 = vld [vmem:[#allocation3 + $0x30] sm:$0xf]
        %v5290 = vld [vmem:[#allocation3 + $0x34] sm:$0xf]
        %v5291 = vld [vmem:[#allocation3 + $0x38] sm:$0xf]
        %v5292 = vld [vmem:[#allocation3 + $0x3c] sm:$0xf]
        %v5293 = vld [vmem:[#allocation3 + $0x40] sm:$0xf]
        %v5294 = vld [vmem:[#allocation3 + $0x44] sm:$0xf]
        %v5295 = vld [vmem:[#allocation3 + $0x48] sm:$0xf]
        %v5296 = vld [vmem:[#allocation3 + $0x4c] sm:$0xf]
        %v5297 = vld [vmem:[#allocation3 + $0x50] sm:$0xf]
        %v5298 = vld [vmem:[#allocation3 + $0x54] sm:$0xf]
        %v5299 = vsel %vm4914, %v5279, 0
        %v5300 = vsel %vm4915, %v5280, 0
        %v5301 = vsel %vm4916, %v5281, 0
        %v5302 = vsel %vm4917, %v5282, 0
        %v5303 = vsel %vm4918, %v5283, 0
        %v5304 = vsel %vm4919, %v5284, 0
        %v5305 = vsel %vm4920, %v5285, 0
        %v5306 = vsel %vm4921, %v5286, 0
        %v5307 = vsel %vm4922, %v5287, 0
        %v5308 = vsel %vm4923, %v5288, 0
        %v5309 = vsel %vm4924, %v5289, 0
        %v5310 = vsel %vm4925, %v5290, 0
        %v5311 = vsel %vm4926, %v5291, 0
        %v5312 = vsel %vm4927, %v5292, 0
        %v5313 = vsel %vm4928, %v5293, 0
        %v5314 = vsel %vm4929, %v5294, 0
        %v5315 = vsel %vm4930, %v5295, 0
        %v5316 = vsel %vm4931, %v5296, 0
        %v5317 = vsel %vm4932, %v5297, 0
        %v5318 = vsel %vm4933, %v5298, 0
        %v5319 = vld [vmem:[#allocation3 + $0x58] sm:$0x1]
        %v5320 = vld [vmem:[#allocation3 + $0x8] sm:$0xe]
        %v5321 = vsel %vm5237, %v5320, 0
        %v5322 = vsel %vm5238, %v5280, 0
        %v5323 = vsel %vm5239, %v5281, 0
        %v5324 = vsel %vm5240, %v5282, 0
        %v5325 = vsel %vm5241, %v5283, 0
        %v5326 = vsel %vm5242, %v5284, 0
        %v5327 = vsel %vm5243, %v5285, 0
        %v5328 = vsel %vm5244, %v5286, 0
        %v5329 = vsel %vm5245, %v5287, 0
        %v5330 = vsel %vm5246, %v5288, 0
        %v5331 = vsel %vm5247, %v5289, 0
        %v5332 = vsel %vm5248, %v5290, 0
        %v5333 = vsel %vm5249, %v5291, 0
        %v5334 = vsel %vm5250, %v5292, 0
        %v5335 = vsel %vm5251, %v5293, 0
        %v5336 = vsel %vm5252, %v5294, 0
        %v5337 = vsel %vm5253, %v5295, 0
        %v5338 = vsel %vm5254, %v5296, 0
        %v5339 = vsel %vm5255, %v5297, 0
        %v5340 = vsel %vm5256, %v5298, 0
        %v5341 = vsel %vm5257, %v5319, 0
        %v5342 = vld [vmem:[#allocation3 + $0x58] sm:$0xf]
        %v5343 = vld [vmem:[#allocation3 + $0x5c] sm:$0xf]
        %v5344 = vsel %vm4914, %v5281, 0
        %v5345 = vsel %vm4915, %v5282, 0
        %v5346 = vsel %vm4916, %v5283, 0
        %v5347 = vsel %vm4917, %v5284, 0
        %v5348 = vsel %vm4918, %v5285, 0
        %v5349 = vsel %vm4919, %v5286, 0
        %v5350 = vsel %vm4920, %v5287, 0
        %v5351 = vsel %vm4921, %v5288, 0
        %v5352 = vsel %vm4922, %v5289, 0
        %v5353 = vsel %vm4923, %v5290, 0
        %v5354 = vsel %vm4924, %v5291, 0
        %v5355 = vsel %vm4925, %v5292, 0
        %v5356 = vsel %vm4926, %v5293, 0
        %v5357 = vsel %vm4927, %v5294, 0
        %v5358 = vsel %vm4928, %v5295, 0
        %v5359 = vsel %vm4929, %v5296, 0
        %v5360 = vsel %vm4930, %v5297, 0
        %v5361 = vsel %vm4931, %v5298, 0
        %v5362 = vsel %vm4932, %v5342, 0
        %v5363 = vsel %vm4933, %v5343, 0
        %v5364 = vld [vmem:[#allocation3 + $0x60] sm:$0x1]
        %v5365 = vld [vmem:[#allocation3 + $0x10] sm:$0xe]
        %v5366 = vsel %vm5237, %v5365, 0
        %v5367 = vsel %vm5238, %v5282, 0
        %v5368 = vsel %vm5239, %v5283, 0
        %v5369 = vsel %vm5240, %v5284, 0
        %v5370 = vsel %vm5241, %v5285, 0
        %v5371 = vsel %vm5242, %v5286, 0
        %v5372 = vsel %vm5243, %v5287, 0
        %v5373 = vsel %vm5244, %v5288, 0
        %v5374 = vsel %vm5245, %v5289, 0
        %v5375 = vsel %vm5246, %v5290, 0
        %v5376 = vsel %vm5247, %v5291, 0
        %v5377 = vsel %vm5248, %v5292, 0
        %v5378 = vsel %vm5249, %v5293, 0
        %v5379 = vsel %vm5250, %v5294, 0
        %v5380 = vsel %vm5251, %v5295, 0
        %v5381 = vsel %vm5252, %v5296, 0
        %v5382 = vsel %vm5253, %v5297, 0
        %v5383 = vsel %vm5254, %v5298, 0
        %v5384 = vsel %vm5255, %v5342, 0
        %v5385 = vsel %vm5256, %v5343, 0
        %v5386 = vsel %vm5257, %v5364, 0
        %v5407 = vunpack.c.l.b16 %v4934
        %v5408 = vunpack.c.l.b16 %v4935
        %v5409 = vunpack.c.l.b16 %v4936
        %v5410 = vunpack.c.l.b16 %v4937
        %v5411 = vunpack.c.l.b16 %v4938
        %v5412 = vunpack.c.l.b16 %v4939
        %v5413 = vunpack.c.l.b16 %v4940
        %v5414 = vunpack.c.l.b16 %v4941
        %v5415 = vunpack.c.l.b16 %v4942
        %v5416 = vunpack.c.l.b16 %v4943
        %v5417 = vunpack.c.l.b16 %v4944
        %v5418 = vunpack.c.l.b16 %v4945
        %v5419 = vunpack.c.l.b16 %v4946
        %v5420 = vunpack.c.l.b16 %v4947
        %v5421 = vunpack.c.l.b16 %v4948
        %v5422 = vunpack.c.l.b16 %v4949
        %v5423 = vunpack.c.l.b16 %v4950
        %v5424 = vunpack.c.l.b16 %v4951
        %v5425 = vunpack.c.l.b16 %v4952
        %v5426 = vunpack.c.l.b16 %v4953
        %v5427 = vpack.c.b16 %v5408, %v5407
        %v5428 = vpack.c.b16 %v5410, %v5409
        %v5429 = vpack.c.b16 %v5412, %v5411
        %v5430 = vpack.c.b16 %v5414, %v5413
        %v5431 = vpack.c.b16 %v5416, %v5415
        %v5432 = vpack.c.b16 %v5418, %v5417
        %v5433 = vpack.c.b16 %v5420, %v5419
        %v5434 = vpack.c.b16 %v5422, %v5421
        %v5435 = vpack.c.b16 %v5424, %v5423
        %v5436 = vpack.c.b16 %v5426, %v5425
        %v5468 = vunpack.c.l.b16 %v4954
        %v5469 = vunpack.c.l.b16 %v4955
        %v5470 = vunpack.c.l.b16 %v4956
        %v5471 = vunpack.c.l.b16 %v4957
        %v5472 = vunpack.c.l.b16 %v4958
        %v5473 = vunpack.c.l.b16 %v4959
        %v5474 = vunpack.c.l.b16 %v4960
        %v5475 = vunpack.c.l.b16 %v4961
        %v5476 = vunpack.c.l.b16 %v4962
        %v5477 = vunpack.c.l.b16 %v4963
        %v5478 = vunpack.c.l.b16 %v4964
        %v5479 = vunpack.c.l.b16 %v4965
        %v5480 = vunpack.c.l.b16 %v4966
        %v5481 = vunpack.c.l.b16 %v4967
        %v5482 = vunpack.c.l.b16 %v4968
        %v5483 = vunpack.c.l.b16 %v4969
        %v5484 = vunpack.c.l.b16 %v4970
        %v5485 = vunpack.c.l.b16 %v4971
        %v5486 = vunpack.c.l.b16 %v4972
        %v5487 = vunpack.c.l.b16 %v4973
        %v5488 = vunpack.c.l.b16 %v4974
        %v5489 = vpack.c.b16 %v5469, %v5468
        %v5490 = vpack.c.b16 %v5471, %v5470
        %v5491 = vpack.c.b16 %v5473, %v5472
        %v5492 = vpack.c.b16 %v5475, %v5474
        %v5493 = vpack.c.b16 %v5477, %v5476
        %v5494 = vpack.c.b16 %v5479, %v5478
        %v5495 = vpack.c.b16 %v5481, %v5480
        %v5496 = vpack.c.b16 %v5483, %v5482
        %v5497 = vpack.c.b16 %v5485, %v5484
        %v5498 = vpack.c.b16 %v5487, %v5486
        %v5499 = vpack.c.b16 %v5488, %v5488
        %v5501 = vshrl.u32 %v5489, 16
        %v5503 = vshll.u32 %v5489, 16
        %v5505 = vrot.slane %v5503, 1
        %v5506 = vor.u32 %v5501, %v5505
        %v5508 = vshll.u32 %v5490, 16
        %v5510 = vrot.slane %v5508, 1
        %v5511 = vsel %vm1185, %v5506, %v5510
        %v5512 = vshrl.u32 %v5490, 16
        %v5514 = vor.u32 %v5512, %v5510
        %v5516 = vshll.u32 %v5491, 16
        %v5518 = vrot.slane %v5516, 1
        %v5519 = vsel %vm1185, %v5514, %v5518
        %v5520 = vshrl.u32 %v5491, 16
        %v5522 = vor.u32 %v5520, %v5518
        %v5524 = vshll.u32 %v5492, 16
        %v5526 = vrot.slane %v5524, 1
        %v5527 = vsel %vm1185, %v5522, %v5526
        %v5528 = vshrl.u32 %v5492, 16
        %v5530 = vor.u32 %v5528, %v5526
        %v5532 = vshll.u32 %v5493, 16
        %v5534 = vrot.slane %v5532, 1
        %v5535 = vsel %vm1185, %v5530, %v5534
        %v5536 = vshrl.u32 %v5493, 16
        %v5538 = vor.u32 %v5536, %v5534
        %v5540 = vshll.u32 %v5494, 16
        %v5542 = vrot.slane %v5540, 1
        %v5543 = vsel %vm1185, %v5538, %v5542
        %v5544 = vshrl.u32 %v5494, 16
        %v5546 = vor.u32 %v5544, %v5542
        %v5548 = vshll.u32 %v5495, 16
        %v5550 = vrot.slane %v5548, 1
        %v5551 = vsel %vm1185, %v5546, %v5550
        %v5552 = vshrl.u32 %v5495, 16
        %v5554 = vor.u32 %v5552, %v5550
        %v5556 = vshll.u32 %v5496, 16
        %v5558 = vrot.slane %v5556, 1
        %v5559 = vsel %vm1185, %v5554, %v5558
        %v5560 = vshrl.u32 %v5496, 16
        %v5562 = vor.u32 %v5560, %v5558
        %v5564 = vshll.u32 %v5497, 16
        %v5566 = vrot.slane %v5564, 1
        %v5567 = vsel %vm1185, %v5562, %v5566
        %v5568 = vshrl.u32 %v5497, 16
        %v5570 = vor.u32 %v5568, %v5566
        %v5572 = vshll.u32 %v5498, 16
        %v5574 = vrot.slane %v5572, 1
        %v5575 = vsel %vm1185, %v5570, %v5574
        %v5576 = vshrl.u32 %v5498, 16
        %v5578 = vor.u32 %v5576, %v5574
        %v5580 = vshll.u32 %v5499, 16
        %v5582 = vrot.slane %v5580, 1
        %v5583 = vsel %vm1185, %v5578, %v5582
        %v5615 = vunpack.c.l.b16 %v5258
        %v5616 = vunpack.c.l.b16 %v5259
        %v5617 = vunpack.c.l.b16 %v5260
        %v5618 = vunpack.c.l.b16 %v5261
        %v5619 = vunpack.c.l.b16 %v5262
        %v5620 = vunpack.c.l.b16 %v5263
        %v5621 = vunpack.c.l.b16 %v5264
        %v5622 = vunpack.c.l.b16 %v5265
        %v5623 = vunpack.c.l.b16 %v5266
        %v5624 = vunpack.c.l.b16 %v5267
        %v5625 = vunpack.c.l.b16 %v5268
        %v5626 = vunpack.c.l.b16 %v5269
        %v5627 = vunpack.c.l.b16 %v5270
        %v5628 = vunpack.c.l.b16 %v5271
        %v5629 = vunpack.c.l.b16 %v5272
        %v5630 = vunpack.c.l.b16 %v5273
        %v5631 = vunpack.c.l.b16 %v5274
        %v5632 = vunpack.c.l.b16 %v5275
        %v5633 = vunpack.c.l.b16 %v5276
        %v5634 = vunpack.c.l.b16 %v5277
        %v5635 = vunpack.c.l.b16 %v5278
        %v5636 = vpack.c.b16 %v5616, %v5615
        %v5637 = vpack.c.b16 %v5618, %v5617
        %v5638 = vpack.c.b16 %v5620, %v5619
        %v5639 = vpack.c.b16 %v5622, %v5621
        %v5640 = vpack.c.b16 %v5624, %v5623
        %v5641 = vpack.c.b16 %v5626, %v5625
        %v5642 = vpack.c.b16 %v5628, %v5627
        %v5643 = vpack.c.b16 %v5630, %v5629
        %v5644 = vpack.c.b16 %v5632, %v5631
        %v5645 = vpack.c.b16 %v5634, %v5633
        %v5646 = vpack.c.b16 %v5635, %v5635
        %v5647 = vrot.slane %v5636, 1
        %v5648 = vrot.slane %v5637, 1
        %v5649 = vsel %vm1346, %v5647, %v5648
        %v5650 = vrot.slane %v5638, 1
        %v5651 = vsel %vm1346, %v5648, %v5650
        %v5652 = vrot.slane %v5639, 1
        %v5653 = vsel %vm1346, %v5650, %v5652
        %v5654 = vrot.slane %v5640, 1
        %v5655 = vsel %vm1346, %v5652, %v5654
        %v5656 = vrot.slane %v5641, 1
        %v5657 = vsel %vm1346, %v5654, %v5656
        %v5658 = vrot.slane %v5642, 1
        %v5659 = vsel %vm1346, %v5656, %v5658
        %v5660 = vrot.slane %v5643, 1
        %v5661 = vsel %vm1346, %v5658, %v5660
        %v5662 = vrot.slane %v5644, 1
        %v5663 = vsel %vm1346, %v5660, %v5662
        %v5664 = vrot.slane %v5645, 1
        %v5665 = vsel %vm1346, %v5662, %v5664
        %v5666 = vrot.slane %v5646, 1
        %v5667 = vsel %vm1346, %v5664, %v5666
        %v5698 = vunpack.c.l.b16 %v5299
        %v5699 = vunpack.c.l.b16 %v5300
        %v5700 = vunpack.c.l.b16 %v5301
        %v5701 = vunpack.c.l.b16 %v5302
        %v5702 = vunpack.c.l.b16 %v5303
        %v5703 = vunpack.c.l.b16 %v5304
        %v5704 = vunpack.c.l.b16 %v5305
        %v5705 = vunpack.c.l.b16 %v5306
        %v5706 = vunpack.c.l.b16 %v5307
        %v5707 = vunpack.c.l.b16 %v5308
        %v5708 = vunpack.c.l.b16 %v5309
        %v5709 = vunpack.c.l.b16 %v5310
        %v5710 = vunpack.c.l.b16 %v5311
        %v5711 = vunpack.c.l.b16 %v5312
        %v5712 = vunpack.c.l.b16 %v5313
        %v5713 = vunpack.c.l.b16 %v5314
        %v5714 = vunpack.c.l.b16 %v5315
        %v5715 = vunpack.c.l.b16 %v5316
        %v5716 = vunpack.c.l.b16 %v5317
        %v5717 = vunpack.c.l.b16 %v5318
        %v5718 = vpack.c.b16 %v5699, %v5698
        %v5719 = vpack.c.b16 %v5701, %v5700
        %v5720 = vpack.c.b16 %v5703, %v5702
        %v5721 = vpack.c.b16 %v5705, %v5704
        %v5722 = vpack.c.b16 %v5707, %v5706
        %v5723 = vpack.c.b16 %v5709, %v5708
        %v5724 = vpack.c.b16 %v5711, %v5710
        %v5725 = vpack.c.b16 %v5713, %v5712
        %v5726 = vpack.c.b16 %v5715, %v5714
        %v5727 = vpack.c.b16 %v5717, %v5716
        %v5759 = vunpack.c.l.b16 %v5279
        %v5760 = vunpack.c.l.b16 %v5280
        %v5761 = vunpack.c.l.b16 %v5281
        %v5762 = vunpack.c.l.b16 %v5282
        %v5763 = vunpack.c.l.b16 %v5283
        %v5764 = vunpack.c.l.b16 %v5284
        %v5765 = vunpack.c.l.b16 %v5285
        %v5766 = vunpack.c.l.b16 %v5286
        %v5767 = vunpack.c.l.b16 %v5287
        %v5768 = vunpack.c.l.b16 %v5288
        %v5769 = vunpack.c.l.b16 %v5289
        %v5770 = vunpack.c.l.b16 %v5290
        %v5771 = vunpack.c.l.b16 %v5291
        %v5772 = vunpack.c.l.b16 %v5292
        %v5773 = vunpack.c.l.b16 %v5293
        %v5774 = vunpack.c.l.b16 %v5294
        %v5775 = vunpack.c.l.b16 %v5295
        %v5776 = vunpack.c.l.b16 %v5296
        %v5777 = vunpack.c.l.b16 %v5297
        %v5778 = vunpack.c.l.b16 %v5298
        %v5779 = vunpack.c.l.b16 %v5319
        %v5780 = vpack.c.b16 %v5760, %v5759
        %v5781 = vpack.c.b16 %v5762, %v5761
        %v5782 = vpack.c.b16 %v5764, %v5763
        %v5783 = vpack.c.b16 %v5766, %v5765
        %v5784 = vpack.c.b16 %v5768, %v5767
        %v5785 = vpack.c.b16 %v5770, %v5769
        %v5786 = vpack.c.b16 %v5772, %v5771
        %v5787 = vpack.c.b16 %v5774, %v5773
        %v5788 = vpack.c.b16 %v5776, %v5775
        %v5789 = vpack.c.b16 %v5778, %v5777
        %v5790 = vpack.c.b16 %v5779, %v5779
        %v5792 = vshrl.u32 %v5780, 16
        %v5794 = vshll.u32 %v5780, 16
        %v5796 = vrot.slane %v5794, 1
        %v5797 = vor.u32 %v5792, %v5796
        %v5799 = vshll.u32 %v5781, 16
        %v5801 = vrot.slane %v5799, 1
        %v5802 = vsel %vm1185, %v5797, %v5801
        %v5803 = vshrl.u32 %v5781, 16
        %v5805 = vor.u32 %v5803, %v5801
        %v5807 = vshll.u32 %v5782, 16
        %v5809 = vrot.slane %v5807, 1
        %v5810 = vsel %vm1185, %v5805, %v5809
        %v5811 = vshrl.u32 %v5782, 16
        %v5813 = vor.u32 %v5811, %v5809
        %v5815 = vshll.u32 %v5783, 16
        %v5817 = vrot.slane %v5815, 1
        %v5818 = vsel %vm1185, %v5813, %v5817
        %v5819 = vshrl.u32 %v5783, 16
        %v5821 = vor.u32 %v5819, %v5817
        %v5823 = vshll.u32 %v5784, 16
        %v5825 = vrot.slane %v5823, 1
        %v5826 = vsel %vm1185, %v5821, %v5825
        %v5827 = vshrl.u32 %v5784, 16
        %v5829 = vor.u32 %v5827, %v5825
        %v5831 = vshll.u32 %v5785, 16
        %v5833 = vrot.slane %v5831, 1
        %v5834 = vsel %vm1185, %v5829, %v5833
        %v5835 = vshrl.u32 %v5785, 16
        %v5837 = vor.u32 %v5835, %v5833
        %v5839 = vshll.u32 %v5786, 16
        %v5841 = vrot.slane %v5839, 1
        %v5842 = vsel %vm1185, %v5837, %v5841
        %v5843 = vshrl.u32 %v5786, 16
        %v5845 = vor.u32 %v5843, %v5841
        %v5847 = vshll.u32 %v5787, 16
        %v5849 = vrot.slane %v5847, 1
        %v5850 = vsel %vm1185, %v5845, %v5849
        %v5851 = vshrl.u32 %v5787, 16
        %v5853 = vor.u32 %v5851, %v5849
        %v5855 = vshll.u32 %v5788, 16
        %v5857 = vrot.slane %v5855, 1
        %v5858 = vsel %vm1185, %v5853, %v5857
        %v5859 = vshrl.u32 %v5788, 16
        %v5861 = vor.u32 %v5859, %v5857
        %v5863 = vshll.u32 %v5789, 16
        %v5865 = vrot.slane %v5863, 1
        %v5866 = vsel %vm1185, %v5861, %v5865
        %v5867 = vshrl.u32 %v5789, 16
        %v5869 = vor.u32 %v5867, %v5865
        %v5871 = vshll.u32 %v5790, 16
        %v5873 = vrot.slane %v5871, 1
        %v5874 = vsel %vm1185, %v5869, %v5873
        %v5906 = vunpack.c.l.b16 %v5321
        %v5907 = vunpack.c.l.b16 %v5322
        %v5908 = vunpack.c.l.b16 %v5323
        %v5909 = vunpack.c.l.b16 %v5324
        %v5910 = vunpack.c.l.b16 %v5325
        %v5911 = vunpack.c.l.b16 %v5326
        %v5912 = vunpack.c.l.b16 %v5327
        %v5913 = vunpack.c.l.b16 %v5328
        %v5914 = vunpack.c.l.b16 %v5329
        %v5915 = vunpack.c.l.b16 %v5330
        %v5916 = vunpack.c.l.b16 %v5331
        %v5917 = vunpack.c.l.b16 %v5332
        %v5918 = vunpack.c.l.b16 %v5333
        %v5919 = vunpack.c.l.b16 %v5334
        %v5920 = vunpack.c.l.b16 %v5335
        %v5921 = vunpack.c.l.b16 %v5336
        %v5922 = vunpack.c.l.b16 %v5337
        %v5923 = vunpack.c.l.b16 %v5338
        %v5924 = vunpack.c.l.b16 %v5339
        %v5925 = vunpack.c.l.b16 %v5340
        %v5926 = vunpack.c.l.b16 %v5341
        %v5927 = vpack.c.b16 %v5907, %v5906
        %v5928 = vpack.c.b16 %v5909, %v5908
        %v5929 = vpack.c.b16 %v5911, %v5910
        %v5930 = vpack.c.b16 %v5913, %v5912
        %v5931 = vpack.c.b16 %v5915, %v5914
        %v5932 = vpack.c.b16 %v5917, %v5916
        %v5933 = vpack.c.b16 %v5919, %v5918
        %v5934 = vpack.c.b16 %v5921, %v5920
        %v5935 = vpack.c.b16 %v5923, %v5922
        %v5936 = vpack.c.b16 %v5925, %v5924
        %v5937 = vpack.c.b16 %v5926, %v5926
        %v5938 = vrot.slane %v5927, 1
        %v5939 = vrot.slane %v5928, 1
        %v5940 = vsel %vm1346, %v5938, %v5939
        %v5941 = vrot.slane %v5929, 1
        %v5942 = vsel %vm1346, %v5939, %v5941
        %v5943 = vrot.slane %v5930, 1
        %v5944 = vsel %vm1346, %v5941, %v5943
        %v5945 = vrot.slane %v5931, 1
        %v5946 = vsel %vm1346, %v5943, %v5945
        %v5947 = vrot.slane %v5932, 1
        %v5948 = vsel %vm1346, %v5945, %v5947
        %v5949 = vrot.slane %v5933, 1
        %v5950 = vsel %vm1346, %v5947, %v5949
        %v5951 = vrot.slane %v5934, 1
        %v5952 = vsel %vm1346, %v5949, %v5951
        %v5953 = vrot.slane %v5935, 1
        %v5954 = vsel %vm1346, %v5951, %v5953
        %v5955 = vrot.slane %v5936, 1
        %v5956 = vsel %vm1346, %v5953, %v5955
        %v5957 = vrot.slane %v5937, 1
        %v5958 = vsel %vm1346, %v5955, %v5957
        %v5989 = vunpack.c.l.b16 %v5344
        %v5990 = vunpack.c.l.b16 %v5345
        %v5991 = vunpack.c.l.b16 %v5346
        %v5992 = vunpack.c.l.b16 %v5347
        %v5993 = vunpack.c.l.b16 %v5348
        %v5994 = vunpack.c.l.b16 %v5349
        %v5995 = vunpack.c.l.b16 %v5350
        %v5996 = vunpack.c.l.b16 %v5351
        %v5997 = vunpack.c.l.b16 %v5352
        %v5998 = vunpack.c.l.b16 %v5353
        %v5999 = vunpack.c.l.b16 %v5354
        %v6000 = vunpack.c.l.b16 %v5355
        %v6001 = vunpack.c.l.b16 %v5356
        %v6002 = vunpack.c.l.b16 %v5357
        %v6003 = vunpack.c.l.b16 %v5358
        %v6004 = vunpack.c.l.b16 %v5359
        %v6005 = vunpack.c.l.b16 %v5360
        %v6006 = vunpack.c.l.b16 %v5361
        %v6007 = vunpack.c.l.b16 %v5362
        %v6008 = vunpack.c.l.b16 %v5363
        %v6009 = vpack.c.b16 %v5990, %v5989
        %v6010 = vpack.c.b16 %v5992, %v5991
        %v6011 = vpack.c.b16 %v5994, %v5993
        %v6012 = vpack.c.b16 %v5996, %v5995
        %v6013 = vpack.c.b16 %v5998, %v5997
        %v6014 = vpack.c.b16 %v6000, %v5999
        %v6015 = vpack.c.b16 %v6002, %v6001
        %v6016 = vpack.c.b16 %v6004, %v6003
        %v6017 = vpack.c.b16 %v6006, %v6005
        %v6018 = vpack.c.b16 %v6008, %v6007
        %v6032 = vunpack.c.l.b16 %v5342
        %v6033 = vunpack.c.l.b16 %v5343
        %v6034 = vunpack.c.l.b16 %v5364
        %v6035 = vpack.c.b16 %v6033, %v6032
        %v6036 = vpack.c.b16 %v6034, %v6034
        %v6038 = vshll.u32 %v6035, 16
        %v6040 = vrot.slane %v6038, 1
        %v6041 = vsel %vm1185, %v5869, %v6040
        %v6042 = vshrl.u32 %v6035, 16
        %v6044 = vor.u32 %v6042, %v6040
        %v6046 = vshll.u32 %v6036, 16
        %v6048 = vrot.slane %v6046, 1
        %v6049 = vsel %vm1185, %v6044, %v6048
        %v6073 = vunpack.c.l.b16 %v5366
        %v6074 = vunpack.c.l.b16 %v5367
        %v6075 = vunpack.c.l.b16 %v5368
        %v6076 = vunpack.c.l.b16 %v5369
        %v6077 = vunpack.c.l.b16 %v5370
        %v6078 = vunpack.c.l.b16 %v5371
        %v6079 = vunpack.c.l.b16 %v5372
        %v6080 = vunpack.c.l.b16 %v5373
        %v6081 = vunpack.c.l.b16 %v5374
        %v6082 = vunpack.c.l.b16 %v5375
        %v6083 = vunpack.c.l.b16 %v5376
        %v6084 = vunpack.c.l.b16 %v5377
        %v6085 = vunpack.c.l.b16 %v5378
        %v6086 = vunpack.c.l.b16 %v5379
        %v6087 = vunpack.c.l.b16 %v5380
        %v6088 = vunpack.c.l.b16 %v5381
        %v6089 = vunpack.c.l.b16 %v5382
        %v6090 = vunpack.c.l.b16 %v5383
        %v6091 = vunpack.c.l.b16 %v5384
        %v6092 = vunpack.c.l.b16 %v5385
        %v6093 = vunpack.c.l.b16 %v5386
        %v6094 = vpack.c.b16 %v6074, %v6073
        %v6095 = vpack.c.b16 %v6076, %v6075
        %v6096 = vpack.c.b16 %v6078, %v6077
        %v6097 = vpack.c.b16 %v6080, %v6079
        %v6098 = vpack.c.b16 %v6082, %v6081
        %v6099 = vpack.c.b16 %v6084, %v6083
        %v6100 = vpack.c.b16 %v6086, %v6085
        %v6101 = vpack.c.b16 %v6088, %v6087
        %v6102 = vpack.c.b16 %v6090, %v6089
        %v6103 = vpack.c.b16 %v6092, %v6091
        %v6104 = vpack.c.b16 %v6093, %v6093
        %v6105 = vrot.slane %v6094, 1
        %v6106 = vrot.slane %v6095, 1
        %v6107 = vsel %vm1346, %v6105, %v6106
        %v6108 = vrot.slane %v6096, 1
        %v6109 = vsel %vm1346, %v6106, %v6108
        %v6110 = vrot.slane %v6097, 1
        %v6111 = vsel %vm1346, %v6108, %v6110
        %v6112 = vrot.slane %v6098, 1
        %v6113 = vsel %vm1346, %v6110, %v6112
        %v6114 = vrot.slane %v6099, 1
        %v6115 = vsel %vm1346, %v6112, %v6114
        %v6116 = vrot.slane %v6100, 1
        %v6117 = vsel %vm1346, %v6114, %v6116
        %v6118 = vrot.slane %v6101, 1
        %v6119 = vsel %vm1346, %v6116, %v6118
        %v6120 = vrot.slane %v6102, 1
        %v6121 = vsel %vm1346, %v6118, %v6120
        %v6122 = vrot.slane %v6103, 1
        %v6123 = vsel %vm1346, %v6120, %v6122
        %v6124 = vrot.slane %v6104, 1
        %v6125 = vsel %vm1346, %v6122, %v6124
        %v6136 = vld [vmem:[%s16] sm:$0xf]
        %v6137 = vld [vmem:[%s16 + $0x4] sm:$0xf]
        %v6138 = vld [vmem:[%s16 + $0x8] sm:$0xf]
        %v6139 = vld [vmem:[%s16 + $0xc] sm:$0xf]
        %v6140 = vld [vmem:[%s16 + $0x10] sm:$0xf]
        %v6141 = vld [vmem:[%s16 + $0x14] sm:$0xf]
        %v6142 = vld [vmem:[%s16 + $0x18] sm:$0xf]
        %v6143 = vld [vmem:[%s16 + $0x1c] sm:$0xf]
        %v6144 = vld [vmem:[%s16 + $0x20] sm:$0xf]
        %v6145 = vld [vmem:[%s16 + $0x24] sm:$0xf]
        %v6146 = vld [vmem:[%s16 + $0x28] sm:$0xf]
        %v6147 = vld [vmem:[%s16 + $0x2c] sm:$0xf]
        %v6148 = vld [vmem:[%s16 + $0x30] sm:$0xf]
        %v6149 = vld [vmem:[%s16 + $0x34] sm:$0xf]
        %v6150 = vld [vmem:[%s16 + $0x38] sm:$0xf]
        %v6151 = vld [vmem:[%s16 + $0x3c] sm:$0xf]
        %v6152 = vld [vmem:[%s16 + $0x40] sm:$0xf]
        %v6153 = vld [vmem:[%s16 + $0x44] sm:$0xf]
        %v6154 = vld [vmem:[%s16 + $0x48] sm:$0xf]
        %v6155 = vld [vmem:[%s16 + $0x4c] sm:$0xf]
        %v6156 = vld [vmem:[%s16 + $0x50] sm:$0xf]
        %v6157 = vld [vmem:[%s16 + $0x54] sm:$0xf]
        %v6158 = vld [vmem:[%s16 + $0x58] sm:$0xf]
        %v6159 = vld [vmem:[%s16 + $0x5c] sm:$0xf]
        %v6160 = vld [vmem:[%s16 + $0x60] sm:$0xf]
        %v6161 = vld [vmem:[%s16 + $0x64] sm:$0xf]
        %v6162 = vld [vmem:[%s16 + $0x68] sm:$0xf]
        %v6163 = vld [vmem:[%s16 + $0x6c] sm:$0xf]
        %v6164 = vld [vmem:[%s16 + $0x70] sm:$0xf]
        %v6165 = vld [vmem:[%s16 + $0x74] sm:$0xf]
        %v6166 = vld [vmem:[%s16 + $0x78] sm:$0xf]
        %v6167 = vld [vmem:[%s16 + $0x7c] sm:$0xf]
        %v6168 = vld [vmem:[%s16 + $0x80] sm:$0xf]
        %v6169 = vld [vmem:[%s16 + $0x84] sm:$0xf]
        %v6170 = vld [vmem:[%s16 + $0x88] sm:$0xf]
        %v6171 = vld [vmem:[%s16 + $0x8c] sm:$0xf]
        %v6172 = vld [vmem:[%s16 + $0x90] sm:$0xf]
        %v6173 = vld [vmem:[%s16 + $0x94] sm:$0xf]
        %v6174 = vld [vmem:[%s16 + $0x98] sm:$0xf]
        %v6175 = vld [vmem:[%s16 + $0x9c] sm:$0xf]
        %v6176 = vld [vmem:[%s16 + $0xa0] sm:$0xf]
        %v6177 = vld [vmem:[%s16 + $0xa4] sm:$0xf]
        %v6178 = vld [vmem:[%s16 + $0xa8] sm:$0xf]
        %v6179 = vld [vmem:[%s16 + $0xac] sm:$0xf]
        %v6180 = vld [vmem:[%s16 + $0xb0] sm:$0xf]
        %v6181 = vld [vmem:[%s16 + $0xb4] sm:$0xf]
        %v6182 = vld [vmem:[%s16 + $0xb8] sm:$0xf]
        %v6183 = vld [vmem:[%s16 + $0xbc] sm:$0xf]
        %v6184 = vld [vmem:[%s16 + $0xc0] sm:$0xf]
        %v6185 = vld [vmem:[%s16 + $0xc4] sm:$0xf]
        %v6186 = vld [vmem:[%s16 + $0xc8] sm:$0xf]
        %v6187 = vld [vmem:[%s16 + $0xcc] sm:$0xf]
        %v6188 = vld [vmem:[%s16 + $0xd0] sm:$0xf]
        %v6189 = vld [vmem:[%s16 + $0xd4] sm:$0xf]
        %v6190 = vld [vmem:[%s16 + $0xd8] sm:$0xf]
        %v6191 = vld [vmem:[%s16 + $0xdc] sm:$0xf]
        %v6192 = vld [vmem:[%s16 + $0xe0] sm:$0xf]
        %v6193 = vld [vmem:[%s16 + $0xe4] sm:$0xf]
        %v6194 = vld [vmem:[%s16 + $0xe8] sm:$0xf]
        %v6195 = vld [vmem:[%s16 + $0xec] sm:$0xf]
        %v6196 = vld [vmem:[%s16 + $0xf0] sm:$0xf]
        %v6197 = vld [vmem:[%s16 + $0xf4] sm:$0xf]
        %v6198 = vld [vmem:[%s16 + $0xf8] sm:$0xf]
        %v6199 = vld [vmem:[%s16 + $0xfc] sm:$0xf]
        %v6200 = vld [vmem:[%s16 + $0x100] sm:$0xf]
        %v6201 = vld [vmem:[%s16 + $0x104] sm:$0xf]
        %v6202 = vld [vmem:[%s16 + $0x108] sm:$0xf]
        %v6203 = vld [vmem:[%s16 + $0x10c] sm:$0xf]
        %v6204 = vld [vmem:[%s16 + $0x110] sm:$0xf]
        %v6205 = vld [vmem:[%s16 + $0x114] sm:$0xf]
        %v6206 = vld [vmem:[%s16 + $0x118] sm:$0xf]
        %v6207 = vld [vmem:[%s16 + $0x11c] sm:$0xf]
        %v6208 = vld [vmem:[%s16 + $0x120] sm:$0xf]
        %v6209 = vld [vmem:[%s16 + $0x124] sm:$0xf]
        %v6210 = vld [vmem:[%s16 + $0x128] sm:$0xf]
        %v6211 = vld [vmem:[%s16 + $0x12c] sm:$0xf]
        %v6212 = vld [vmem:[%s16 + $0x130] sm:$0xf]
        %v6213 = vld [vmem:[%s16 + $0x134] sm:$0xf]
        %v6214 = vld [vmem:[%s16 + $0x138] sm:$0xf]
        %v6215 = vld [vmem:[%s16 + $0x13c] sm:$0xf]
        %v6216 = vld [vmem:[%s16 + $0x140] sm:$0xf]
        %v6217 = vld [vmem:[%s16 + $0x144] sm:$0xf]
        %v6218 = vld [vmem:[%s16 + $0x148] sm:$0xf]
        %v6219 = vld [vmem:[%s16 + $0x14c] sm:$0xf]
        %v6220 = vld [vmem:[%s16 + $0x150] sm:$0xf]
        %v6221 = vld [vmem:[%s16 + $0x154] sm:$0xf]
        %v6222 = vld [vmem:[%s16 + $0x158] sm:$0xf]
        %v6223 = vld [vmem:[%s16 + $0x15c] sm:$0xf]
        %v6224 = vld [vmem:[%s16 + $0x160] sm:$0xf]
        %v6225 = vld [vmem:[%s16 + $0x164] sm:$0xf]
        %v6226 = vld [vmem:[%s16 + $0x168] sm:$0xf]
        %v6227 = vld [vmem:[%s16 + $0x16c] sm:$0xf]
        %v6228 = vld [vmem:[%s16 + $0x170] sm:$0xf]
        %v6229 = vld [vmem:[%s16 + $0x174] sm:$0xf]
        %v6230 = vld [vmem:[%s16 + $0x178] sm:$0xf]
        %v6231 = vld [vmem:[%s16 + $0x17c] sm:$0xf]
        %v6232 = vld [vmem:[%s16 + $0x180] sm:$0xf]
        %v6233 = vld [vmem:[%s16 + $0x184] sm:$0xf]
        %v6234 = vld [vmem:[%s16 + $0x188] sm:$0xf]
        %v6235 = vld [vmem:[%s16 + $0x18c] sm:$0xf]
        %v6236 = vld [vmem:[%s16 + $0x190] sm:$0xf]
        %v6237 = vld [vmem:[%s16 + $0x194] sm:$0xf]
        %v6238 = vld [vmem:[%s16 + $0x198] sm:$0xf]
        %v6239 = vld [vmem:[%s16 + $0x19c] sm:$0xf]
        %v6240 = vld [vmem:[%s16 + $0x1a0] sm:$0xf]
        %v6241 = vld [vmem:[%s16 + $0x1a4] sm:$0xf]
        %v6242 = vld [vmem:[%s16 + $0x1a8] sm:$0xf]
        %v6243 = vld [vmem:[%s16 + $0x1ac] sm:$0xf]
        %v6244 = vld [vmem:[%s16 + $0x1b0] sm:$0xf]
        %v6245 = vld [vmem:[%s16 + $0x1b4] sm:$0xf]
        %v6246 = vld [vmem:[%s16 + $0x1b8] sm:$0xf]
        %v6247 = vld [vmem:[%s16 + $0x1bc] sm:$0xf]
        %v6248 = vld [vmem:[%s16 + $0x1c0] sm:$0xf]
        %v6249 = vld [vmem:[%s16 + $0x1c4] sm:$0xf]
        %v6250 = vld [vmem:[%s16 + $0x1c8] sm:$0xf]
        %v6251 = vld [vmem:[%s16 + $0x1cc] sm:$0xf]
        %v6252 = vld [vmem:[%s16 + $0x1d0] sm:$0xf]
        %v6253 = vld [vmem:[%s16 + $0x1d4] sm:$0xf]
        %v6254 = vld [vmem:[%s16 + $0x1d8] sm:$0xf]
        %v6255 = vld [vmem:[%s16 + $0x1dc] sm:$0xf]
        %v6256 = vld [vmem:[%s16 + $0x1e0] sm:$0xf]
        %v6257 = vld [vmem:[%s16 + $0x1e4] sm:$0xf]
        %v6258 = vld [vmem:[%s16 + $0x1e8] sm:$0xf]
        %v6259 = vld [vmem:[%s16 + $0x1ec] sm:$0xf]
        %v6260 = vld [vmem:[%s16 + $0x1f0] sm:$0xf]
        %v6261 = vld [vmem:[%s16 + $0x1f4] sm:$0xf]
        %v6262 = vld [vmem:[%s16 + $0x1f8] sm:$0xf]
        %v6263 = vld [vmem:[%s16 + $0x1fc] sm:$0xf]
        %v6264 = vld [vmem:[%s16 + $0x200] sm:$0xf]
        %v6265 = vld [vmem:[%s16 + $0x204] sm:$0xf]
        %v6266 = vld [vmem:[%s16 + $0x208] sm:$0xf]
        %v6267 = vld [vmem:[%s16 + $0x20c] sm:$0xf]
        %v6268 = vld [vmem:[%s16 + $0x210] sm:$0xf]
        %v6269 = vld [vmem:[%s16 + $0x214] sm:$0xf]
        %v6270 = vld [vmem:[%s16 + $0x218] sm:$0xf]
        %v6271 = vld [vmem:[%s16 + $0x21c] sm:$0xf]
        %v6272 = vld [vmem:[%s16 + $0x220] sm:$0xf]
        %v6273 = vld [vmem:[%s16 + $0x224] sm:$0xf]
        %v6274 = vld [vmem:[%s16 + $0x228] sm:$0xf]
        %v6275 = vld [vmem:[%s16 + $0x22c] sm:$0xf]
        %v6276 = vld [vmem:[%s16 + $0x230] sm:$0xf]
        %v6277 = vld [vmem:[%s16 + $0x234] sm:$0xf]
        %v6278 = vld [vmem:[%s16 + $0x238] sm:$0xf]
        %v6279 = vld [vmem:[%s16 + $0x23c] sm:$0xf]
        %v6424 = vunpack.c.l.b16 %v6136
        %v6425 = vunpack.c.l.b16 %v6137
        %v6426 = vunpack.c.l.b16 %v6138
        %v6427 = vunpack.c.l.b16 %v6139
        %v6428 = vunpack.c.l.b16 %v6140
        %v6429 = vunpack.c.l.b16 %v6141
        %v6430 = vunpack.c.l.b16 %v6142
        %v6431 = vunpack.c.l.b16 %v6143
        %v6432 = vunpack.c.l.b16 %v6144
        %v6433 = vunpack.c.l.b16 %v6145
        %v6434 = vunpack.c.l.b16 %v6146
        %v6435 = vunpack.c.l.b16 %v6147
        %v6436 = vunpack.c.l.b16 %v6148
        %v6437 = vunpack.c.l.b16 %v6149
        %v6438 = vunpack.c.l.b16 %v6150
        %v6439 = vunpack.c.l.b16 %v6151
        %v6440 = vunpack.c.l.b16 %v6152
        %v6441 = vunpack.c.l.b16 %v6153
        %v6442 = vunpack.c.l.b16 %v6154
        %v6443 = vunpack.c.l.b16 %v6155
        %v6444 = vunpack.c.l.b16 %v6156
        %v6445 = vunpack.c.l.b16 %v6157
        %v6446 = vunpack.c.l.b16 %v6158
        %v6447 = vunpack.c.l.b16 %v6159
        %v6448 = vunpack.c.l.b16 %v6160
        %v6449 = vunpack.c.l.b16 %v6161
        %v6450 = vunpack.c.l.b16 %v6162
        %v6451 = vunpack.c.l.b16 %v6163
        %v6452 = vunpack.c.l.b16 %v6164
        %v6453 = vunpack.c.l.b16 %v6165
        %v6454 = vunpack.c.l.b16 %v6166
        %v6455 = vunpack.c.l.b16 %v6167
        %v6456 = vunpack.c.l.b16 %v6168
        %v6457 = vunpack.c.l.b16 %v6169
        %v6458 = vunpack.c.l.b16 %v6170
        %v6459 = vunpack.c.l.b16 %v6171
        %v6460 = vunpack.c.l.b16 %v6172
        %v6461 = vunpack.c.l.b16 %v6173
        %v6462 = vunpack.c.l.b16 %v6174
        %v6463 = vunpack.c.l.b16 %v6175
        %v6464 = vunpack.c.l.b16 %v6176
        %v6465 = vunpack.c.l.b16 %v6177
        %v6466 = vunpack.c.l.b16 %v6178
        %v6467 = vunpack.c.l.b16 %v6179
        %v6468 = vunpack.c.l.b16 %v6180
        %v6469 = vunpack.c.l.b16 %v6181
        %v6470 = vunpack.c.l.b16 %v6182
        %v6471 = vunpack.c.l.b16 %v6183
        %v6472 = vunpack.c.l.b16 %v6184
        %v6473 = vunpack.c.l.b16 %v6185
        %v6474 = vunpack.c.l.b16 %v6186
        %v6475 = vunpack.c.l.b16 %v6187
        %v6476 = vunpack.c.l.b16 %v6188
        %v6477 = vunpack.c.l.b16 %v6189
        %v6478 = vunpack.c.l.b16 %v6190
        %v6479 = vunpack.c.l.b16 %v6191
        %v6480 = vunpack.c.l.b16 %v6192
        %v6481 = vunpack.c.l.b16 %v6193
        %v6482 = vunpack.c.l.b16 %v6194
        %v6483 = vunpack.c.l.b16 %v6195
        %v6484 = vunpack.c.l.b16 %v6196
        %v6485 = vunpack.c.l.b16 %v6197
        %v6486 = vunpack.c.l.b16 %v6198
        %v6487 = vunpack.c.l.b16 %v6199
        %v6488 = vunpack.c.l.b16 %v6200
        %v6489 = vunpack.c.l.b16 %v6201
        %v6490 = vunpack.c.l.b16 %v6202
        %v6491 = vunpack.c.l.b16 %v6203
        %v6492 = vunpack.c.l.b16 %v6204
        %v6493 = vunpack.c.l.b16 %v6205
        %v6494 = vunpack.c.l.b16 %v6206
        %v6495 = vunpack.c.l.b16 %v6207
        %v6496 = vunpack.c.l.b16 %v6208
        %v6497 = vunpack.c.l.b16 %v6209
        %v6498 = vunpack.c.l.b16 %v6210
        %v6499 = vunpack.c.l.b16 %v6211
        %v6500 = vunpack.c.l.b16 %v6212
        %v6501 = vunpack.c.l.b16 %v6213
        %v6502 = vunpack.c.l.b16 %v6214
        %v6503 = vunpack.c.l.b16 %v6215
        %v6504 = vunpack.c.l.b16 %v6216
        %v6505 = vunpack.c.l.b16 %v6217
        %v6506 = vunpack.c.l.b16 %v6218
        %v6507 = vunpack.c.l.b16 %v6219
        %v6508 = vunpack.c.l.b16 %v6220
        %v6509 = vunpack.c.l.b16 %v6221
        %v6510 = vunpack.c.l.b16 %v6222
        %v6511 = vunpack.c.l.b16 %v6223
        %v6512 = vunpack.c.l.b16 %v6224
        %v6513 = vunpack.c.l.b16 %v6225
        %v6514 = vunpack.c.l.b16 %v6226
        %v6515 = vunpack.c.l.b16 %v6227
        %v6516 = vunpack.c.l.b16 %v6228
        %v6517 = vunpack.c.l.b16 %v6229
        %v6518 = vunpack.c.l.b16 %v6230
        %v6519 = vunpack.c.l.b16 %v6231
        %v6520 = vunpack.c.l.b16 %v6232
        %v6521 = vunpack.c.l.b16 %v6233
        %v6522 = vunpack.c.l.b16 %v6234
        %v6523 = vunpack.c.l.b16 %v6235
        %v6524 = vunpack.c.l.b16 %v6236
        %v6525 = vunpack.c.l.b16 %v6237
        %v6526 = vunpack.c.l.b16 %v6238
        %v6527 = vunpack.c.l.b16 %v6239
        %v6528 = vunpack.c.l.b16 %v6240
        %v6529 = vunpack.c.l.b16 %v6241
        %v6530 = vunpack.c.l.b16 %v6242
        %v6531 = vunpack.c.l.b16 %v6243
        %v6532 = vunpack.c.l.b16 %v6244
        %v6533 = vunpack.c.l.b16 %v6245
        %v6534 = vunpack.c.l.b16 %v6246
        %v6535 = vunpack.c.l.b16 %v6247
        %v6536 = vunpack.c.l.b16 %v6248
        %v6537 = vunpack.c.l.b16 %v6249
        %v6538 = vunpack.c.l.b16 %v6250
        %v6539 = vunpack.c.l.b16 %v6251
        %v6540 = vunpack.c.l.b16 %v6252
        %v6541 = vunpack.c.l.b16 %v6253
        %v6542 = vunpack.c.l.b16 %v6254
        %v6543 = vunpack.c.l.b16 %v6255
        %v6544 = vunpack.c.l.b16 %v6256
        %v6545 = vunpack.c.l.b16 %v6257
        %v6546 = vunpack.c.l.b16 %v6258
        %v6547 = vunpack.c.l.b16 %v6259
        %v6548 = vunpack.c.l.b16 %v6260
        %v6549 = vunpack.c.l.b16 %v6261
        %v6550 = vunpack.c.l.b16 %v6262
        %v6551 = vunpack.c.l.b16 %v6263
        %v6552 = vunpack.c.l.b16 %v6264
        %v6553 = vunpack.c.l.b16 %v6265
        %v6554 = vunpack.c.l.b16 %v6266
        %v6555 = vunpack.c.l.b16 %v6267
        %v6556 = vunpack.c.l.b16 %v6268
        %v6557 = vunpack.c.l.b16 %v6269
        %v6558 = vunpack.c.l.b16 %v6270
        %v6559 = vunpack.c.l.b16 %v6271
        %v6560 = vunpack.c.l.b16 %v6272
        %v6561 = vunpack.c.l.b16 %v6273
        %v6562 = vunpack.c.l.b16 %v6274
        %v6563 = vunpack.c.l.b16 %v6275
        %v6564 = vunpack.c.l.b16 %v6276
        %v6565 = vunpack.c.l.b16 %v6277
        %v6566 = vunpack.c.l.b16 %v6278
        %v6567 = vunpack.c.l.b16 %v6279
        %v6568 = vpack.c.b16 %v6425, %v6424
        %v6569 = vpack.c.b16 %v6427, %v6426
        %v6570 = vpack.c.b16 %v6429, %v6428
        %v6571 = vpack.c.b16 %v6431, %v6430
        %v6572 = vpack.c.b16 %v6433, %v6432
        %v6573 = vpack.c.b16 %v6435, %v6434
        %v6574 = vpack.c.b16 %v6437, %v6436
        %v6575 = vpack.c.b16 %v6439, %v6438
        %v6576 = vpack.c.b16 %v6441, %v6440
        %v6577 = vpack.c.b16 %v6443, %v6442
        %v6578 = vpack.c.b16 %v6445, %v6444
        %v6579 = vpack.c.b16 %v6447, %v6446
        %v6580 = vpack.c.b16 %v6449, %v6448
        %v6581 = vpack.c.b16 %v6451, %v6450
        %v6582 = vpack.c.b16 %v6453, %v6452
        %v6583 = vpack.c.b16 %v6455, %v6454
        %v6584 = vpack.c.b16 %v6457, %v6456
        %v6585 = vpack.c.b16 %v6459, %v6458
        %v6586 = vpack.c.b16 %v6461, %v6460
        %v6587 = vpack.c.b16 %v6463, %v6462
        %v6588 = vpack.c.b16 %v6465, %v6464
        %v6589 = vpack.c.b16 %v6467, %v6466
        %v6590 = vpack.c.b16 %v6469, %v6468
        %v6591 = vpack.c.b16 %v6471, %v6470
        %v6592 = vpack.c.b16 %v6473, %v6472
        %v6593 = vpack.c.b16 %v6475, %v6474
        %v6594 = vpack.c.b16 %v6477, %v6476
        %v6595 = vpack.c.b16 %v6479, %v6478
        %v6596 = vpack.c.b16 %v6481, %v6480
        %v6597 = vpack.c.b16 %v6483, %v6482
        %v6598 = vpack.c.b16 %v6485, %v6484
        %v6599 = vpack.c.b16 %v6487, %v6486
        %v6600 = vpack.c.b16 %v6489, %v6488
        %v6601 = vpack.c.b16 %v6491, %v6490
        %v6602 = vpack.c.b16 %v6493, %v6492
        %v6603 = vpack.c.b16 %v6495, %v6494
        %v6604 = vpack.c.b16 %v6497, %v6496
        %v6605 = vpack.c.b16 %v6499, %v6498
        %v6606 = vpack.c.b16 %v6501, %v6500
        %v6607 = vpack.c.b16 %v6503, %v6502
        %v6608 = vpack.c.b16 %v6505, %v6504
        %v6609 = vpack.c.b16 %v6507, %v6506
        %v6610 = vpack.c.b16 %v6509, %v6508
        %v6611 = vpack.c.b16 %v6511, %v6510
        %v6612 = vpack.c.b16 %v6513, %v6512
        %v6613 = vpack.c.b16 %v6515, %v6514
        %v6614 = vpack.c.b16 %v6517, %v6516
        %v6615 = vpack.c.b16 %v6519, %v6518
        %v6616 = vpack.c.b16 %v6521, %v6520
        %v6617 = vpack.c.b16 %v6523, %v6522
        %v6618 = vpack.c.b16 %v6525, %v6524
        %v6619 = vpack.c.b16 %v6527, %v6526
        %v6620 = vpack.c.b16 %v6529, %v6528
        %v6621 = vpack.c.b16 %v6531, %v6530
        %v6622 = vpack.c.b16 %v6533, %v6532
        %v6623 = vpack.c.b16 %v6535, %v6534
        %v6624 = vpack.c.b16 %v6537, %v6536
        %v6625 = vpack.c.b16 %v6539, %v6538
        %v6626 = vpack.c.b16 %v6541, %v6540
        %v6627 = vpack.c.b16 %v6543, %v6542
        %v6628 = vpack.c.b16 %v6545, %v6544
        %v6629 = vpack.c.b16 %v6547, %v6546
        %v6630 = vpack.c.b16 %v6549, %v6548
        %v6631 = vpack.c.b16 %v6551, %v6550
        %v6632 = vpack.c.b16 %v6553, %v6552
        %v6633 = vpack.c.b16 %v6555, %v6554
        %v6634 = vpack.c.b16 %v6557, %v6556
        %v6635 = vpack.c.b16 %v6559, %v6558
        %v6636 = vpack.c.b16 %v6561, %v6560
        %v6637 = vpack.c.b16 %v6563, %v6562
        %v6638 = vpack.c.b16 %v6565, %v6564
        %v6639 = vpack.c.b16 %v6567, %v6566
        %6712 = vmatprep.subr.bf16.mxu0 0
        %6713 = vmatpush1.bf16.msra.mxu0 %v6575
        %6714 = vmatprep.subr.bf16.mxu0 0
        %6715 = vmatpush1.bf16.msra.mxu0 %v6574
        %6716 = vmatprep.subr.bf16.mxu0 0
        %6717 = vmatpush1.bf16.msra.mxu0 %v6573
        %6718 = vmatprep.subr.bf16.mxu0 0
        %6719 = vmatpush1.bf16.msra.mxu0 %v6572
        %6720 = vmatprep.subr.bf16.mxu0 0
        %6721 = vmatpush1.bf16.msra.mxu0 %v6571
        %6722 = vmatprep.subr.bf16.mxu0 0
        %6723 = vmatpush1.bf16.msra.mxu0 %v6570
        %6724 = vmatprep.subr.bf16.mxu0 0
        %6725 = vmatpush1.bf16.msra.mxu0 %v6569
        %6726 = vmatprep.subr.bf16.mxu0 0
        %6727 = vmatpush1.bf16.msra.mxu0 %v6568
        %6728 = vmatprep.subr.bf16.mxu0 0
        %6729 = vmatpush2.bf16.msra.mxu0 %v6583
        %6730 = vmatprep.subr.bf16.mxu0 0
        %6731 = vmatpush2.bf16.msra.mxu0 %v6582
        %6732 = vmatprep.subr.bf16.mxu0 0
        %6733 = vmatpush2.bf16.msra.mxu0 %v6581
        %6734 = vmatprep.subr.bf16.mxu0 0
        %6735 = vmatpush2.bf16.msra.mxu0 %v6580
        %6736 = vmatprep.subr.bf16.mxu0 0
        %6737 = vmatpush2.bf16.msra.mxu0 %v6579
        %6738 = vmatprep.subr.bf16.mxu0 0
        %6739 = vmatpush2.bf16.msra.mxu0 %v6578
        %6740 = vmatprep.subr.bf16.mxu0 0
        %6741 = vmatpush2.bf16.msra.mxu0 %v6577
        %6742 = vmatprep.subr.bf16.mxu0 0
        %6743 = vmatpush2.bf16.msra.mxu0 %v6576
        %6744 = vmatprep.mubr.bf16.mxu0 %v5511
        %6745 = vmatmul.mubr.bf16.gmra.mxu0 %v5427
        %v6746 = vpop.f32.mrf.mxu0
        %v6747 = vpop.f32.mrf.mxu0
        %v6748 = vpop.f32.mrf.mxu0
        %v6749 = vpop.f32.mrf.mxu0
        %6750 = vmatprep.mubr.bf16.mxu0 %v5519
        %6751 = vmatmul.mubr.bf16.gmra.mxu0 %v5428
        %v6752 = vpop.f32.mrf.mxu0
        %v6753 = vadd.f32 0.0, %v6752
        %v6754 = vpop.f32.mrf.mxu0
        %v6755 = vpop.f32.mrf.mxu0
        %v6756 = vadd.f32 0.0, %v6755
        %v6757 = vpop.f32.mrf.mxu0
        %6758 = vmatprep.mubr.bf16.mxu0 %v5527
        %6759 = vmatmul.mubr.bf16.gmra.mxu0 %v5429
        %v6760 = vpop.f32.mrf.mxu0
        %v6761 = vadd.f32 0.0, %v6760
        %v6762 = vpop.f32.mrf.mxu0
        %v6763 = vpop.f32.mrf.mxu0
        %v6764 = vadd.f32 0.0, %v6763
        %v6765 = vpop.f32.mrf.mxu0
        %6766 = vmatprep.mubr.bf16.mxu0 %v5535
        %6767 = vmatmul.mubr.bf16.gmra.mxu0 %v5430
        %v6768 = vpop.f32.mrf.mxu0
        %v6769 = vadd.f32 0.0, %v6768
        %v6770 = vpop.f32.mrf.mxu0
        %v6771 = vpop.f32.mrf.mxu0
        %v6772 = vadd.f32 0.0, %v6771
        %v6773 = vpop.f32.mrf.mxu0
        %6774 = vmatprep.mubr.bf16.mxu0 %v5543
        %6775 = vmatmul.mubr.bf16.gmra.mxu0 %v5431
        %v6776 = vpop.f32.mrf.mxu0
        %v6777 = vadd.f32 0.0, %v6776
        %v6778 = vpop.f32.mrf.mxu0
        %v6779 = vpop.f32.mrf.mxu0
        %v6780 = vadd.f32 0.0, %v6779
        %v6781 = vpop.f32.mrf.mxu0
        %6782 = vmatprep.mubr.bf16.mxu0 %v5551
        %6783 = vmatmul.mubr.bf16.gmra.mxu0 %v5432
        %v6784 = vpop.f32.mrf.mxu0
        %v6785 = vadd.f32 0.0, %v6784
        %v6786 = vpop.f32.mrf.mxu0
        %v6787 = vpop.f32.mrf.mxu0
        %v6788 = vadd.f32 0.0, %v6787
        %v6789 = vpop.f32.mrf.mxu0
        %6790 = vmatprep.mubr.bf16.mxu0 %v5559
        %6791 = vmatmul.mubr.bf16.gmra.mxu0 %v5433
        %v6792 = vpop.f32.mrf.mxu0
        %v6793 = vadd.f32 0.0, %v6792
        %v6794 = vpop.f32.mrf.mxu0
        %v6795 = vpop.f32.mrf.mxu0
        %v6796 = vadd.f32 0.0, %v6795
        %v6797 = vpop.f32.mrf.mxu0
        %6798 = vmatprep.mubr.bf16.mxu0 %v5567
        %6799 = vmatmul.mubr.bf16.gmra.mxu0 %v5434
        %v6800 = vpop.f32.mrf.mxu0
        %v6801 = vadd.f32 0.0, %v6800
        %v6802 = vpop.f32.mrf.mxu0
        %v6803 = vpop.f32.mrf.mxu0
        %v6804 = vadd.f32 0.0, %v6803
        %v6805 = vpop.f32.mrf.mxu0
        %6806 = vmatprep.mubr.bf16.mxu0 %v5575
        %6807 = vmatmul.mubr.bf16.gmra.mxu0 %v5435
        %v6808 = vpop.f32.mrf.mxu0
        %v6809 = vadd.f32 0.0, %v6808
        %v6810 = vpop.f32.mrf.mxu0
        %v6811 = vpop.f32.mrf.mxu0
        %v6812 = vadd.f32 0.0, %v6811
        %v6813 = vpop.f32.mrf.mxu0
        %6814 = vmatprep.mubr.bf16.mxu0 %v5583
        %6815 = vmatmul.mubr.bf16.gmra.mxu0 %v5436
        %v6816 = vpop.f32.mrf.mxu0
        %v6817 = vpop.f32.mrf.mxu0
        %v6818 = vpop.f32.mrf.mxu0
        %v6819 = vpop.f32.mrf.mxu0
        %6820 = vdwg.mxu0
        %6821 = vmatprep.subr.bf16.mxu0 0
        %6822 = vmatpush1.bf16.msra.mxu0 %v6591
        %6823 = vmatprep.subr.bf16.mxu0 0
        %6824 = vmatpush1.bf16.msra.mxu0 %v6590
        %6825 = vmatprep.subr.bf16.mxu0 0
        %6826 = vmatpush1.bf16.msra.mxu0 %v6589
        %6827 = vmatprep.subr.bf16.mxu0 0
        %6828 = vmatpush1.bf16.msra.mxu0 %v6588
        %6829 = vmatprep.subr.bf16.mxu0 0
        %6830 = vmatpush1.bf16.msra.mxu0 %v6587
        %6831 = vmatprep.subr.bf16.mxu0 0
        %6832 = vmatpush1.bf16.msra.mxu0 %v6586
        %6833 = vmatprep.subr.bf16.mxu0 0
        %6834 = vmatpush1.bf16.msra.mxu0 %v6585
        %6835 = vmatprep.subr.bf16.mxu0 0
        %6836 = vmatpush1.bf16.msra.mxu0 %v6584
        %6837 = vmatprep.subr.bf16.mxu0 0
        %6838 = vmatpush2.bf16.msra.mxu0 %v6599
        %6839 = vmatprep.subr.bf16.mxu0 0
        %6840 = vmatpush2.bf16.msra.mxu0 %v6598
        %6841 = vmatprep.subr.bf16.mxu0 0
        %6842 = vmatpush2.bf16.msra.mxu0 %v6597
        %6843 = vmatprep.subr.bf16.mxu0 0
        %6844 = vmatpush2.bf16.msra.mxu0 %v6596
        %6845 = vmatprep.subr.bf16.mxu0 0
        %6846 = vmatpush2.bf16.msra.mxu0 %v6595
        %6847 = vmatprep.subr.bf16.mxu0 0
        %6848 = vmatpush2.bf16.msra.mxu0 %v6594
        %6849 = vmatprep.subr.bf16.mxu0 0
        %6850 = vmatpush2.bf16.msra.mxu0 %v6593
        %6851 = vmatprep.subr.bf16.mxu0 0
        %6852 = vmatpush2.bf16.msra.mxu0 %v6592
        %6853 = vmatprep.mubr.bf16.mxu0 %v5718
        %6854 = vmatmul.mubr.bf16.gmra.mxu0 %v5649
        %v6855 = vpop.f32.mrf.mxu0
        %v6856 = vpop.f32.mrf.mxu0
        %v6857 = vpop.f32.mrf.mxu0
        %v6858 = vpop.f32.mrf.mxu0
        %6859 = vmatprep.mubr.bf16.mxu0 %v5719
        %6860 = vmatmul.mubr.bf16.gmra.mxu0 %v5651
        %v6861 = vpop.f32.mrf.mxu0
        %v6862 = vadd.f32 %v6753, %v6861
        %v6863 = vpop.f32.mrf.mxu0
        %v6864 = vpop.f32.mrf.mxu0
        %v6865 = vadd.f32 %v6756, %v6864
        %v6866 = vpop.f32.mrf.mxu0
        %6867 = vmatprep.mubr.bf16.mxu0 %v5720
        %6868 = vmatmul.mubr.bf16.gmra.mxu0 %v5653
        %v6869 = vpop.f32.mrf.mxu0
        %v6870 = vadd.f32 %v6761, %v6869
        %v6871 = vpop.f32.mrf.mxu0
        %v6872 = vpop.f32.mrf.mxu0
        %v6873 = vadd.f32 %v6764, %v6872
        %v6874 = vpop.f32.mrf.mxu0
        %6875 = vmatprep.mubr.bf16.mxu0 %v5721
        %6876 = vmatmul.mubr.bf16.gmra.mxu0 %v5655
        %v6877 = vpop.f32.mrf.mxu0
        %v6878 = vadd.f32 %v6769, %v6877
        %v6879 = vpop.f32.mrf.mxu0
        %v6880 = vpop.f32.mrf.mxu0
        %v6881 = vadd.f32 %v6772, %v6880
        %v6882 = vpop.f32.mrf.mxu0
        %6883 = vmatprep.mubr.bf16.mxu0 %v5722
        %6884 = vmatmul.mubr.bf16.gmra.mxu0 %v5657
        %v6885 = vpop.f32.mrf.mxu0
        %v6886 = vadd.f32 %v6777, %v6885
        %v6887 = vpop.f32.mrf.mxu0
        %v6888 = vpop.f32.mrf.mxu0
        %v6889 = vadd.f32 %v6780, %v6888
        %v6890 = vpop.f32.mrf.mxu0
        %6891 = vmatprep.mubr.bf16.mxu0 %v5723
        %6892 = vmatmul.mubr.bf16.gmra.mxu0 %v5659
        %v6893 = vpop.f32.mrf.mxu0
        %v6894 = vadd.f32 %v6785, %v6893
        %v6895 = vpop.f32.mrf.mxu0
        %v6896 = vpop.f32.mrf.mxu0
        %v6897 = vadd.f32 %v6788, %v6896
        %v6898 = vpop.f32.mrf.mxu0
        %6899 = vmatprep.mubr.bf16.mxu0 %v5724
        %6900 = vmatmul.mubr.bf16.gmra.mxu0 %v5661
        %v6901 = vpop.f32.mrf.mxu0
        %v6902 = vadd.f32 %v6793, %v6901
        %v6903 = vpop.f32.mrf.mxu0
        %v6904 = vpop.f32.mrf.mxu0
        %v6905 = vadd.f32 %v6796, %v6904
        %v6906 = vpop.f32.mrf.mxu0
        %6907 = vmatprep.mubr.bf16.mxu0 %v5725
        %6908 = vmatmul.mubr.bf16.gmra.mxu0 %v5663
        %v6909 = vpop.f32.mrf.mxu0
        %v6910 = vadd.f32 %v6801, %v6909
        %v6911 = vpop.f32.mrf.mxu0
        %v6912 = vpop.f32.mrf.mxu0
        %v6913 = vadd.f32 %v6804, %v6912
        %v6914 = vpop.f32.mrf.mxu0
        %6915 = vmatprep.mubr.bf16.mxu0 %v5726
        %6916 = vmatmul.mubr.bf16.gmra.mxu0 %v5665
        %v6917 = vpop.f32.mrf.mxu0
        %v6918 = vadd.f32 %v6809, %v6917
        %v6919 = vpop.f32.mrf.mxu0
        %v6920 = vpop.f32.mrf.mxu0
        %v6921 = vadd.f32 %v6812, %v6920
        %v6922 = vpop.f32.mrf.mxu0
        %6923 = vmatprep.mubr.bf16.mxu0 %v5727
        %6924 = vmatmul.mubr.bf16.gmra.mxu0 %v5667
        %v6925 = vpop.f32.mrf.mxu0
        %v6926 = vpop.f32.mrf.mxu0
        %v6927 = vpop.f32.mrf.mxu0
        %v6928 = vpop.f32.mrf.mxu0
        %6929 = vdwg.mxu0
        %6930 = vmatprep.subr.bf16.mxu0 0
        %6931 = vmatpush1.bf16.msra.mxu0 %v6607
        %6932 = vmatprep.subr.bf16.mxu0 0
        %6933 = vmatpush1.bf16.msra.mxu0 %v6606
        %6934 = vmatprep.subr.bf16.mxu0 0
        %6935 = vmatpush1.bf16.msra.mxu0 %v6605
        %6936 = vmatprep.subr.bf16.mxu0 0
        %6937 = vmatpush1.bf16.msra.mxu0 %v6604
        %6938 = vmatprep.subr.bf16.mxu0 0
        %6939 = vmatpush1.bf16.msra.mxu0 %v6603
        %6940 = vmatprep.subr.bf16.mxu0 0
        %6941 = vmatpush1.bf16.msra.mxu0 %v6602
        %6942 = vmatprep.subr.bf16.mxu0 0
        %6943 = vmatpush1.bf16.msra.mxu0 %v6601
        %6944 = vmatprep.subr.bf16.mxu0 0
        %6945 = vmatpush1.bf16.msra.mxu0 %v6600
        %6946 = vmatprep.subr.bf16.mxu0 0
        %6947 = vmatpush2.bf16.msra.mxu0 %v6615
        %6948 = vmatprep.subr.bf16.mxu0 0
        %6949 = vmatpush2.bf16.msra.mxu0 %v6614
        %6950 = vmatprep.subr.bf16.mxu0 0
        %6951 = vmatpush2.bf16.msra.mxu0 %v6613
        %6952 = vmatprep.subr.bf16.mxu0 0
        %6953 = vmatpush2.bf16.msra.mxu0 %v6612
        %6954 = vmatprep.subr.bf16.mxu0 0
        %6955 = vmatpush2.bf16.msra.mxu0 %v6611
        %6956 = vmatprep.subr.bf16.mxu0 0
        %6957 = vmatpush2.bf16.msra.mxu0 %v6610
        %6958 = vmatprep.subr.bf16.mxu0 0
        %6959 = vmatpush2.bf16.msra.mxu0 %v6609
        %6960 = vmatprep.subr.bf16.mxu0 0
        %6961 = vmatpush2.bf16.msra.mxu0 %v6608
        %6962 = vmatprep.mubr.bf16.mxu0 %v5940
        %6963 = vmatmul.mubr.bf16.gmra.mxu0 %v5802
        %v6964 = vpop.f32.mrf.mxu0
        %v6965 = vpop.f32.mrf.mxu0
        %v6966 = vpop.f32.mrf.mxu0
        %v6967 = vpop.f32.mrf.mxu0
        %6968 = vmatprep.mubr.bf16.mxu0 %v5942
        %6969 = vmatmul.mubr.bf16.gmra.mxu0 %v5810
        %v6970 = vpop.f32.mrf.mxu0
        %v6971 = vadd.f32 %v6862, %v6970
        %v6972 = vpop.f32.mrf.mxu0
        %v6973 = vpop.f32.mrf.mxu0
        %v6974 = vadd.f32 %v6865, %v6973
        %v6975 = vpop.f32.mrf.mxu0
        %6976 = vmatprep.mubr.bf16.mxu0 %v5944
        %6977 = vmatmul.mubr.bf16.gmra.mxu0 %v5818
        %v6978 = vpop.f32.mrf.mxu0
        %v6979 = vadd.f32 %v6870, %v6978
        %v6980 = vpop.f32.mrf.mxu0
        %v6981 = vpop.f32.mrf.mxu0
        %v6982 = vadd.f32 %v6873, %v6981
        %v6983 = vpop.f32.mrf.mxu0
        %6984 = vmatprep.mubr.bf16.mxu0 %v5946
        %6985 = vmatmul.mubr.bf16.gmra.mxu0 %v5826
        %v6986 = vpop.f32.mrf.mxu0
        %v6987 = vadd.f32 %v6878, %v6986
        %v6988 = vpop.f32.mrf.mxu0
        %v6989 = vpop.f32.mrf.mxu0
        %v6990 = vadd.f32 %v6881, %v6989
        %v6991 = vpop.f32.mrf.mxu0
        %6992 = vmatprep.mubr.bf16.mxu0 %v5948
        %6993 = vmatmul.mubr.bf16.gmra.mxu0 %v5834
        %v6994 = vpop.f32.mrf.mxu0
        %v6995 = vadd.f32 %v6886, %v6994
        %v6996 = vpop.f32.mrf.mxu0
        %v6997 = vpop.f32.mrf.mxu0
        %v6998 = vadd.f32 %v6889, %v6997
        %v6999 = vpop.f32.mrf.mxu0
        %7000 = vmatprep.mubr.bf16.mxu0 %v5950
        %7001 = vmatmul.mubr.bf16.gmra.mxu0 %v5842
        %v7002 = vpop.f32.mrf.mxu0
        %v7003 = vadd.f32 %v6894, %v7002
        %v7004 = vpop.f32.mrf.mxu0
        %v7005 = vpop.f32.mrf.mxu0
        %v7006 = vadd.f32 %v6897, %v7005
        %v7007 = vpop.f32.mrf.mxu0
        %7008 = vmatprep.mubr.bf16.mxu0 %v5952
        %7009 = vmatmul.mubr.bf16.gmra.mxu0 %v5850
        %v7010 = vpop.f32.mrf.mxu0
        %v7011 = vadd.f32 %v6902, %v7010
        %v7012 = vpop.f32.mrf.mxu0
        %v7013 = vpop.f32.mrf.mxu0
        %v7014 = vadd.f32 %v6905, %v7013
        %v7015 = vpop.f32.mrf.mxu0
        %7016 = vmatprep.mubr.bf16.mxu0 %v5954
        %7017 = vmatmul.mubr.bf16.gmra.mxu0 %v5858
        %v7018 = vpop.f32.mrf.mxu0
        %v7019 = vadd.f32 %v6910, %v7018
        %v7020 = vpop.f32.mrf.mxu0
        %v7021 = vpop.f32.mrf.mxu0
        %v7022 = vadd.f32 %v6913, %v7021
        %v7023 = vpop.f32.mrf.mxu0
        %7024 = vmatprep.mubr.bf16.mxu0 %v5956
        %7025 = vmatmul.mubr.bf16.gmra.mxu0 %v5866
        %v7026 = vpop.f32.mrf.mxu0
        %v7027 = vadd.f32 %v6918, %v7026
        %v7028 = vpop.f32.mrf.mxu0
        %v7029 = vpop.f32.mrf.mxu0
        %v7030 = vadd.f32 %v6921, %v7029
        %v7031 = vpop.f32.mrf.mxu0
        %7032 = vmatprep.mubr.bf16.mxu0 %v5958
        %7033 = vmatmul.mubr.bf16.gmra.mxu0 %v5874
        %v7034 = vpop.f32.mrf.mxu0
        %v7035 = vpop.f32.mrf.mxu0
        %v7036 = vpop.f32.mrf.mxu0
        %v7037 = vpop.f32.mrf.mxu0
        %7038 = vdwg.mxu0
        %7039 = vmatprep.subr.bf16.mxu0 0
        %7040 = vmatpush1.bf16.msra.mxu0 %v6623
        %7041 = vmatprep.subr.bf16.mxu0 0
        %7042 = vmatpush1.bf16.msra.mxu0 %v6622
        %7043 = vmatprep.subr.bf16.mxu0 0
        %7044 = vmatpush1.bf16.msra.mxu0 %v6621
        %7045 = vmatprep.subr.bf16.mxu0 0
        %7046 = vmatpush1.bf16.msra.mxu0 %v6620
        %7047 = vmatprep.subr.bf16.mxu0 0
        %7048 = vmatpush1.bf16.msra.mxu0 %v6619
        %7049 = vmatprep.subr.bf16.mxu0 0
        %7050 = vmatpush1.bf16.msra.mxu0 %v6618
        %7051 = vmatprep.subr.bf16.mxu0 0
        %7052 = vmatpush1.bf16.msra.mxu0 %v6617
        %7053 = vmatprep.subr.bf16.mxu0 0
        %7054 = vmatpush1.bf16.msra.mxu0 %v6616
        %7055 = vmatprep.subr.bf16.mxu0 0
        %7056 = vmatpush2.bf16.msra.mxu0 %v6631
        %7057 = vmatprep.subr.bf16.mxu0 0
        %7058 = vmatpush2.bf16.msra.mxu0 %v6630
        %7059 = vmatprep.subr.bf16.mxu0 0
        %7060 = vmatpush2.bf16.msra.mxu0 %v6629
        %7061 = vmatprep.subr.bf16.mxu0 0
        %7062 = vmatpush2.bf16.msra.mxu0 %v6628
        %7063 = vmatprep.subr.bf16.mxu0 0
        %7064 = vmatpush2.bf16.msra.mxu0 %v6627
        %7065 = vmatprep.subr.bf16.mxu0 0
        %7066 = vmatpush2.bf16.msra.mxu0 %v6626
        %7067 = vmatprep.subr.bf16.mxu0 0
        %7068 = vmatpush2.bf16.msra.mxu0 %v6625
        %7069 = vmatprep.subr.bf16.mxu0 0
        %7070 = vmatpush2.bf16.msra.mxu0 %v6624
        %7071 = vmatprep.mubr.bf16.mxu0 %v5810
        %7072 = vmatmul.mubr.bf16.gmra.mxu0 %v6009
        %v7073 = vpop.f32.mrf.mxu0
        %v7074 = vpop.f32.mrf.mxu0
        %v7075 = vpop.f32.mrf.mxu0
        %v7076 = vpop.f32.mrf.mxu0
        %7077 = vmatprep.mubr.bf16.mxu0 %v5818
        %7078 = vmatmul.mubr.bf16.gmra.mxu0 %v6010
        %v7079 = vpop.f32.mrf.mxu0
        %v7080 = vadd.f32 %v6971, %v7079
        %v7081 = vpop.f32.mrf.mxu0
        %v7082 = vpop.f32.mrf.mxu0
        %v7083 = vadd.f32 %v6974, %v7082
        %v7084 = vpop.f32.mrf.mxu0
        %7085 = vmatprep.mubr.bf16.mxu0 %v5826
        %7086 = vmatmul.mubr.bf16.gmra.mxu0 %v6011
        %v7087 = vpop.f32.mrf.mxu0
        %v7088 = vadd.f32 %v6979, %v7087
        %v7089 = vpop.f32.mrf.mxu0
        %v7090 = vpop.f32.mrf.mxu0
        %v7091 = vadd.f32 %v6982, %v7090
        %v7092 = vpop.f32.mrf.mxu0
        %7093 = vmatprep.mubr.bf16.mxu0 %v5834
        %7094 = vmatmul.mubr.bf16.gmra.mxu0 %v6012
        %v7095 = vpop.f32.mrf.mxu0
        %v7096 = vadd.f32 %v6987, %v7095
        %v7097 = vpop.f32.mrf.mxu0
        %v7098 = vpop.f32.mrf.mxu0
        %v7099 = vadd.f32 %v6990, %v7098
        %v7100 = vpop.f32.mrf.mxu0
        %7101 = vmatprep.mubr.bf16.mxu0 %v5842
        %7102 = vmatmul.mubr.bf16.gmra.mxu0 %v6013
        %v7103 = vpop.f32.mrf.mxu0
        %v7104 = vadd.f32 %v6995, %v7103
        %v7105 = vpop.f32.mrf.mxu0
        %v7106 = vpop.f32.mrf.mxu0
        %v7107 = vadd.f32 %v6998, %v7106
        %v7108 = vpop.f32.mrf.mxu0
        %7109 = vmatprep.mubr.bf16.mxu0 %v5850
        %7110 = vmatmul.mubr.bf16.gmra.mxu0 %v6014
        %v7111 = vpop.f32.mrf.mxu0
        %v7112 = vadd.f32 %v7003, %v7111
        %v7113 = vpop.f32.mrf.mxu0
        %v7114 = vpop.f32.mrf.mxu0
        %v7115 = vadd.f32 %v7006, %v7114
        %v7116 = vpop.f32.mrf.mxu0
        %7117 = vmatprep.mubr.bf16.mxu0 %v5858
        %7118 = vmatmul.mubr.bf16.gmra.mxu0 %v6015
        %v7119 = vpop.f32.mrf.mxu0
        %v7120 = vadd.f32 %v7011, %v7119
        %v7121 = vpop.f32.mrf.mxu0
        %v7122 = vpop.f32.mrf.mxu0
        %v7123 = vadd.f32 %v7014, %v7122
        %v7124 = vpop.f32.mrf.mxu0
        %7125 = vmatprep.mubr.bf16.mxu0 %v5866
        %7126 = vmatmul.mubr.bf16.gmra.mxu0 %v6016
        %v7127 = vpop.f32.mrf.mxu0
        %v7128 = vadd.f32 %v7019, %v7127
        %v7129 = vpop.f32.mrf.mxu0
        %v7130 = vpop.f32.mrf.mxu0
        %v7131 = vadd.f32 %v7022, %v7130
        %v7132 = vpop.f32.mrf.mxu0
        %7133 = vmatprep.mubr.bf16.mxu0 %v6041
        %7134 = vmatmul.mubr.bf16.gmra.mxu0 %v6017
        %v7135 = vpop.f32.mrf.mxu0
        %v7136 = vadd.f32 %v7027, %v7135
        %v7137 = vpop.f32.mrf.mxu0
        %v7138 = vpop.f32.mrf.mxu0
        %v7139 = vadd.f32 %v7030, %v7138
        %v7140 = vpop.f32.mrf.mxu0
        %7141 = vmatprep.mubr.bf16.mxu0 %v6049
        %7142 = vmatmul.mubr.bf16.gmra.mxu0 %v6018
        %v7143 = vpop.f32.mrf.mxu0
        %v7144 = vpop.f32.mrf.mxu0
        %v7145 = vpop.f32.mrf.mxu0
        %v7146 = vpop.f32.mrf.mxu0
        %7147 = vdwg.mxu0
        %7148 = vmatprep.subr.bf16.mxu0 0
        %7149 = vmatpush1.bf16.msra.mxu0 %v6639
        %7150 = vmatprep.subr.bf16.mxu0 0
        %7151 = vmatpush1.bf16.msra.mxu0 %v6638
        %7152 = vmatprep.subr.bf16.mxu0 0
        %7153 = vmatpush1.bf16.msra.mxu0 %v6637
        %7154 = vmatprep.subr.bf16.mxu0 0
        %7155 = vmatpush1.bf16.msra.mxu0 %v6636
        %7156 = vmatprep.subr.bf16.mxu0 0
        %7157 = vmatpush1.bf16.msra.mxu0 %v6635
        %7158 = vmatprep.subr.bf16.mxu0 0
        %7159 = vmatpush1.bf16.msra.mxu0 %v6634
        %7160 = vmatprep.subr.bf16.mxu0 0
        %7161 = vmatpush1.bf16.msra.mxu0 %v6633
        %7162 = vmatprep.subr.bf16.mxu0 0
        %7163 = vmatpush1.bf16.msra.mxu0 %v6632
        %7164 = vmatprep.subr.bf16.mxu0 0
        %7165 = vmatpush2.bf16.msra.mxu0 0
        %7166 = vmatprep.subr.bf16.mxu0 0
        %7167 = vmatpush2.bf16.msra.mxu0 0
        %7168 = vmatprep.subr.bf16.mxu0 0
        %7169 = vmatpush2.bf16.msra.mxu0 0
        %7170 = vmatprep.subr.bf16.mxu0 0
        %7171 = vmatpush2.bf16.msra.mxu0 0
        %7172 = vmatprep.subr.bf16.mxu0 0
        %7173 = vmatpush2.bf16.msra.mxu0 0
        %7174 = vmatprep.subr.bf16.mxu0 0
        %7175 = vmatpush2.bf16.msra.mxu0 0
        %7176 = vmatprep.subr.bf16.mxu0 0
        %7177 = vmatpush2.bf16.msra.mxu0 0
        %7178 = vmatprep.subr.bf16.mxu0 0
        %7179 = vmatpush2.bf16.msra.mxu0 0
        %7180 = vmatprep.mubr.bf16.mxu0 0
        %7181 = vmatmul.mubr.bf16.gmra.mxu0 %v6107
        %v7182 = vpop.f32.mrf.mxu0
        %v7183 = vpop.f32.mrf.mxu0
        %v7184 = vpop.f32.mrf.mxu0
        %v7185 = vpop.f32.mrf.mxu0
        %7186 = vmatprep.mubr.bf16.mxu0 0
        %7187 = vmatmul.mubr.bf16.gmra.mxu0 %v6109
        %v7188 = vpop.f32.mrf.mxu0
        %v7189 = vadd.f32 %v7080, %v7188
        %v7190 = vpop.f32.mrf.mxu0
        %v7191 = vpop.f32.mrf.mxu0
        %v7192 = vadd.f32 %v7083, %v7191
        %v7193 = vpop.f32.mrf.mxu0
        %7194 = vmatprep.mubr.bf16.mxu0 0
        %7195 = vmatmul.mubr.bf16.gmra.mxu0 %v6111
        %v7196 = vpop.f32.mrf.mxu0
        %v7197 = vadd.f32 %v7088, %v7196
        %v7198 = vpop.f32.mrf.mxu0
        %v7199 = vpop.f32.mrf.mxu0
        %v7200 = vadd.f32 %v7091, %v7199
        %v7201 = vpop.f32.mrf.mxu0
        %7202 = vmatprep.mubr.bf16.mxu0 0
        %7203 = vmatmul.mubr.bf16.gmra.mxu0 %v6113
        %v7204 = vpop.f32.mrf.mxu0
        %v7205 = vadd.f32 %v7096, %v7204
        %v7206 = vpop.f32.mrf.mxu0
        %v7207 = vpop.f32.mrf.mxu0
        %v7208 = vadd.f32 %v7099, %v7207
        %v7209 = vpop.f32.mrf.mxu0
        %7210 = vmatprep.mubr.bf16.mxu0 0
        %7211 = vmatmul.mubr.bf16.gmra.mxu0 %v6115
        %v7212 = vpop.f32.mrf.mxu0
        %v7213 = vadd.f32 %v7104, %v7212
        %v7214 = vpop.f32.mrf.mxu0
        %v7215 = vpop.f32.mrf.mxu0
        %v7216 = vadd.f32 %v7107, %v7215
        %v7217 = vpop.f32.mrf.mxu0
        %7218 = vmatprep.mubr.bf16.mxu0 0
        %7219 = vmatmul.mubr.bf16.gmra.mxu0 %v6117
        %v7220 = vpop.f32.mrf.mxu0
        %v7221 = vadd.f32 %v7112, %v7220
        %v7222 = vpop.f32.mrf.mxu0
        %v7223 = vpop.f32.mrf.mxu0
        %v7224 = vadd.f32 %v7115, %v7223
        %v7225 = vpop.f32.mrf.mxu0
        %7226 = vmatprep.mubr.bf16.mxu0 0
        %7227 = vmatmul.mubr.bf16.gmra.mxu0 %v6119
        %v7228 = vpop.f32.mrf.mxu0
        %v7229 = vadd.f32 %v7120, %v7228
        %v7230 = vpop.f32.mrf.mxu0
        %v7231 = vpop.f32.mrf.mxu0
        %v7232 = vadd.f32 %v7123, %v7231
        %v7233 = vpop.f32.mrf.mxu0
        %7234 = vmatprep.mubr.bf16.mxu0 0
        %7235 = vmatmul.mubr.bf16.gmra.mxu0 %v6121
        %v7236 = vpop.f32.mrf.mxu0
        %v7237 = vadd.f32 %v7128, %v7236
        %v7238 = vpop.f32.mrf.mxu0
        %v7239 = vpop.f32.mrf.mxu0
        %v7240 = vadd.f32 %v7131, %v7239
        %v7241 = vpop.f32.mrf.mxu0
        %7242 = vmatprep.mubr.bf16.mxu0 0
        %7243 = vmatmul.mubr.bf16.gmra.mxu0 %v6123
        %v7244 = vpop.f32.mrf.mxu0
        %v7245 = vadd.f32 %v7136, %v7244
        %v7246 = vpop.f32.mrf.mxu0
        %v7247 = vpop.f32.mrf.mxu0
        %v7248 = vadd.f32 %v7139, %v7247
        %v7249 = vpop.f32.mrf.mxu0
        %7250 = vmatprep.mubr.bf16.mxu0 0
        %7251 = vmatmul.mubr.bf16.gmra.mxu0 %v6125
        %v7252 = vpop.f32.mrf.mxu0
        %v7253 = vpop.f32.mrf.mxu0
        %v7254 = vpop.f32.mrf.mxu0
        %v7255 = vpop.f32.mrf.mxu0
        %7256 = vdwg.mxu0
        %v7257 = vld [vmem:[%s17] sm:$0x1]
        %v7259 = vlaneseq
        %v7260 = vshrl.u32 %v7259, 7
        %v7261 = vsub.s32 0, %v7260
        %v7262 = vrot.slane %v7257, %v7261
        %v7264 = vmul.f32 %v7189, %v7262
        %v7265 = vmul.f32 %v7192, %v7262
        %v7266 = vmul.f32 %v7197, %v7262
        %v7267 = vmul.f32 %v7200, %v7262
        %v7268 = vmul.f32 %v7205, %v7262
        %v7269 = vmul.f32 %v7208, %v7262
        %v7270 = vmul.f32 %v7213, %v7262
        %v7271 = vmul.f32 %v7216, %v7262
        %v7272 = vmul.f32 %v7221, %v7262
        %v7273 = vmul.f32 %v7224, %v7262
        %v7274 = vmul.f32 %v7229, %v7262
        %v7275 = vmul.f32 %v7232, %v7262
        %v7276 = vmul.f32 %v7237, %v7262
        %v7277 = vmul.f32 %v7240, %v7262
        %v7278 = vmul.f32 %v7245, %v7262
        %v7279 = vmul.f32 %v7248, %v7262
        %v7280 = vld [vmem:[%s18] sm:$0x1]
        %v7282 = vlaneseq
        %v7283 = vshrl.u32 %v7282, 7
        %v7284 = vsub.s32 0, %v7283
        %v7285 = vrot.slane %v7280, %v7284
        %v7287 = vadd.f32 %v7264, %v7285
        %v7288 = vadd.f32 %v7265, %v7285
        %v7289 = vadd.f32 %v7266, %v7285
        %v7290 = vadd.f32 %v7267, %v7285
        %v7291 = vadd.f32 %v7268, %v7285
        %v7292 = vadd.f32 %v7269, %v7285
        %v7293 = vadd.f32 %v7270, %v7285
        %v7294 = vadd.f32 %v7271, %v7285
        %v7295 = vadd.f32 %v7272, %v7285
        %v7296 = vadd.f32 %v7273, %v7285
        %v7297 = vadd.f32 %v7274, %v7285
        %v7298 = vadd.f32 %v7275, %v7285
        %v7299 = vadd.f32 %v7276, %v7285
        %v7300 = vadd.f32 %v7277, %v7285
        %v7301 = vadd.f32 %v7278, %v7285
        %v7302 = vadd.f32 %v7279, %v7285
        %v7303 = vxor.u32 %v7287, 2147483648
        %v7304 = vxor.u32 %v7288, 2147483648
        %v7305 = vxor.u32 %v7289, 2147483648
        %v7306 = vxor.u32 %v7290, 2147483648
        %v7307 = vxor.u32 %v7291, 2147483648
        %v7308 = vxor.u32 %v7292, 2147483648
        %v7309 = vxor.u32 %v7293, 2147483648
        %v7310 = vxor.u32 %v7294, 2147483648
        %v7311 = vxor.u32 %v7295, 2147483648
        %v7312 = vxor.u32 %v7296, 2147483648
        %v7313 = vxor.u32 %v7297, 2147483648
        %v7314 = vxor.u32 %v7298, 2147483648
        %v7315 = vxor.u32 %v7299, 2147483648
        %v7316 = vxor.u32 %v7300, 2147483648
        %v7317 = vxor.u32 %v7301, 2147483648
        %v7318 = vxor.u32 %v7302, 2147483648
        %v7319 = vmul.f32 %v7303, 1.442695
        %v7320 = vpow.pop %v7319
        %v7321 = vmul.f32 %v7304, 1.442695
        %v7322 = vpow.pop %v7321
        %v7323 = vmul.f32 %v7305, 1.442695
        %v7324 = vpow.pop %v7323
        %v7325 = vmul.f32 %v7306, 1.442695
        %v7326 = vpow.pop %v7325
        %v7327 = vmul.f32 %v7307, 1.442695
        %v7328 = vpow.pop %v7327
        %v7329 = vmul.f32 %v7308, 1.442695
        %v7330 = vpow.pop %v7329
        %v7331 = vmul.f32 %v7309, 1.442695
        %v7332 = vpow.pop %v7331
        %v7333 = vmul.f32 %v7310, 1.442695
        %v7334 = vpow.pop %v7333
        %v7335 = vmul.f32 %v7311, 1.442695
        %v7336 = vpow.pop %v7335
        %v7337 = vmul.f32 %v7312, 1.442695
        %v7338 = vpow.pop %v7337
        %v7339 = vmul.f32 %v7313, 1.442695
        %v7340 = vpow.pop %v7339
        %v7341 = vmul.f32 %v7314, 1.442695
        %v7342 = vpow.pop %v7341
        %v7343 = vmul.f32 %v7315, 1.442695
        %v7344 = vpow.pop %v7343
        %v7345 = vmul.f32 %v7316, 1.442695
        %v7346 = vpow.pop %v7345
        %v7347 = vmul.f32 %v7317, 1.442695
        %v7348 = vpow.pop %v7347
        %v7349 = vmul.f32 %v7318, 1.442695
        %v7350 = vpow.pop %v7349
        %v7351 = vadd.f32 %v7320, 1.0
        %v7352 = vadd.f32 %v7322, 1.0
        %v7353 = vadd.f32 %v7324, 1.0
        %v7354 = vadd.f32 %v7326, 1.0
        %v7355 = vadd.f32 %v7328, 1.0
        %v7356 = vadd.f32 %v7330, 1.0
        %v7357 = vadd.f32 %v7332, 1.0
        %v7358 = vadd.f32 %v7334, 1.0
        %v7359 = vadd.f32 %v7336, 1.0
        %v7360 = vadd.f32 %v7338, 1.0
        %v7361 = vadd.f32 %v7340, 1.0
        %v7362 = vadd.f32 %v7342, 1.0
        %v7363 = vadd.f32 %v7344, 1.0
        %v7364 = vadd.f32 %v7346, 1.0
        %v7365 = vadd.f32 %v7348, 1.0
        %v7366 = vadd.f32 %v7350, 1.0
        %v7367 = vrcp.pop %v7351
        %v7368 = vmul.f32 1.0, %v7367
        %v7369 = vrcp.pop %v7352
        %v7370 = vmul.f32 1.0, %v7369
        %v7371 = vrcp.pop %v7353
        %v7372 = vmul.f32 1.0, %v7371
        %v7373 = vrcp.pop %v7354
        %v7374 = vmul.f32 1.0, %v7373
        %v7375 = vrcp.pop %v7355
        %v7376 = vmul.f32 1.0, %v7375
        %v7377 = vrcp.pop %v7356
        %v7378 = vmul.f32 1.0, %v7377
        %v7379 = vrcp.pop %v7357
        %v7380 = vmul.f32 1.0, %v7379
        %v7381 = vrcp.pop %v7358
        %v7382 = vmul.f32 1.0, %v7381
        %v7383 = vrcp.pop %v7359
        %v7384 = vmul.f32 1.0, %v7383
        %v7385 = vrcp.pop %v7360
        %v7386 = vmul.f32 1.0, %v7385
        %v7387 = vrcp.pop %v7361
        %v7388 = vmul.f32 1.0, %v7387
        %v7389 = vrcp.pop %v7362
        %v7390 = vmul.f32 1.0, %v7389
        %v7391 = vrcp.pop %v7363
        %v7392 = vmul.f32 1.0, %v7391
        %v7393 = vrcp.pop %v7364
        %v7394 = vmul.f32 1.0, %v7393
        %v7395 = vrcp.pop %v7365
        %v7396 = vmul.f32 1.0, %v7395
        %v7397 = vrcp.pop %v7366
        %v7398 = vmul.f32 1.0, %v7397
        %v7399 = vmul.f32 %v7287, %v7368
        %v7400 = vmul.f32 %v7288, %v7370
        %v7401 = vmul.f32 %v7289, %v7372
        %v7402 = vmul.f32 %v7290, %v7374
        %v7403 = vmul.f32 %v7291, %v7376
        %v7404 = vmul.f32 %v7292, %v7378
        %v7405 = vmul.f32 %v7293, %v7380
        %v7406 = vmul.f32 %v7294, %v7382
        %v7407 = vmul.f32 %v7295, %v7384
        %v7408 = vmul.f32 %v7296, %v7386
        %v7409 = vmul.f32 %v7297, %v7388
        %v7410 = vmul.f32 %v7298, %v7390
        %v7411 = vmul.f32 %v7299, %v7392
        %v7412 = vmul.f32 %v7300, %v7394
        %v7413 = vmul.f32 %v7301, %v7396
        %v7414 = vmul.f32 %v7302, %v7398
        %v7415 = vpack.c.bf16 %v7400, %v7399
        %v7416 = vpack.c.bf16 %v7402, %v7401
        %v7417 = vpack.c.bf16 %v7404, %v7403
        %v7418 = vpack.c.bf16 %v7406, %v7405
        %v7419 = vpack.c.bf16 %v7408, %v7407
        %v7420 = vpack.c.bf16 %v7410, %v7409
        %v7421 = vpack.c.bf16 %v7412, %v7411
        %v7422 = vpack.c.bf16 %v7414, %v7413
        %v7423 = vadd.bf16 %v3684, %v7415
        %v7424 = vadd.bf16 %v3685, %v7416
        %v7425 = vadd.bf16 %v3686, %v7417
        %v7426 = vadd.bf16 %v3687, %v7418
        %v7427 = vadd.bf16 %v3688, %v7419
        %v7428 = vadd.bf16 %v3689, %v7420
        %v7429 = vadd.bf16 %v3690, %v7421
        %v7430 = vadd.bf16 %v3691, %v7422
        %v7431 = vld [vmem:[%s19] sm:$0xf]
        %v7432 = vld [vmem:[%s19 + $0x4] sm:$0xf]
        %v7433 = vld [vmem:[%s19 + $0x8] sm:$0xf]
        %v7434 = vld [vmem:[%s19 + $0xc] sm:$0xf]
        %v7435 = vld [vmem:[%s19 + $0x10] sm:$0xf]
        %v7436 = vld [vmem:[%s19 + $0x14] sm:$0xf]
        %v7437 = vld [vmem:[%s19 + $0x18] sm:$0xf]
        %v7438 = vld [vmem:[%s19 + $0x1c] sm:$0xf]
        %v7439 = vld [vmem:[%s19 + $0x20] sm:$0xf]
        %v7440 = vld [vmem:[%s19 + $0x24] sm:$0xf]
        %v7441 = vld [vmem:[%s19 + $0x28] sm:$0xf]
        %v7442 = vld [vmem:[%s19 + $0x2c] sm:$0xf]
        %v7443 = vld [vmem:[%s19 + $0x30] sm:$0xf]
        %v7444 = vld [vmem:[%s19 + $0x34] sm:$0xf]
        %v7445 = vld [vmem:[%s19 + $0x38] sm:$0xf]
        %v7446 = vld [vmem:[%s19 + $0x3c] sm:$0xf]
        %v7447 = vld [vmem:[%s20] sm:$0xf]
        %v7448 = vld [vmem:[%s20 + $0x4] sm:$0xf]
        %v7449 = vld [vmem:[%s20 + $0x8] sm:$0xf]
        %v7450 = vld [vmem:[%s20 + $0xc] sm:$0xf]
        %v7451 = vld [vmem:[%s20 + $0x10] sm:$0xf]
        %v7452 = vld [vmem:[%s20 + $0x14] sm:$0xf]
        %v7453 = vld [vmem:[%s20 + $0x18] sm:$0xf]
        %v7454 = vld [vmem:[%s20 + $0x1c] sm:$0xf]
        %v7455 = vld [vmem:[%s20 + $0x20] sm:$0xf]
        %v7456 = vld [vmem:[%s20 + $0x24] sm:$0xf]
        %v7457 = vld [vmem:[%s20 + $0x28] sm:$0xf]
        %v7458 = vld [vmem:[%s20 + $0x2c] sm:$0xf]
        %v7459 = vld [vmem:[%s20 + $0x30] sm:$0xf]
        %v7460 = vld [vmem:[%s20 + $0x34] sm:$0xf]
        %v7461 = vld [vmem:[%s20 + $0x38] sm:$0xf]
        %v7462 = vld [vmem:[%s20 + $0x3c] sm:$0xf]
        %v7479 = vunpack.c.l.b16 %v7447
        %v7480 = vunpack.c.l.b16 %v7448
        %v7481 = vunpack.c.l.b16 %v7449
        %v7482 = vunpack.c.l.b16 %v7450
        %v7483 = vunpack.c.l.b16 %v7451
        %v7484 = vunpack.c.l.b16 %v7452
        %v7485 = vunpack.c.l.b16 %v7453
        %v7486 = vunpack.c.l.b16 %v7454
        %v7487 = vunpack.c.l.b16 %v7455
        %v7488 = vunpack.c.l.b16 %v7456
        %v7489 = vunpack.c.l.b16 %v7457
        %v7490 = vunpack.c.l.b16 %v7458
        %v7491 = vunpack.c.l.b16 %v7459
        %v7492 = vunpack.c.l.b16 %v7460
        %v7493 = vunpack.c.l.b16 %v7461
        %v7494 = vunpack.c.l.b16 %v7462
        %v7495 = vpack.c.b16 %v7480, %v7479
        %v7496 = vpack.c.b16 %v7482, %v7481
        %v7497 = vpack.c.b16 %v7484, %v7483
        %v7498 = vpack.c.b16 %v7486, %v7485
        %v7499 = vpack.c.b16 %v7488, %v7487
        %v7500 = vpack.c.b16 %v7490, %v7489
        %v7501 = vpack.c.b16 %v7492, %v7491
        %v7502 = vpack.c.b16 %v7494, %v7493
        %7511 = vmatprep.subr.bf16.mxu0 0
        %7512 = vmatpush1.bf16.msra.mxu0 %v7502
        %7513 = vmatprep.subr.bf16.mxu0 0
        %7514 = vmatpush1.bf16.msra.mxu0 %v7501
        %7515 = vmatprep.subr.bf16.mxu0 0
        %7516 = vmatpush1.bf16.msra.mxu0 %v7500
        %7517 = vmatprep.subr.bf16.mxu0 0
        %7518 = vmatpush1.bf16.msra.mxu0 %v7499
        %7519 = vmatprep.subr.bf16.mxu0 0
        %7520 = vmatpush1.bf16.msra.mxu0 %v7498
        %7521 = vmatprep.subr.bf16.mxu0 0
        %7522 = vmatpush1.bf16.msra.mxu0 %v7497
        %7523 = vmatprep.subr.bf16.mxu0 0
        %7524 = vmatpush1.bf16.msra.mxu0 %v7496
        %7525 = vmatprep.subr.bf16.mxu0 0
        %7526 = vmatpush1.bf16.msra.mxu0 %v7495
        %7527 = vmatprep.subr.bf16.mxu0 0
        %7528 = vmatpush2.bf16.msra.mxu0 0
        %7529 = vmatprep.subr.bf16.mxu0 0
        %7530 = vmatpush2.bf16.msra.mxu0 0
        %7531 = vmatprep.subr.bf16.mxu0 0
        %7532 = vmatpush2.bf16.msra.mxu0 0
        %7533 = vmatprep.subr.bf16.mxu0 0
        %7534 = vmatpush2.bf16.msra.mxu0 0
        %7535 = vmatprep.subr.bf16.mxu0 0
        %7536 = vmatpush2.bf16.msra.mxu0 0
        %7537 = vmatprep.subr.bf16.mxu0 0
        %7538 = vmatpush2.bf16.msra.mxu0 0
        %7539 = vmatprep.subr.bf16.mxu0 0
        %7540 = vmatpush2.bf16.msra.mxu0 0
        %7541 = vmatprep.subr.bf16.mxu0 0
        %7542 = vmatpush2.bf16.msra.mxu0 0
        %7543 = vmatprep.mubr.bf16.mxu0 0
        %7544 = vmatmul.mubr.bf16.gmra.mxu0 %v4012
        %v7545 = vpop.f32.mrf.mxu0
        %v7546 = vadd.f32 0.0, %v7545
        %v7547 = vpop.f32.mrf.mxu0
        %v7548 = vpop.f32.mrf.mxu0
        %v7549 = vadd.f32 0.0, %v7548
        %v7550 = vpop.f32.mrf.mxu0
        %7551 = vmatprep.mubr.bf16.mxu0 0
        %7552 = vmatmul.mubr.bf16.gmra.mxu0 %v4013
        %v7553 = vpop.f32.mrf.mxu0
        %v7554 = vadd.f32 0.0, %v7553
        %v7555 = vpop.f32.mrf.mxu0
        %v7556 = vpop.f32.mrf.mxu0
        %v7557 = vadd.f32 0.0, %v7556
        %v7558 = vpop.f32.mrf.mxu0
        %7559 = vmatprep.mubr.bf16.mxu0 0
        %7560 = vmatmul.mubr.bf16.gmra.mxu0 %v4014
        %v7561 = vpop.f32.mrf.mxu0
        %v7562 = vadd.f32 0.0, %v7561
        %v7563 = vpop.f32.mrf.mxu0
        %v7564 = vpop.f32.mrf.mxu0
        %v7565 = vadd.f32 0.0, %v7564
        %v7566 = vpop.f32.mrf.mxu0
        %7567 = vmatprep.mubr.bf16.mxu0 0
        %7568 = vmatmul.mubr.bf16.gmra.mxu0 %v4015
        %v7569 = vpop.f32.mrf.mxu0
        %v7570 = vadd.f32 0.0, %v7569
        %v7571 = vpop.f32.mrf.mxu0
        %v7572 = vpop.f32.mrf.mxu0
        %v7573 = vadd.f32 0.0, %v7572
        %v7574 = vpop.f32.mrf.mxu0
        %7575 = vmatprep.mubr.bf16.mxu0 0
        %7576 = vmatmul.mubr.bf16.gmra.mxu0 %v4016
        %v7577 = vpop.f32.mrf.mxu0
        %v7578 = vadd.f32 0.0, %v7577
        %v7579 = vpop.f32.mrf.mxu0
        %v7580 = vpop.f32.mrf.mxu0
        %v7581 = vadd.f32 0.0, %v7580
        %v7582 = vpop.f32.mrf.mxu0
        %7583 = vmatprep.mubr.bf16.mxu0 0
        %7584 = vmatmul.mubr.bf16.gmra.mxu0 %v4017
        %v7585 = vpop.f32.mrf.mxu0
        %v7586 = vadd.f32 0.0, %v7585
        %v7587 = vpop.f32.mrf.mxu0
        %v7588 = vpop.f32.mrf.mxu0
        %v7589 = vadd.f32 0.0, %v7588
        %v7590 = vpop.f32.mrf.mxu0
        %7591 = vmatprep.mubr.bf16.mxu0 0
        %7592 = vmatmul.mubr.bf16.gmra.mxu0 %v4018
        %v7593 = vpop.f32.mrf.mxu0
        %v7594 = vadd.f32 0.0, %v7593
        %v7595 = vpop.f32.mrf.mxu0
        %v7596 = vpop.f32.mrf.mxu0
        %v7597 = vadd.f32 0.0, %v7596
        %v7598 = vpop.f32.mrf.mxu0
        %7599 = vmatprep.mubr.bf16.mxu0 0
        %7600 = vmatmul.mubr.bf16.gmra.mxu0 %v4019
        %v7601 = vpop.f32.mrf.mxu0
        %v7602 = vadd.f32 0.0, %v7601
        %v7603 = vpop.f32.mrf.mxu0
        %v7604 = vpop.f32.mrf.mxu0
        %v7605 = vadd.f32 0.0, %v7604
        %v7606 = vpop.f32.mrf.mxu0
        %7607 = vdwg.mxu0
        %v7624 = vunpack.c.l.b16 %v7431
        %v7625 = vunpack.c.l.b16 %v7432
        %v7626 = vunpack.c.l.b16 %v7433
        %v7627 = vunpack.c.l.b16 %v7434
        %v7628 = vunpack.c.l.b16 %v7435
        %v7629 = vunpack.c.l.b16 %v7436
        %v7630 = vunpack.c.l.b16 %v7437
        %v7631 = vunpack.c.l.b16 %v7438
        %v7632 = vunpack.c.l.b16 %v7439
        %v7633 = vunpack.c.l.b16 %v7440
        %v7634 = vunpack.c.l.b16 %v7441
        %v7635 = vunpack.c.l.b16 %v7442
        %v7636 = vunpack.c.l.b16 %v7443
        %v7637 = vunpack.c.l.b16 %v7444
        %v7638 = vunpack.c.l.b16 %v7445
        %v7639 = vunpack.c.l.b16 %v7446
        %v7640 = vpack.c.b16 %v7625, %v7624
        %v7641 = vpack.c.b16 %v7627, %v7626
        %v7642 = vpack.c.b16 %v7629, %v7628
        %v7643 = vpack.c.b16 %v7631, %v7630
        %v7644 = vpack.c.b16 %v7633, %v7632
        %v7645 = vpack.c.b16 %v7635, %v7634
        %v7646 = vpack.c.b16 %v7637, %v7636
        %v7647 = vpack.c.b16 %v7639, %v7638
        %7656 = vmatprep.subr.bf16.mxu0 0
        %7657 = vmatpush1.bf16.msra.mxu0 %v7647
        %7658 = vmatprep.subr.bf16.mxu0 0
        %7659 = vmatpush1.bf16.msra.mxu0 %v7646
        %7660 = vmatprep.subr.bf16.mxu0 0
        %7661 = vmatpush1.bf16.msra.mxu0 %v7645
        %7662 = vmatprep.subr.bf16.mxu0 0
        %7663 = vmatpush1.bf16.msra.mxu0 %v7644
        %7664 = vmatprep.subr.bf16.mxu0 0
        %7665 = vmatpush1.bf16.msra.mxu0 %v7643
        %7666 = vmatprep.subr.bf16.mxu0 0
        %7667 = vmatpush1.bf16.msra.mxu0 %v7642
        %7668 = vmatprep.subr.bf16.mxu0 0
        %7669 = vmatpush1.bf16.msra.mxu0 %v7641
        %7670 = vmatprep.subr.bf16.mxu0 0
        %7671 = vmatpush1.bf16.msra.mxu0 %v7640
        %7672 = vmatprep.subr.bf16.mxu0 0
        %7673 = vmatpush2.bf16.msra.mxu0 0
        %7674 = vmatprep.subr.bf16.mxu0 0
        %7675 = vmatpush2.bf16.msra.mxu0 0
        %7676 = vmatprep.subr.bf16.mxu0 0
        %7677 = vmatpush2.bf16.msra.mxu0 0
        %7678 = vmatprep.subr.bf16.mxu0 0
        %7679 = vmatpush2.bf16.msra.mxu0 0
        %7680 = vmatprep.subr.bf16.mxu0 0
        %7681 = vmatpush2.bf16.msra.mxu0 0
        %7682 = vmatprep.subr.bf16.mxu0 0
        %7683 = vmatpush2.bf16.msra.mxu0 0
        %7684 = vmatprep.subr.bf16.mxu0 0
        %7685 = vmatpush2.bf16.msra.mxu0 0
        %7686 = vmatprep.subr.bf16.mxu0 0
        %7687 = vmatpush2.bf16.msra.mxu0 0
        %7688 = vmatprep.mubr.bf16.mxu0 0
        %7689 = vmatmul.mubr.bf16.gmra.mxu0 %v7423
        %v7690 = vpop.f32.mrf.mxu0
        %v7691 = vadd.f32 %v7546, %v7690
        %v7692 = vpop.f32.mrf.mxu0
        %v7693 = vpop.f32.mrf.mxu0
        %v7694 = vadd.f32 %v7549, %v7693
        %v7695 = vpop.f32.mrf.mxu0
        %7696 = vmatprep.mubr.bf16.mxu0 0
        %7697 = vmatmul.mubr.bf16.gmra.mxu0 %v7424
        %v7698 = vpop.f32.mrf.mxu0
        %v7699 = vadd.f32 %v7554, %v7698
        %v7700 = vpop.f32.mrf.mxu0
        %v7701 = vpop.f32.mrf.mxu0
        %v7702 = vadd.f32 %v7557, %v7701
        %v7703 = vpop.f32.mrf.mxu0
        %7704 = vmatprep.mubr.bf16.mxu0 0
        %7705 = vmatmul.mubr.bf16.gmra.mxu0 %v7425
        %v7706 = vpop.f32.mrf.mxu0
        %v7707 = vadd.f32 %v7562, %v7706
        %v7708 = vpop.f32.mrf.mxu0
        %v7709 = vpop.f32.mrf.mxu0
        %v7710 = vadd.f32 %v7565, %v7709
        %v7711 = vpop.f32.mrf.mxu0
        %7712 = vmatprep.mubr.bf16.mxu0 0
        %7713 = vmatmul.mubr.bf16.gmra.mxu0 %v7426
        %v7714 = vpop.f32.mrf.mxu0
        %v7715 = vadd.f32 %v7570, %v7714
        %v7716 = vpop.f32.mrf.mxu0
        %v7717 = vpop.f32.mrf.mxu0
        %v7718 = vadd.f32 %v7573, %v7717
        %v7719 = vpop.f32.mrf.mxu0
        %7720 = vmatprep.mubr.bf16.mxu0 0
        %7721 = vmatmul.mubr.bf16.gmra.mxu0 %v7427
        %v7722 = vpop.f32.mrf.mxu0
        %v7723 = vadd.f32 %v7578, %v7722
        %v7724 = vpop.f32.mrf.mxu0
        %v7725 = vpop.f32.mrf.mxu0
        %v7726 = vadd.f32 %v7581, %v7725
        %v7727 = vpop.f32.mrf.mxu0
        %7728 = vmatprep.mubr.bf16.mxu0 0
        %7729 = vmatmul.mubr.bf16.gmra.mxu0 %v7428
        %v7730 = vpop.f32.mrf.mxu0
        %v7731 = vadd.f32 %v7586, %v7730
        %v7732 = vpop.f32.mrf.mxu0
        %v7733 = vpop.f32.mrf.mxu0
        %v7734 = vadd.f32 %v7589, %v7733
        %v7735 = vpop.f32.mrf.mxu0
        %7736 = vmatprep.mubr.bf16.mxu0 0
        %7737 = vmatmul.mubr.bf16.gmra.mxu0 %v7429
        %v7738 = vpop.f32.mrf.mxu0
        %v7739 = vadd.f32 %v7594, %v7738
        %v7740 = vpop.f32.mrf.mxu0
        %v7741 = vpop.f32.mrf.mxu0
        %v7742 = vadd.f32 %v7597, %v7741
        %v7743 = vpop.f32.mrf.mxu0
        %7744 = vmatprep.mubr.bf16.mxu0 0
        %7745 = vmatmul.mubr.bf16.gmra.mxu0 %v7430
        %v7746 = vpop.f32.mrf.mxu0
        %v7747 = vadd.f32 %v7602, %v7746
        %v7748 = vpop.f32.mrf.mxu0
        %v7749 = vpop.f32.mrf.mxu0
        %v7750 = vadd.f32 %v7605, %v7749
        %v7751 = vpop.f32.mrf.mxu0
        %7752 = vdwg.mxu0
        %v7753 = vld [vmem:[%s21] sm:$0x1]
        %v7755 = vlaneseq
        %v7756 = vshrl.u32 %v7755, 7
        %v7757 = vsub.s32 0, %v7756
        %v7758 = vrot.slane %v7753, %v7757
        %v7760 = vmul.f32 %v7691, %v7758
        %v7761 = vmul.f32 %v7694, %v7758
        %v7762 = vmul.f32 %v7699, %v7758
        %v7763 = vmul.f32 %v7702, %v7758
        %v7764 = vmul.f32 %v7707, %v7758
        %v7765 = vmul.f32 %v7710, %v7758
        %v7766 = vmul.f32 %v7715, %v7758
        %v7767 = vmul.f32 %v7718, %v7758
        %v7768 = vmul.f32 %v7723, %v7758
        %v7769 = vmul.f32 %v7726, %v7758
        %v7770 = vmul.f32 %v7731, %v7758
        %v7771 = vmul.f32 %v7734, %v7758
        %v7772 = vmul.f32 %v7739, %v7758
        %v7773 = vmul.f32 %v7742, %v7758
        %v7774 = vmul.f32 %v7747, %v7758
        %v7775 = vmul.f32 %v7750, %v7758
        %v7776 = vld [vmem:[%s22] sm:$0x1]
        %v7778 = vlaneseq
        %v7779 = vshrl.u32 %v7778, 7
        %v7780 = vsub.s32 0, %v7779
        %v7781 = vrot.slane %v7776, %v7780
        %v7783 = vadd.f32 %v7760, %v7781
        %v7784 = vadd.f32 %v7761, %v7781
        %v7785 = vadd.f32 %v7762, %v7781
        %v7786 = vadd.f32 %v7763, %v7781
        %v7787 = vadd.f32 %v7764, %v7781
        %v7788 = vadd.f32 %v7765, %v7781
        %v7789 = vadd.f32 %v7766, %v7781
        %v7790 = vadd.f32 %v7767, %v7781
        %v7791 = vadd.f32 %v7768, %v7781
        %v7792 = vadd.f32 %v7769, %v7781
        %v7793 = vadd.f32 %v7770, %v7781
        %v7794 = vadd.f32 %v7771, %v7781
        %v7795 = vadd.f32 %v7772, %v7781
        %v7796 = vadd.f32 %v7773, %v7781
        %v7797 = vadd.f32 %v7774, %v7781
        %v7798 = vadd.f32 %v7775, %v7781
        %v7799 = vxor.u32 %v7783, 2147483648
        %v7800 = vxor.u32 %v7784, 2147483648
        %v7801 = vxor.u32 %v7785, 2147483648
        %v7802 = vxor.u32 %v7786, 2147483648
        %v7803 = vxor.u32 %v7787, 2147483648
        %v7804 = vxor.u32 %v7788, 2147483648
        %v7805 = vxor.u32 %v7789, 2147483648
        %v7806 = vxor.u32 %v7790, 2147483648
        %v7807 = vxor.u32 %v7791, 2147483648
        %v7808 = vxor.u32 %v7792, 2147483648
        %v7809 = vxor.u32 %v7793, 2147483648
        %v7810 = vxor.u32 %v7794, 2147483648
        %v7811 = vxor.u32 %v7795, 2147483648
        %v7812 = vxor.u32 %v7796, 2147483648
        %v7813 = vxor.u32 %v7797, 2147483648
        %v7814 = vxor.u32 %v7798, 2147483648
        %v7815 = vmul.f32 %v7799, 1.442695
        %v7816 = vpow.pop %v7815
        %v7817 = vmul.f32 %v7800, 1.442695
        %v7818 = vpow.pop %v7817
        %v7819 = vmul.f32 %v7801, 1.442695
        %v7820 = vpow.pop %v7819
        %v7821 = vmul.f32 %v7802, 1.442695
        %v7822 = vpow.pop %v7821
        %v7823 = vmul.f32 %v7803, 1.442695
        %v7824 = vpow.pop %v7823
        %v7825 = vmul.f32 %v7804, 1.442695
        %v7826 = vpow.pop %v7825
        %v7827 = vmul.f32 %v7805, 1.442695
        %v7828 = vpow.pop %v7827
        %v7829 = vmul.f32 %v7806, 1.442695
        %v7830 = vpow.pop %v7829
        %v7831 = vmul.f32 %v7807, 1.442695
        %v7832 = vpow.pop %v7831
        %v7833 = vmul.f32 %v7808, 1.442695
        %v7834 = vpow.pop %v7833
        %v7835 = vmul.f32 %v7809, 1.442695
        %v7836 = vpow.pop %v7835
        %v7837 = vmul.f32 %v7810, 1.442695
        %v7838 = vpow.pop %v7837
        %v7839 = vmul.f32 %v7811, 1.442695
        %v7840 = vpow.pop %v7839
        %v7841 = vmul.f32 %v7812, 1.442695
        %v7842 = vpow.pop %v7841
        %v7843 = vmul.f32 %v7813, 1.442695
        %v7844 = vpow.pop %v7843
        %v7845 = vmul.f32 %v7814, 1.442695
        %v7846 = vpow.pop %v7845
        %v7847 = vadd.f32 %v7816, 1.0
        %v7848 = vadd.f32 %v7818, 1.0
        %v7849 = vadd.f32 %v7820, 1.0
        %v7850 = vadd.f32 %v7822, 1.0
        %v7851 = vadd.f32 %v7824, 1.0
        %v7852 = vadd.f32 %v7826, 1.0
        %v7853 = vadd.f32 %v7828, 1.0
        %v7854 = vadd.f32 %v7830, 1.0
        %v7855 = vadd.f32 %v7832, 1.0
        %v7856 = vadd.f32 %v7834, 1.0
        %v7857 = vadd.f32 %v7836, 1.0
        %v7858 = vadd.f32 %v7838, 1.0
        %v7859 = vadd.f32 %v7840, 1.0
        %v7860 = vadd.f32 %v7842, 1.0
        %v7861 = vadd.f32 %v7844, 1.0
        %v7862 = vadd.f32 %v7846, 1.0
        %v7863 = vrcp.pop %v7847
        %v7864 = vmul.f32 1.0, %v7863
        %v7865 = vrcp.pop %v7848
        %v7866 = vmul.f32 1.0, %v7865
        %v7867 = vrcp.pop %v7849
        %v7868 = vmul.f32 1.0, %v7867
        %v7869 = vrcp.pop %v7850
        %v7870 = vmul.f32 1.0, %v7869
        %v7871 = vrcp.pop %v7851
        %v7872 = vmul.f32 1.0, %v7871
        %v7873 = vrcp.pop %v7852
        %v7874 = vmul.f32 1.0, %v7873
        %v7875 = vrcp.pop %v7853
        %v7876 = vmul.f32 1.0, %v7875
        %v7877 = vrcp.pop %v7854
        %v7878 = vmul.f32 1.0, %v7877
        %v7879 = vrcp.pop %v7855
        %v7880 = vmul.f32 1.0, %v7879
        %v7881 = vrcp.pop %v7856
        %v7882 = vmul.f32 1.0, %v7881
        %v7883 = vrcp.pop %v7857
        %v7884 = vmul.f32 1.0, %v7883
        %v7885 = vrcp.pop %v7858
        %v7886 = vmul.f32 1.0, %v7885
        %v7887 = vrcp.pop %v7859
        %v7888 = vmul.f32 1.0, %v7887
        %v7889 = vrcp.pop %v7860
        %v7890 = vmul.f32 1.0, %v7889
        %v7891 = vrcp.pop %v7861
        %v7892 = vmul.f32 1.0, %v7891
        %v7893 = vrcp.pop %v7862
        %v7894 = vmul.f32 1.0, %v7893
        %v7895 = vmul.f32 %v7783, %v7864
        %v7896 = vmul.f32 %v7784, %v7866
        %v7897 = vmul.f32 %v7785, %v7868
        %v7898 = vmul.f32 %v7786, %v7870
        %v7899 = vmul.f32 %v7787, %v7872
        %v7900 = vmul.f32 %v7788, %v7874
        %v7901 = vmul.f32 %v7789, %v7876
        %v7902 = vmul.f32 %v7790, %v7878
        %v7903 = vmul.f32 %v7791, %v7880
        %v7904 = vmul.f32 %v7792, %v7882
        %v7905 = vmul.f32 %v7793, %v7884
        %v7906 = vmul.f32 %v7794, %v7886
        %v7907 = vmul.f32 %v7795, %v7888
        %v7908 = vmul.f32 %v7796, %v7890
        %v7909 = vmul.f32 %v7797, %v7892
        %v7910 = vmul.f32 %v7798, %v7894
        %v7911 = vpack.c.bf16 %v7896, %v7895
        %v7912 = vpack.c.bf16 %v7898, %v7897
        %v7913 = vpack.c.bf16 %v7900, %v7899
        %v7914 = vpack.c.bf16 %v7902, %v7901
        %v7915 = vpack.c.bf16 %v7904, %v7903
        %v7916 = vpack.c.bf16 %v7906, %v7905
        %v7917 = vpack.c.bf16 %v7908, %v7907
        %v7918 = vpack.c.bf16 %v7910, %v7909
        %v7927 = vunpack.c.l.b16 %v7911
        %v7928 = vunpack.c.h.b16 %v7911
        %v7929 = vunpack.c.l.b16 %v7912
        %v7930 = vunpack.c.h.b16 %v7912
        %v7931 = vunpack.c.l.b16 %v7913
        %v7932 = vunpack.c.h.b16 %v7913
        %v7933 = vunpack.c.l.b16 %v7914
        %v7934 = vunpack.c.h.b16 %v7914
        %v7935 = vunpack.c.l.b16 %v7915
        %v7936 = vunpack.c.h.b16 %v7915
        %v7937 = vunpack.c.l.b16 %v7916
        %v7938 = vunpack.c.h.b16 %v7916
        %v7939 = vunpack.c.l.b16 %v7917
        %v7940 = vunpack.c.h.b16 %v7917
        %v7941 = vunpack.c.l.b16 %v7918
        %v7942 = vunpack.c.h.b16 %v7918
        %v7943 = vpack.c.b16 %v7927, %v7927
        %v7944 = vpack.c.b16 %v7928, %v7928
        %v7945 = vpack.c.b16 %v7929, %v7929
        %v7946 = vpack.c.b16 %v7930, %v7930
        %v7947 = vpack.c.b16 %v7931, %v7931
        %v7948 = vpack.c.b16 %v7932, %v7932
        %v7949 = vpack.c.b16 %v7933, %v7933
        %v7950 = vpack.c.b16 %v7934, %v7934
        %v7951 = vpack.c.b16 %v7935, %v7935
        %v7952 = vpack.c.b16 %v7936, %v7936
        %v7953 = vpack.c.b16 %v7937, %v7937
        %v7954 = vpack.c.b16 %v7938, %v7938
        %v7955 = vpack.c.b16 %v7939, %v7939
        %v7956 = vpack.c.b16 %v7940, %v7940
        %v7957 = vpack.c.b16 %v7941, %v7941
        %v7958 = vpack.c.b16 %v7942, %v7942
        %7975 = vst [vmem:[%s826] sm:$0xf] %v7943
        %7976 = vst [vmem:[%s826 + $0x4] sm:$0xf] %v7944
        %7977 = vst [vmem:[%s826 + $0x8] sm:$0xf] %v7945
        %7978 = vst [vmem:[%s826 + $0xc] sm:$0xf] %v7946
        %7979 = vst [vmem:[%s826 + $0x10] sm:$0xf] %v7947
        %7980 = vst [vmem:[%s826 + $0x14] sm:$0xf] %v7948
        %7981 = vst [vmem:[%s826 + $0x18] sm:$0xf] %v7949
        %7982 = vst [vmem:[%s826 + $0x1c] sm:$0xf] %v7950
        %7983 = vst [vmem:[%s826 + $0x20] sm:$0xf] %v7951
        %7984 = vst [vmem:[%s826 + $0x24] sm:$0xf] %v7952
        %7985 = vst [vmem:[%s826 + $0x28] sm:$0xf] %v7953
        %7986 = vst [vmem:[%s826 + $0x2c] sm:$0xf] %v7954
        %7987 = vst [vmem:[%s826 + $0x30] sm:$0xf] %v7955
        %7988 = vst [vmem:[%s826 + $0x34] sm:$0xf] %v7956
        %7989 = vst [vmem:[%s826 + $0x38] sm:$0xf] %v7957
        %7990 = vst [vmem:[%s826 + $0x3c] sm:$0xf] %v7958
        %s7991 = sand.u32 %s579, 1
        %s7992 = scalar_lea.sflag [#allocation5], %s7991
        %s7993 = sand.u32 %s579, 1
        %s7994 = smul.addr %s7993, 64
        %s7995 = scalar_lea.vmem [#allocation4], %s7994
        // Predicated region
        $region121: #{tpu_custom_call.1} parent=111 // pred_check
          %p7996 = pneg %p589
        $region122: #{tpu_custom_call.1} parent=111 // pred_check_branch
          %7998 = sbr.rel (%p7996) target = $region124
        $region123: #{tpu_custom_call.1} parent=111 // pred_region
          %s7999 = smul.u32 8, %s42
          %s8001 = ssub.s32 1024, 1024
          %8002 = vsyncadd %s7992, %s8001
          %s8003 = smul.addr %s7999, 2
          %s8004 = smul.addr %s41, 32
          %s8005 = sadd.s32 %s8003, %s8004
          %s8006 = smul.addr %s8005, 64
          %s8007 = scalar_lea.hbm %s23, %s8006
          %s8008 = sshll.u32 %s7995, 4
          %s8009 = int_to_ptr.vmem [resolvable:$true] %s8008
          %8014 = dma.vmem_to_hbm [thread:$0]  %s8009, 1024, %s8007, %s7992, 64, 64, 4
        $region124: #{tpu_custom_call.1} parent=111 // pred_fallthru
          _
      $region112: #{tpu_custom_call.1} parent=5 // pred_fallthru
        _
      %p8015 = scmp.le.s32.totalorder 2, %s32
      // Predicated region
      $region125: #{tpu_custom_call.1} parent=5 // pred_check
        %p8016 = pneg %p8015
      $region126: #{tpu_custom_call.1} parent=5 // pred_check_branch
        %8018 = sbr.rel (%p8016) target = $region128
      $region127: #{tpu_custom_call.1} parent=5 // pred_region
        %s8019 = ssub.s32 %s32, 2
        // Predicated region
        $region129: #{tpu_custom_call.1} parent=127 // pred_check
          %p8020 = pneg %p595
        $region130: #{tpu_custom_call.1} parent=127 // pred_check_branch
          %8022 = sbr.rel (%p8020) target = $region132
        $region131: #{tpu_custom_call.1} parent=127 // pred_region
          %s8023 = sand.u32 %s580, 1
          %s8024 = scalar_lea.sflag [#allocation5], %s8023
          %s8025 = sand.u32 %s580, 1
          %s8026 = smul.addr %s8025, 64
          %s8027 = scalar_lea.vmem [#allocation4], %s8026
          %8028 = dma.done %s8024, 1024
        $region132: #{tpu_custom_call.1} parent=127 // pred_fallthru
          _
      $region128: #{tpu_custom_call.1} parent=5 // pred_fallthru
        _
    $region6: #{tpu_custom_call.1} parent=1 // loop_footer
      %s36 = sadd.s32 1, %s32
    $region7: #{tpu_custom_call.1} parent=1 // loop_footer_branch
      %31 = sbr.rel target = $region3
    $region8: #{tpu_custom_call.1} parent=1 // loop_exit
      _
    %8029 = vsyncpa [#allocation5], 1
    %s8030 = scalar_lea.sflag [#allocation5], 1
    %8031 = vsyncpa %s8030, 1

</llo_original>
